<compile_context>
chip_gen: v7x
topology: tpu7x:2x2x1
jax: 0.10.0
libtpu: 0.0.40
codegen_flags: <defaults>
</compile_context>

<pallas_src>
import functools

import numpy as np
import jax
import jax.numpy as jnp
from jax import lax
from jax.experimental import pallas as pl
from jax.experimental.pallas import tpu as pltpu


def _round_up(x, m):
    return (x + m - 1) // m * m


def _mxu_depth_ge_256():
    """Fuse the two directions into one K=2*Hp matmul only on 256-deep MXUs."""
    try:
        kind = jax.devices()[0].device_kind.lower()
        return ("v6" in kind) or ("v7" in kind)
    except Exception:  # pragma: no cover - conservative fallback
        return False


# ----------------------------------------------------------------------------
# Gate math for one direction.  Gate columns are 128-aligned:
# r=[0:Hp], z=[Hp:2Hp], n=[2Hp:3Hp].  b_ih (+ b_hh for r/z) is already folded
# into gi; bn_b is the (broadcast) b_hh for the n gate.
# ----------------------------------------------------------------------------
def _gru_gates(gi, gh, h, bn_b, Hp):
    r = jax.nn.sigmoid(gi[:, 0:Hp] + gh[:, 0:Hp])
    z = jax.nn.sigmoid(gi[:, Hp:2 * Hp] + gh[:, Hp:2 * Hp])
    n = jnp.tanh(gi[:, 2 * Hp:3 * Hp] + r * (gh[:, 2 * Hp:3 * Hp] + bn_b))
    return n + z * (h - n)            # == (1-z)*n + z*h


# ----------------------------------------------------------------------------
# Fully fused kernel: all layers + final FC in one pallas_call.
#
# Inputs (all VMEM, per layer 7 tensors):
#   x        : (T*Bp, D0)         time-major, batch padded to Bp
#   wih_f/b  : (Din, 3*Hp)        Din = D0 (layer 0) or 2*Hp
#   whh_blk  : (2*Hp, 6*Hp)       block_diag(whh_f, whh_b)
#   bg_f/b   : (1, 3*Hp)          b_ih + b_hh for r/z, b_ih for n
#   bn_f/b   : (1, Hp)            b_hh for n
#   fc_w     : (2*Hp, Op)         fc_b : (1, Op)
# Output:
#   y        : (Bp, Op)
# Scratch:
#   gi_f, gi_b : (T*Bp, 3*Hp)     hoisted input projections (reused per layer)
#   h_fb       : (Bp, 2*Hp)       [h_f | h_b]
#   bufs       : n_bufs x (T*Bp, 2*Hp)  ping-pong inter-layer activations
# ----------------------------------------------------------------------------
def _bigru_fused_kernel(*refs, T, Bp, Hp, num_layers, unroll, fuse_dirs):
    idx = 0
    x_ref = refs[idx]; idx += 1
    layer_refs = []
    for _ in range(num_layers):
        layer_refs.append(refs[idx:idx + 7]); idx += 7
    fcw_ref = refs[idx]; idx += 1
    fcb_ref = refs[idx]; idx += 1
    y_ref = refs[idx]; idx += 1
    gi_f = refs[idx]; idx += 1
    gi_b = refs[idx]; idx += 1
    h_fb = refs[idx]; idx += 1
    bufs = refs[idx:]

    # -------------------- middle layer: writes the full sequence ------------
    def run_mid_layer(src_ref, lw, dst_ref):
        wih_f, wih_b, whh_blk, bg_f, bg_b, bn_f, bn_b = lw
        x2 = src_ref[...]
        # Hoisted input projections: one big MXU matmul per direction.
        gi_f[...] = jnp.dot(x2, wih_f[...],
                            preferred_element_type=jnp.float32) + bg_f[...]
        gi_b[...] = jnp.dot(x2, wih_b[...],
                            preferred_element_type=jnp.float32) + bg_b[...]
        h_fb[...] = jnp.zeros_like(h_fb)
        # Hoist bias broadcasts (JAX does not CSE broadcast_in_dim in loops).
        bnf_b = jnp.broadcast_to(bn_f[...], (Bp, Hp))
        bnb_b = jnp.broadcast_to(bn_b[...], (Bp, Hp))
        whhf_view = whh_blk.at[0:Hp, 0:3 * Hp]
        whhb_view = whh_blk.at[Hp:2 * Hp, 3 * Hp:6 * Hp]

        def step(i, carry):
            rowf = pl.multiple_of(i * Bp, Bp)               # fwd time  i
            rowb = pl.multiple_of((T - 1 - i) * Bp, Bp)     # bwd time  T-1-i
            h_f = h_fb[:, 0:Hp]
            h_b = h_fb[:, Hp:2 * Hp]
            if fuse_dirs:
                # One K=2*Hp block-diagonal matmul fills the 256-deep MXU.
                gh = jnp.dot(h_fb[...], whh_blk[...],
                             preferred_element_type=jnp.float32)
                ghf = gh[:, 0:3 * Hp]
                ghb = gh[:, 3 * Hp:6 * Hp]
            else:
                # 128-deep MXU (v5e/v4): two K=Hp matmuls, no zero padding.
                ghf = jnp.dot(h_f, whhf_view[...],
                              preferred_element_type=jnp.float32)
                ghb = jnp.dot(h_b, whhb_view[...],
                              preferred_element_type=jnp.float32)
            hf_new = _gru_gates(gi_f[pl.ds(rowf, Bp), :], ghf, h_f, bnf_b, Hp)
            hb_new = _gru_gates(gi_b[pl.ds(rowb, Bp), :], ghb, h_b, bnb_b, Hp)
            h_fb[:, 0:Hp] = hf_new
            h_fb[:, Hp:2 * Hp] = hb_new
            dst_ref[pl.ds(rowf, Bp), 0:Hp] = hf_new
            dst_ref[pl.ds(rowb, Bp), Hp:2 * Hp] = hb_new
            return carry

        lax.fori_loop(0, T, step, 0, unroll=unroll)

    # -------------------- last layer fused with the final Linear ------------
    # Only out[:, -1, :] is consumed downstream:
    #   * forward direction runs the full T-step scan,
    #   * backward direction needs just its first step (time T-1, h0 = 0),
    #   * no full-sequence output is written.
    def run_last_layer(src_ref, lw):
        wih_f, wih_b, whh_blk, bg_f, bg_b, bn_f, bn_b = lw
        x2 = src_ref[...]
        gi_f[...] = jnp.dot(x2, wih_f[...],
                            preferred_element_type=jnp.float32) + bg_f[...]
        h_fb[...] = jnp.zeros_like(h_fb)
        bnf_b = jnp.broadcast_to(bn_f[...], (Bp, Hp))
        whhf_view = whh_blk.at[0:Hp, 0:3 * Hp]

        def step(i, carry):
            row = pl.multiple_of(i * Bp, Bp)
            h_f = h_fb[:, 0:Hp]
            ghf = jnp.dot(h_f, whhf_view[...],
                          preferred_element_type=jnp.float32)
            h_fb[:, 0:Hp] = _gru_gates(gi_f[pl.ds(row, Bp), :], ghf, h_f,
                                       bnf_b, Hp)
            return carry

        lax.fori_loop(0, T, step, 0, unroll=unroll)

        # Backward direction: single step at time T-1 with h0 = 0 (gh == 0).
        x_last = x2[(T - 1) * Bp:, :]                       # (Bp, Din)
        gib = jnp.dot(x_last, wih_b[...],
                      preferred_element_type=jnp.float32) + bg_b[...]
        r = jax.nn.sigmoid(gib[:, 0:Hp])
        z = jax.nn.sigmoid(gib[:, Hp:2 * Hp])
        n = jnp.tanh(gib[:, 2 * Hp:3 * Hp] + r * bn_b[...])
        hb_last = n - z * n                                 # (1-z)*n, h0 = 0

        # Fused FC: y = [h_f_final, hb_last] @ fc_w_padded + fc_b (no concat).
        h_f_final = h_fb[:, 0:Hp]
        y = (jnp.dot(h_f_final, fcw_ref[0:Hp, :],
                     preferred_element_type=jnp.float32)
             + jnp.dot(hb_last, fcw_ref[Hp:2 * Hp, :],
                       preferred_element_type=jnp.float32)
             + fcb_ref[...])
        y_ref[...] = y.astype(y_ref.dtype)

    # -------------------- static layer loop (traced once) -------------------
    src = x_ref
    for li in range(num_layers):
        lw = layer_refs[li]
        if li == num_layers - 1:
            run_last_layer(src, lw)
        else:
            dst = bufs[li % len(bufs)]
            run_mid_layer(src, lw, dst)
            src = dst


# ----------------------------------------------------------------------------
# One-time parameter preparation: transpose, pad H->Hp (128-aligned gate
# blocks), build the block-diagonal recurrent weight, fold biases, pad FC.
# Zero-padding of whh rows/cols, bg and bn keeps padded hidden lanes exactly
# zero through the recurrence (r=z=0.5, n=0 => h stays 0) -- do not change.
# ----------------------------------------------------------------------------
def _pad_gate_cols(w_t, H, Hp):                 # (D, 3H) -> (D, 3Hp)
    D = w_t.shape[0]
    out = jnp.zeros((D, 3 * Hp), jnp.float32)
    for g in range(3):
        out = out.at[:, g * Hp:g * Hp + H].set(w_t[:, g * H:(g + 1) * H])
    return out


def _pad_rows_blocks(w, real_in, n_blocks, Hp):  # (n_blocks*real_in, C) -> (n_blocks*Hp, C)
    C = w.shape[1]
    out = jnp.zeros((n_blocks * Hp, C), jnp.float32)
    for d in range(n_blocks):
        out = out.at[d * Hp:d * Hp + real_in, :].set(
            w[d * real_in:(d + 1) * real_in, :])
    return out


def prepare_params(gru_params, fc_w, fc_b, hidden_size):
    H = hidden_size
    Hp = _round_up(H, 128)
    O = fc_w.shape[0]
    Op = _round_up(O, 128)

    layers = []
    for li, dirs in enumerate(gru_params):
        entry = {}
        whh_pad = {}
        for tag, (w_ih, w_hh, b_ih, b_hh) in zip(("f", "b"), dirs):
            wih_t = _pad_gate_cols(w_ih.T.astype(jnp.float32), H, Hp)
            if li > 0:                                       # Din = 2H -> 2Hp
                wih_t = _pad_rows_blocks(wih_t, H, 2, Hp)
            whh_t = _pad_gate_cols(w_hh.T.astype(jnp.float32), H, Hp)
            whh_t = _pad_rows_blocks(whh_t, H, 1, Hp)        # (Hp, 3Hp)
            whh_pad[tag] = whh_t
            bsum = (b_ih + b_hh).astype(jnp.float32)
            bg = jnp.zeros((1, 3 * Hp), jnp.float32)
            bg = bg.at[0, 0 * Hp:0 * Hp + H].set(bsum[0:H])            # r
            bg = bg.at[0, 1 * Hp:1 * Hp + H].set(bsum[H:2 * H])        # z
            bg = bg.at[0, 2 * Hp:2 * Hp + H].set(
                b_ih[2 * H:3 * H].astype(jnp.float32))                 # n (b_ih)
            bn = jnp.zeros((1, Hp), jnp.float32)
            bn = bn.at[0, :H].set(b_hh[2 * H:3 * H].astype(jnp.float32))
            entry["wih_" + tag] = wih_t
            entry["bg_" + tag] = bg
            entry["bn_" + tag] = bn
        # Block-diagonal recurrent weight: [h_f | h_b] @ blk -> [gh_f | gh_b].
        whh_blk = jnp.zeros((2 * Hp, 6 * Hp), jnp.float32)
        whh_blk = whh_blk.at[0:Hp, 0:3 * Hp].set(whh_pad["f"])
        whh_blk = whh_blk.at[Hp:2 * Hp, 3 * Hp:6 * Hp].set(whh_pad["b"])
        entry["whh_blk"] = whh_blk
        layers.append(entry)

    fcw = _pad_rows_blocks(fc_w.T.astype(jnp.float32), H, 2, Hp)  # (2Hp, O)
    fcw = jnp.pad(fcw, ((0, 0), (0, Op - O)))                     # (2Hp, Op)
    fcb = jnp.zeros((1, Op), jnp.float32).at[0, :O].set(fc_b.astype(jnp.float32))

    return {"layers": layers, "fc_w": fcw, "fc_b": fcb,
            "H": H, "Hp": Hp, "O": O, "Op": Op}


# ----------------------------------------------------------------------------
# Forward pass: single fused pallas_call.
# ----------------------------------------------------------------------------
def bigru_forward(x, prep):
    """x: (B, T, input_size) (batch_first, like the PyTorch module)."""
    B, T, D0 = x.shape
    Bp = _round_up(max(B, 8), 8)
    Hp, Op, O = prep["Hp"], prep["Op"], prep["O"]
    num_layers = len(prep["layers"])
    unroll = True if T <= 8 else 4              # serial recurrence: cap unroll
    fuse_dirs = _mxu_depth_ge_256()

    xt = jnp.transpose(x.astype(jnp.float32), (1, 0, 2))        # (T, B, D0)
    xt = jnp.pad(xt, ((0, 0), (0, Bp - B), (0, 0)))             # (T, Bp, D0)
    x2 = xt.reshape(T * Bp, D0)                                 # time-major rows

    inputs = [x2]
    for lp in prep["layers"]:
        inputs += [lp["wih_f"], lp["wih_b"], lp["whh_blk"],
                   lp["bg_f"], lp["bg_b"], lp["bn_f"], lp["bn_b"]]
    inputs += [prep["fc_w"], prep["fc_b"]]

    n_bufs = 0 if num_layers == 1 else (1 if num_layers == 2 else 2)
    scratch_shapes = [pltpu.VMEM((T * Bp, 3 * Hp), jnp.float32),   # gi_f
                      pltpu.VMEM((T * Bp, 3 * Hp), jnp.float32),   # gi_b
                      pltpu.VMEM((Bp, 2 * Hp), jnp.float32)]       # h_fb
    scratch_shapes += [pltpu.VMEM((T * Bp, 2 * Hp), jnp.float32)
                       for _ in range(n_bufs)]

    # Explicit VMEM budget (inputs + output + scratch) with ~30% headroom.
    input_bytes = sum(int(np.prod(a.shape)) * 4 for a in inputs)
    scratch_bytes = 4 * (2 * T * Bp * 3 * Hp + Bp * 2 * Hp
                         + n_bufs * T * Bp * 2 * Hp)
    out_bytes = 4 * Bp * Op
    vmem_limit = int((input_bytes + scratch_bytes + out_bytes) * 1.3) + (2 << 20)
    vmem_limit = min(vmem_limit, 64 * 1024 * 1024)

    vmem = pl.BlockSpec(memory_space=pltpu.MemorySpace.VMEM)
    kernel = functools.partial(_bigru_fused_kernel, T=T, Bp=Bp, Hp=Hp,
                               num_layers=num_layers, unroll=unroll,
                               fuse_dirs=fuse_dirs)
    y = pl.pallas_call(
        kernel,
        out_shape=jax.ShapeDtypeStruct((Bp, Op), jnp.float32),
        in_specs=[vmem] * len(inputs),
        out_specs=vmem,
        scratch_shapes=scratch_shapes,
        compiler_params=pltpu.CompilerParams(vmem_limit_bytes=vmem_limit),
    )(*inputs)
    return y[:B, :O]


# ----------------------------------------------------------------------------
# Pure-JAX reference (for correctness check only)
# ----------------------------------------------------------------------------
def bigru_reference(x, gru_params, fc_w, fc_b):
    def cell(h, x_t, w_ih, w_hh, b_ih, b_hh, H):
        gi = x_t @ w_ih.T + b_ih
        gh = h @ w_hh.T + b_hh
        r = jax.nn.sigmoid(gi[:, :H] + gh[:, :H])
        z = jax.nn.sigmoid(gi[:, H:2 * H] + gh[:, H:2 * H])
        n = jnp.tanh(gi[:, 2 * H:] + r * gh[:, 2 * H:])
        return (1.0 - z) * n + z * h

    B, T, _ = x.shape
    seq = x.astype(jnp.float32)
    for layer_params in gru_params:
        H = layer_params[0][1].shape[1]
        out_dirs = []
        for d, (w_ih, w_hh, b_ih, b_hh) in enumerate(layer_params):
            h = jnp.zeros((B, H), jnp.float32)
            order = range(T - 1, -1, -1) if d == 1 else range(T)
            outs = [None] * T
            for t in order:
                h = cell(h, seq[:, t, :], w_ih, w_hh, b_ih, b_hh, H)
                outs[t] = h
            out_dirs.append(jnp.stack(outs, axis=1))
        seq = jnp.concatenate(out_dirs, axis=-1)
    return seq[:, -1, :] @ fc_w.T + fc_b


# ----------------------------------------------------------------------------
# Deterministic parameter init (synthetic; matches nn.GRU/nn.Linear shapes)
# ----------------------------------------------------------------------------
def init_params(key, input_size, hidden_size, num_layers, output_size):
    k = 1.0 / np.sqrt(hidden_size)
    keys = jax.random.split(key, num_layers * 2 * 4 + 2)
    idx = 0
    gru_params = []
    for layer in range(num_layers):
        layer_in = input_size if layer == 0 else 2 * hidden_size
        dirs = []
        for _ in range(2):  # forward, backward
            w_ih = jax.random.uniform(keys[idx], (3 * hidden_size, layer_in),
                                      minval=-k, maxval=k); idx += 1
            w_hh = jax.random.uniform(keys[idx], (3 * hidden_size, hidden_size),
                                      minval=-k, maxval=k); idx += 1
            b_ih = jax.random.uniform(keys[idx], (3 * hidden_size,),
                                      minval=-k, maxval=k); idx += 1
            b_hh = jax.random.uniform(keys[idx], (3 * hidden_size,),
                                      minval=-k, maxval=k); idx += 1
            dirs.append((w_ih, w_hh, b_ih, b_hh))
        gru_params.append(dirs)
    fc_w = jax.random.uniform(keys[idx], (output_size, 2 * hidden_size),
                              minval=-k, maxval=k); idx += 1
    fc_b = jax.random.uniform(keys[idx], (output_size,), minval=-k, maxval=k)
    return gru_params, fc_w, fc_b


# ----------------------------------------------------------------------------
if __name__ == "__main__":
    INPUT_SIZE = 16
    HIDDEN_SIZE = 32
    NUM_LAYERS = 2
    OUTPUT_SIZE = 8
    BATCH = 2
    SEQ = 8

    root = jax.random.PRNGKey(0)
    k_x, k_p = jax.random.split(root)
    x = jax.random.normal(k_x, (BATCH, SEQ, INPUT_SIZE), dtype=jnp.float32)
    gru_params, fc_w, fc_b = init_params(
        k_p, INPUT_SIZE, HIDDEN_SIZE, NUM_LAYERS, OUTPUT_SIZE)

    prep = prepare_params(gru_params, fc_w, fc_b, HIDDEN_SIZE)  # one-time prep

    out = bigru_forward(x, prep)
    out = jax.block_until_ready(out)
    assert out.shape == (BATCH, OUTPUT_SIZE)

    ref = jax.block_until_ready(bigru_reference(x, gru_params, fc_w, fc_b))
    np.testing.assert_allclose(np.asarray(out), np.asarray(ref),
                               rtol=2e-3, atol=2e-3)

    print("KERNEL_OK")
</pallas_src>

<mosaic_0001>
module attributes {stable_mosaic.version = 11 : i64} {
  func.func @_bigru_fused_kernel(%arg0: memref<64x16xf32, #tpu.memory_space<vmem>>, %arg1: memref<16x384xf32, #tpu.memory_space<vmem>>, %arg2: memref<16x384xf32, #tpu.memory_space<vmem>>, %arg3: memref<256x768xf32, #tpu.memory_space<vmem>>, %arg4: memref<1x384xf32, #tpu.memory_space<vmem>>, %arg5: memref<1x384xf32, #tpu.memory_space<vmem>>, %arg6: memref<1x128xf32, #tpu.memory_space<vmem>>, %arg7: memref<1x128xf32, #tpu.memory_space<vmem>>, %arg8: memref<256x384xf32, #tpu.memory_space<vmem>>, %arg9: memref<256x384xf32, #tpu.memory_space<vmem>>, %arg10: memref<256x768xf32, #tpu.memory_space<vmem>>, %arg11: memref<1x384xf32, #tpu.memory_space<vmem>>, %arg12: memref<1x384xf32, #tpu.memory_space<vmem>>, %arg13: memref<1x128xf32, #tpu.memory_space<vmem>>, %arg14: memref<1x128xf32, #tpu.memory_space<vmem>>, %arg15: memref<256x128xf32, #tpu.memory_space<vmem>>, %arg16: memref<1x128xf32, #tpu.memory_space<vmem>>, %arg17: memref<8x128xf32, #tpu.memory_space<vmem>>, %arg18: memref<64x384xf32, #tpu.memory_space<vmem>>, %arg19: memref<64x384xf32, #tpu.memory_space<vmem>>, %arg20: memref<8x256xf32, #tpu.memory_space<vmem>>, %arg21: memref<64x256xf32, #tpu.memory_space<vmem>>) attributes {dimension_semantics = [], scalar_prefetch = 0 : i64, scratch_operands = 4 : i64, tpu.core_type = #tpu.core_type<tc>} {
    %c0 = arith.constant 0 : index
    %c0_0 = arith.constant 0 : index
    %0 = vector.load %arg0[%c0, %c0_0] : memref<64x16xf32, #tpu.memory_space<vmem>>, vector<64x16xf32>
    %c0_1 = arith.constant 0 : index
    %c0_2 = arith.constant 0 : index
    %1 = vector.load %arg1[%c0_1, %c0_2] : memref<16x384xf32, #tpu.memory_space<vmem>>, vector<16x384xf32>
    %cst = arith.constant dense<0.000000e+00> : vector<64x384xf32>
    %2 = tpu.matmul %0, %1, %cst {dimension_numbers = #tpu.dot_dimension_numbers<[1], [0], [0], [1], [0, 0, 1, 1], [], []>} : vector<64x16xf32>, vector<16x384xf32>, vector<64x384xf32> -> vector<64x384xf32>
    %c0_3 = arith.constant 0 : index
    %c0_4 = arith.constant 0 : index
    %3 = vector.load %arg4[%c0_3, %c0_4] : memref<1x384xf32, #tpu.memory_space<vmem>>, vector<1x384xf32>
    %4 = vector.broadcast %3 : vector<1x384xf32> to vector<64x384xf32>
    %5 = arith.addf %2, %4 : vector<64x384xf32>
    %c0_5 = arith.constant 0 : index
    %c0_6 = arith.constant 0 : index
    %6 = vector.load %arg18[%c0_5, %c0_6] : memref<64x384xf32, #tpu.memory_space<vmem>>, vector<64x384xf32>
    tpu.vector_store %arg18[%c0_5, %c0_6], %5 {strides = array<i32>} : memref<64x384xf32, #tpu.memory_space<vmem>>, vector<64x384xf32>,
    %c0_7 = arith.constant 0 : index
    %c0_8 = arith.constant 0 : index
    %7 = vector.load %arg2[%c0_7, %c0_8] : memref<16x384xf32, #tpu.memory_space<vmem>>, vector<16x384xf32>
    %cst_9 = arith.constant dense<0.000000e+00> : vector<64x384xf32>
    %8 = tpu.matmul %0, %7, %cst_9 {dimension_numbers = #tpu.dot_dimension_numbers<[1], [0], [0], [1], [0, 0, 1, 1], [], []>} : vector<64x16xf32>, vector<16x384xf32>, vector<64x384xf32> -> vector<64x384xf32>
    %c0_10 = arith.constant 0 : index
    %c0_11 = arith.constant 0 : index
    %9 = vector.load %arg5[%c0_10, %c0_11] : memref<1x384xf32, #tpu.memory_space<vmem>>, vector<1x384xf32>
    %10 = vector.broadcast %9 : vector<1x384xf32> to vector<64x384xf32>
    %11 = arith.addf %8, %10 : vector<64x384xf32>
    %c0_12 = arith.constant 0 : index
    %c0_13 = arith.constant 0 : index
    %12 = vector.load %arg19[%c0_12, %c0_13] : memref<64x384xf32, #tpu.memory_space<vmem>>, vector<64x384xf32>
    tpu.vector_store %arg19[%c0_12, %c0_13], %11 {strides = array<i32>} : memref<64x384xf32, #tpu.memory_space<vmem>>, vector<64x384xf32>,
    %cst_14 = arith.constant 0.000000e+00 : f32
    %13 = vector.broadcast %cst_14 : f32 to vector<8x256xf32>
    %c0_15 = arith.constant 0 : index
    %c0_16 = arith.constant 0 : index
    %14 = vector.load %arg20[%c0_15, %c0_16] : memref<8x256xf32, #tpu.memory_space<vmem>>, vector<8x256xf32>
    tpu.vector_store %arg20[%c0_15, %c0_16], %13 {strides = array<i32>} : memref<8x256xf32, #tpu.memory_space<vmem>>, vector<8x256xf32>,
    %c0_17 = arith.constant 0 : index
    %c0_18 = arith.constant 0 : index
    %15 = vector.load %arg6[%c0_17, %c0_18] : memref<1x128xf32, #tpu.memory_space<vmem>>, vector<1x128xf32>
    %16 = vector.shape_cast %15 : vector<1x128xf32> to vector<1x128xf32>
    %17 = vector.broadcast %16 : vector<1x128xf32> to vector<8x128xf32>
    %c0_19 = arith.constant 0 : index
    %c0_20 = arith.constant 0 : index
    %18 = vector.load %arg7[%c0_19, %c0_20] : memref<1x128xf32, #tpu.memory_space<vmem>>, vector<1x128xf32>
    %19 = vector.shape_cast %18 : vector<1x128xf32> to vector<1x128xf32>
    %20 = vector.broadcast %19 : vector<1x128xf32> to vector<8x128xf32>
    %c0_i32 = arith.constant 0 : i32
    %c8_i32 = arith.constant 8 : i32
    %21 = arith.muli %c0_i32, %c8_i32 : i32
    %22 = tpu.assume_multiple %21, 8 : i32
    %c7_i32 = arith.constant 7 : i32
    %23 = arith.subi %c7_i32, %c0_i32 : i32
    %c8_i32_21 = arith.constant 8 : i32
    %24 = arith.muli %23, %c8_i32_21 : i32
    %25 = tpu.assume_multiple %24, 8 : i32
    %c0_22 = arith.constant 0 : index
    %c0_23 = arith.constant 0 : index
    %26 = vector.load %arg20[%c0_22, %c0_23] : memref<8x256xf32, #tpu.memory_space<vmem>>, vector<8x128xf32>
    %c0_24 = arith.constant 0 : index
    %c128 = arith.constant 128 : index
    %27 = vector.load %arg20[%c0_24, %c128] : memref<8x256xf32, #tpu.memory_space<vmem>>, vector<8x128xf32>
    %c0_25 = arith.constant 0 : index
    %c0_26 = arith.constant 0 : index
    %28 = vector.load %arg3[%c0_25, %c0_26] : memref<256x768xf32, #tpu.memory_space<vmem>>, vector<128x384xf32>
    %cst_27 = arith.constant dense<0.000000e+00> : vector<8x384xf32>
    %29 = tpu.matmul %26, %28, %cst_27 {dimension_numbers = #tpu.dot_dimension_numbers<[1], [0], [0], [1], [0, 0, 1, 1], [], []>} : vector<8x128xf32>, vector<128x384xf32>, vector<8x384xf32> -> vector<8x384xf32>
    %c128_28 = arith.constant 128 : index
    %c384 = arith.constant 384 : index
    %30 = vector.load %arg3[%c128_28, %c384] : memref<256x768xf32, #tpu.memory_space<vmem>>, vector<128x384xf32>
    %cst_29 = arith.constant dense<0.000000e+00> : vector<8x384xf32>
    %31 = tpu.matmul %27, %30, %cst_29 {dimension_numbers = #tpu.dot_dimension_numbers<[1], [0], [0], [1], [0, 0, 1, 1], [], []>} : vector<8x128xf32>, vector<128x384xf32>, vector<8x384xf32> -> vector<8x384xf32>
    %32 = arith.index_cast %22 : i32 to index
    %c0_30 = arith.constant 0 : index
    %33 = vector.load %arg18[%32, %c0_30] : memref<64x384xf32, #tpu.memory_space<vmem>>, vector<8x384xf32>
    %34 = vector.extract_strided_slice %33 {offsets = [0, 0], sizes = [8, 128], strides = [1, 1]} : vector<8x384xf32> to vector<8x128xf32>
    %35 = vector.extract_strided_slice %29 {offsets = [0, 0], sizes = [8, 128], strides = [1, 1]} : vector<8x384xf32> to vector<8x128xf32>
    %36 = arith.addf %34, %35 : vector<8x128xf32>
    %37 = arith.negf %36 : vector<8x128xf32>
    %38 = math.exp %37 : vector<8x128xf32>
    %cst_31 = arith.constant 1.000000e+00 : f32
    %39 = vector.broadcast %cst_31 : f32 to vector<8x128xf32>
    %40 = arith.addf %39, %38 : vector<8x128xf32>
    %41 = arith.divf %39, %40 : vector<8x128xf32>
    %42 = vector.extract_strided_slice %33 {offsets = [0, 128], sizes = [8, 128], strides = [1, 1]} : vector<8x384xf32> to vector<8x128xf32>
    %43 = vector.extract_strided_slice %29 {offsets = [0, 128], sizes = [8, 128], strides = [1, 1]} : vector<8x384xf32> to vector<8x128xf32>
    %44 = arith.addf %42, %43 : vector<8x128xf32>
    %45 = arith.negf %44 : vector<8x128xf32>
    %46 = math.exp %45 : vector<8x128xf32>
    %cst_32 = arith.constant 1.000000e+00 : f32
    %47 = vector.broadcast %cst_32 : f32 to vector<8x128xf32>
    %48 = arith.addf %47, %46 : vector<8x128xf32>
    %49 = arith.divf %47, %48 : vector<8x128xf32>
    %50 = vector.extract_strided_slice %33 {offsets = [0, 256], sizes = [8, 128], strides = [1, 1]} : vector<8x384xf32> to vector<8x128xf32>
    %51 = vector.extract_strided_slice %29 {offsets = [0, 256], sizes = [8, 128], strides = [1, 1]} : vector<8x384xf32> to vector<8x128xf32>
    %52 = arith.addf %51, %17 : vector<8x128xf32>
    %53 = arith.mulf %41, %52 : vector<8x128xf32>
    %54 = arith.addf %50, %53 : vector<8x128xf32>
    %55 = math.tanh %54 : vector<8x128xf32>
    %56 = arith.subf %26, %55 : vector<8x128xf32>
    %57 = arith.mulf %49, %56 : vector<8x128xf32>
    %58 = arith.addf %55, %57 : vector<8x128xf32>
    %59 = arith.index_cast %25 : i32 to index
    %c0_33 = arith.constant 0 : index
    %60 = vector.load %arg19[%59, %c0_33] : memref<64x384xf32, #tpu.memory_space<vmem>>, vector<8x384xf32>
    %61 = vector.extract_strided_slice %60 {offsets = [0, 0], sizes = [8, 128], strides = [1, 1]} : vector<8x384xf32> to vector<8x128xf32>
    %62 = vector.extract_strided_slice %31 {offsets = [0, 0], sizes = [8, 128], strides = [1, 1]} : vector<8x384xf32> to vector<8x128xf32>
    %63 = arith.addf %61, %62 : vector<8x128xf32>
    %64 = arith.negf %63 : vector<8x128xf32>
    %65 = math.exp %64 : vector<8x128xf32>
    %cst_34 = arith.constant 1.000000e+00 : f32
    %66 = vector.broadcast %cst_34 : f32 to vector<8x128xf32>
    %67 = arith.addf %66, %65 : vector<8x128xf32>
    %68 = arith.divf %66, %67 : vector<8x128xf32>
    %69 = vector.extract_strided_slice %60 {offsets = [0, 128], sizes = [8, 128], strides = [1, 1]} : vector<8x384xf32> to vector<8x128xf32>
    %70 = vector.extract_strided_slice %31 {offsets = [0, 128], sizes = [8, 128], strides = [1, 1]} : vector<8x384xf32> to vector<8x128xf32>
    %71 = arith.addf %69, %70 : vector<8x128xf32>
    %72 = arith.negf %71 : vector<8x128xf32>
    %73 = math.exp %72 : vector<8x128xf32>
    %cst_35 = arith.constant 1.000000e+00 : f32
    %74 = vector.broadcast %cst_35 : f32 to vector<8x128xf32>
    %75 = arith.addf %74, %73 : vector<8x128xf32>
    %76 = arith.divf %74, %75 : vector<8x128xf32>
    %77 = vector.extract_strided_slice %60 {offsets = [0, 256], sizes = [8, 128], strides = [1, 1]} : vector<8x384xf32> to vector<8x128xf32>
    %78 = vector.extract_strided_slice %31 {offsets = [0, 256], sizes = [8, 128], strides = [1, 1]} : vector<8x384xf32> to vector<8x128xf32>
    %79 = arith.addf %78, %20 : vector<8x128xf32>
    %80 = arith.mulf %68, %79 : vector<8x128xf32>
    %81 = arith.addf %77, %80 : vector<8x128xf32>
    %82 = math.tanh %81 : vector<8x128xf32>
    %83 = arith.subf %27, %82 : vector<8x128xf32>
    %84 = arith.mulf %76, %83 : vector<8x128xf32>
    %85 = arith.addf %82, %84 : vector<8x128xf32>
    %c0_36 = arith.constant 0 : index
    %c0_37 = arith.constant 0 : index
    %86 = vector.load %arg20[%c0_36, %c0_37] : memref<8x256xf32, #tpu.memory_space<vmem>>, vector<8x128xf32>
    tpu.vector_store %arg20[%c0_36, %c0_37], %58 {strides = array<i32>} : memref<8x256xf32, #tpu.memory_space<vmem>>, vector<8x128xf32>,
    %c0_38 = arith.constant 0 : index
    %c128_39 = arith.constant 128 : index
    %87 = vector.load %arg20[%c0_38, %c128_39] : memref<8x256xf32, #tpu.memory_space<vmem>>, vector<8x128xf32>
    tpu.vector_store %arg20[%c0_38, %c128_39], %85 {strides = array<i32>} : memref<8x256xf32, #tpu.memory_space<vmem>>, vector<8x128xf32>,
    %88 = arith.index_cast %22 : i32 to index
    %c0_40 = arith.constant 0 : index
    %89 = vector.load %arg21[%88, %c0_40] : memref<64x256xf32, #tpu.memory_space<vmem>>, vector<8x128xf32>
    tpu.vector_store %arg21[%88, %c0_40], %58 {strides = array<i32>} : memref<64x256xf32, #tpu.memory_space<vmem>>, vector<8x128xf32>,
    %90 = arith.index_cast %25 : i32 to index
    %c128_41 = arith.constant 128 : index
    %91 = vector.load %arg21[%90, %c128_41] : memref<64x256xf32, #tpu.memory_space<vmem>>, vector<8x128xf32>
    tpu.vector_store %arg21[%90, %c128_41], %85 {strides = array<i32>} : memref<64x256xf32, #tpu.memory_space<vmem>>, vector<8x128xf32>,
    %c1_i32 = arith.constant 1 : i32
    %c8_i32_42 = arith.constant 8 : i32
    %92 = arith.muli %c1_i32, %c8_i32_42 : i32
    %93 = tpu.assume_multiple %92, 8 : i32
    %c7_i32_43 = arith.constant 7 : i32
    %94 = arith.subi %c7_i32_43, %c1_i32 : i32
    %c8_i32_44 = arith.constant 8 : i32
    %95 = arith.muli %94, %c8_i32_44 : i32
    %96 = tpu.assume_multiple %95, 8 : i32
    %c0_45 = arith.constant 0 : index
    %c0_46 = arith.constant 0 : index
    %97 = vector.load %arg20[%c0_45, %c0_46] : memref<8x256xf32, #tpu.memory_space<vmem>>, vector<8x128xf32>
    %c0_47 = arith.constant 0 : index
    %c128_48 = arith.constant 128 : index
    %98 = vector.load %arg20[%c0_47, %c128_48] : memref<8x256xf32, #tpu.memory_space<vmem>>, vector<8x128xf32>
    %c0_49 = arith.constant 0 : index
    %c0_50 = arith.constant 0 : index
    %99 = vector.load %arg3[%c0_49, %c0_50] : memref<256x768xf32, #tpu.memory_space<vmem>>, vector<128x384xf32>
    %cst_51 = arith.constant dense<0.000000e+00> : vector<8x384xf32>
    %100 = tpu.matmul %97, %99, %cst_51 {dimension_numbers = #tpu.dot_dimension_numbers<[1], [0], [0], [1], [0, 0, 1, 1], [], []>} : vector<8x128xf32>, vector<128x384xf32>, vector<8x384xf32> -> vector<8x384xf32>
    %c128_52 = arith.constant 128 : index
    %c384_53 = arith.constant 384 : index
    %101 = vector.load %arg3[%c128_52, %c384_53] : memref<256x768xf32, #tpu.memory_space<vmem>>, vector<128x384xf32>
    %cst_54 = arith.constant dense<0.000000e+00> : vector<8x384xf32>
    %102 = tpu.matmul %98, %101, %cst_54 {dimension_numbers = #tpu.dot_dimension_numbers<[1], [0], [0], [1], [0, 0, 1, 1], [], []>} : vector<8x128xf32>, vector<128x384xf32>, vector<8x384xf32> -> vector<8x384xf32>
    %103 = arith.index_cast %93 : i32 to index
    %c0_55 = arith.constant 0 : index
    %104 = vector.load %arg18[%103, %c0_55] : memref<64x384xf32, #tpu.memory_space<vmem>>, vector<8x384xf32>
    %105 = vector.extract_strided_slice %104 {offsets = [0, 0], sizes = [8, 128], strides = [1, 1]} : vector<8x384xf32> to vector<8x128xf32>
    %106 = vector.extract_strided_slice %100 {offsets = [0, 0], sizes = [8, 128], strides = [1, 1]} : vector<8x384xf32> to vector<8x128xf32>
    %107 = arith.addf %105, %106 : vector<8x128xf32>
    %108 = arith.negf %107 : vector<8x128xf32>
    %109 = math.exp %108 : vector<8x128xf32>
    %cst_56 = arith.constant 1.000000e+00 : f32
    %110 = vector.broadcast %cst_56 : f32 to vector<8x128xf32>
    %111 = arith.addf %110, %109 : vector<8x128xf32>
    %112 = arith.divf %110, %111 : vector<8x128xf32>
    %113 = vector.extract_strided_slice %104 {offsets = [0, 128], sizes = [8, 128], strides = [1, 1]} : vector<8x384xf32> to vector<8x128xf32>
    %114 = vector.extract_strided_slice %100 {offsets = [0, 128], sizes = [8, 128], strides = [1, 1]} : vector<8x384xf32> to vector<8x128xf32>
    %115 = arith.addf %113, %114 : vector<8x128xf32>
    %116 = arith.negf %115 : vector<8x128xf32>
    %117 = math.exp %116 : vector<8x128xf32>
    %cst_57 = arith.constant 1.000000e+00 : f32
    %118 = vector.broadcast %cst_57 : f32 to vector<8x128xf32>
    %119 = arith.addf %118, %117 : vector<8x128xf32>
    %120 = arith.divf %118, %119 : vector<8x128xf32>
    %121 = vector.extract_strided_slice %104 {offsets = [0, 256], sizes = [8, 128], strides = [1, 1]} : vector<8x384xf32> to vector<8x128xf32>
    %122 = vector.extract_strided_slice %100 {offsets = [0, 256], sizes = [8, 128], strides = [1, 1]} : vector<8x384xf32> to vector<8x128xf32>
    %123 = arith.addf %122, %17 : vector<8x128xf32>
    %124 = arith.mulf %112, %123 : vector<8x128xf32>
    %125 = arith.addf %121, %124 : vector<8x128xf32>
    %126 = math.tanh %125 : vector<8x128xf32>
    %127 = arith.subf %97, %126 : vector<8x128xf32>
    %128 = arith.mulf %120, %127 : vector<8x128xf32>
    %129 = arith.addf %126, %128 : vector<8x128xf32>
    %130 = arith.index_cast %96 : i32 to index
    %c0_58 = arith.constant 0 : index
    %131 = vector.load %arg19[%130, %c0_58] : memref<64x384xf32, #tpu.memory_space<vmem>>, vector<8x384xf32>
    %132 = vector.extract_strided_slice %131 {offsets = [0, 0], sizes = [8, 128], strides = [1, 1]} : vector<8x384xf32> to vector<8x128xf32>
    %133 = vector.extract_strided_slice %102 {offsets = [0, 0], sizes = [8, 128], strides = [1, 1]} : vector<8x384xf32> to vector<8x128xf32>
    %134 = arith.addf %132, %133 : vector<8x128xf32>
    %135 = arith.negf %134 : vector<8x128xf32>
    %136 = math.exp %135 : vector<8x128xf32>
    %cst_59 = arith.constant 1.000000e+00 : f32
    %137 = vector.broadcast %cst_59 : f32 to vector<8x128xf32>
    %138 = arith.addf %137, %136 : vector<8x128xf32>
    %139 = arith.divf %137, %138 : vector<8x128xf32>
    %140 = vector.extract_strided_slice %131 {offsets = [0, 128], sizes = [8, 128], strides = [1, 1]} : vector<8x384xf32> to vector<8x128xf32>
    %141 = vector.extract_strided_slice %102 {offsets = [0, 128], sizes = [8, 128], strides = [1, 1]} : vector<8x384xf32> to vector<8x128xf32>
    %142 = arith.addf %140, %141 : vector<8x128xf32>
    %143 = arith.negf %142 : vector<8x128xf32>
    %144 = math.exp %143 : vector<8x128xf32>
    %cst_60 = arith.constant 1.000000e+00 : f32
    %145 = vector.broadcast %cst_60 : f32 to vector<8x128xf32>
    %146 = arith.addf %145, %144 : vector<8x128xf32>
    %147 = arith.divf %145, %146 : vector<8x128xf32>
    %148 = vector.extract_strided_slice %131 {offsets = [0, 256], sizes = [8, 128], strides = [1, 1]} : vector<8x384xf32> to vector<8x128xf32>
    %149 = vector.extract_strided_slice %102 {offsets = [0, 256], sizes = [8, 128], strides = [1, 1]} : vector<8x384xf32> to vector<8x128xf32>
    %150 = arith.addf %149, %20 : vector<8x128xf32>
    %151 = arith.mulf %139, %150 : vector<8x128xf32>
    %152 = arith.addf %148, %151 : vector<8x128xf32>
    %153 = math.tanh %152 : vector<8x128xf32>
    %154 = arith.subf %98, %153 : vector<8x128xf32>
    %155 = arith.mulf %147, %154 : vector<8x128xf32>
    %156 = arith.addf %153, %155 : vector<8x128xf32>
    %c0_61 = arith.constant 0 : index
    %c0_62 = arith.constant 0 : index
    %157 = vector.load %arg20[%c0_61, %c0_62] : memref<8x256xf32, #tpu.memory_space<vmem>>, vector<8x128xf32>
    tpu.vector_store %arg20[%c0_61, %c0_62], %129 {strides = array<i32>} : memref<8x256xf32, #tpu.memory_space<vmem>>, vector<8x128xf32>,
    %c0_63 = arith.constant 0 : index
    %c128_64 = arith.constant 128 : index
    %158 = vector.load %arg20[%c0_63, %c128_64] : memref<8x256xf32, #tpu.memory_space<vmem>>, vector<8x128xf32>
    tpu.vector_store %arg20[%c0_63, %c128_64], %156 {strides = array<i32>} : memref<8x256xf32, #tpu.memory_space<vmem>>, vector<8x128xf32>,
    %159 = arith.index_cast %93 : i32 to index
    %c0_65 = arith.constant 0 : index
    %160 = vector.load %arg21[%159, %c0_65] : memref<64x256xf32, #tpu.memory_space<vmem>>, vector<8x128xf32>
    tpu.vector_store %arg21[%159, %c0_65], %129 {strides = array<i32>} : memref<64x256xf32, #tpu.memory_space<vmem>>, vector<8x128xf32>,
    %161 = arith.index_cast %96 : i32 to index
    %c128_66 = arith.constant 128 : index
    %162 = vector.load %arg21[%161, %c128_66] : memref<64x256xf32, #tpu.memory_space<vmem>>, vector<8x128xf32>
    tpu.vector_store %arg21[%161, %c128_66], %156 {strides = array<i32>} : memref<64x256xf32, #tpu.memory_space<vmem>>, vector<8x128xf32>,
    %c2_i32 = arith.constant 2 : i32
    %c8_i32_67 = arith.constant 8 : i32
    %163 = arith.muli %c2_i32, %c8_i32_67 : i32
    %164 = tpu.assume_multiple %163, 8 : i32
    %c7_i32_68 = arith.constant 7 : i32
    %165 = arith.subi %c7_i32_68, %c2_i32 : i32
    %c8_i32_69 = arith.constant 8 : i32
    %166 = arith.muli %165, %c8_i32_69 : i32
    %167 = tpu.assume_multiple %166, 8 : i32
    %c0_70 = arith.constant 0 : index
    %c0_71 = arith.constant 0 : index
    %168 = vector.load %arg20[%c0_70, %c0_71] : memref<8x256xf32, #tpu.memory_space<vmem>>, vector<8x128xf32>
    %c0_72 = arith.constant 0 : index
    %c128_73 = arith.constant 128 : index
    %169 = vector.load %arg20[%c0_72, %c128_73] : memref<8x256xf32, #tpu.memory_space<vmem>>, vector<8x128xf32>
    %c0_74 = arith.constant 0 : index
    %c0_75 = arith.constant 0 : index
    %170 = vector.load %arg3[%c0_74, %c0_75] : memref<256x768xf32, #tpu.memory_space<vmem>>, vector<128x384xf32>
    %cst_76 = arith.constant dense<0.000000e+00> : vector<8x384xf32>
    %171 = tpu.matmul %168, %170, %cst_76 {dimension_numbers = #tpu.dot_dimension_numbers<[1], [0], [0], [1], [0, 0, 1, 1], [], []>} : vector<8x128xf32>, vector<128x384xf32>, vector<8x384xf32> -> vector<8x384xf32>
    %c128_77 = arith.constant 128 : index
    %c384_78 = arith.constant 384 : index
    %172 = vector.load %arg3[%c128_77, %c384_78] : memref<256x768xf32, #tpu.memory_space<vmem>>, vector<128x384xf32>
    %cst_79 = arith.constant dense<0.000000e+00> : vector<8x384xf32>
    %173 = tpu.matmul %169, %172, %cst_79 {dimension_numbers = #tpu.dot_dimension_numbers<[1], [0], [0], [1], [0, 0, 1, 1], [], []>} : vector<8x128xf32>, vector<128x384xf32>, vector<8x384xf32> -> vector<8x384xf32>
    %174 = arith.index_cast %164 : i32 to index
    %c0_80 = arith.constant 0 : index
    %175 = vector.load %arg18[%174, %c0_80] : memref<64x384xf32, #tpu.memory_space<vmem>>, vector<8x384xf32>
    %176 = vector.extract_strided_slice %175 {offsets = [0, 0], sizes = [8, 128], strides = [1, 1]} : vector<8x384xf32> to vector<8x128xf32>
    %177 = vector.extract_strided_slice %171 {offsets = [0, 0], sizes = [8, 128], strides = [1, 1]} : vector<8x384xf32> to vector<8x128xf32>
    %178 = arith.addf %176, %177 : vector<8x128xf32>
    %179 = arith.negf %178 : vector<8x128xf32>
    %180 = math.exp %179 : vector<8x128xf32>
    %cst_81 = arith.constant 1.000000e+00 : f32
    %181 = vector.broadcast %cst_81 : f32 to vector<8x128xf32>
    %182 = arith.addf %181, %180 : vector<8x128xf32>
    %183 = arith.divf %181, %182 : vector<8x128xf32>
    %184 = vector.extract_strided_slice %175 {offsets = [0, 128], sizes = [8, 128], strides = [1, 1]} : vector<8x384xf32> to vector<8x128xf32>
    %185 = vector.extract_strided_slice %171 {offsets = [0, 128], sizes = [8, 128], strides = [1, 1]} : vector<8x384xf32> to vector<8x128xf32>
    %186 = arith.addf %184, %185 : vector<8x128xf32>
    %187 = arith.negf %186 : vector<8x128xf32>
    %188 = math.exp %187 : vector<8x128xf32>
    %cst_82 = arith.constant 1.000000e+00 : f32
    %189 = vector.broadcast %cst_82 : f32 to vector<8x128xf32>
    %190 = arith.addf %189, %188 : vector<8x128xf32>
    %191 = arith.divf %189, %190 : vector<8x128xf32>
    %192 = vector.extract_strided_slice %175 {offsets = [0, 256], sizes = [8, 128], strides = [1, 1]} : vector<8x384xf32> to vector<8x128xf32>
    %193 = vector.extract_strided_slice %171 {offsets = [0, 256], sizes = [8, 128], strides = [1, 1]} : vector<8x384xf32> to vector<8x128xf32>
    %194 = arith.addf %193, %17 : vector<8x128xf32>
    %195 = arith.mulf %183, %194 : vector<8x128xf32>
    %196 = arith.addf %192, %195 : vector<8x128xf32>
    %197 = math.tanh %196 : vector<8x128xf32>
    %198 = arith.subf %168, %197 : vector<8x128xf32>
    %199 = arith.mulf %191, %198 : vector<8x128xf32>
    %200 = arith.addf %197, %199 : vector<8x128xf32>
    %201 = arith.index_cast %167 : i32 to index
    %c0_83 = arith.constant 0 : index
    %202 = vector.load %arg19[%201, %c0_83] : memref<64x384xf32, #tpu.memory_space<vmem>>, vector<8x384xf32>
    %203 = vector.extract_strided_slice %202 {offsets = [0, 0], sizes = [8, 128], strides = [1, 1]} : vector<8x384xf32> to vector<8x128xf32>
    %204 = vector.extract_strided_slice %173 {offsets = [0, 0], sizes = [8, 128], strides = [1, 1]} : vector<8x384xf32> to vector<8x128xf32>
    %205 = arith.addf %203, %204 : vector<8x128xf32>
    %206 = arith.negf %205 : vector<8x128xf32>
    %207 = math.exp %206 : vector<8x128xf32>
    %cst_84 = arith.constant 1.000000e+00 : f32
    %208 = vector.broadcast %cst_84 : f32 to vector<8x128xf32>
    %209 = arith.addf %208, %207 : vector<8x128xf32>
    %210 = arith.divf %208, %209 : vector<8x128xf32>
    %211 = vector.extract_strided_slice %202 {offsets = [0, 128], sizes = [8, 128], strides = [1, 1]} : vector<8x384xf32> to vector<8x128xf32>
    %212 = vector.extract_strided_slice %173 {offsets = [0, 128], sizes = [8, 128], strides = [1, 1]} : vector<8x384xf32> to vector<8x128xf32>
    %213 = arith.addf %211, %212 : vector<8x128xf32>
    %214 = arith.negf %213 : vector<8x128xf32>
    %215 = math.exp %214 : vector<8x128xf32>
    %cst_85 = arith.constant 1.000000e+00 : f32
    %216 = vector.broadcast %cst_85 : f32 to vector<8x128xf32>
    %217 = arith.addf %216, %215 : vector<8x128xf32>
    %218 = arith.divf %216, %217 : vector<8x128xf32>
    %219 = vector.extract_strided_slice %202 {offsets = [0, 256], sizes = [8, 128], strides = [1, 1]} : vector<8x384xf32> to vector<8x128xf32>
    %220 = vector.extract_strided_slice %173 {offsets = [0, 256], sizes = [8, 128], strides = [1, 1]} : vector<8x384xf32> to vector<8x128xf32>
    %221 = arith.addf %220, %20 : vector<8x128xf32>
    %222 = arith.mulf %210, %221 : vector<8x128xf32>
    %223 = arith.addf %219, %222 : vector<8x128xf32>
    %224 = math.tanh %223 : vector<8x128xf32>
    %225 = arith.subf %169, %224 : vector<8x128xf32>
    %226 = arith.mulf %218, %225 : vector<8x128xf32>
    %227 = arith.addf %224, %226 : vector<8x128xf32>
    %c0_86 = arith.constant 0 : index
    %c0_87 = arith.constant 0 : index
    %228 = vector.load %arg20[%c0_86, %c0_87] : memref<8x256xf32, #tpu.memory_space<vmem>>, vector<8x128xf32>
    tpu.vector_store %arg20[%c0_86, %c0_87], %200 {strides = array<i32>} : memref<8x256xf32, #tpu.memory_space<vmem>>, vector<8x128xf32>,
    %c0_88 = arith.constant 0 : index
    %c128_89 = arith.constant 128 : index
    %229 = vector.load %arg20[%c0_88, %c128_89] : memref<8x256xf32, #tpu.memory_space<vmem>>, vector<8x128xf32>
    tpu.vector_store %arg20[%c0_88, %c128_89], %227 {strides = array<i32>} : memref<8x256xf32, #tpu.memory_space<vmem>>, vector<8x128xf32>,
    %230 = arith.index_cast %164 : i32 to index
    %c0_90 = arith.constant 0 : index
    %231 = vector.load %arg21[%230, %c0_90] : memref<64x256xf32, #tpu.memory_space<vmem>>, vector<8x128xf32>
    tpu.vector_store %arg21[%230, %c0_90], %200 {strides = array<i32>} : memref<64x256xf32, #tpu.memory_space<vmem>>, vector<8x128xf32>,
    %232 = arith.index_cast %167 : i32 to index
    %c128_91 = arith.constant 128 : index
    %233 = vector.load %arg21[%232, %c128_91] : memref<64x256xf32, #tpu.memory_space<vmem>>, vector<8x128xf32>
    tpu.vector_store %arg21[%232, %c128_91], %227 {strides = array<i32>} : memref<64x256xf32, #tpu.memory_space<vmem>>, vector<8x128xf32>,
    %c3_i32 = arith.constant 3 : i32
    %c8_i32_92 = arith.constant 8 : i32
    %234 = arith.muli %c3_i32, %c8_i32_92 : i32
    %235 = tpu.assume_multiple %234, 8 : i32
    %c7_i32_93 = arith.constant 7 : i32
    %236 = arith.subi %c7_i32_93, %c3_i32 : i32
    %c8_i32_94 = arith.constant 8 : i32
    %237 = arith.muli %236, %c8_i32_94 : i32
    %238 = tpu.assume_multiple %237, 8 : i32
    %c0_95 = arith.constant 0 : index
    %c0_96 = arith.constant 0 : index
    %239 = vector.load %arg20[%c0_95, %c0_96] : memref<8x256xf32, #tpu.memory_space<vmem>>, vector<8x128xf32>
    %c0_97 = arith.constant 0 : index
    %c128_98 = arith.constant 128 : index
    %240 = vector.load %arg20[%c0_97, %c128_98] : memref<8x256xf32, #tpu.memory_space<vmem>>, vector<8x128xf32>
    %c0_99 = arith.constant 0 : index
    %c0_100 = arith.constant 0 : index
    %241 = vector.load %arg3[%c0_99, %c0_100] : memref<256x768xf32, #tpu.memory_space<vmem>>, vector<128x384xf32>
    %cst_101 = arith.constant dense<0.000000e+00> : vector<8x384xf32>
    %242 = tpu.matmul %239, %241, %cst_101 {dimension_numbers = #tpu.dot_dimension_numbers<[1], [0], [0], [1], [0, 0, 1, 1], [], []>} : vector<8x128xf32>, vector<128x384xf32>, vector<8x384xf32> -> vector<8x384xf32>
    %c128_102 = arith.constant 128 : index
    %c384_103 = arith.constant 384 : index
    %243 = vector.load %arg3[%c128_102, %c384_103] : memref<256x768xf32, #tpu.memory_space<vmem>>, vector<128x384xf32>
    %cst_104 = arith.constant dense<0.000000e+00> : vector<8x384xf32>
    %244 = tpu.matmul %240, %243, %cst_104 {dimension_numbers = #tpu.dot_dimension_numbers<[1], [0], [0], [1], [0, 0, 1, 1], [], []>} : vector<8x128xf32>, vector<128x384xf32>, vector<8x384xf32> -> vector<8x384xf32>
    %245 = arith.index_cast %235 : i32 to index
    %c0_105 = arith.constant 0 : index
    %246 = vector.load %arg18[%245, %c0_105] : memref<64x384xf32, #tpu.memory_space<vmem>>, vector<8x384xf32>
    %247 = vector.extract_strided_slice %246 {offsets = [0, 0], sizes = [8, 128], strides = [1, 1]} : vector<8x384xf32> to vector<8x128xf32>
    %248 = vector.extract_strided_slice %242 {offsets = [0, 0], sizes = [8, 128], strides = [1, 1]} : vector<8x384xf32> to vector<8x128xf32>
    %249 = arith.addf %247, %248 : vector<8x128xf32>
    %250 = arith.negf %249 : vector<8x128xf32>
    %251 = math.exp %250 : vector<8x128xf32>
    %cst_106 = arith.constant 1.000000e+00 : f32
    %252 = vector.broadcast %cst_106 : f32 to vector<8x128xf32>
    %253 = arith.addf %252, %251 : vector<8x128xf32>
    %254 = arith.divf %252, %253 : vector<8x128xf32>
    %255 = vector.extract_strided_slice %246 {offsets = [0, 128], sizes = [8, 128], strides = [1, 1]} : vector<8x384xf32> to vector<8x128xf32>
    %256 = vector.extract_strided_slice %242 {offsets = [0, 128], sizes = [8, 128], strides = [1, 1]} : vector<8x384xf32> to vector<8x128xf32>
    %257 = arith.addf %255, %256 : vector<8x128xf32>
    %258 = arith.negf %257 : vector<8x128xf32>
    %259 = math.exp %258 : vector<8x128xf32>
    %cst_107 = arith.constant 1.000000e+00 : f32
    %260 = vector.broadcast %cst_107 : f32 to vector<8x128xf32>
    %261 = arith.addf %260, %259 : vector<8x128xf32>
    %262 = arith.divf %260, %261 : vector<8x128xf32>
    %263 = vector.extract_strided_slice %246 {offsets = [0, 256], sizes = [8, 128], strides = [1, 1]} : vector<8x384xf32> to vector<8x128xf32>
    %264 = vector.extract_strided_slice %242 {offsets = [0, 256], sizes = [8, 128], strides = [1, 1]} : vector<8x384xf32> to vector<8x128xf32>
    %265 = arith.addf %264, %17 : vector<8x128xf32>
    %266 = arith.mulf %254, %265 : vector<8x128xf32>
    %267 = arith.addf %263, %266 : vector<8x128xf32>
    %268 = math.tanh %267 : vector<8x128xf32>
    %269 = arith.subf %239, %268 : vector<8x128xf32>
    %270 = arith.mulf %262, %269 : vector<8x128xf32>
    %271 = arith.addf %268, %270 : vector<8x128xf32>
    %272 = arith.index_cast %238 : i32 to index
    %c0_108 = arith.constant 0 : index
    %273 = vector.load %arg19[%272, %c0_108] : memref<64x384xf32, #tpu.memory_space<vmem>>, vector<8x384xf32>
    %274 = vector.extract_strided_slice %273 {offsets = [0, 0], sizes = [8, 128], strides = [1, 1]} : vector<8x384xf32> to vector<8x128xf32>
    %275 = vector.extract_strided_slice %244 {offsets = [0, 0], sizes = [8, 128], strides = [1, 1]} : vector<8x384xf32> to vector<8x128xf32>
    %276 = arith.addf %274, %275 : vector<8x128xf32>
    %277 = arith.negf %276 : vector<8x128xf32>
    %278 = math.exp %277 : vector<8x128xf32>
    %cst_109 = arith.constant 1.000000e+00 : f32
    %279 = vector.broadcast %cst_109 : f32 to vector<8x128xf32>
    %280 = arith.addf %279, %278 : vector<8x128xf32>
    %281 = arith.divf %279, %280 : vector<8x128xf32>
    %282 = vector.extract_strided_slice %273 {offsets = [0, 128], sizes = [8, 128], strides = [1, 1]} : vector<8x384xf32> to vector<8x128xf32>
    %283 = vector.extract_strided_slice %244 {offsets = [0, 128], sizes = [8, 128], strides = [1, 1]} : vector<8x384xf32> to vector<8x128xf32>
    %284 = arith.addf %282, %283 : vector<8x128xf32>
    %285 = arith.negf %284 : vector<8x128xf32>
    %286 = math.exp %285 : vector<8x128xf32>
    %cst_110 = arith.constant 1.000000e+00 : f32
    %287 = vector.broadcast %cst_110 : f32 to vector<8x128xf32>
    %288 = arith.addf %287, %286 : vector<8x128xf32>
    %289 = arith.divf %287, %288 : vector<8x128xf32>
    %290 = vector.extract_strided_slice %273 {offsets = [0, 256], sizes = [8, 128], strides = [1, 1]} : vector<8x384xf32> to vector<8x128xf32>
    %291 = vector.extract_strided_slice %244 {offsets = [0, 256], sizes = [8, 128], strides = [1, 1]} : vector<8x384xf32> to vector<8x128xf32>
    %292 = arith.addf %291, %20 : vector<8x128xf32>
    %293 = arith.mulf %281, %292 : vector<8x128xf32>
    %294 = arith.addf %290, %293 : vector<8x128xf32>
    %295 = math.tanh %294 : vector<8x128xf32>
    %296 = arith.subf %240, %295 : vector<8x128xf32>
    %297 = arith.mulf %289, %296 : vector<8x128xf32>
    %298 = arith.addf %295, %297 : vector<8x128xf32>
    %c0_111 = arith.constant 0 : index
    %c0_112 = arith.constant 0 : index
    %299 = vector.load %arg20[%c0_111, %c0_112] : memref<8x256xf32, #tpu.memory_space<vmem>>, vector<8x128xf32>
    tpu.vector_store %arg20[%c0_111, %c0_112], %271 {strides = array<i32>} : memref<8x256xf32, #tpu.memory_space<vmem>>, vector<8x128xf32>,
    %c0_113 = arith.constant 0 : index
    %c128_114 = arith.constant 128 : index
    %300 = vector.load %arg20[%c0_113, %c128_114] : memref<8x256xf32, #tpu.memory_space<vmem>>, vector<8x128xf32>
    tpu.vector_store %arg20[%c0_113, %c128_114], %298 {strides = array<i32>} : memref<8x256xf32, #tpu.memory_space<vmem>>, vector<8x128xf32>,
    %301 = arith.index_cast %235 : i32 to index
    %c0_115 = arith.constant 0 : index
    %302 = vector.load %arg21[%301, %c0_115] : memref<64x256xf32, #tpu.memory_space<vmem>>, vector<8x128xf32>
    tpu.vector_store %arg21[%301, %c0_115], %271 {strides = array<i32>} : memref<64x256xf32, #tpu.memory_space<vmem>>, vector<8x128xf32>,
    %303 = arith.index_cast %238 : i32 to index
    %c128_116 = arith.constant 128 : index
    %304 = vector.load %arg21[%303, %c128_116] : memref<64x256xf32, #tpu.memory_space<vmem>>, vector<8x128xf32>
    tpu.vector_store %arg21[%303, %c128_116], %298 {strides = array<i32>} : memref<64x256xf32, #tpu.memory_space<vmem>>, vector<8x128xf32>,
    %c4_i32 = arith.constant 4 : i32
    %c8_i32_117 = arith.constant 8 : i32
    %305 = arith.muli %c4_i32, %c8_i32_117 : i32
    %306 = tpu.assume_multiple %305, 8 : i32
    %c7_i32_118 = arith.constant 7 : i32
    %307 = arith.subi %c7_i32_118, %c4_i32 : i32
    %c8_i32_119 = arith.constant 8 : i32
    %308 = arith.muli %307, %c8_i32_119 : i32
    %309 = tpu.assume_multiple %308, 8 : i32
    %c0_120 = arith.constant 0 : index
    %c0_121 = arith.constant 0 : index
    %310 = vector.load %arg20[%c0_120, %c0_121] : memref<8x256xf32, #tpu.memory_space<vmem>>, vector<8x128xf32>
    %c0_122 = arith.constant 0 : index
    %c128_123 = arith.constant 128 : index
    %311 = vector.load %arg20[%c0_122, %c128_123] : memref<8x256xf32, #tpu.memory_space<vmem>>, vector<8x128xf32>
    %c0_124 = arith.constant 0 : index
    %c0_125 = arith.constant 0 : index
    %312 = vector.load %arg3[%c0_124, %c0_125] : memref<256x768xf32, #tpu.memory_space<vmem>>, vector<128x384xf32>
    %cst_126 = arith.constant dense<0.000000e+00> : vector<8x384xf32>
    %313 = tpu.matmul %310, %312, %cst_126 {dimension_numbers = #tpu.dot_dimension_numbers<[1], [0], [0], [1], [0, 0, 1, 1], [], []>} : vector<8x128xf32>, vector<128x384xf32>, vector<8x384xf32> -> vector<8x384xf32>
    %c128_127 = arith.constant 128 : index
    %c384_128 = arith.constant 384 : index
    %314 = vector.load %arg3[%c128_127, %c384_128] : memref<256x768xf32, #tpu.memory_space<vmem>>, vector<128x384xf32>
    %cst_129 = arith.constant dense<0.000000e+00> : vector<8x384xf32>
    %315 = tpu.matmul %311, %314, %cst_129 {dimension_numbers = #tpu.dot_dimension_numbers<[1], [0], [0], [1], [0, 0, 1, 1], [], []>} : vector<8x128xf32>, vector<128x384xf32>, vector<8x384xf32> -> vector<8x384xf32>
    %316 = arith.index_cast %306 : i32 to index
    %c0_130 = arith.constant 0 : index
    %317 = vector.load %arg18[%316, %c0_130] : memref<64x384xf32, #tpu.memory_space<vmem>>, vector<8x384xf32>
    %318 = vector.extract_strided_slice %317 {offsets = [0, 0], sizes = [8, 128], strides = [1, 1]} : vector<8x384xf32> to vector<8x128xf32>
    %319 = vector.extract_strided_slice %313 {offsets = [0, 0], sizes = [8, 128], strides = [1, 1]} : vector<8x384xf32> to vector<8x128xf32>
    %320 = arith.addf %318, %319 : vector<8x128xf32>
    %321 = arith.negf %320 : vector<8x128xf32>
    %322 = math.exp %321 : vector<8x128xf32>
    %cst_131 = arith.constant 1.000000e+00 : f32
    %323 = vector.broadcast %cst_131 : f32 to vector<8x128xf32>
    %324 = arith.addf %323, %322 : vector<8x128xf32>
    %325 = arith.divf %323, %324 : vector<8x128xf32>
    %326 = vector.extract_strided_slice %317 {offsets = [0, 128], sizes = [8, 128], strides = [1, 1]} : vector<8x384xf32> to vector<8x128xf32>
    %327 = vector.extract_strided_slice %313 {offsets = [0, 128], sizes = [8, 128], strides = [1, 1]} : vector<8x384xf32> to vector<8x128xf32>
    %328 = arith.addf %326, %327 : vector<8x128xf32>
    %329 = arith.negf %328 : vector<8x128xf32>
    %330 = math.exp %329 : vector<8x128xf32>
    %cst_132 = arith.constant 1.000000e+00 : f32
    %331 = vector.broadcast %cst_132 : f32 to vector<8x128xf32>
    %332 = arith.addf %331, %330 : vector<8x128xf32>
    %333 = arith.divf %331, %332 : vector<8x128xf32>
    %334 = vector.extract_strided_slice %317 {offsets = [0, 256], sizes = [8, 128], strides = [1, 1]} : vector<8x384xf32> to vector<8x128xf32>
    %335 = vector.extract_strided_slice %313 {offsets = [0, 256], sizes = [8, 128], strides = [1, 1]} : vector<8x384xf32> to vector<8x128xf32>
    %336 = arith.addf %335, %17 : vector<8x128xf32>
    %337 = arith.mulf %325, %336 : vector<8x128xf32>
    %338 = arith.addf %334, %337 : vector<8x128xf32>
    %339 = math.tanh %338 : vector<8x128xf32>
    %340 = arith.subf %310, %339 : vector<8x128xf32>
    %341 = arith.mulf %333, %340 : vector<8x128xf32>
    %342 = arith.addf %339, %341 : vector<8x128xf32>
    %343 = arith.index_cast %309 : i32 to index
    %c0_133 = arith.constant 0 : index
    %344 = vector.load %arg19[%343, %c0_133] : memref<64x384xf32, #tpu.memory_space<vmem>>, vector<8x384xf32>
    %345 = vector.extract_strided_slice %344 {offsets = [0, 0], sizes = [8, 128], strides = [1, 1]} : vector<8x384xf32> to vector<8x128xf32>
    %346 = vector.extract_strided_slice %315 {offsets = [0, 0], sizes = [8, 128], strides = [1, 1]} : vector<8x384xf32> to vector<8x128xf32>
    %347 = arith.addf %345, %346 : vector<8x128xf32>
    %348 = arith.negf %347 : vector<8x128xf32>
    %349 = math.exp %348 : vector<8x128xf32>
    %cst_134 = arith.constant 1.000000e+00 : f32
    %350 = vector.broadcast %cst_134 : f32 to vector<8x128xf32>
    %351 = arith.addf %350, %349 : vector<8x128xf32>
    %352 = arith.divf %350, %351 : vector<8x128xf32>
    %353 = vector.extract_strided_slice %344 {offsets = [0, 128], sizes = [8, 128], strides = [1, 1]} : vector<8x384xf32> to vector<8x128xf32>
    %354 = vector.extract_strided_slice %315 {offsets = [0, 128], sizes = [8, 128], strides = [1, 1]} : vector<8x384xf32> to vector<8x128xf32>
    %355 = arith.addf %353, %354 : vector<8x128xf32>
    %356 = arith.negf %355 : vector<8x128xf32>
    %357 = math.exp %356 : vector<8x128xf32>
    %cst_135 = arith.constant 1.000000e+00 : f32
    %358 = vector.broadcast %cst_135 : f32 to vector<8x128xf32>
    %359 = arith.addf %358, %357 : vector<8x128xf32>
    %360 = arith.divf %358, %359 : vector<8x128xf32>
    %361 = vector.extract_strided_slice %344 {offsets = [0, 256], sizes = [8, 128], strides = [1, 1]} : vector<8x384xf32> to vector<8x128xf32>
    %362 = vector.extract_strided_slice %315 {offsets = [0, 256], sizes = [8, 128], strides = [1, 1]} : vector<8x384xf32> to vector<8x128xf32>
    %363 = arith.addf %362, %20 : vector<8x128xf32>
    %364 = arith.mulf %352, %363 : vector<8x128xf32>
    %365 = arith.addf %361, %364 : vector<8x128xf32>
    %366 = math.tanh %365 : vector<8x128xf32>
    %367 = arith.subf %311, %366 : vector<8x128xf32>
    %368 = arith.mulf %360, %367 : vector<8x128xf32>
    %369 = arith.addf %366, %368 : vector<8x128xf32>
    %c0_136 = arith.constant 0 : index
    %c0_137 = arith.constant 0 : index
    %370 = vector.load %arg20[%c0_136, %c0_137] : memref<8x256xf32, #tpu.memory_space<vmem>>, vector<8x128xf32>
    tpu.vector_store %arg20[%c0_136, %c0_137], %342 {strides = array<i32>} : memref<8x256xf32, #tpu.memory_space<vmem>>, vector<8x128xf32>,
    %c0_138 = arith.constant 0 : index
    %c128_139 = arith.constant 128 : index
    %371 = vector.load %arg20[%c0_138, %c128_139] : memref<8x256xf32, #tpu.memory_space<vmem>>, vector<8x128xf32>
    tpu.vector_store %arg20[%c0_138, %c128_139], %369 {strides = array<i32>} : memref<8x256xf32, #tpu.memory_space<vmem>>, vector<8x128xf32>,
    %372 = arith.index_cast %306 : i32 to index
    %c0_140 = arith.constant 0 : index
    %373 = vector.load %arg21[%372, %c0_140] : memref<64x256xf32, #tpu.memory_space<vmem>>, vector<8x128xf32>
    tpu.vector_store %arg21[%372, %c0_140], %342 {strides = array<i32>} : memref<64x256xf32, #tpu.memory_space<vmem>>, vector<8x128xf32>,
    %374 = arith.index_cast %309 : i32 to index
    %c128_141 = arith.constant 128 : index
    %375 = vector.load %arg21[%374, %c128_141] : memref<64x256xf32, #tpu.memory_space<vmem>>, vector<8x128xf32>
    tpu.vector_store %arg21[%374, %c128_141], %369 {strides = array<i32>} : memref<64x256xf32, #tpu.memory_space<vmem>>, vector<8x128xf32>,
    %c5_i32 = arith.constant 5 : i32
    %c8_i32_142 = arith.constant 8 : i32
    %376 = arith.muli %c5_i32, %c8_i32_142 : i32
    %377 = tpu.assume_multiple %376, 8 : i32
    %c7_i32_143 = arith.constant 7 : i32
    %378 = arith.subi %c7_i32_143, %c5_i32 : i32
    %c8_i32_144 = arith.constant 8 : i32
    %379 = arith.muli %378, %c8_i32_144 : i32
    %380 = tpu.assume_multiple %379, 8 : i32
    %c0_145 = arith.constant 0 : index
    %c0_146 = arith.constant 0 : index
    %381 = vector.load %arg20[%c0_145, %c0_146] : memref<8x256xf32, #tpu.memory_space<vmem>>, vector<8x128xf32>
    %c0_147 = arith.constant 0 : index
    %c128_148 = arith.constant 128 : index
    %382 = vector.load %arg20[%c0_147, %c128_148] : memref<8x256xf32, #tpu.memory_space<vmem>>, vector<8x128xf32>
    %c0_149 = arith.constant 0 : index
    %c0_150 = arith.constant 0 : index
    %383 = vector.load %arg3[%c0_149, %c0_150] : memref<256x768xf32, #tpu.memory_space<vmem>>, vector<128x384xf32>
    %cst_151 = arith.constant dense<0.000000e+00> : vector<8x384xf32>
    %384 = tpu.matmul %381, %383, %cst_151 {dimension_numbers = #tpu.dot_dimension_numbers<[1], [0], [0], [1], [0, 0, 1, 1], [], []>} : vector<8x128xf32>, vector<128x384xf32>, vector<8x384xf32> -> vector<8x384xf32>
    %c128_152 = arith.constant 128 : index
    %c384_153 = arith.constant 384 : index
    %385 = vector.load %arg3[%c128_152, %c384_153] : memref<256x768xf32, #tpu.memory_space<vmem>>, vector<128x384xf32>
    %cst_154 = arith.constant dense<0.000000e+00> : vector<8x384xf32>
    %386 = tpu.matmul %382, %385, %cst_154 {dimension_numbers = #tpu.dot_dimension_numbers<[1], [0], [0], [1], [0, 0, 1, 1], [], []>} : vector<8x128xf32>, vector<128x384xf32>, vector<8x384xf32> -> vector<8x384xf32>
    %387 = arith.index_cast %377 : i32 to index
    %c0_155 = arith.constant 0 : index
    %388 = vector.load %arg18[%387, %c0_155] : memref<64x384xf32, #tpu.memory_space<vmem>>, vector<8x384xf32>
    %389 = vector.extract_strided_slice %388 {offsets = [0, 0], sizes = [8, 128], strides = [1, 1]} : vector<8x384xf32> to vector<8x128xf32>
    %390 = vector.extract_strided_slice %384 {offsets = [0, 0], sizes = [8, 128], strides = [1, 1]} : vector<8x384xf32> to vector<8x128xf32>
    %391 = arith.addf %389, %390 : vector<8x128xf32>
    %392 = arith.negf %391 : vector<8x128xf32>
    %393 = math.exp %392 : vector<8x128xf32>
    %cst_156 = arith.constant 1.000000e+00 : f32
    %394 = vector.broadcast %cst_156 : f32 to vector<8x128xf32>
    %395 = arith.addf %394, %393 : vector<8x128xf32>
    %396 = arith.divf %394, %395 : vector<8x128xf32>
    %397 = vector.extract_strided_slice %388 {offsets = [0, 128], sizes = [8, 128], strides = [1, 1]} : vector<8x384xf32> to vector<8x128xf32>
    %398 = vector.extract_strided_slice %384 {offsets = [0, 128], sizes = [8, 128], strides = [1, 1]} : vector<8x384xf32> to vector<8x128xf32>
    %399 = arith.addf %397, %398 : vector<8x128xf32>
    %400 = arith.negf %399 : vector<8x128xf32>
    %401 = math.exp %400 : vector<8x128xf32>
    %cst_157 = arith.constant 1.000000e+00 : f32
    %402 = vector.broadcast %cst_157 : f32 to vector<8x128xf32>
    %403 = arith.addf %402, %401 : vector<8x128xf32>
    %404 = arith.divf %402, %403 : vector<8x128xf32>
    %405 = vector.extract_strided_slice %388 {offsets = [0, 256], sizes = [8, 128], strides = [1, 1]} : vector<8x384xf32> to vector<8x128xf32>
    %406 = vector.extract_strided_slice %384 {offsets = [0, 256], sizes = [8, 128], strides = [1, 1]} : vector<8x384xf32> to vector<8x128xf32>
    %407 = arith.addf %406, %17 : vector<8x128xf32>
    %408 = arith.mulf %396, %407 : vector<8x128xf32>
    %409 = arith.addf %405, %408 : vector<8x128xf32>
    %410 = math.tanh %409 : vector<8x128xf32>
    %411 = arith.subf %381, %410 : vector<8x128xf32>
    %412 = arith.mulf %404, %411 : vector<8x128xf32>
    %413 = arith.addf %410, %412 : vector<8x128xf32>
    %414 = arith.index_cast %380 : i32 to index
    %c0_158 = arith.constant 0 : index
    %415 = vector.load %arg19[%414, %c0_158] : memref<64x384xf32, #tpu.memory_space<vmem>>, vector<8x384xf32>
    %416 = vector.extract_strided_slice %415 {offsets = [0, 0], sizes = [8, 128], strides = [1, 1]} : vector<8x384xf32> to vector<8x128xf32>
    %417 = vector.extract_strided_slice %386 {offsets = [0, 0], sizes = [8, 128], strides = [1, 1]} : vector<8x384xf32> to vector<8x128xf32>
    %418 = arith.addf %416, %417 : vector<8x128xf32>
    %419 = arith.negf %418 : vector<8x128xf32>
    %420 = math.exp %419 : vector<8x128xf32>
    %cst_159 = arith.constant 1.000000e+00 : f32
    %421 = vector.broadcast %cst_159 : f32 to vector<8x128xf32>
    %422 = arith.addf %421, %420 : vector<8x128xf32>
    %423 = arith.divf %421, %422 : vector<8x128xf32>
    %424 = vector.extract_strided_slice %415 {offsets = [0, 128], sizes = [8, 128], strides = [1, 1]} : vector<8x384xf32> to vector<8x128xf32>
    %425 = vector.extract_strided_slice %386 {offsets = [0, 128], sizes = [8, 128], strides = [1, 1]} : vector<8x384xf32> to vector<8x128xf32>
    %426 = arith.addf %424, %425 : vector<8x128xf32>
    %427 = arith.negf %426 : vector<8x128xf32>
    %428 = math.exp %427 : vector<8x128xf32>
    %cst_160 = arith.constant 1.000000e+00 : f32
    %429 = vector.broadcast %cst_160 : f32 to vector<8x128xf32>
    %430 = arith.addf %429, %428 : vector<8x128xf32>
    %431 = arith.divf %429, %430 : vector<8x128xf32>
    %432 = vector.extract_strided_slice %415 {offsets = [0, 256], sizes = [8, 128], strides = [1, 1]} : vector<8x384xf32> to vector<8x128xf32>
    %433 = vector.extract_strided_slice %386 {offsets = [0, 256], sizes = [8, 128], strides = [1, 1]} : vector<8x384xf32> to vector<8x128xf32>
    %434 = arith.addf %433, %20 : vector<8x128xf32>
    %435 = arith.mulf %423, %434 : vector<8x128xf32>
    %436 = arith.addf %432, %435 : vector<8x128xf32>
    %437 = math.tanh %436 : vector<8x128xf32>
    %438 = arith.subf %382, %437 : vector<8x128xf32>
    %439 = arith.mulf %431, %438 : vector<8x128xf32>
    %440 = arith.addf %437, %439 : vector<8x128xf32>
    %c0_161 = arith.constant 0 : index
    %c0_162 = arith.constant 0 : index
    %441 = vector.load %arg20[%c0_161, %c0_162] : memref<8x256xf32, #tpu.memory_space<vmem>>, vector<8x128xf32>
    tpu.vector_store %arg20[%c0_161, %c0_162], %413 {strides = array<i32>} : memref<8x256xf32, #tpu.memory_space<vmem>>, vector<8x128xf32>,
    %c0_163 = arith.constant 0 : index
    %c128_164 = arith.constant 128 : index
    %442 = vector.load %arg20[%c0_163, %c128_164] : memref<8x256xf32, #tpu.memory_space<vmem>>, vector<8x128xf32>
    tpu.vector_store %arg20[%c0_163, %c128_164], %440 {strides = array<i32>} : memref<8x256xf32, #tpu.memory_space<vmem>>, vector<8x128xf32>,
    %443 = arith.index_cast %377 : i32 to index
    %c0_165 = arith.constant 0 : index
    %444 = vector.load %arg21[%443, %c0_165] : memref<64x256xf32, #tpu.memory_space<vmem>>, vector<8x128xf32>
    tpu.vector_store %arg21[%443, %c0_165], %413 {strides = array<i32>} : memref<64x256xf32, #tpu.memory_space<vmem>>, vector<8x128xf32>,
    %445 = arith.index_cast %380 : i32 to index
    %c128_166 = arith.constant 128 : index
    %446 = vector.load %arg21[%445, %c128_166] : memref<64x256xf32, #tpu.memory_space<vmem>>, vector<8x128xf32>
    tpu.vector_store %arg21[%445, %c128_166], %440 {strides = array<i32>} : memref<64x256xf32, #tpu.memory_space<vmem>>, vector<8x128xf32>,
    %c6_i32 = arith.constant 6 : i32
    %c8_i32_167 = arith.constant 8 : i32
    %447 = arith.muli %c6_i32, %c8_i32_167 : i32
    %448 = tpu.assume_multiple %447, 8 : i32
    %c7_i32_168 = arith.constant 7 : i32
    %449 = arith.subi %c7_i32_168, %c6_i32 : i32
    %c8_i32_169 = arith.constant 8 : i32
    %450 = arith.muli %449, %c8_i32_169 : i32
    %451 = tpu.assume_multiple %450, 8 : i32
    %c0_170 = arith.constant 0 : index
    %c0_171 = arith.constant 0 : index
    %452 = vector.load %arg20[%c0_170, %c0_171] : memref<8x256xf32, #tpu.memory_space<vmem>>, vector<8x128xf32>
    %c0_172 = arith.constant 0 : index
    %c128_173 = arith.constant 128 : index
    %453 = vector.load %arg20[%c0_172, %c128_173] : memref<8x256xf32, #tpu.memory_space<vmem>>, vector<8x128xf32>
    %c0_174 = arith.constant 0 : index
    %c0_175 = arith.constant 0 : index
    %454 = vector.load %arg3[%c0_174, %c0_175] : memref<256x768xf32, #tpu.memory_space<vmem>>, vector<128x384xf32>
    %cst_176 = arith.constant dense<0.000000e+00> : vector<8x384xf32>
    %455 = tpu.matmul %452, %454, %cst_176 {dimension_numbers = #tpu.dot_dimension_numbers<[1], [0], [0], [1], [0, 0, 1, 1], [], []>} : vector<8x128xf32>, vector<128x384xf32>, vector<8x384xf32> -> vector<8x384xf32>
    %c128_177 = arith.constant 128 : index
    %c384_178 = arith.constant 384 : index
    %456 = vector.load %arg3[%c128_177, %c384_178] : memref<256x768xf32, #tpu.memory_space<vmem>>, vector<128x384xf32>
    %cst_179 = arith.constant dense<0.000000e+00> : vector<8x384xf32>
    %457 = tpu.matmul %453, %456, %cst_179 {dimension_numbers = #tpu.dot_dimension_numbers<[1], [0], [0], [1], [0, 0, 1, 1], [], []>} : vector<8x128xf32>, vector<128x384xf32>, vector<8x384xf32> -> vector<8x384xf32>
    %458 = arith.index_cast %448 : i32 to index
    %c0_180 = arith.constant 0 : index
    %459 = vector.load %arg18[%458, %c0_180] : memref<64x384xf32, #tpu.memory_space<vmem>>, vector<8x384xf32>
    %460 = vector.extract_strided_slice %459 {offsets = [0, 0], sizes = [8, 128], strides = [1, 1]} : vector<8x384xf32> to vector<8x128xf32>
    %461 = vector.extract_strided_slice %455 {offsets = [0, 0], sizes = [8, 128], strides = [1, 1]} : vector<8x384xf32> to vector<8x128xf32>
    %462 = arith.addf %460, %461 : vector<8x128xf32>
    %463 = arith.negf %462 : vector<8x128xf32>
    %464 = math.exp %463 : vector<8x128xf32>
    %cst_181 = arith.constant 1.000000e+00 : f32
    %465 = vector.broadcast %cst_181 : f32 to vector<8x128xf32>
    %466 = arith.addf %465, %464 : vector<8x128xf32>
    %467 = arith.divf %465, %466 : vector<8x128xf32>
    %468 = vector.extract_strided_slice %459 {offsets = [0, 128], sizes = [8, 128], strides = [1, 1]} : vector<8x384xf32> to vector<8x128xf32>
    %469 = vector.extract_strided_slice %455 {offsets = [0, 128], sizes = [8, 128], strides = [1, 1]} : vector<8x384xf32> to vector<8x128xf32>
    %470 = arith.addf %468, %469 : vector<8x128xf32>
    %471 = arith.negf %470 : vector<8x128xf32>
    %472 = math.exp %471 : vector<8x128xf32>
    %cst_182 = arith.constant 1.000000e+00 : f32
    %473 = vector.broadcast %cst_182 : f32 to vector<8x128xf32>
    %474 = arith.addf %473, %472 : vector<8x128xf32>
    %475 = arith.divf %473, %474 : vector<8x128xf32>
    %476 = vector.extract_strided_slice %459 {offsets = [0, 256], sizes = [8, 128], strides = [1, 1]} : vector<8x384xf32> to vector<8x128xf32>
    %477 = vector.extract_strided_slice %455 {offsets = [0, 256], sizes = [8, 128], strides = [1, 1]} : vector<8x384xf32> to vector<8x128xf32>
    %478 = arith.addf %477, %17 : vector<8x128xf32>
    %479 = arith.mulf %467, %478 : vector<8x128xf32>
    %480 = arith.addf %476, %479 : vector<8x128xf32>
    %481 = math.tanh %480 : vector<8x128xf32>
    %482 = arith.subf %452, %481 : vector<8x128xf32>
    %483 = arith.mulf %475, %482 : vector<8x128xf32>
    %484 = arith.addf %481, %483 : vector<8x128xf32>
    %485 = arith.index_cast %451 : i32 to index
    %c0_183 = arith.constant 0 : index
    %486 = vector.load %arg19[%485, %c0_183] : memref<64x384xf32, #tpu.memory_space<vmem>>, vector<8x384xf32>
    %487 = vector.extract_strided_slice %486 {offsets = [0, 0], sizes = [8, 128], strides = [1, 1]} : vector<8x384xf32> to vector<8x128xf32>
    %488 = vector.extract_strided_slice %457 {offsets = [0, 0], sizes = [8, 128], strides = [1, 1]} : vector<8x384xf32> to vector<8x128xf32>
    %489 = arith.addf %487, %488 : vector<8x128xf32>
    %490 = arith.negf %489 : vector<8x128xf32>
    %491 = math.exp %490 : vector<8x128xf32>
    %cst_184 = arith.constant 1.000000e+00 : f32
    %492 = vector.broadcast %cst_184 : f32 to vector<8x128xf32>
    %493 = arith.addf %492, %491 : vector<8x128xf32>
    %494 = arith.divf %492, %493 : vector<8x128xf32>
    %495 = vector.extract_strided_slice %486 {offsets = [0, 128], sizes = [8, 128], strides = [1, 1]} : vector<8x384xf32> to vector<8x128xf32>
    %496 = vector.extract_strided_slice %457 {offsets = [0, 128], sizes = [8, 128], strides = [1, 1]} : vector<8x384xf32> to vector<8x128xf32>
    %497 = arith.addf %495, %496 : vector<8x128xf32>
    %498 = arith.negf %497 : vector<8x128xf32>
    %499 = math.exp %498 : vector<8x128xf32>
    %cst_185 = arith.constant 1.000000e+00 : f32
    %500 = vector.broadcast %cst_185 : f32 to vector<8x128xf32>
    %501 = arith.addf %500, %499 : vector<8x128xf32>
    %502 = arith.divf %500, %501 : vector<8x128xf32>
    %503 = vector.extract_strided_slice %486 {offsets = [0, 256], sizes = [8, 128], strides = [1, 1]} : vector<8x384xf32> to vector<8x128xf32>
    %504 = vector.extract_strided_slice %457 {offsets = [0, 256], sizes = [8, 128], strides = [1, 1]} : vector<8x384xf32> to vector<8x128xf32>
    %505 = arith.addf %504, %20 : vector<8x128xf32>
    %506 = arith.mulf %494, %505 : vector<8x128xf32>
    %507 = arith.addf %503, %506 : vector<8x128xf32>
    %508 = math.tanh %507 : vector<8x128xf32>
    %509 = arith.subf %453, %508 : vector<8x128xf32>
    %510 = arith.mulf %502, %509 : vector<8x128xf32>
    %511 = arith.addf %508, %510 : vector<8x128xf32>
    %c0_186 = arith.constant 0 : index
    %c0_187 = arith.constant 0 : index
    %512 = vector.load %arg20[%c0_186, %c0_187] : memref<8x256xf32, #tpu.memory_space<vmem>>, vector<8x128xf32>
    tpu.vector_store %arg20[%c0_186, %c0_187], %484 {strides = array<i32>} : memref<8x256xf32, #tpu.memory_space<vmem>>, vector<8x128xf32>,
    %c0_188 = arith.constant 0 : index
    %c128_189 = arith.constant 128 : index
    %513 = vector.load %arg20[%c0_188, %c128_189] : memref<8x256xf32, #tpu.memory_space<vmem>>, vector<8x128xf32>
    tpu.vector_store %arg20[%c0_188, %c128_189], %511 {strides = array<i32>} : memref<8x256xf32, #tpu.memory_space<vmem>>, vector<8x128xf32>,
    %514 = arith.index_cast %448 : i32 to index
    %c0_190 = arith.constant 0 : index
    %515 = vector.load %arg21[%514, %c0_190] : memref<64x256xf32, #tpu.memory_space<vmem>>, vector<8x128xf32>
    tpu.vector_store %arg21[%514, %c0_190], %484 {strides = array<i32>} : memref<64x256xf32, #tpu.memory_space<vmem>>, vector<8x128xf32>,
    %516 = arith.index_cast %451 : i32 to index
    %c128_191 = arith.constant 128 : index
    %517 = vector.load %arg21[%516, %c128_191] : memref<64x256xf32, #tpu.memory_space<vmem>>, vector<8x128xf32>
    tpu.vector_store %arg21[%516, %c128_191], %511 {strides = array<i32>} : memref<64x256xf32, #tpu.memory_space<vmem>>, vector<8x128xf32>,
    %c7_i32_192 = arith.constant 7 : i32
    %c8_i32_193 = arith.constant 8 : i32
    %518 = arith.muli %c7_i32_192, %c8_i32_193 : i32
    %519 = tpu.assume_multiple %518, 8 : i32
    %c7_i32_194 = arith.constant 7 : i32
    %520 = arith.subi %c7_i32_194, %c7_i32_192 : i32
    %c8_i32_195 = arith.constant 8 : i32
    %521 = arith.muli %520, %c8_i32_195 : i32
    %522 = tpu.assume_multiple %521, 8 : i32
    %c0_196 = arith.constant 0 : index
    %c0_197 = arith.constant 0 : index
    %523 = vector.load %arg20[%c0_196, %c0_197] : memref<8x256xf32, #tpu.memory_space<vmem>>, vector<8x128xf32>
    %c0_198 = arith.constant 0 : index
    %c128_199 = arith.constant 128 : index
    %524 = vector.load %arg20[%c0_198, %c128_199] : memref<8x256xf32, #tpu.memory_space<vmem>>, vector<8x128xf32>
    %c0_200 = arith.constant 0 : index
    %c0_201 = arith.constant 0 : index
    %525 = vector.load %arg3[%c0_200, %c0_201] : memref<256x768xf32, #tpu.memory_space<vmem>>, vector<128x384xf32>
    %cst_202 = arith.constant dense<0.000000e+00> : vector<8x384xf32>
    %526 = tpu.matmul %523, %525, %cst_202 {dimension_numbers = #tpu.dot_dimension_numbers<[1], [0], [0], [1], [0, 0, 1, 1], [], []>} : vector<8x128xf32>, vector<128x384xf32>, vector<8x384xf32> -> vector<8x384xf32>
    %c128_203 = arith.constant 128 : index
    %c384_204 = arith.constant 384 : index
    %527 = vector.load %arg3[%c128_203, %c384_204] : memref<256x768xf32, #tpu.memory_space<vmem>>, vector<128x384xf32>
    %cst_205 = arith.constant dense<0.000000e+00> : vector<8x384xf32>
    %528 = tpu.matmul %524, %527, %cst_205 {dimension_numbers = #tpu.dot_dimension_numbers<[1], [0], [0], [1], [0, 0, 1, 1], [], []>} : vector<8x128xf32>, vector<128x384xf32>, vector<8x384xf32> -> vector<8x384xf32>
    %529 = arith.index_cast %519 : i32 to index
    %c0_206 = arith.constant 0 : index
    %530 = vector.load %arg18[%529, %c0_206] : memref<64x384xf32, #tpu.memory_space<vmem>>, vector<8x384xf32>
    %531 = vector.extract_strided_slice %530 {offsets = [0, 0], sizes = [8, 128], strides = [1, 1]} : vector<8x384xf32> to vector<8x128xf32>
    %532 = vector.extract_strided_slice %526 {offsets = [0, 0], sizes = [8, 128], strides = [1, 1]} : vector<8x384xf32> to vector<8x128xf32>
    %533 = arith.addf %531, %532 : vector<8x128xf32>
    %534 = arith.negf %533 : vector<8x128xf32>
    %535 = math.exp %534 : vector<8x128xf32>
    %cst_207 = arith.constant 1.000000e+00 : f32
    %536 = vector.broadcast %cst_207 : f32 to vector<8x128xf32>
    %537 = arith.addf %536, %535 : vector<8x128xf32>
    %538 = arith.divf %536, %537 : vector<8x128xf32>
    %539 = vector.extract_strided_slice %530 {offsets = [0, 128], sizes = [8, 128], strides = [1, 1]} : vector<8x384xf32> to vector<8x128xf32>
    %540 = vector.extract_strided_slice %526 {offsets = [0, 128], sizes = [8, 128], strides = [1, 1]} : vector<8x384xf32> to vector<8x128xf32>
    %541 = arith.addf %539, %540 : vector<8x128xf32>
    %542 = arith.negf %541 : vector<8x128xf32>
    %543 = math.exp %542 : vector<8x128xf32>
    %cst_208 = arith.constant 1.000000e+00 : f32
    %544 = vector.broadcast %cst_208 : f32 to vector<8x128xf32>
    %545 = arith.addf %544, %543 : vector<8x128xf32>
    %546 = arith.divf %544, %545 : vector<8x128xf32>
    %547 = vector.extract_strided_slice %530 {offsets = [0, 256], sizes = [8, 128], strides = [1, 1]} : vector<8x384xf32> to vector<8x128xf32>
    %548 = vector.extract_strided_slice %526 {offsets = [0, 256], sizes = [8, 128], strides = [1, 1]} : vector<8x384xf32> to vector<8x128xf32>
    %549 = arith.addf %548, %17 : vector<8x128xf32>
    %550 = arith.mulf %538, %549 : vector<8x128xf32>
    %551 = arith.addf %547, %550 : vector<8x128xf32>
    %552 = math.tanh %551 : vector<8x128xf32>
    %553 = arith.subf %523, %552 : vector<8x128xf32>
    %554 = arith.mulf %546, %553 : vector<8x128xf32>
    %555 = arith.addf %552, %554 : vector<8x128xf32>
    %556 = arith.index_cast %522 : i32 to index
    %c0_209 = arith.constant 0 : index
    %557 = vector.load %arg19[%556, %c0_209] : memref<64x384xf32, #tpu.memory_space<vmem>>, vector<8x384xf32>
    %558 = vector.extract_strided_slice %557 {offsets = [0, 0], sizes = [8, 128], strides = [1, 1]} : vector<8x384xf32> to vector<8x128xf32>
    %559 = vector.extract_strided_slice %528 {offsets = [0, 0], sizes = [8, 128], strides = [1, 1]} : vector<8x384xf32> to vector<8x128xf32>
    %560 = arith.addf %558, %559 : vector<8x128xf32>
    %561 = arith.negf %560 : vector<8x128xf32>
    %562 = math.exp %561 : vector<8x128xf32>
    %cst_210 = arith.constant 1.000000e+00 : f32
    %563 = vector.broadcast %cst_210 : f32 to vector<8x128xf32>
    %564 = arith.addf %563, %562 : vector<8x128xf32>
    %565 = arith.divf %563, %564 : vector<8x128xf32>
    %566 = vector.extract_strided_slice %557 {offsets = [0, 128], sizes = [8, 128], strides = [1, 1]} : vector<8x384xf32> to vector<8x128xf32>
    %567 = vector.extract_strided_slice %528 {offsets = [0, 128], sizes = [8, 128], strides = [1, 1]} : vector<8x384xf32> to vector<8x128xf32>
    %568 = arith.addf %566, %567 : vector<8x128xf32>
    %569 = arith.negf %568 : vector<8x128xf32>
    %570 = math.exp %569 : vector<8x128xf32>
    %cst_211 = arith.constant 1.000000e+00 : f32
    %571 = vector.broadcast %cst_211 : f32 to vector<8x128xf32>
    %572 = arith.addf %571, %570 : vector<8x128xf32>
    %573 = arith.divf %571, %572 : vector<8x128xf32>
    %574 = vector.extract_strided_slice %557 {offsets = [0, 256], sizes = [8, 128], strides = [1, 1]} : vector<8x384xf32> to vector<8x128xf32>
    %575 = vector.extract_strided_slice %528 {offsets = [0, 256], sizes = [8, 128], strides = [1, 1]} : vector<8x384xf32> to vector<8x128xf32>
    %576 = arith.addf %575, %20 : vector<8x128xf32>
    %577 = arith.mulf %565, %576 : vector<8x128xf32>
    %578 = arith.addf %574, %577 : vector<8x128xf32>
    %579 = math.tanh %578 : vector<8x128xf32>
    %580 = arith.subf %524, %579 : vector<8x128xf32>
    %581 = arith.mulf %573, %580 : vector<8x128xf32>
    %582 = arith.addf %579, %581 : vector<8x128xf32>
    %c0_212 = arith.constant 0 : index
    %c0_213 = arith.constant 0 : index
    %583 = vector.load %arg20[%c0_212, %c0_213] : memref<8x256xf32, #tpu.memory_space<vmem>>, vector<8x128xf32>
    tpu.vector_store %arg20[%c0_212, %c0_213], %555 {strides = array<i32>} : memref<8x256xf32, #tpu.memory_space<vmem>>, vector<8x128xf32>,
    %c0_214 = arith.constant 0 : index
    %c128_215 = arith.constant 128 : index
    %584 = vector.load %arg20[%c0_214, %c128_215] : memref<8x256xf32, #tpu.memory_space<vmem>>, vector<8x128xf32>
    tpu.vector_store %arg20[%c0_214, %c128_215], %582 {strides = array<i32>} : memref<8x256xf32, #tpu.memory_space<vmem>>, vector<8x128xf32>,
    %585 = arith.index_cast %519 : i32 to index
    %c0_216 = arith.constant 0 : index
    %586 = vector.load %arg21[%585, %c0_216] : memref<64x256xf32, #tpu.memory_space<vmem>>, vector<8x128xf32>
    tpu.vector_store %arg21[%585, %c0_216], %555 {strides = array<i32>} : memref<64x256xf32, #tpu.memory_space<vmem>>, vector<8x128xf32>,
    %587 = arith.index_cast %522 : i32 to index
    %c128_217 = arith.constant 128 : index
    %588 = vector.load %arg21[%587, %c128_217] : memref<64x256xf32, #tpu.memory_space<vmem>>, vector<8x128xf32>
    tpu.vector_store %arg21[%587, %c128_217], %582 {strides = array<i32>} : memref<64x256xf32, #tpu.memory_space<vmem>>, vector<8x128xf32>,
    %c8_i32_218 = arith.constant 8 : i32
    %c0_219 = arith.constant 0 : index
    %c0_220 = arith.constant 0 : index
    %589 = vector.load %arg21[%c0_219, %c0_220] : memref<64x256xf32, #tpu.memory_space<vmem>>, vector<64x256xf32>
    %c0_221 = arith.constant 0 : index
    %c0_222 = arith.constant 0 : index
    %590 = vector.load %arg8[%c0_221, %c0_222] : memref<256x384xf32, #tpu.memory_space<vmem>>, vector<256x384xf32>
    %cst_223 = arith.constant dense<0.000000e+00> : vector<64x384xf32>
    %591 = tpu.matmul %589, %590, %cst_223 {dimension_numbers = #tpu.dot_dimension_numbers<[1], [0], [0], [1], [0, 0, 1, 1], [], []>} : vector<64x256xf32>, vector<256x384xf32>, vector<64x384xf32> -> vector<64x384xf32>
    %c0_224 = arith.constant 0 : index
    %c0_225 = arith.constant 0 : index
    %592 = vector.load %arg11[%c0_224, %c0_225] : memref<1x384xf32, #tpu.memory_space<vmem>>, vector<1x384xf32>
    %593 = vector.broadcast %592 : vector<1x384xf32> to vector<64x384xf32>
    %594 = arith.addf %591, %593 : vector<64x384xf32>
    %c0_226 = arith.constant 0 : index
    %c0_227 = arith.constant 0 : index
    %595 = vector.load %arg18[%c0_226, %c0_227] : memref<64x384xf32, #tpu.memory_space<vmem>>, vector<64x384xf32>
    tpu.vector_store %arg18[%c0_226, %c0_227], %594 {strides = array<i32>} : memref<64x384xf32, #tpu.memory_space<vmem>>, vector<64x384xf32>,
    %cst_228 = arith.constant 0.000000e+00 : f32
    %596 = vector.broadcast %cst_228 : f32 to vector<8x256xf32>
    %c0_229 = arith.constant 0 : index
    %c0_230 = arith.constant 0 : index
    %597 = vector.load %arg20[%c0_229, %c0_230] : memref<8x256xf32, #tpu.memory_space<vmem>>, vector<8x256xf32>
    tpu.vector_store %arg20[%c0_229, %c0_230], %596 {strides = array<i32>} : memref<8x256xf32, #tpu.memory_space<vmem>>, vector<8x256xf32>,
    %c0_231 = arith.constant 0 : index
    %c0_232 = arith.constant 0 : index
    %598 = vector.load %arg13[%c0_231, %c0_232] : memref<1x128xf32, #tpu.memory_space<vmem>>, vector<1x128xf32>
    %599 = vector.shape_cast %598 : vector<1x128xf32> to vector<1x128xf32>
    %600 = vector.broadcast %599 : vector<1x128xf32> to vector<8x128xf32>
    %c0_i32_233 = arith.constant 0 : i32
    %c8_i32_234 = arith.constant 8 : i32
    %601 = arith.muli %c0_i32_233, %c8_i32_234 : i32
    %602 = tpu.assume_multiple %601, 8 : i32
    %c0_235 = arith.constant 0 : index
    %c0_236 = arith.constant 0 : index
    %603 = vector.load %arg20[%c0_235, %c0_236] : memref<8x256xf32, #tpu.memory_space<vmem>>, vector<8x128xf32>
    %c0_237 = arith.constant 0 : index
    %c0_238 = arith.constant 0 : index
    %604 = vector.load %arg10[%c0_237, %c0_238] : memref<256x768xf32, #tpu.memory_space<vmem>>, vector<128x384xf32>
    %cst_239 = arith.constant dense<0.000000e+00> : vector<8x384xf32>
    %605 = tpu.matmul %603, %604, %cst_239 {dimension_numbers = #tpu.dot_dimension_numbers<[1], [0], [0], [1], [0, 0, 1, 1], [], []>} : vector<8x128xf32>, vector<128x384xf32>, vector<8x384xf32> -> vector<8x384xf32>
    %606 = arith.index_cast %602 : i32 to index
    %c0_240 = arith.constant 0 : index
    %607 = vector.load %arg18[%606, %c0_240] : memref<64x384xf32, #tpu.memory_space<vmem>>, vector<8x384xf32>
    %608 = vector.extract_strided_slice %607 {offsets = [0, 0], sizes = [8, 128], strides = [1, 1]} : vector<8x384xf32> to vector<8x128xf32>
    %609 = vector.extract_strided_slice %605 {offsets = [0, 0], sizes = [8, 128], strides = [1, 1]} : vector<8x384xf32> to vector<8x128xf32>
    %610 = arith.addf %608, %609 : vector<8x128xf32>
    %611 = arith.negf %610 : vector<8x128xf32>
    %612 = math.exp %611 : vector<8x128xf32>
    %cst_241 = arith.constant 1.000000e+00 : f32
    %613 = vector.broadcast %cst_241 : f32 to vector<8x128xf32>
    %614 = arith.addf %613, %612 : vector<8x128xf32>
    %615 = arith.divf %613, %614 : vector<8x128xf32>
    %616 = vector.extract_strided_slice %607 {offsets = [0, 128], sizes = [8, 128], strides = [1, 1]} : vector<8x384xf32> to vector<8x128xf32>
    %617 = vector.extract_strided_slice %605 {offsets = [0, 128], sizes = [8, 128], strides = [1, 1]} : vector<8x384xf32> to vector<8x128xf32>
    %618 = arith.addf %616, %617 : vector<8x128xf32>
    %619 = arith.negf %618 : vector<8x128xf32>
    %620 = math.exp %619 : vector<8x128xf32>
    %cst_242 = arith.constant 1.000000e+00 : f32
    %621 = vector.broadcast %cst_242 : f32 to vector<8x128xf32>
    %622 = arith.addf %621, %620 : vector<8x128xf32>
    %623 = arith.divf %621, %622 : vector<8x128xf32>
    %624 = vector.extract_strided_slice %607 {offsets = [0, 256], sizes = [8, 128], strides = [1, 1]} : vector<8x384xf32> to vector<8x128xf32>
    %625 = vector.extract_strided_slice %605 {offsets = [0, 256], sizes = [8, 128], strides = [1, 1]} : vector<8x384xf32> to vector<8x128xf32>
    %626 = arith.addf %625, %600 : vector<8x128xf32>
    %627 = arith.mulf %615, %626 : vector<8x128xf32>
    %628 = arith.addf %624, %627 : vector<8x128xf32>
    %629 = math.tanh %628 : vector<8x128xf32>
    %630 = arith.subf %603, %629 : vector<8x128xf32>
    %631 = arith.mulf %623, %630 : vector<8x128xf32>
    %632 = arith.addf %629, %631 : vector<8x128xf32>
    %c0_243 = arith.constant 0 : index
    %c0_244 = arith.constant 0 : index
    %633 = vector.load %arg20[%c0_243, %c0_244] : memref<8x256xf32, #tpu.memory_space<vmem>>, vector<8x128xf32>
    tpu.vector_store %arg20[%c0_243, %c0_244], %632 {strides = array<i32>} : memref<8x256xf32, #tpu.memory_space<vmem>>, vector<8x128xf32>,
    %c1_i32_245 = arith.constant 1 : i32
    %c8_i32_246 = arith.constant 8 : i32
    %634 = arith.muli %c1_i32_245, %c8_i32_246 : i32
    %635 = tpu.assume_multiple %634, 8 : i32
    %c0_247 = arith.constant 0 : index
    %c0_248 = arith.constant 0 : index
    %636 = vector.load %arg20[%c0_247, %c0_248] : memref<8x256xf32, #tpu.memory_space<vmem>>, vector<8x128xf32>
    %c0_249 = arith.constant 0 : index
    %c0_250 = arith.constant 0 : index
    %637 = vector.load %arg10[%c0_249, %c0_250] : memref<256x768xf32, #tpu.memory_space<vmem>>, vector<128x384xf32>
    %cst_251 = arith.constant dense<0.000000e+00> : vector<8x384xf32>
    %638 = tpu.matmul %636, %637, %cst_251 {dimension_numbers = #tpu.dot_dimension_numbers<[1], [0], [0], [1], [0, 0, 1, 1], [], []>} : vector<8x128xf32>, vector<128x384xf32>, vector<8x384xf32> -> vector<8x384xf32>
    %639 = arith.index_cast %635 : i32 to index
    %c0_252 = arith.constant 0 : index
    %640 = vector.load %arg18[%639, %c0_252] : memref<64x384xf32, #tpu.memory_space<vmem>>, vector<8x384xf32>
    %641 = vector.extract_strided_slice %640 {offsets = [0, 0], sizes = [8, 128], strides = [1, 1]} : vector<8x384xf32> to vector<8x128xf32>
    %642 = vector.extract_strided_slice %638 {offsets = [0, 0], sizes = [8, 128], strides = [1, 1]} : vector<8x384xf32> to vector<8x128xf32>
    %643 = arith.addf %641, %642 : vector<8x128xf32>
    %644 = arith.negf %643 : vector<8x128xf32>
    %645 = math.exp %644 : vector<8x128xf32>
    %cst_253 = arith.constant 1.000000e+00 : f32
    %646 = vector.broadcast %cst_253 : f32 to vector<8x128xf32>
    %647 = arith.addf %646, %645 : vector<8x128xf32>
    %648 = arith.divf %646, %647 : vector<8x128xf32>
    %649 = vector.extract_strided_slice %640 {offsets = [0, 128], sizes = [8, 128], strides = [1, 1]} : vector<8x384xf32> to vector<8x128xf32>
    %650 = vector.extract_strided_slice %638 {offsets = [0, 128], sizes = [8, 128], strides = [1, 1]} : vector<8x384xf32> to vector<8x128xf32>
    %651 = arith.addf %649, %650 : vector<8x128xf32>
    %652 = arith.negf %651 : vector<8x128xf32>
    %653 = math.exp %652 : vector<8x128xf32>
    %cst_254 = arith.constant 1.000000e+00 : f32
    %654 = vector.broadcast %cst_254 : f32 to vector<8x128xf32>
    %655 = arith.addf %654, %653 : vector<8x128xf32>
    %656 = arith.divf %654, %655 : vector<8x128xf32>
    %657 = vector.extract_strided_slice %640 {offsets = [0, 256], sizes = [8, 128], strides = [1, 1]} : vector<8x384xf32> to vector<8x128xf32>
    %658 = vector.extract_strided_slice %638 {offsets = [0, 256], sizes = [8, 128], strides = [1, 1]} : vector<8x384xf32> to vector<8x128xf32>
    %659 = arith.addf %658, %600 : vector<8x128xf32>
    %660 = arith.mulf %648, %659 : vector<8x128xf32>
    %661 = arith.addf %657, %660 : vector<8x128xf32>
    %662 = math.tanh %661 : vector<8x128xf32>
    %663 = arith.subf %636, %662 : vector<8x128xf32>
    %664 = arith.mulf %656, %663 : vector<8x128xf32>
    %665 = arith.addf %662, %664 : vector<8x128xf32>
    %c0_255 = arith.constant 0 : index
    %c0_256 = arith.constant 0 : index
    %666 = vector.load %arg20[%c0_255, %c0_256] : memref<8x256xf32, #tpu.memory_space<vmem>>, vector<8x128xf32>
    tpu.vector_store %arg20[%c0_255, %c0_256], %665 {strides = array<i32>} : memref<8x256xf32, #tpu.memory_space<vmem>>, vector<8x128xf32>,
    %c2_i32_257 = arith.constant 2 : i32
    %c8_i32_258 = arith.constant 8 : i32
    %667 = arith.muli %c2_i32_257, %c8_i32_258 : i32
    %668 = tpu.assume_multiple %667, 8 : i32
    %c0_259 = arith.constant 0 : index
    %c0_260 = arith.constant 0 : index
    %669 = vector.load %arg20[%c0_259, %c0_260] : memref<8x256xf32, #tpu.memory_space<vmem>>, vector<8x128xf32>
    %c0_261 = arith.constant 0 : index
    %c0_262 = arith.constant 0 : index
    %670 = vector.load %arg10[%c0_261, %c0_262] : memref<256x768xf32, #tpu.memory_space<vmem>>, vector<128x384xf32>
    %cst_263 = arith.constant dense<0.000000e+00> : vector<8x384xf32>
    %671 = tpu.matmul %669, %670, %cst_263 {dimension_numbers = #tpu.dot_dimension_numbers<[1], [0], [0], [1], [0, 0, 1, 1], [], []>} : vector<8x128xf32>, vector<128x384xf32>, vector<8x384xf32> -> vector<8x384xf32>
    %672 = arith.index_cast %668 : i32 to index
    %c0_264 = arith.constant 0 : index
    %673 = vector.load %arg18[%672, %c0_264] : memref<64x384xf32, #tpu.memory_space<vmem>>, vector<8x384xf32>
    %674 = vector.extract_strided_slice %673 {offsets = [0, 0], sizes = [8, 128], strides = [1, 1]} : vector<8x384xf32> to vector<8x128xf32>
    %675 = vector.extract_strided_slice %671 {offsets = [0, 0], sizes = [8, 128], strides = [1, 1]} : vector<8x384xf32> to vector<8x128xf32>
    %676 = arith.addf %674, %675 : vector<8x128xf32>
    %677 = arith.negf %676 : vector<8x128xf32>
    %678 = math.exp %677 : vector<8x128xf32>
    %cst_265 = arith.constant 1.000000e+00 : f32
    %679 = vector.broadcast %cst_265 : f32 to vector<8x128xf32>
    %680 = arith.addf %679, %678 : vector<8x128xf32>
    %681 = arith.divf %679, %680 : vector<8x128xf32>
    %682 = vector.extract_strided_slice %673 {offsets = [0, 128], sizes = [8, 128], strides = [1, 1]} : vector<8x384xf32> to vector<8x128xf32>
    %683 = vector.extract_strided_slice %671 {offsets = [0, 128], sizes = [8, 128], strides = [1, 1]} : vector<8x384xf32> to vector<8x128xf32>
    %684 = arith.addf %682, %683 : vector<8x128xf32>
    %685 = arith.negf %684 : vector<8x128xf32>
    %686 = math.exp %685 : vector<8x128xf32>
    %cst_266 = arith.constant 1.000000e+00 : f32
    %687 = vector.broadcast %cst_266 : f32 to vector<8x128xf32>
    %688 = arith.addf %687, %686 : vector<8x128xf32>
    %689 = arith.divf %687, %688 : vector<8x128xf32>
    %690 = vector.extract_strided_slice %673 {offsets = [0, 256], sizes = [8, 128], strides = [1, 1]} : vector<8x384xf32> to vector<8x128xf32>
    %691 = vector.extract_strided_slice %671 {offsets = [0, 256], sizes = [8, 128], strides = [1, 1]} : vector<8x384xf32> to vector<8x128xf32>
    %692 = arith.addf %691, %600 : vector<8x128xf32>
    %693 = arith.mulf %681, %692 : vector<8x128xf32>
    %694 = arith.addf %690, %693 : vector<8x128xf32>
    %695 = math.tanh %694 : vector<8x128xf32>
    %696 = arith.subf %669, %695 : vector<8x128xf32>
    %697 = arith.mulf %689, %696 : vector<8x128xf32>
    %698 = arith.addf %695, %697 : vector<8x128xf32>
    %c0_267 = arith.constant 0 : index
    %c0_268 = arith.constant 0 : index
    %699 = vector.load %arg20[%c0_267, %c0_268] : memref<8x256xf32, #tpu.memory_space<vmem>>, vector<8x128xf32>
    tpu.vector_store %arg20[%c0_267, %c0_268], %698 {strides = array<i32>} : memref<8x256xf32, #tpu.memory_space<vmem>>, vector<8x128xf32>,
    %c3_i32_269 = arith.constant 3 : i32
    %c8_i32_270 = arith.constant 8 : i32
    %700 = arith.muli %c3_i32_269, %c8_i32_270 : i32
    %701 = tpu.assume_multiple %700, 8 : i32
    %c0_271 = arith.constant 0 : index
    %c0_272 = arith.constant 0 : index
    %702 = vector.load %arg20[%c0_271, %c0_272] : memref<8x256xf32, #tpu.memory_space<vmem>>, vector<8x128xf32>
    %c0_273 = arith.constant 0 : index
    %c0_274 = arith.constant 0 : index
    %703 = vector.load %arg10[%c0_273, %c0_274] : memref<256x768xf32, #tpu.memory_space<vmem>>, vector<128x384xf32>
    %cst_275 = arith.constant dense<0.000000e+00> : vector<8x384xf32>
    %704 = tpu.matmul %702, %703, %cst_275 {dimension_numbers = #tpu.dot_dimension_numbers<[1], [0], [0], [1], [0, 0, 1, 1], [], []>} : vector<8x128xf32>, vector<128x384xf32>, vector<8x384xf32> -> vector<8x384xf32>
    %705 = arith.index_cast %701 : i32 to index
    %c0_276 = arith.constant 0 : index
    %706 = vector.load %arg18[%705, %c0_276] : memref<64x384xf32, #tpu.memory_space<vmem>>, vector<8x384xf32>
    %707 = vector.extract_strided_slice %706 {offsets = [0, 0], sizes = [8, 128], strides = [1, 1]} : vector<8x384xf32> to vector<8x128xf32>
    %708 = vector.extract_strided_slice %704 {offsets = [0, 0], sizes = [8, 128], strides = [1, 1]} : vector<8x384xf32> to vector<8x128xf32>
    %709 = arith.addf %707, %708 : vector<8x128xf32>
    %710 = arith.negf %709 : vector<8x128xf32>
    %711 = math.exp %710 : vector<8x128xf32>
    %cst_277 = arith.constant 1.000000e+00 : f32
    %712 = vector.broadcast %cst_277 : f32 to vector<8x128xf32>
    %713 = arith.addf %712, %711 : vector<8x128xf32>
    %714 = arith.divf %712, %713 : vector<8x128xf32>
    %715 = vector.extract_strided_slice %706 {offsets = [0, 128], sizes = [8, 128], strides = [1, 1]} : vector<8x384xf32> to vector<8x128xf32>
    %716 = vector.extract_strided_slice %704 {offsets = [0, 128], sizes = [8, 128], strides = [1, 1]} : vector<8x384xf32> to vector<8x128xf32>
    %717 = arith.addf %715, %716 : vector<8x128xf32>
    %718 = arith.negf %717 : vector<8x128xf32>
    %719 = math.exp %718 : vector<8x128xf32>
    %cst_278 = arith.constant 1.000000e+00 : f32
    %720 = vector.broadcast %cst_278 : f32 to vector<8x128xf32>
    %721 = arith.addf %720, %719 : vector<8x128xf32>
    %722 = arith.divf %720, %721 : vector<8x128xf32>
    %723 = vector.extract_strided_slice %706 {offsets = [0, 256], sizes = [8, 128], strides = [1, 1]} : vector<8x384xf32> to vector<8x128xf32>
    %724 = vector.extract_strided_slice %704 {offsets = [0, 256], sizes = [8, 128], strides = [1, 1]} : vector<8x384xf32> to vector<8x128xf32>
    %725 = arith.addf %724, %600 : vector<8x128xf32>
    %726 = arith.mulf %714, %725 : vector<8x128xf32>
    %727 = arith.addf %723, %726 : vector<8x128xf32>
    %728 = math.tanh %727 : vector<8x128xf32>
    %729 = arith.subf %702, %728 : vector<8x128xf32>
    %730 = arith.mulf %722, %729 : vector<8x128xf32>
    %731 = arith.addf %728, %730 : vector<8x128xf32>
    %c0_279 = arith.constant 0 : index
    %c0_280 = arith.constant 0 : index
    %732 = vector.load %arg20[%c0_279, %c0_280] : memref<8x256xf32, #tpu.memory_space<vmem>>, vector<8x128xf32>
    tpu.vector_store %arg20[%c0_279, %c0_280], %731 {strides = array<i32>} : memref<8x256xf32, #tpu.memory_space<vmem>>, vector<8x128xf32>,
    %c4_i32_281 = arith.constant 4 : i32
    %c8_i32_282 = arith.constant 8 : i32
    %733 = arith.muli %c4_i32_281, %c8_i32_282 : i32
    %734 = tpu.assume_multiple %733, 8 : i32
    %c0_283 = arith.constant 0 : index
    %c0_284 = arith.constant 0 : index
    %735 = vector.load %arg20[%c0_283, %c0_284] : memref<8x256xf32, #tpu.memory_space<vmem>>, vector<8x128xf32>
    %c0_285 = arith.constant 0 : index
    %c0_286 = arith.constant 0 : index
    %736 = vector.load %arg10[%c0_285, %c0_286] : memref<256x768xf32, #tpu.memory_space<vmem>>, vector<128x384xf32>
    %cst_287 = arith.constant dense<0.000000e+00> : vector<8x384xf32>
    %737 = tpu.matmul %735, %736, %cst_287 {dimension_numbers = #tpu.dot_dimension_numbers<[1], [0], [0], [1], [0, 0, 1, 1], [], []>} : vector<8x128xf32>, vector<128x384xf32>, vector<8x384xf32> -> vector<8x384xf32>
    %738 = arith.index_cast %734 : i32 to index
    %c0_288 = arith.constant 0 : index
    %739 = vector.load %arg18[%738, %c0_288] : memref<64x384xf32, #tpu.memory_space<vmem>>, vector<8x384xf32>
    %740 = vector.extract_strided_slice %739 {offsets = [0, 0], sizes = [8, 128], strides = [1, 1]} : vector<8x384xf32> to vector<8x128xf32>
    %741 = vector.extract_strided_slice %737 {offsets = [0, 0], sizes = [8, 128], strides = [1, 1]} : vector<8x384xf32> to vector<8x128xf32>
    %742 = arith.addf %740, %741 : vector<8x128xf32>
    %743 = arith.negf %742 : vector<8x128xf32>
    %744 = math.exp %743 : vector<8x128xf32>
    %cst_289 = arith.constant 1.000000e+00 : f32
    %745 = vector.broadcast %cst_289 : f32 to vector<8x128xf32>
    %746 = arith.addf %745, %744 : vector<8x128xf32>
    %747 = arith.divf %745, %746 : vector<8x128xf32>
    %748 = vector.extract_strided_slice %739 {offsets = [0, 128], sizes = [8, 128], strides = [1, 1]} : vector<8x384xf32> to vector<8x128xf32>
    %749 = vector.extract_strided_slice %737 {offsets = [0, 128], sizes = [8, 128], strides = [1, 1]} : vector<8x384xf32> to vector<8x128xf32>
    %750 = arith.addf %748, %749 : vector<8x128xf32>
    %751 = arith.negf %750 : vector<8x128xf32>
    %752 = math.exp %751 : vector<8x128xf32>
    %cst_290 = arith.constant 1.000000e+00 : f32
    %753 = vector.broadcast %cst_290 : f32 to vector<8x128xf32>
    %754 = arith.addf %753, %752 : vector<8x128xf32>
    %755 = arith.divf %753, %754 : vector<8x128xf32>
    %756 = vector.extract_strided_slice %739 {offsets = [0, 256], sizes = [8, 128], strides = [1, 1]} : vector<8x384xf32> to vector<8x128xf32>
    %757 = vector.extract_strided_slice %737 {offsets = [0, 256], sizes = [8, 128], strides = [1, 1]} : vector<8x384xf32> to vector<8x128xf32>
    %758 = arith.addf %757, %600 : vector<8x128xf32>
    %759 = arith.mulf %747, %758 : vector<8x128xf32>
    %760 = arith.addf %756, %759 : vector<8x128xf32>
    %761 = math.tanh %760 : vector<8x128xf32>
    %762 = arith.subf %735, %761 : vector<8x128xf32>
    %763 = arith.mulf %755, %762 : vector<8x128xf32>
    %764 = arith.addf %761, %763 : vector<8x128xf32>
    %c0_291 = arith.constant 0 : index
    %c0_292 = arith.constant 0 : index
    %765 = vector.load %arg20[%c0_291, %c0_292] : memref<8x256xf32, #tpu.memory_space<vmem>>, vector<8x128xf32>
    tpu.vector_store %arg20[%c0_291, %c0_292], %764 {strides = array<i32>} : memref<8x256xf32, #tpu.memory_space<vmem>>, vector<8x128xf32>,
    %c5_i32_293 = arith.constant 5 : i32
    %c8_i32_294 = arith.constant 8 : i32
    %766 = arith.muli %c5_i32_293, %c8_i32_294 : i32
    %767 = tpu.assume_multiple %766, 8 : i32
    %c0_295 = arith.constant 0 : index
    %c0_296 = arith.constant 0 : index
    %768 = vector.load %arg20[%c0_295, %c0_296] : memref<8x256xf32, #tpu.memory_space<vmem>>, vector<8x128xf32>
    %c0_297 = arith.constant 0 : index
    %c0_298 = arith.constant 0 : index
    %769 = vector.load %arg10[%c0_297, %c0_298] : memref<256x768xf32, #tpu.memory_space<vmem>>, vector<128x384xf32>
    %cst_299 = arith.constant dense<0.000000e+00> : vector<8x384xf32>
    %770 = tpu.matmul %768, %769, %cst_299 {dimension_numbers = #tpu.dot_dimension_numbers<[1], [0], [0], [1], [0, 0, 1, 1], [], []>} : vector<8x128xf32>, vector<128x384xf32>, vector<8x384xf32> -> vector<8x384xf32>
    %771 = arith.index_cast %767 : i32 to index
    %c0_300 = arith.constant 0 : index
    %772 = vector.load %arg18[%771, %c0_300] : memref<64x384xf32, #tpu.memory_space<vmem>>, vector<8x384xf32>
    %773 = vector.extract_strided_slice %772 {offsets = [0, 0], sizes = [8, 128], strides = [1, 1]} : vector<8x384xf32> to vector<8x128xf32>
    %774 = vector.extract_strided_slice %770 {offsets = [0, 0], sizes = [8, 128], strides = [1, 1]} : vector<8x384xf32> to vector<8x128xf32>
    %775 = arith.addf %773, %774 : vector<8x128xf32>
    %776 = arith.negf %775 : vector<8x128xf32>
    %777 = math.exp %776 : vector<8x128xf32>
    %cst_301 = arith.constant 1.000000e+00 : f32
    %778 = vector.broadcast %cst_301 : f32 to vector<8x128xf32>
    %779 = arith.addf %778, %777 : vector<8x128xf32>
    %780 = arith.divf %778, %779 : vector<8x128xf32>
    %781 = vector.extract_strided_slice %772 {offsets = [0, 128], sizes = [8, 128], strides = [1, 1]} : vector<8x384xf32> to vector<8x128xf32>
    %782 = vector.extract_strided_slice %770 {offsets = [0, 128], sizes = [8, 128], strides = [1, 1]} : vector<8x384xf32> to vector<8x128xf32>
    %783 = arith.addf %781, %782 : vector<8x128xf32>
    %784 = arith.negf %783 : vector<8x128xf32>
    %785 = math.exp %784 : vector<8x128xf32>
    %cst_302 = arith.constant 1.000000e+00 : f32
    %786 = vector.broadcast %cst_302 : f32 to vector<8x128xf32>
    %787 = arith.addf %786, %785 : vector<8x128xf32>
    %788 = arith.divf %786, %787 : vector<8x128xf32>
    %789 = vector.extract_strided_slice %772 {offsets = [0, 256], sizes = [8, 128], strides = [1, 1]} : vector<8x384xf32> to vector<8x128xf32>
    %790 = vector.extract_strided_slice %770 {offsets = [0, 256], sizes = [8, 128], strides = [1, 1]} : vector<8x384xf32> to vector<8x128xf32>
    %791 = arith.addf %790, %600 : vector<8x128xf32>
    %792 = arith.mulf %780, %791 : vector<8x128xf32>
    %793 = arith.addf %789, %792 : vector<8x128xf32>
    %794 = math.tanh %793 : vector<8x128xf32>
    %795 = arith.subf %768, %794 : vector<8x128xf32>
    %796 = arith.mulf %788, %795 : vector<8x128xf32>
    %797 = arith.addf %794, %796 : vector<8x128xf32>
    %c0_303 = arith.constant 0 : index
    %c0_304 = arith.constant 0 : index
    %798 = vector.load %arg20[%c0_303, %c0_304] : memref<8x256xf32, #tpu.memory_space<vmem>>, vector<8x128xf32>
    tpu.vector_store %arg20[%c0_303, %c0_304], %797 {strides = array<i32>} : memref<8x256xf32, #tpu.memory_space<vmem>>, vector<8x128xf32>,
    %c6_i32_305 = arith.constant 6 : i32
    %c8_i32_306 = arith.constant 8 : i32
    %799 = arith.muli %c6_i32_305, %c8_i32_306 : i32
    %800 = tpu.assume_multiple %799, 8 : i32
    %c0_307 = arith.constant 0 : index
    %c0_308 = arith.constant 0 : index
    %801 = vector.load %arg20[%c0_307, %c0_308] : memref<8x256xf32, #tpu.memory_space<vmem>>, vector<8x128xf32>
    %c0_309 = arith.constant 0 : index
    %c0_310 = arith.constant 0 : index
    %802 = vector.load %arg10[%c0_309, %c0_310] : memref<256x768xf32, #tpu.memory_space<vmem>>, vector<128x384xf32>
    %cst_311 = arith.constant dense<0.000000e+00> : vector<8x384xf32>
    %803 = tpu.matmul %801, %802, %cst_311 {dimension_numbers = #tpu.dot_dimension_numbers<[1], [0], [0], [1], [0, 0, 1, 1], [], []>} : vector<8x128xf32>, vector<128x384xf32>, vector<8x384xf32> -> vector<8x384xf32>
    %804 = arith.index_cast %800 : i32 to index
    %c0_312 = arith.constant 0 : index
    %805 = vector.load %arg18[%804, %c0_312] : memref<64x384xf32, #tpu.memory_space<vmem>>, vector<8x384xf32>
    %806 = vector.extract_strided_slice %805 {offsets = [0, 0], sizes = [8, 128], strides = [1, 1]} : vector<8x384xf32> to vector<8x128xf32>
    %807 = vector.extract_strided_slice %803 {offsets = [0, 0], sizes = [8, 128], strides = [1, 1]} : vector<8x384xf32> to vector<8x128xf32>
    %808 = arith.addf %806, %807 : vector<8x128xf32>
    %809 = arith.negf %808 : vector<8x128xf32>
    %810 = math.exp %809 : vector<8x128xf32>
    %cst_313 = arith.constant 1.000000e+00 : f32
    %811 = vector.broadcast %cst_313 : f32 to vector<8x128xf32>
    %812 = arith.addf %811, %810 : vector<8x128xf32>
    %813 = arith.divf %811, %812 : vector<8x128xf32>
    %814 = vector.extract_strided_slice %805 {offsets = [0, 128], sizes = [8, 128], strides = [1, 1]} : vector<8x384xf32> to vector<8x128xf32>
    %815 = vector.extract_strided_slice %803 {offsets = [0, 128], sizes = [8, 128], strides = [1, 1]} : vector<8x384xf32> to vector<8x128xf32>
    %816 = arith.addf %814, %815 : vector<8x128xf32>
    %817 = arith.negf %816 : vector<8x128xf32>
    %818 = math.exp %817 : vector<8x128xf32>
    %cst_314 = arith.constant 1.000000e+00 : f32
    %819 = vector.broadcast %cst_314 : f32 to vector<8x128xf32>
    %820 = arith.addf %819, %818 : vector<8x128xf32>
    %821 = arith.divf %819, %820 : vector<8x128xf32>
    %822 = vector.extract_strided_slice %805 {offsets = [0, 256], sizes = [8, 128], strides = [1, 1]} : vector<8x384xf32> to vector<8x128xf32>
    %823 = vector.extract_strided_slice %803 {offsets = [0, 256], sizes = [8, 128], strides = [1, 1]} : vector<8x384xf32> to vector<8x128xf32>
    %824 = arith.addf %823, %600 : vector<8x128xf32>
    %825 = arith.mulf %813, %824 : vector<8x128xf32>
    %826 = arith.addf %822, %825 : vector<8x128xf32>
    %827 = math.tanh %826 : vector<8x128xf32>
    %828 = arith.subf %801, %827 : vector<8x128xf32>
    %829 = arith.mulf %821, %828 : vector<8x128xf32>
    %830 = arith.addf %827, %829 : vector<8x128xf32>
    %c0_315 = arith.constant 0 : index
    %c0_316 = arith.constant 0 : index
    %831 = vector.load %arg20[%c0_315, %c0_316] : memref<8x256xf32, #tpu.memory_space<vmem>>, vector<8x128xf32>
    tpu.vector_store %arg20[%c0_315, %c0_316], %830 {strides = array<i32>} : memref<8x256xf32, #tpu.memory_space<vmem>>, vector<8x128xf32>,
    %c7_i32_317 = arith.constant 7 : i32
    %c8_i32_318 = arith.constant 8 : i32
    %832 = arith.muli %c7_i32_317, %c8_i32_318 : i32
    %833 = tpu.assume_multiple %832, 8 : i32
    %c0_319 = arith.constant 0 : index
    %c0_320 = arith.constant 0 : index
    %834 = vector.load %arg20[%c0_319, %c0_320] : memref<8x256xf32, #tpu.memory_space<vmem>>, vector<8x128xf32>
    %c0_321 = arith.constant 0 : index
    %c0_322 = arith.constant 0 : index
    %835 = vector.load %arg10[%c0_321, %c0_322] : memref<256x768xf32, #tpu.memory_space<vmem>>, vector<128x384xf32>
    %cst_323 = arith.constant dense<0.000000e+00> : vector<8x384xf32>
    %836 = tpu.matmul %834, %835, %cst_323 {dimension_numbers = #tpu.dot_dimension_numbers<[1], [0], [0], [1], [0, 0, 1, 1], [], []>} : vector<8x128xf32>, vector<128x384xf32>, vector<8x384xf32> -> vector<8x384xf32>
    %837 = arith.index_cast %833 : i32 to index
    %c0_324 = arith.constant 0 : index
    %838 = vector.load %arg18[%837, %c0_324] : memref<64x384xf32, #tpu.memory_space<vmem>>, vector<8x384xf32>
    %839 = vector.extract_strided_slice %838 {offsets = [0, 0], sizes = [8, 128], strides = [1, 1]} : vector<8x384xf32> to vector<8x128xf32>
    %840 = vector.extract_strided_slice %836 {offsets = [0, 0], sizes = [8, 128], strides = [1, 1]} : vector<8x384xf32> to vector<8x128xf32>
    %841 = arith.addf %839, %840 : vector<8x128xf32>
    %842 = arith.negf %841 : vector<8x128xf32>
    %843 = math.exp %842 : vector<8x128xf32>
    %cst_325 = arith.constant 1.000000e+00 : f32
    %844 = vector.broadcast %cst_325 : f32 to vector<8x128xf32>
    %845 = arith.addf %844, %843 : vector<8x128xf32>
    %846 = arith.divf %844, %845 : vector<8x128xf32>
    %847 = vector.extract_strided_slice %838 {offsets = [0, 128], sizes = [8, 128], strides = [1, 1]} : vector<8x384xf32> to vector<8x128xf32>
    %848 = vector.extract_strided_slice %836 {offsets = [0, 128], sizes = [8, 128], strides = [1, 1]} : vector<8x384xf32> to vector<8x128xf32>
    %849 = arith.addf %847, %848 : vector<8x128xf32>
    %850 = arith.negf %849 : vector<8x128xf32>
    %851 = math.exp %850 : vector<8x128xf32>
    %cst_326 = arith.constant 1.000000e+00 : f32
    %852 = vector.broadcast %cst_326 : f32 to vector<8x128xf32>
    %853 = arith.addf %852, %851 : vector<8x128xf32>
    %854 = arith.divf %852, %853 : vector<8x128xf32>
    %855 = vector.extract_strided_slice %838 {offsets = [0, 256], sizes = [8, 128], strides = [1, 1]} : vector<8x384xf32> to vector<8x128xf32>
    %856 = vector.extract_strided_slice %836 {offsets = [0, 256], sizes = [8, 128], strides = [1, 1]} : vector<8x384xf32> to vector<8x128xf32>
    %857 = arith.addf %856, %600 : vector<8x128xf32>
    %858 = arith.mulf %846, %857 : vector<8x128xf32>
    %859 = arith.addf %855, %858 : vector<8x128xf32>
    %860 = math.tanh %859 : vector<8x128xf32>
    %861 = arith.subf %834, %860 : vector<8x128xf32>
    %862 = arith.mulf %854, %861 : vector<8x128xf32>
    %863 = arith.addf %860, %862 : vector<8x128xf32>
    %c0_327 = arith.constant 0 : index
    %c0_328 = arith.constant 0 : index
    %864 = vector.load %arg20[%c0_327, %c0_328] : memref<8x256xf32, #tpu.memory_space<vmem>>, vector<8x128xf32>
    tpu.vector_store %arg20[%c0_327, %c0_328], %863 {strides = array<i32>} : memref<8x256xf32, #tpu.memory_space<vmem>>, vector<8x128xf32>,
    %c8_i32_329 = arith.constant 8 : i32
    %865 = vector.extract_strided_slice %589 {offsets = [56, 0], sizes = [8, 256], strides = [1, 1]} : vector<64x256xf32> to vector<8x256xf32>
    %c0_330 = arith.constant 0 : index
    %c0_331 = arith.constant 0 : index
    %866 = vector.load %arg9[%c0_330, %c0_331] : memref<256x384xf32, #tpu.memory_space<vmem>>, vector<256x384xf32>
    %cst_332 = arith.constant dense<0.000000e+00> : vector<8x384xf32>
    %867 = tpu.matmul %865, %866, %cst_332 {dimension_numbers = #tpu.dot_dimension_numbers<[1], [0], [0], [1], [0, 0, 1, 1], [], []>} : vector<8x256xf32>, vector<256x384xf32>, vector<8x384xf32> -> vector<8x384xf32>
    %c0_333 = arith.constant 0 : index
    %c0_334 = arith.constant 0 : index
    %868 = vector.load %arg12[%c0_333, %c0_334] : memref<1x384xf32, #tpu.memory_space<vmem>>, vector<1x384xf32>
    %869 = vector.broadcast %868 : vector<1x384xf32> to vector<8x384xf32>
    %870 = arith.addf %867, %869 : vector<8x384xf32>
    %871 = vector.extract_strided_slice %870 {offsets = [0, 0], sizes = [8, 128], strides = [1, 1]} : vector<8x384xf32> to vector<8x128xf32>
    %872 = arith.negf %871 : vector<8x128xf32>
    %873 = math.exp %872 : vector<8x128xf32>
    %cst_335 = arith.constant 1.000000e+00 : f32
    %874 = vector.broadcast %cst_335 : f32 to vector<8x128xf32>
    %875 = arith.addf %874, %873 : vector<8x128xf32>
    %876 = arith.divf %874, %875 : vector<8x128xf32>
    %877 = vector.extract_strided_slice %870 {offsets = [0, 128], sizes = [8, 128], strides = [1, 1]} : vector<8x384xf32> to vector<8x128xf32>
    %878 = arith.negf %877 : vector<8x128xf32>
    %879 = math.exp %878 : vector<8x128xf32>
    %cst_336 = arith.constant 1.000000e+00 : f32
    %880 = vector.broadcast %cst_336 : f32 to vector<8x128xf32>
    %881 = arith.addf %880, %879 : vector<8x128xf32>
    %882 = arith.divf %880, %881 : vector<8x128xf32>
    %883 = vector.extract_strided_slice %870 {offsets = [0, 256], sizes = [8, 128], strides = [1, 1]} : vector<8x384xf32> to vector<8x128xf32>
    %c0_337 = arith.constant 0 : index
    %c0_338 = arith.constant 0 : index
    %884 = vector.load %arg14[%c0_337, %c0_338] : memref<1x128xf32, #tpu.memory_space<vmem>>, vector<1x128xf32>
    %885 = vector.broadcast %884 : vector<1x128xf32> to vector<8x128xf32>
    %886 = arith.mulf %876, %885 : vector<8x128xf32>
    %887 = arith.addf %883, %886 : vector<8x128xf32>
    %888 = math.tanh %887 : vector<8x128xf32>
    %889 = arith.mulf %882, %888 : vector<8x128xf32>
    %890 = arith.subf %888, %889 : vector<8x128xf32>
    %c0_339 = arith.constant 0 : index
    %c0_340 = arith.constant 0 : index
    %891 = vector.load %arg20[%c0_339, %c0_340] : memref<8x256xf32, #tpu.memory_space<vmem>>, vector<8x128xf32>
    %c0_341 = arith.constant 0 : index
    %c0_342 = arith.constant 0 : index
    %892 = vector.load %arg15[%c0_341, %c0_342] : memref<256x128xf32, #tpu.memory_space<vmem>>, vector<128x128xf32>
    %cst_343 = arith.constant dense<0.000000e+00> : vector<8x128xf32>
    %893 = tpu.matmul %891, %892, %cst_343 {dimension_numbers = #tpu.dot_dimension_numbers<[1], [0], [0], [1], [0, 0, 1, 1], [], []>} : vector<8x128xf32>, vector<128x128xf32>, vector<8x128xf32> -> vector<8x128xf32>
    %c128_344 = arith.constant 128 : index
    %c0_345 = arith.constant 0 : index
    %894 = vector.load %arg15[%c128_344, %c0_345] : memref<256x128xf32, #tpu.memory_space<vmem>>, vector<128x128xf32>
    %cst_346 = arith.constant dense<0.000000e+00> : vector<8x128xf32>
    %895 = tpu.matmul %890, %894, %cst_346 {dimension_numbers = #tpu.dot_dimension_numbers<[1], [0], [0], [1], [0, 0, 1, 1], [], []>} : vector<8x128xf32>, vector<128x128xf32>, vector<8x128xf32> -> vector<8x128xf32>
    %896 = arith.addf %893, %895 : vector<8x128xf32>
    %c0_347 = arith.constant 0 : index
    %c0_348 = arith.constant 0 : index
    %897 = vector.load %arg16[%c0_347, %c0_348] : memref<1x128xf32, #tpu.memory_space<vmem>>, vector<1x128xf32>
    %898 = vector.broadcast %897 : vector<1x128xf32> to vector<8x128xf32>
    %899 = arith.addf %896, %898 : vector<8x128xf32>
    %c0_349 = arith.constant 0 : index
    %c0_350 = arith.constant 0 : index
    %900 = vector.load %arg17[%c0_349, %c0_350] : memref<8x128xf32, #tpu.memory_space<vmem>>, vector<8x128xf32>
    tpu.vector_store %arg17[%c0_349, %c0_350], %899 {strides = array<i32>} : memref<8x128xf32, #tpu.memory_space<vmem>>, vector<8x128xf32>,
    return
  }
}

</mosaic_0001>

<llo_original>
// kernel: tpu_custom_call.1
$region0: #{tpu_custom_call.1}
  #allocation0 [shape = 'u32[]', space=smem, size = 0x4, offset = 0x4, fixed_abs, tag = 'smem constant byte address 0x4 - core index']
  #allocation1 [shape = 'u32[144,128]{1,0:T(1,128)}', space=vmem, size = 0x12000, scoped, tag = 'internal scratch']
  #allocation2 [shape = 'f32[64,384]{1,0:T(8,128)}', space=vmem, size = 0x18000, scoped, tag = 'scratch operand']
  #allocation3 [shape = 'f32[64,384]{1,0:T(8,128)}', space=vmem, size = 0x18000, scoped, tag = 'scratch operand']
  #allocation4 [shape = 'f32[8,256]{1,0:T(8,128)}', space=vmem, size = 0x2000, scoped, tag = 'scratch operand']
  #allocation5 [shape = 'f32[64,256]{1,0:T(8,128)}', space=vmem, size = 0x10000, scoped, tag = 'scratch operand']
  %s0 = inlined_call_operand.vmem [shape: f32[64,16], index: 0, kind: input, shape index: {}]
  %s1 = inlined_call_operand.vmem [shape: f32[16,384], index: 1, kind: input, shape index: {}]
  %s2 = inlined_call_operand.hbm [shape: f32[16,384], index: 2, kind: input, shape index: {}]
  %s3 = inlined_call_operand.hbm [shape: f32[256,768], index: 3, kind: input, shape index: {}]
  %s4 = inlined_call_operand.vmem [shape: f32[1,384], index: 4, kind: input, shape index: {}]
  %s5 = inlined_call_operand.vmem [shape: f32[1,384], index: 5, kind: input, shape index: {}]
  %s6 = inlined_call_operand.vmem [shape: f32[1,128], index: 6, kind: input, shape index: {}]
  %s7 = inlined_call_operand.vmem [shape: f32[1,128], index: 7, kind: input, shape index: {}]
  %s8 = inlined_call_operand.hbm [shape: f32[256,384], index: 8, kind: input, shape index: {}]
  %s9 = inlined_call_operand.hbm [shape: f32[256,384], index: 9, kind: input, shape index: {}]
  %s10 = inlined_call_operand.hbm [shape: f32[256,768], index: 10, kind: input, shape index: {}]
  %s11 = inlined_call_operand.vmem [shape: f32[1,384], index: 11, kind: input, shape index: {}]
  %s12 = inlined_call_operand.vmem [shape: f32[1,384], index: 12, kind: input, shape index: {}]
  %s13 = inlined_call_operand.vmem [shape: f32[1,128], index: 13, kind: input, shape index: {}]
  %s14 = inlined_call_operand.vmem [shape: f32[1,128], index: 14, kind: input, shape index: {}]
  %s15 = inlined_call_operand.hbm [shape: f32[256,128], index: 15, kind: input, shape index: {}]
  %s16 = inlined_call_operand.vmem [shape: f32[1,128], index: 16, kind: input, shape index: {}]
  %s17 = inlined_call_operand.hbm [shape: f32[8,128], index: 17, kind: output, shape index: {}]
  %s18 = sld [smem:[#allocation0]]
  $region102: #{tpu_custom_call.1} parent=0
    _
  %s20 = ssub.s32 1, %s18
  %s21 = scalar_select 0, %s20, %s18
  $region1: #{tpu_custom_call.1} parent=0
    #allocation6 [shape = 'u8[24576]{0}', space=vmem, size = 0x6000, scoped, tag = 'input window, operand 2, single buffered']
    #allocation7 [shape = 's32[1]{0}', space=sflag, size = 0x4, scoped, tag = 'scoped memory for tpu_custom_call.1']
    #allocation8 [shape = 's32[1]{0}', space=sflag, size = 0x4, scoped, tag = 'scoped memory for tpu_custom_call.1']
    #allocation9 [shape = 'u8[786432]{0}', space=vmem, size = 0xc0000, scoped, tag = 'input window, operand 3, single buffered']
    #allocation10 [shape = 's32[1]{0}', space=sflag, size = 0x4, scoped, tag = 'scoped memory for tpu_custom_call.1']
    #allocation11 [shape = 'u8[393216]{0}', space=vmem, size = 0x60000, scoped, tag = 'input window, operand 8, single buffered']
    #allocation12 [shape = 'u8[393216]{0}', space=vmem, size = 0x60000, scoped, tag = 'input window, operand 9, single buffered']
    #allocation13 [shape = 's32[1]{0}', space=sflag, size = 0x4, scoped, tag = 'scoped memory for tpu_custom_call.1']
    #allocation14 [shape = 'u8[786432]{0}', space=vmem, size = 0xc0000, scoped, tag = 'input window, operand 10, single buffered']
    #allocation15 [shape = 'u8[131072]{0}', space=vmem, size = 0x20000, scoped, tag = 'input window, operand 15, single buffered']
    #allocation16 [shape = 's32[1]{0}', space=sflag, size = 0x4, scoped, tag = 'scoped memory for tpu_custom_call.1']
    #allocation17 [shape = 'u8[4096]{0}', space=vmem, size = 0x1000, scoped, tag = 'output window, operand 0, single buffered']
    %22 = vsyncpa [#allocation7], 0
    %23 = vsyncpa [#allocation10], 0
    %24 = vsyncpa [#allocation13], 0
    %25 = vsyncpa [#allocation16], 0
    %26 = vsyncpa [#allocation8], 0
    // Predicated region
    $region2: #{tpu_custom_call.1} parent=1 // pred_check
      _
    $region3: #{tpu_custom_call.1} parent=1 // pred_check_branch
      %28 = sbr.rel (0) target = $region5
    $region4: #{tpu_custom_call.1} parent=1 // pred_region
      _
    $region5: #{tpu_custom_call.1} parent=1 // pred_fallthru
      _
    // Predicated region
    $region6: #{tpu_custom_call.1} parent=1 // pred_check
      _
    $region7: #{tpu_custom_call.1} parent=1 // pred_check_branch
      %30 = sbr.rel (0) target = $region9
    $region8: #{tpu_custom_call.1} parent=1 // pred_region
      _
    $region9: #{tpu_custom_call.1} parent=1 // pred_fallthru
      _
    // Predicated region
    $region10: #{tpu_custom_call.1} parent=1 // pred_check
      _
    $region11: #{tpu_custom_call.1} parent=1 // pred_check_branch
      %32 = sbr.rel (0) target = $region13
    $region12: #{tpu_custom_call.1} parent=1 // pred_region
      %s34 = ssub.s32 768, 768
      %35 = vsyncadd [#allocation7], %s34
      %s36 = sshll.u32 [#allocation6], 4
      %s37 = int_to_ptr.vmem [resolvable:$true] %s36
      %42 = dma.hbm_to_vmem [thread:$0]  %s2, 768, %s37, [#allocation7], 384, 384, 24
    $region13: #{tpu_custom_call.1} parent=1 // pred_fallthru
      _
    // Predicated region
    $region14: #{tpu_custom_call.1} parent=1 // pred_check
      _
    $region15: #{tpu_custom_call.1} parent=1 // pred_check_branch
      %44 = sbr.rel (0) target = $region17
    $region16: #{tpu_custom_call.1} parent=1 // pred_region
      %s46 = ssub.s32 24576, 24576
      %47 = vsyncadd [#allocation10], %s46
      %s48 = sshll.u32 [#allocation9], 4
      %s49 = int_to_ptr.vmem [resolvable:$true] %s48
      %54 = dma.hbm_to_vmem [thread:$0]  %s3, 24576, %s49, [#allocation10], 768, 768, 48
    $region17: #{tpu_custom_call.1} parent=1 // pred_fallthru
      _
    // Predicated region
    $region18: #{tpu_custom_call.1} parent=1 // pred_check
      _
    $region19: #{tpu_custom_call.1} parent=1 // pred_check_branch
      %56 = sbr.rel (0) target = $region21
    $region20: #{tpu_custom_call.1} parent=1 // pred_region
      _
    $region21: #{tpu_custom_call.1} parent=1 // pred_fallthru
      _
    // Predicated region
    $region22: #{tpu_custom_call.1} parent=1 // pred_check
      _
    $region23: #{tpu_custom_call.1} parent=1 // pred_check_branch
      %58 = sbr.rel (0) target = $region25
    $region24: #{tpu_custom_call.1} parent=1 // pred_region
      _
    $region25: #{tpu_custom_call.1} parent=1 // pred_fallthru
      _
    // Predicated region
    $region26: #{tpu_custom_call.1} parent=1 // pred_check
      _
    $region27: #{tpu_custom_call.1} parent=1 // pred_check_branch
      %60 = sbr.rel (0) target = $region29
    $region28: #{tpu_custom_call.1} parent=1 // pred_region
      _
    $region29: #{tpu_custom_call.1} parent=1 // pred_fallthru
      _
    // Predicated region
    $region30: #{tpu_custom_call.1} parent=1 // pred_check
      _
    $region31: #{tpu_custom_call.1} parent=1 // pred_check_branch
      %62 = sbr.rel (0) target = $region33
    $region32: #{tpu_custom_call.1} parent=1 // pred_region
      _
    $region33: #{tpu_custom_call.1} parent=1 // pred_fallthru
      _
    // Predicated region
    $region34: #{tpu_custom_call.1} parent=1 // pred_check
      _
    $region35: #{tpu_custom_call.1} parent=1 // pred_check_branch
      %64 = sbr.rel (0) target = $region37
    $region36: #{tpu_custom_call.1} parent=1 // pred_region
      %s66 = ssub.s32 12288, 12288
      %67 = vsyncadd [#allocation10], %s66
      %s68 = sshll.u32 [#allocation11], 4
      %s69 = int_to_ptr.vmem [resolvable:$true] %s68
      %74 = dma.hbm_to_vmem [thread:$0]  %s8, 12288, %s69, [#allocation10], 384, 384, 24
    $region37: #{tpu_custom_call.1} parent=1 // pred_fallthru
      _
    // Predicated region
    $region38: #{tpu_custom_call.1} parent=1 // pred_check
      _
    $region39: #{tpu_custom_call.1} parent=1 // pred_check_branch
      %76 = sbr.rel (0) target = $region41
    $region40: #{tpu_custom_call.1} parent=1 // pred_region
      %s78 = ssub.s32 12288, 12288
      %79 = vsyncadd [#allocation13], %s78
      %s80 = sshll.u32 [#allocation12], 4
      %s81 = int_to_ptr.vmem [resolvable:$true] %s80
      %86 = dma.hbm_to_vmem [thread:$0]  %s9, 12288, %s81, [#allocation13], 384, 384, 24
    $region41: #{tpu_custom_call.1} parent=1 // pred_fallthru
      _
    // Predicated region
    $region42: #{tpu_custom_call.1} parent=1 // pred_check
      _
    $region43: #{tpu_custom_call.1} parent=1 // pred_check_branch
      %88 = sbr.rel (0) target = $region45
    $region44: #{tpu_custom_call.1} parent=1 // pred_region
      %s90 = ssub.s32 24576, 24576
      %91 = vsyncadd [#allocation13], %s90
      %s92 = sshll.u32 [#allocation14], 4
      %s93 = int_to_ptr.vmem [resolvable:$true] %s92
      %98 = dma.hbm_to_vmem [thread:$0]  %s10, 24576, %s93, [#allocation13], 768, 768, 48
    $region45: #{tpu_custom_call.1} parent=1 // pred_fallthru
      _
    // Predicated region
    $region46: #{tpu_custom_call.1} parent=1 // pred_check
      _
    $region47: #{tpu_custom_call.1} parent=1 // pred_check_branch
      %100 = sbr.rel (0) target = $region49
    $region48: #{tpu_custom_call.1} parent=1 // pred_region
      _
    $region49: #{tpu_custom_call.1} parent=1 // pred_fallthru
      _
    // Predicated region
    $region50: #{tpu_custom_call.1} parent=1 // pred_check
      _
    $region51: #{tpu_custom_call.1} parent=1 // pred_check_branch
      %102 = sbr.rel (0) target = $region53
    $region52: #{tpu_custom_call.1} parent=1 // pred_region
      _
    $region53: #{tpu_custom_call.1} parent=1 // pred_fallthru
      _
    // Predicated region
    $region54: #{tpu_custom_call.1} parent=1 // pred_check
      _
    $region55: #{tpu_custom_call.1} parent=1 // pred_check_branch
      %104 = sbr.rel (0) target = $region57
    $region56: #{tpu_custom_call.1} parent=1 // pred_region
      _
    $region57: #{tpu_custom_call.1} parent=1 // pred_fallthru
      _
    // Predicated region
    $region58: #{tpu_custom_call.1} parent=1 // pred_check
      _
    $region59: #{tpu_custom_call.1} parent=1 // pred_check_branch
      %106 = sbr.rel (0) target = $region61
    $region60: #{tpu_custom_call.1} parent=1 // pred_region
      _
    $region61: #{tpu_custom_call.1} parent=1 // pred_fallthru
      _
    // Predicated region
    $region62: #{tpu_custom_call.1} parent=1 // pred_check
      _
    $region63: #{tpu_custom_call.1} parent=1 // pred_check_branch
      %108 = sbr.rel (0) target = $region65
    $region64: #{tpu_custom_call.1} parent=1 // pred_region
      %s110 = ssub.s32 4096, 4096
      %111 = vsyncadd [#allocation16], %s110
      %s112 = sshll.u32 [#allocation15], 4
      %s113 = int_to_ptr.vmem [resolvable:$true] %s112
      %118 = dma.hbm_to_vmem [thread:$0]  %s15, 4096, %s113, [#allocation16], 128, 128, 8
    $region65: #{tpu_custom_call.1} parent=1 // pred_fallthru
      _
    // Predicated region
    $region66: #{tpu_custom_call.1} parent=1 // pred_check
      _
    $region67: #{tpu_custom_call.1} parent=1 // pred_check_branch
      %120 = sbr.rel (0) target = $region69
    $region68: #{tpu_custom_call.1} parent=1 // pred_region
      _
    $region69: #{tpu_custom_call.1} parent=1 // pred_fallthru
      _
    // Predicated region
    $region70: #{tpu_custom_call.1} parent=1 // pred_check
      _
    $region71: #{tpu_custom_call.1} parent=1 // pred_check_branch
      %122 = sbr.rel (0) target = $region73
    $region72: #{tpu_custom_call.1} parent=1 // pred_region
      %123 = dma.done [#allocation7], 768
    $region73: #{tpu_custom_call.1} parent=1 // pred_fallthru
      _
    // Predicated region
    $region74: #{tpu_custom_call.1} parent=1 // pred_check
      _
    $region75: #{tpu_custom_call.1} parent=1 // pred_check_branch
      %125 = sbr.rel (0) target = $region77
    $region76: #{tpu_custom_call.1} parent=1 // pred_region
      %126 = dma.done [#allocation10], 24576
    $region77: #{tpu_custom_call.1} parent=1 // pred_fallthru
      _
    // Predicated region
    $region78: #{tpu_custom_call.1} parent=1 // pred_check
      _
    $region79: #{tpu_custom_call.1} parent=1 // pred_check_branch
      %128 = sbr.rel (0) target = $region81
    $region80: #{tpu_custom_call.1} parent=1 // pred_region
      %129 = dma.done [#allocation10], 12288
    $region81: #{tpu_custom_call.1} parent=1 // pred_fallthru
      _
    // Predicated region
    $region82: #{tpu_custom_call.1} parent=1 // pred_check
      _
    $region83: #{tpu_custom_call.1} parent=1 // pred_check_branch
      %131 = sbr.rel (0) target = $region85
    $region84: #{tpu_custom_call.1} parent=1 // pred_region
      %132 = dma.done [#allocation13], 12288
    $region85: #{tpu_custom_call.1} parent=1 // pred_fallthru
      _
    // Predicated region
    $region86: #{tpu_custom_call.1} parent=1 // pred_check
      _
    $region87: #{tpu_custom_call.1} parent=1 // pred_check_branch
      %134 = sbr.rel (0) target = $region89
    $region88: #{tpu_custom_call.1} parent=1 // pred_region
      %135 = dma.done [#allocation13], 24576
    $region89: #{tpu_custom_call.1} parent=1 // pred_fallthru
      _
    // Predicated region
    $region90: #{tpu_custom_call.1} parent=1 // pred_check
      _
    $region91: #{tpu_custom_call.1} parent=1 // pred_check_branch
      %137 = sbr.rel (0) target = $region93
    $region92: #{tpu_custom_call.1} parent=1 // pred_region
      %138 = dma.done [#allocation16], 4096
    $region93: #{tpu_custom_call.1} parent=1 // pred_fallthru
      _
    %v139 = vld [vmem:[%s0] sm:$0xff]
    %v140 = vld [vmem:[%s0 + $0x8] sm:$0xff]
    %v141 = vld [vmem:[%s0 + $0x10] sm:$0xff]
    %v142 = vld [vmem:[%s0 + $0x18] sm:$0xff]
    %v143 = vld [vmem:[%s0 + $0x20] sm:$0xff]
    %v144 = vld [vmem:[%s0 + $0x28] sm:$0xff]
    %v145 = vld [vmem:[%s0 + $0x30] sm:$0xff]
    %v146 = vld [vmem:[%s0 + $0x38] sm:$0xff]
    %v147 = vld [vmem:[%s1] sm:$0xff]
    %v148 = vld [vmem:[%s1 + $0x8] sm:$0xff]
    %v149 = vld [vmem:[%s1 + $0x10] sm:$0xff]
    %v150 = vld [vmem:[%s1 + $0x18] sm:$0xff]
    %v151 = vld [vmem:[%s1 + $0x20] sm:$0xff]
    %v152 = vld [vmem:[%s1 + $0x28] sm:$0xff]
    %v153 = vld [vmem:[%s4] sm:$0x7]
    %v155 = vlaneseq
    %v156 = vshrl.u32 %v155, 7
    %v157 = vsub.s32 0, %v156
    %v158 = vrot.slane %v153, %v157
    %v159 = vlaneseq
    %v160 = vshrl.u32 %v159, 7
    %v161 = vsub.s32 1, %v160
    %v162 = vrot.slane %v153, %v161
    %v163 = vlaneseq
    %v164 = vshrl.u32 %v163, 7
    %v165 = vsub.s32 2, %v164
    %v166 = vrot.slane %v153, %v165
    %vm170 = vcmask 130048
    %v172 = vsel %vm170, %v139, 0
    %v175 = vsel %vm170, %v140, 0
    %v178 = vsel %vm170, %v141, 0
    %v181 = vsel %vm170, %v142, 0
    %v184 = vsel %vm170, %v143, 0
    %v187 = vsel %vm170, %v144, 0
    %v190 = vsel %vm170, %v145, 0
    %v193 = vsel %vm170, %v146, 0
    %195 = vmatprep.subr.mxu0 %v148
    %196 = vmatpush1.msra.mxu0 %v147
    %197 = vmatprep.subr.mxu0 %v151
    %198 = vmatpush1.msra.mxu0 %v150
    %199 = vmatprep.subr.mxu0 0.0
    %200 = vmatpush1.msra.mxu0 0.0
    %201 = vmatprep.subr.mxu0 0.0
    %202 = vmatpush1.msra.mxu0 0.0
    %203 = vmatprep.subr.mxu0 0.0
    %204 = vmatpush1.msra.mxu0 0.0
    %205 = vmatprep.subr.mxu0 0.0
    %206 = vmatpush1.msra.mxu0 0.0
    %207 = vmatprep.subr.mxu0 0.0
    %208 = vmatpush1.msra.mxu0 0.0
    %209 = vmatprep.subr.mxu0 0.0
    %210 = vmatpush1.msra.mxu0 0.0
    %211 = vmatprep.subr.mxu0 0.0
    %212 = vmatpush1.msra.mxu0 0.0
    %213 = vmatprep.subr.mxu0 0.0
    %214 = vmatpush1.msra.mxu0 0.0
    %215 = vmatprep.subr.mxu0 0.0
    %216 = vmatpush1.msra.mxu0 0.0
    %217 = vmatprep.subr.mxu0 0.0
    %218 = vmatpush1.msra.mxu0 0.0
    %219 = vmatprep.subr.mxu0 0.0
    %220 = vmatpush1.msra.mxu0 0.0
    %221 = vmatprep.subr.mxu0 0.0
    %222 = vmatpush1.msra.mxu0 0.0
    %223 = vmatprep.subr.mxu0 0.0
    %224 = vmatpush1.msra.mxu0 0.0
    %225 = vmatprep.subr.mxu0 0.0
    %226 = vmatpush1.msra.mxu0 0.0
    %227 = vmatprep.subr.mxu0 0.0
    %228 = vmatpush1.msra.mxu0 0.0
    %229 = vmatprep.subr.mxu0 0.0
    %230 = vmatpush1.msra.mxu0 0.0
    %231 = vmatprep.subr.mxu0 0.0
    %232 = vmatpush1.msra.mxu0 0.0
    %233 = vmatprep.subr.mxu0 0.0
    %234 = vmatpush1.msra.mxu0 0.0
    %235 = vmatprep.subr.mxu0 0.0
    %236 = vmatpush1.msra.mxu0 0.0
    %237 = vmatprep.subr.mxu0 0.0
    %238 = vmatpush1.msra.mxu0 0.0
    %239 = vmatprep.subr.mxu0 0.0
    %240 = vmatpush1.msra.mxu0 0.0
    %241 = vmatprep.subr.mxu0 0.0
    %242 = vmatpush1.msra.mxu0 0.0
    %243 = vmatprep.subr.mxu0 0.0
    %244 = vmatpush1.msra.mxu0 0.0
    %245 = vmatprep.subr.mxu0 0.0
    %246 = vmatpush1.msra.mxu0 0.0
    %247 = vmatprep.subr.mxu0 0.0
    %248 = vmatpush1.msra.mxu0 0.0
    %249 = vmatprep.subr.mxu0 0.0
    %250 = vmatpush1.msra.mxu0 0.0
    %251 = vmatprep.subr.mxu0 0.0
    %252 = vmatpush1.msra.mxu0 0.0
    %253 = vmatprep.subr.mxu0 0.0
    %254 = vmatpush1.msra.mxu0 0.0
    %255 = vmatprep.subr.mxu0 0.0
    %256 = vmatpush1.msra.mxu0 0.0
    %257 = vmatprep.subr.mxu0 0.0
    %258 = vmatpush1.msra.mxu0 0.0
    %259 = vmatprep.mubr.f32.mxu0 0.0
    %260 = vmatmul.mubr.f32.gmra.mrb[0].mxu0 %v172
    %v261 = vpop.f32.mrb[0].mxu0
    %v262 = vadd.f32 %v158, %v261
    %v263 = vpop.f32.mrb[0].mxu0
    %v264 = vadd.f32 %v162, %v263
    %265 = vmatprep.mubr.f32.mxu0 0.0
    %266 = vmatmul.mubr.f32.gmra.mrb[0].mxu0 %v175
    %v267 = vpop.f32.mrb[0].mxu0
    %v268 = vadd.f32 %v158, %v267
    %v269 = vpop.f32.mrb[0].mxu0
    %v270 = vadd.f32 %v162, %v269
    %271 = vmatprep.mubr.f32.mxu0 0.0
    %272 = vmatmul.mubr.f32.gmra.mrb[0].mxu0 %v178
    %v273 = vpop.f32.mrb[0].mxu0
    %v274 = vadd.f32 %v158, %v273
    %v275 = vpop.f32.mrb[0].mxu0
    %v276 = vadd.f32 %v162, %v275
    %277 = vmatprep.mubr.f32.mxu0 0.0
    %278 = vmatmul.mubr.f32.gmra.mrb[0].mxu0 %v181
    %v279 = vpop.f32.mrb[0].mxu0
    %v280 = vadd.f32 %v158, %v279
    %v281 = vpop.f32.mrb[0].mxu0
    %v282 = vadd.f32 %v162, %v281
    %283 = vmatprep.mubr.f32.mxu0 0.0
    %284 = vmatmul.mubr.f32.gmra.mrb[0].mxu0 %v184
    %v285 = vpop.f32.mrb[0].mxu0
    %v286 = vadd.f32 %v158, %v285
    %v287 = vpop.f32.mrb[0].mxu0
    %v288 = vadd.f32 %v162, %v287
    %289 = vmatprep.mubr.f32.mxu0 0.0
    %290 = vmatmul.mubr.f32.gmra.mrb[0].mxu0 %v187
    %v291 = vpop.f32.mrb[0].mxu0
    %v292 = vadd.f32 %v158, %v291
    %v293 = vpop.f32.mrb[0].mxu0
    %v294 = vadd.f32 %v162, %v293
    %295 = vmatprep.mubr.f32.mxu0 0.0
    %296 = vmatmul.mubr.f32.gmra.mrb[0].mxu0 %v190
    %v297 = vpop.f32.mrb[0].mxu0
    %v298 = vadd.f32 %v158, %v297
    %v299 = vpop.f32.mrb[0].mxu0
    %v300 = vadd.f32 %v162, %v299
    %301 = vmatprep.mubr.f32.mxu0 0.0
    %302 = vmatmul.mubr.f32.gmra.mrb[0].mxu0 %v193
    %v303 = vpop.f32.mrb[0].mxu0
    %v304 = vadd.f32 %v158, %v303
    %v305 = vpop.f32.mrb[0].mxu0
    %v306 = vadd.f32 %v162, %v305
    %307 = vdwg.mxu0
    %308 = vmatprep.subr.mxu0 0.0
    %309 = vmatpush1.msra.mxu0 %v149
    %310 = vmatprep.subr.mxu0 0.0
    %311 = vmatpush1.msra.mxu0 %v152
    %312 = vmatprep.subr.mxu0 0.0
    %313 = vmatpush1.msra.mxu0 0.0
    %314 = vmatprep.subr.mxu0 0.0
    %315 = vmatpush1.msra.mxu0 0.0
    %316 = vmatprep.subr.mxu0 0.0
    %317 = vmatpush1.msra.mxu0 0.0
    %318 = vmatprep.subr.mxu0 0.0
    %319 = vmatpush1.msra.mxu0 0.0
    %320 = vmatprep.subr.mxu0 0.0
    %321 = vmatpush1.msra.mxu0 0.0
    %322 = vmatprep.subr.mxu0 0.0
    %323 = vmatpush1.msra.mxu0 0.0
    %324 = vmatprep.subr.mxu0 0.0
    %325 = vmatpush1.msra.mxu0 0.0
    %326 = vmatprep.subr.mxu0 0.0
    %327 = vmatpush1.msra.mxu0 0.0
    %328 = vmatprep.subr.mxu0 0.0
    %329 = vmatpush1.msra.mxu0 0.0
    %330 = vmatprep.subr.mxu0 0.0
    %331 = vmatpush1.msra.mxu0 0.0
    %332 = vmatprep.subr.mxu0 0.0
    %333 = vmatpush1.msra.mxu0 0.0
    %334 = vmatprep.subr.mxu0 0.0
    %335 = vmatpush1.msra.mxu0 0.0
    %336 = vmatprep.subr.mxu0 0.0
    %337 = vmatpush1.msra.mxu0 0.0
    %338 = vmatprep.subr.mxu0 0.0
    %339 = vmatpush1.msra.mxu0 0.0
    %340 = vmatprep.subr.mxu0 0.0
    %341 = vmatpush1.msra.mxu0 0.0
    %342 = vmatprep.subr.mxu0 0.0
    %343 = vmatpush1.msra.mxu0 0.0
    %344 = vmatprep.subr.mxu0 0.0
    %345 = vmatpush1.msra.mxu0 0.0
    %346 = vmatprep.subr.mxu0 0.0
    %347 = vmatpush1.msra.mxu0 0.0
    %348 = vmatprep.subr.mxu0 0.0
    %349 = vmatpush1.msra.mxu0 0.0
    %350 = vmatprep.subr.mxu0 0.0
    %351 = vmatpush1.msra.mxu0 0.0
    %352 = vmatprep.subr.mxu0 0.0
    %353 = vmatpush1.msra.mxu0 0.0
    %354 = vmatprep.subr.mxu0 0.0
    %355 = vmatpush1.msra.mxu0 0.0
    %356 = vmatprep.subr.mxu0 0.0
    %357 = vmatpush1.msra.mxu0 0.0
    %358 = vmatprep.subr.mxu0 0.0
    %359 = vmatpush1.msra.mxu0 0.0
    %360 = vmatprep.subr.mxu0 0.0
    %361 = vmatpush1.msra.mxu0 0.0
    %362 = vmatprep.subr.mxu0 0.0
    %363 = vmatpush1.msra.mxu0 0.0
    %364 = vmatprep.subr.mxu0 0.0
    %365 = vmatpush1.msra.mxu0 0.0
    %366 = vmatprep.subr.mxu0 0.0
    %367 = vmatpush1.msra.mxu0 0.0
    %368 = vmatprep.subr.mxu0 0.0
    %369 = vmatpush1.msra.mxu0 0.0
    %370 = vmatprep.subr.mxu0 0.0
    %371 = vmatpush1.msra.mxu0 0.0
    %372 = vmatprep.mubr.f32.mxu0 0.0
    %373 = vmatmul.mubr.f32.gmra.mrb[0].mxu0 %v172
    %v374 = vpop.f32.mrb[0].mxu0
    %v375 = vadd.f32 %v166, %v374
    %v376 = vpop.f32.mrb[0].mxu0
    %377 = vmatprep.mubr.f32.mxu0 0.0
    %378 = vmatmul.mubr.f32.gmra.mrb[0].mxu0 %v175
    %v379 = vpop.f32.mrb[0].mxu0
    %v380 = vadd.f32 %v166, %v379
    %v381 = vpop.f32.mrb[0].mxu0
    %382 = vmatprep.mubr.f32.mxu0 0.0
    %383 = vmatmul.mubr.f32.gmra.mrb[0].mxu0 %v178
    %v384 = vpop.f32.mrb[0].mxu0
    %v385 = vadd.f32 %v166, %v384
    %v386 = vpop.f32.mrb[0].mxu0
    %387 = vmatprep.mubr.f32.mxu0 0.0
    %388 = vmatmul.mubr.f32.gmra.mrb[0].mxu0 %v181
    %v389 = vpop.f32.mrb[0].mxu0
    %v390 = vadd.f32 %v166, %v389
    %v391 = vpop.f32.mrb[0].mxu0
    %392 = vmatprep.mubr.f32.mxu0 0.0
    %393 = vmatmul.mubr.f32.gmra.mrb[0].mxu0 %v184
    %v394 = vpop.f32.mrb[0].mxu0
    %v395 = vadd.f32 %v166, %v394
    %v396 = vpop.f32.mrb[0].mxu0
    %397 = vmatprep.mubr.f32.mxu0 0.0
    %398 = vmatmul.mubr.f32.gmra.mrb[0].mxu0 %v187
    %v399 = vpop.f32.mrb[0].mxu0
    %v400 = vadd.f32 %v166, %v399
    %v401 = vpop.f32.mrb[0].mxu0
    %402 = vmatprep.mubr.f32.mxu0 0.0
    %403 = vmatmul.mubr.f32.gmra.mrb[0].mxu0 %v190
    %v404 = vpop.f32.mrb[0].mxu0
    %v405 = vadd.f32 %v166, %v404
    %v406 = vpop.f32.mrb[0].mxu0
    %407 = vmatprep.mubr.f32.mxu0 0.0
    %408 = vmatmul.mubr.f32.gmra.mrb[0].mxu0 %v193
    %v409 = vpop.f32.mrb[0].mxu0
    %v410 = vadd.f32 %v166, %v409
    %v411 = vpop.f32.mrb[0].mxu0
    %412 = vdwg.mxu0
    %413 = vst [vmem:[#allocation2] sm:$0xff] %v262
    %414 = vst [vmem:[#allocation2 + $0x8] sm:$0xff] %v264
    %415 = vst [vmem:[#allocation2 + $0x10] sm:$0xff] %v375
    %416 = vst [vmem:[#allocation2 + $0x18] sm:$0xff] %v268
    %417 = vst [vmem:[#allocation2 + $0x20] sm:$0xff] %v270
    %418 = vst [vmem:[#allocation2 + $0x28] sm:$0xff] %v380
    %419 = vst [vmem:[#allocation2 + $0x30] sm:$0xff] %v274
    %420 = vst [vmem:[#allocation2 + $0x38] sm:$0xff] %v276
    %421 = vst [vmem:[#allocation2 + $0x40] sm:$0xff] %v385
    %422 = vst [vmem:[#allocation2 + $0x48] sm:$0xff] %v280
    %423 = vst [vmem:[#allocation2 + $0x50] sm:$0xff] %v282
    %424 = vst [vmem:[#allocation2 + $0x58] sm:$0xff] %v390
    %425 = vst [vmem:[#allocation2 + $0x60] sm:$0xff] %v286
    %426 = vst [vmem:[#allocation2 + $0x68] sm:$0xff] %v288
    %427 = vst [vmem:[#allocation2 + $0x70] sm:$0xff] %v395
    %428 = vst [vmem:[#allocation2 + $0x78] sm:$0xff] %v292
    %429 = vst [vmem:[#allocation2 + $0x80] sm:$0xff] %v294
    %430 = vst [vmem:[#allocation2 + $0x88] sm:$0xff] %v400
    %431 = vst [vmem:[#allocation2 + $0x90] sm:$0xff] %v298
    %432 = vst [vmem:[#allocation2 + $0x98] sm:$0xff] %v300
    %433 = vst [vmem:[#allocation2 + $0xa0] sm:$0xff] %v405
    %434 = vst [vmem:[#allocation2 + $0xa8] sm:$0xff] %v304
    %435 = vst [vmem:[#allocation2 + $0xb0] sm:$0xff] %v306
    %436 = vst [vmem:[#allocation2 + $0xb8] sm:$0xff] %v410
    %v437 = vld [vmem:[#allocation6] sm:$0xff]
    %v438 = vld [vmem:[#allocation6 + $0x8] sm:$0xff]
    %v439 = vld [vmem:[#allocation6 + $0x10] sm:$0xff]
    %v440 = vld [vmem:[#allocation6 + $0x18] sm:$0xff]
    %v441 = vld [vmem:[#allocation6 + $0x20] sm:$0xff]
    %v442 = vld [vmem:[#allocation6 + $0x28] sm:$0xff]
    %v443 = vld [vmem:[%s5] sm:$0x7]
    %v445 = vlaneseq
    %v446 = vshrl.u32 %v445, 7
    %v447 = vsub.s32 0, %v446
    %v448 = vrot.slane %v443, %v447
    %v449 = vlaneseq
    %v450 = vshrl.u32 %v449, 7
    %v451 = vsub.s32 1, %v450
    %v452 = vrot.slane %v443, %v451
    %v453 = vlaneseq
    %v454 = vshrl.u32 %v453, 7
    %v455 = vsub.s32 2, %v454
    %v456 = vrot.slane %v443, %v455
    %460 = vmatprep.subr.mxu0 %v438
    %461 = vmatpush1.msra.mxu0 %v437
    %462 = vmatprep.subr.mxu0 %v441
    %463 = vmatpush1.msra.mxu0 %v440
    %464 = vmatprep.subr.mxu0 0.0
    %465 = vmatpush1.msra.mxu0 0.0
    %466 = vmatprep.subr.mxu0 0.0
    %467 = vmatpush1.msra.mxu0 0.0
    %468 = vmatprep.subr.mxu0 0.0
    %469 = vmatpush1.msra.mxu0 0.0
    %470 = vmatprep.subr.mxu0 0.0
    %471 = vmatpush1.msra.mxu0 0.0
    %472 = vmatprep.subr.mxu0 0.0
    %473 = vmatpush1.msra.mxu0 0.0
    %474 = vmatprep.subr.mxu0 0.0
    %475 = vmatpush1.msra.mxu0 0.0
    %476 = vmatprep.subr.mxu0 0.0
    %477 = vmatpush1.msra.mxu0 0.0
    %478 = vmatprep.subr.mxu0 0.0
    %479 = vmatpush1.msra.mxu0 0.0
    %480 = vmatprep.subr.mxu0 0.0
    %481 = vmatpush1.msra.mxu0 0.0
    %482 = vmatprep.subr.mxu0 0.0
    %483 = vmatpush1.msra.mxu0 0.0
    %484 = vmatprep.subr.mxu0 0.0
    %485 = vmatpush1.msra.mxu0 0.0
    %486 = vmatprep.subr.mxu0 0.0
    %487 = vmatpush1.msra.mxu0 0.0
    %488 = vmatprep.subr.mxu0 0.0
    %489 = vmatpush1.msra.mxu0 0.0
    %490 = vmatprep.subr.mxu0 0.0
    %491 = vmatpush1.msra.mxu0 0.0
    %492 = vmatprep.subr.mxu0 0.0
    %493 = vmatpush1.msra.mxu0 0.0
    %494 = vmatprep.subr.mxu0 0.0
    %495 = vmatpush1.msra.mxu0 0.0
    %496 = vmatprep.subr.mxu0 0.0
    %497 = vmatpush1.msra.mxu0 0.0
    %498 = vmatprep.subr.mxu0 0.0
    %499 = vmatpush1.msra.mxu0 0.0
    %500 = vmatprep.subr.mxu0 0.0
    %501 = vmatpush1.msra.mxu0 0.0
    %502 = vmatprep.subr.mxu0 0.0
    %503 = vmatpush1.msra.mxu0 0.0
    %504 = vmatprep.subr.mxu0 0.0
    %505 = vmatpush1.msra.mxu0 0.0
    %506 = vmatprep.subr.mxu0 0.0
    %507 = vmatpush1.msra.mxu0 0.0
    %508 = vmatprep.subr.mxu0 0.0
    %509 = vmatpush1.msra.mxu0 0.0
    %510 = vmatprep.subr.mxu0 0.0
    %511 = vmatpush1.msra.mxu0 0.0
    %512 = vmatprep.subr.mxu0 0.0
    %513 = vmatpush1.msra.mxu0 0.0
    %514 = vmatprep.subr.mxu0 0.0
    %515 = vmatpush1.msra.mxu0 0.0
    %516 = vmatprep.subr.mxu0 0.0
    %517 = vmatpush1.msra.mxu0 0.0
    %518 = vmatprep.subr.mxu0 0.0
    %519 = vmatpush1.msra.mxu0 0.0
    %520 = vmatprep.subr.mxu0 0.0
    %521 = vmatpush1.msra.mxu0 0.0
    %522 = vmatprep.subr.mxu0 0.0
    %523 = vmatpush1.msra.mxu0 0.0
    %524 = vmatprep.mubr.f32.mxu0 0.0
    %525 = vmatmul.mubr.f32.gmra.mrb[0].mxu0 %v172
    %v526 = vpop.f32.mrb[0].mxu0
    %v527 = vadd.f32 %v448, %v526
    %v528 = vpop.f32.mrb[0].mxu0
    %v529 = vadd.f32 %v452, %v528
    %530 = vmatprep.mubr.f32.mxu0 0.0
    %531 = vmatmul.mubr.f32.gmra.mrb[0].mxu0 %v175
    %v532 = vpop.f32.mrb[0].mxu0
    %v533 = vadd.f32 %v448, %v532
    %v534 = vpop.f32.mrb[0].mxu0
    %v535 = vadd.f32 %v452, %v534
    %536 = vmatprep.mubr.f32.mxu0 0.0
    %537 = vmatmul.mubr.f32.gmra.mrb[0].mxu0 %v178
    %v538 = vpop.f32.mrb[0].mxu0
    %v539 = vadd.f32 %v448, %v538
    %v540 = vpop.f32.mrb[0].mxu0
    %v541 = vadd.f32 %v452, %v540
    %542 = vmatprep.mubr.f32.mxu0 0.0
    %543 = vmatmul.mubr.f32.gmra.mrb[0].mxu0 %v181
    %v544 = vpop.f32.mrb[0].mxu0
    %v545 = vadd.f32 %v448, %v544
    %v546 = vpop.f32.mrb[0].mxu0
    %v547 = vadd.f32 %v452, %v546
    %548 = vmatprep.mubr.f32.mxu0 0.0
    %549 = vmatmul.mubr.f32.gmra.mrb[0].mxu0 %v184
    %v550 = vpop.f32.mrb[0].mxu0
    %v551 = vadd.f32 %v448, %v550
    %v552 = vpop.f32.mrb[0].mxu0
    %v553 = vadd.f32 %v452, %v552
    %554 = vmatprep.mubr.f32.mxu0 0.0
    %555 = vmatmul.mubr.f32.gmra.mrb[0].mxu0 %v187
    %v556 = vpop.f32.mrb[0].mxu0
    %v557 = vadd.f32 %v448, %v556
    %v558 = vpop.f32.mrb[0].mxu0
    %v559 = vadd.f32 %v452, %v558
    %560 = vmatprep.mubr.f32.mxu0 0.0
    %561 = vmatmul.mubr.f32.gmra.mrb[0].mxu0 %v190
    %v562 = vpop.f32.mrb[0].mxu0
    %v563 = vadd.f32 %v448, %v562
    %v564 = vpop.f32.mrb[0].mxu0
    %v565 = vadd.f32 %v452, %v564
    %566 = vmatprep.mubr.f32.mxu0 0.0
    %567 = vmatmul.mubr.f32.gmra.mrb[0].mxu0 %v193
    %v568 = vpop.f32.mrb[0].mxu0
    %v569 = vadd.f32 %v448, %v568
    %v570 = vpop.f32.mrb[0].mxu0
    %v571 = vadd.f32 %v452, %v570
    %572 = vdwg.mxu0
    %573 = vmatprep.subr.mxu0 0.0
    %574 = vmatpush1.msra.mxu0 %v439
    %575 = vmatprep.subr.mxu0 0.0
    %576 = vmatpush1.msra.mxu0 %v442
    %577 = vmatprep.subr.mxu0 0.0
    %578 = vmatpush1.msra.mxu0 0.0
    %579 = vmatprep.subr.mxu0 0.0
    %580 = vmatpush1.msra.mxu0 0.0
    %581 = vmatprep.subr.mxu0 0.0
    %582 = vmatpush1.msra.mxu0 0.0
    %583 = vmatprep.subr.mxu0 0.0
    %584 = vmatpush1.msra.mxu0 0.0
    %585 = vmatprep.subr.mxu0 0.0
    %586 = vmatpush1.msra.mxu0 0.0
    %587 = vmatprep.subr.mxu0 0.0
    %588 = vmatpush1.msra.mxu0 0.0
    %589 = vmatprep.subr.mxu0 0.0
    %590 = vmatpush1.msra.mxu0 0.0
    %591 = vmatprep.subr.mxu0 0.0
    %592 = vmatpush1.msra.mxu0 0.0
    %593 = vmatprep.subr.mxu0 0.0
    %594 = vmatpush1.msra.mxu0 0.0
    %595 = vmatprep.subr.mxu0 0.0
    %596 = vmatpush1.msra.mxu0 0.0
    %597 = vmatprep.subr.mxu0 0.0
    %598 = vmatpush1.msra.mxu0 0.0
    %599 = vmatprep.subr.mxu0 0.0
    %600 = vmatpush1.msra.mxu0 0.0
    %601 = vmatprep.subr.mxu0 0.0
    %602 = vmatpush1.msra.mxu0 0.0
    %603 = vmatprep.subr.mxu0 0.0
    %604 = vmatpush1.msra.mxu0 0.0
    %605 = vmatprep.subr.mxu0 0.0
    %606 = vmatpush1.msra.mxu0 0.0
    %607 = vmatprep.subr.mxu0 0.0
    %608 = vmatpush1.msra.mxu0 0.0
    %609 = vmatprep.subr.mxu0 0.0
    %610 = vmatpush1.msra.mxu0 0.0
    %611 = vmatprep.subr.mxu0 0.0
    %612 = vmatpush1.msra.mxu0 0.0
    %613 = vmatprep.subr.mxu0 0.0
    %614 = vmatpush1.msra.mxu0 0.0
    %615 = vmatprep.subr.mxu0 0.0
    %616 = vmatpush1.msra.mxu0 0.0
    %617 = vmatprep.subr.mxu0 0.0
    %618 = vmatpush1.msra.mxu0 0.0
    %619 = vmatprep.subr.mxu0 0.0
    %620 = vmatpush1.msra.mxu0 0.0
    %621 = vmatprep.subr.mxu0 0.0
    %622 = vmatpush1.msra.mxu0 0.0
    %623 = vmatprep.subr.mxu0 0.0
    %624 = vmatpush1.msra.mxu0 0.0
    %625 = vmatprep.subr.mxu0 0.0
    %626 = vmatpush1.msra.mxu0 0.0
    %627 = vmatprep.subr.mxu0 0.0
    %628 = vmatpush1.msra.mxu0 0.0
    %629 = vmatprep.subr.mxu0 0.0
    %630 = vmatpush1.msra.mxu0 0.0
    %631 = vmatprep.subr.mxu0 0.0
    %632 = vmatpush1.msra.mxu0 0.0
    %633 = vmatprep.subr.mxu0 0.0
    %634 = vmatpush1.msra.mxu0 0.0
    %635 = vmatprep.subr.mxu0 0.0
    %636 = vmatpush1.msra.mxu0 0.0
    %637 = vmatprep.mubr.f32.mxu0 0.0
    %638 = vmatmul.mubr.f32.gmra.mrb[0].mxu0 %v172
    %v639 = vpop.f32.mrb[0].mxu0
    %v640 = vadd.f32 %v456, %v639
    %v641 = vpop.f32.mrb[0].mxu0
    %642 = vmatprep.mubr.f32.mxu0 0.0
    %643 = vmatmul.mubr.f32.gmra.mrb[0].mxu0 %v175
    %v644 = vpop.f32.mrb[0].mxu0
    %v645 = vadd.f32 %v456, %v644
    %v646 = vpop.f32.mrb[0].mxu0
    %647 = vmatprep.mubr.f32.mxu0 0.0
    %648 = vmatmul.mubr.f32.gmra.mrb[0].mxu0 %v178
    %v649 = vpop.f32.mrb[0].mxu0
    %v650 = vadd.f32 %v456, %v649
    %v651 = vpop.f32.mrb[0].mxu0
    %652 = vmatprep.mubr.f32.mxu0 0.0
    %653 = vmatmul.mubr.f32.gmra.mrb[0].mxu0 %v181
    %v654 = vpop.f32.mrb[0].mxu0
    %v655 = vadd.f32 %v456, %v654
    %v656 = vpop.f32.mrb[0].mxu0
    %657 = vmatprep.mubr.f32.mxu0 0.0
    %658 = vmatmul.mubr.f32.gmra.mrb[0].mxu0 %v184
    %v659 = vpop.f32.mrb[0].mxu0
    %v660 = vadd.f32 %v456, %v659
    %v661 = vpop.f32.mrb[0].mxu0
    %662 = vmatprep.mubr.f32.mxu0 0.0
    %663 = vmatmul.mubr.f32.gmra.mrb[0].mxu0 %v187
    %v664 = vpop.f32.mrb[0].mxu0
    %v665 = vadd.f32 %v456, %v664
    %v666 = vpop.f32.mrb[0].mxu0
    %667 = vmatprep.mubr.f32.mxu0 0.0
    %668 = vmatmul.mubr.f32.gmra.mrb[0].mxu0 %v190
    %v669 = vpop.f32.mrb[0].mxu0
    %v670 = vadd.f32 %v456, %v669
    %v671 = vpop.f32.mrb[0].mxu0
    %672 = vmatprep.mubr.f32.mxu0 0.0
    %673 = vmatmul.mubr.f32.gmra.mrb[0].mxu0 %v193
    %v674 = vpop.f32.mrb[0].mxu0
    %v675 = vadd.f32 %v456, %v674
    %v676 = vpop.f32.mrb[0].mxu0
    %677 = vdwg.mxu0
    %678 = vst [vmem:[#allocation3] sm:$0xff] %v527
    %679 = vst [vmem:[#allocation3 + $0x8] sm:$0xff] %v529
    %680 = vst [vmem:[#allocation3 + $0x10] sm:$0xff] %v640
    %681 = vst [vmem:[#allocation3 + $0x18] sm:$0xff] %v533
    %682 = vst [vmem:[#allocation3 + $0x20] sm:$0xff] %v535
    %683 = vst [vmem:[#allocation3 + $0x28] sm:$0xff] %v645
    %684 = vst [vmem:[#allocation3 + $0x30] sm:$0xff] %v539
    %685 = vst [vmem:[#allocation3 + $0x38] sm:$0xff] %v541
    %686 = vst [vmem:[#allocation3 + $0x40] sm:$0xff] %v650
    %687 = vst [vmem:[#allocation3 + $0x48] sm:$0xff] %v545
    %688 = vst [vmem:[#allocation3 + $0x50] sm:$0xff] %v547
    %689 = vst [vmem:[#allocation3 + $0x58] sm:$0xff] %v655
    %690 = vst [vmem:[#allocation3 + $0x60] sm:$0xff] %v551
    %691 = vst [vmem:[#allocation3 + $0x68] sm:$0xff] %v553
    %692 = vst [vmem:[#allocation3 + $0x70] sm:$0xff] %v660
    %693 = vst [vmem:[#allocation3 + $0x78] sm:$0xff] %v557
    %694 = vst [vmem:[#allocation3 + $0x80] sm:$0xff] %v559
    %695 = vst [vmem:[#allocation3 + $0x88] sm:$0xff] %v665
    %696 = vst [vmem:[#allocation3 + $0x90] sm:$0xff] %v563
    %697 = vst [vmem:[#allocation3 + $0x98] sm:$0xff] %v565
    %698 = vst [vmem:[#allocation3 + $0xa0] sm:$0xff] %v670
    %699 = vst [vmem:[#allocation3 + $0xa8] sm:$0xff] %v569
    %700 = vst [vmem:[#allocation3 + $0xb0] sm:$0xff] %v571
    %701 = vst [vmem:[#allocation3 + $0xb8] sm:$0xff] %v675
    %702 = vst [vmem:[#allocation4] sm:$0xff] 0.0
    %703 = vst [vmem:[#allocation4 + $0x8] sm:$0xff] 0.0
    %v704 = vld [vmem:[%s6] sm:$0x1]
    %v706 = vlaneseq
    %v707 = vshrl.u32 %v706, 7
    %v708 = vsub.s32 0, %v707
    %v709 = vrot.slane %v704, %v708
    %v711 = vld [vmem:[%s7] sm:$0x1]
    %v713 = vlaneseq
    %v714 = vshrl.u32 %v713, 7
    %v715 = vsub.s32 0, %v714
    %v716 = vrot.slane %v711, %v715
    %v718 = vld [vmem:[#allocation4] sm:$0xff]
    %v719 = vld [vmem:[#allocation4 + $0x8] sm:$0xff]
    %v720 = vld [vmem:[#allocation9] sm:$0xff]
    %v721 = vld [vmem:[#allocation9 + $0x8] sm:$0xff]
    %v722 = vld [vmem:[#allocation9 + $0x10] sm:$0xff]
    %v723 = vld [vmem:[#allocation9 + $0x30] sm:$0xff]
    %v724 = vld [vmem:[#allocation9 + $0x38] sm:$0xff]
    %v725 = vld [vmem:[#allocation9 + $0x40] sm:$0xff]
    %v726 = vld [vmem:[#allocation9 + $0x60] sm:$0xff]
    %v727 = vld [vmem:[#allocation9 + $0x68] sm:$0xff]
    %v728 = vld [vmem:[#allocation9 + $0x70] sm:$0xff]
    %v729 = vld [vmem:[#allocation9 + $0x90] sm:$0xff]
    %v730 = vld [vmem:[#allocation9 + $0x98] sm:$0xff]
    %v731 = vld [vmem:[#allocation9 + $0xa0] sm:$0xff]
    %v732 = vld [vmem:[#allocation9 + $0xc0] sm:$0xff]
    %v733 = vld [vmem:[#allocation9 + $0xc8] sm:$0xff]
    %v734 = vld [vmem:[#allocation9 + $0xd0] sm:$0xff]
    %v735 = vld [vmem:[#allocation9 + $0xf0] sm:$0xff]
    %v736 = vld [vmem:[#allocation9 + $0xf8] sm:$0xff]
    %v737 = vld [vmem:[#allocation9 + $0x100] sm:$0xff]
    %v738 = vld [vmem:[#allocation9 + $0x120] sm:$0xff]
    %v739 = vld [vmem:[#allocation9 + $0x128] sm:$0xff]
    %v740 = vld [vmem:[#allocation9 + $0x130] sm:$0xff]
    %v741 = vld [vmem:[#allocation9 + $0x150] sm:$0xff]
    %v742 = vld [vmem:[#allocation9 + $0x158] sm:$0xff]
    %v743 = vld [vmem:[#allocation9 + $0x160] sm:$0xff]
    %v744 = vld [vmem:[#allocation9 + $0x180] sm:$0xff]
    %v745 = vld [vmem:[#allocation9 + $0x188] sm:$0xff]
    %v746 = vld [vmem:[#allocation9 + $0x190] sm:$0xff]
    %v747 = vld [vmem:[#allocation9 + $0x1b0] sm:$0xff]
    %v748 = vld [vmem:[#allocation9 + $0x1b8] sm:$0xff]
    %v749 = vld [vmem:[#allocation9 + $0x1c0] sm:$0xff]
    %v750 = vld [vmem:[#allocation9 + $0x1e0] sm:$0xff]
    %v751 = vld [vmem:[#allocation9 + $0x1e8] sm:$0xff]
    %v752 = vld [vmem:[#allocation9 + $0x1f0] sm:$0xff]
    %v753 = vld [vmem:[#allocation9 + $0x210] sm:$0xff]
    %v754 = vld [vmem:[#allocation9 + $0x218] sm:$0xff]
    %v755 = vld [vmem:[#allocation9 + $0x220] sm:$0xff]
    %v756 = vld [vmem:[#allocation9 + $0x240] sm:$0xff]
    %v757 = vld [vmem:[#allocation9 + $0x248] sm:$0xff]
    %v758 = vld [vmem:[#allocation9 + $0x250] sm:$0xff]
    %v759 = vld [vmem:[#allocation9 + $0x270] sm:$0xff]
    %v760 = vld [vmem:[#allocation9 + $0x278] sm:$0xff]
    %v761 = vld [vmem:[#allocation9 + $0x280] sm:$0xff]
    %v762 = vld [vmem:[#allocation9 + $0x2a0] sm:$0xff]
    %v763 = vld [vmem:[#allocation9 + $0x2a8] sm:$0xff]
    %v764 = vld [vmem:[#allocation9 + $0x2b0] sm:$0xff]
    %v765 = vld [vmem:[#allocation9 + $0x2d0] sm:$0xff]
    %v766 = vld [vmem:[#allocation9 + $0x2d8] sm:$0xff]
    %v767 = vld [vmem:[#allocation9 + $0x2e0] sm:$0xff]
    %768 = vmatprep.subr.mxu0 %v721
    %769 = vmatpush1.msra.mxu0 %v720
    %770 = vmatprep.subr.mxu0 %v724
    %771 = vmatpush1.msra.mxu0 %v723
    %772 = vmatprep.subr.mxu0 %v727
    %773 = vmatpush1.msra.mxu0 %v726
    %774 = vmatprep.subr.mxu0 %v730
    %775 = vmatpush1.msra.mxu0 %v729
    %776 = vmatprep.subr.mxu0 %v733
    %777 = vmatpush1.msra.mxu0 %v732
    %778 = vmatprep.subr.mxu0 %v736
    %779 = vmatpush1.msra.mxu0 %v735
    %780 = vmatprep.subr.mxu0 %v739
    %781 = vmatpush1.msra.mxu0 %v738
    %782 = vmatprep.subr.mxu0 %v742
    %783 = vmatpush1.msra.mxu0 %v741
    %784 = vmatprep.subr.mxu0 %v745
    %785 = vmatpush1.msra.mxu0 %v744
    %786 = vmatprep.subr.mxu0 %v748
    %787 = vmatpush1.msra.mxu0 %v747
    %788 = vmatprep.subr.mxu0 %v751
    %789 = vmatpush1.msra.mxu0 %v750
    %790 = vmatprep.subr.mxu0 %v754
    %791 = vmatpush1.msra.mxu0 %v753
    %792 = vmatprep.subr.mxu0 %v757
    %793 = vmatpush1.msra.mxu0 %v756
    %794 = vmatprep.subr.mxu0 %v760
    %795 = vmatpush1.msra.mxu0 %v759
    %796 = vmatprep.subr.mxu0 %v763
    %797 = vmatpush1.msra.mxu0 %v762
    %798 = vmatprep.subr.mxu0 %v766
    %799 = vmatpush1.msra.mxu0 %v765
    %800 = vmatprep.subr.mxu0 0.0
    %801 = vmatpush1.msra.mxu0 0.0
    %802 = vmatprep.subr.mxu0 0.0
    %803 = vmatpush1.msra.mxu0 0.0
    %804 = vmatprep.subr.mxu0 0.0
    %805 = vmatpush1.msra.mxu0 0.0
    %806 = vmatprep.subr.mxu0 0.0
    %807 = vmatpush1.msra.mxu0 0.0
    %808 = vmatprep.subr.mxu0 0.0
    %809 = vmatpush1.msra.mxu0 0.0
    %810 = vmatprep.subr.mxu0 0.0
    %811 = vmatpush1.msra.mxu0 0.0
    %812 = vmatprep.subr.mxu0 0.0
    %813 = vmatpush1.msra.mxu0 0.0
    %814 = vmatprep.subr.mxu0 0.0
    %815 = vmatpush1.msra.mxu0 0.0
    %816 = vmatprep.subr.mxu0 0.0
    %817 = vmatpush1.msra.mxu0 0.0
    %818 = vmatprep.subr.mxu0 0.0
    %819 = vmatpush1.msra.mxu0 0.0
    %820 = vmatprep.subr.mxu0 0.0
    %821 = vmatpush1.msra.mxu0 0.0
    %822 = vmatprep.subr.mxu0 0.0
    %823 = vmatpush1.msra.mxu0 0.0
    %824 = vmatprep.subr.mxu0 0.0
    %825 = vmatpush1.msra.mxu0 0.0
    %826 = vmatprep.subr.mxu0 0.0
    %827 = vmatpush1.msra.mxu0 0.0
    %828 = vmatprep.subr.mxu0 0.0
    %829 = vmatpush1.msra.mxu0 0.0
    %830 = vmatprep.subr.mxu0 0.0
    %831 = vmatpush1.msra.mxu0 0.0
    %832 = vmatprep.mubr.f32.mxu0 0.0
    %833 = vmatmul.mubr.f32.gmra.mrb[0].mxu0 %v718
    %v834 = vpop.f32.mrb[0].mxu0
    %v835 = vadd.f32 0.0, %v834
    %v836 = vpop.f32.mrb[0].mxu0
    %v837 = vadd.f32 0.0, %v836
    %838 = vdwg.mxu0
    %839 = vmatprep.subr.mxu0 0.0
    %840 = vmatpush1.msra.mxu0 %v722
    %841 = vmatprep.subr.mxu0 0.0
    %842 = vmatpush1.msra.mxu0 %v725
    %843 = vmatprep.subr.mxu0 0.0
    %844 = vmatpush1.msra.mxu0 %v728
    %845 = vmatprep.subr.mxu0 0.0
    %846 = vmatpush1.msra.mxu0 %v731
    %847 = vmatprep.subr.mxu0 0.0
    %848 = vmatpush1.msra.mxu0 %v734
    %849 = vmatprep.subr.mxu0 0.0
    %850 = vmatpush1.msra.mxu0 %v737
    %851 = vmatprep.subr.mxu0 0.0
    %852 = vmatpush1.msra.mxu0 %v740
    %853 = vmatprep.subr.mxu0 0.0
    %854 = vmatpush1.msra.mxu0 %v743
    %855 = vmatprep.subr.mxu0 0.0
    %856 = vmatpush1.msra.mxu0 %v746
    %857 = vmatprep.subr.mxu0 0.0
    %858 = vmatpush1.msra.mxu0 %v749
    %859 = vmatprep.subr.mxu0 0.0
    %860 = vmatpush1.msra.mxu0 %v752
    %861 = vmatprep.subr.mxu0 0.0
    %862 = vmatpush1.msra.mxu0 %v755
    %863 = vmatprep.subr.mxu0 0.0
    %864 = vmatpush1.msra.mxu0 %v758
    %865 = vmatprep.subr.mxu0 0.0
    %866 = vmatpush1.msra.mxu0 %v761
    %867 = vmatprep.subr.mxu0 0.0
    %868 = vmatpush1.msra.mxu0 %v764
    %869 = vmatprep.subr.mxu0 0.0
    %870 = vmatpush1.msra.mxu0 %v767
    %871 = vmatprep.subr.mxu0 0.0
    %872 = vmatpush1.msra.mxu0 0.0
    %873 = vmatprep.subr.mxu0 0.0
    %874 = vmatpush1.msra.mxu0 0.0
    %875 = vmatprep.subr.mxu0 0.0
    %876 = vmatpush1.msra.mxu0 0.0
    %877 = vmatprep.subr.mxu0 0.0
    %878 = vmatpush1.msra.mxu0 0.0
    %879 = vmatprep.subr.mxu0 0.0
    %880 = vmatpush1.msra.mxu0 0.0
    %881 = vmatprep.subr.mxu0 0.0
    %882 = vmatpush1.msra.mxu0 0.0
    %883 = vmatprep.subr.mxu0 0.0
    %884 = vmatpush1.msra.mxu0 0.0
    %885 = vmatprep.subr.mxu0 0.0
    %886 = vmatpush1.msra.mxu0 0.0
    %887 = vmatprep.subr.mxu0 0.0
    %888 = vmatpush1.msra.mxu0 0.0
    %889 = vmatprep.subr.mxu0 0.0
    %890 = vmatpush1.msra.mxu0 0.0
    %891 = vmatprep.subr.mxu0 0.0
    %892 = vmatpush1.msra.mxu0 0.0
    %893 = vmatprep.subr.mxu0 0.0
    %894 = vmatpush1.msra.mxu0 0.0
    %895 = vmatprep.subr.mxu0 0.0
    %896 = vmatpush1.msra.mxu0 0.0
    %897 = vmatprep.subr.mxu0 0.0
    %898 = vmatpush1.msra.mxu0 0.0
    %899 = vmatprep.subr.mxu0 0.0
    %900 = vmatpush1.msra.mxu0 0.0
    %901 = vmatprep.subr.mxu0 0.0
    %902 = vmatpush1.msra.mxu0 0.0
    %903 = vmatprep.mubr.f32.mxu0 0.0
    %904 = vmatmul.mubr.f32.gmra.mrb[0].mxu0 %v718
    %v905 = vpop.f32.mrb[0].mxu0
    %v906 = vadd.f32 0.0, %v905
    %v907 = vpop.f32.mrb[0].mxu0
    %908 = vdwg.mxu0
    %v909 = vld [vmem:[#allocation9 + $0x318] sm:$0xff]
    %v910 = vld [vmem:[#allocation9 + $0x320] sm:$0xff]
    %v911 = vld [vmem:[#allocation9 + $0x328] sm:$0xff]
    %v912 = vld [vmem:[#allocation9 + $0x348] sm:$0xff]
    %v913 = vld [vmem:[#allocation9 + $0x350] sm:$0xff]
    %v914 = vld [vmem:[#allocation9 + $0x358] sm:$0xff]
    %v915 = vld [vmem:[#allocation9 + $0x378] sm:$0xff]
    %v916 = vld [vmem:[#allocation9 + $0x380] sm:$0xff]
    %v917 = vld [vmem:[#allocation9 + $0x388] sm:$0xff]
    %v918 = vld [vmem:[#allocation9 + $0x3a8] sm:$0xff]
    %v919 = vld [vmem:[#allocation9 + $0x3b0] sm:$0xff]
    %v920 = vld [vmem:[#allocation9 + $0x3b8] sm:$0xff]
    %v921 = vld [vmem:[#allocation9 + $0x3d8] sm:$0xff]
    %v922 = vld [vmem:[#allocation9 + $0x3e0] sm:$0xff]
    %v923 = vld [vmem:[#allocation9 + $0x3e8] sm:$0xff]
    %v924 = vld [vmem:[#allocation9 + $0x408] sm:$0xff]
    %v925 = vld [vmem:[#allocation9 + $0x410] sm:$0xff]
    %v926 = vld [vmem:[#allocation9 + $0x418] sm:$0xff]
    %v927 = vld [vmem:[#allocation9 + $0x438] sm:$0xff]
    %v928 = vld [vmem:[#allocation9 + $0x440] sm:$0xff]
    %v929 = vld [vmem:[#allocation9 + $0x448] sm:$0xff]
    %v930 = vld [vmem:[#allocation9 + $0x468] sm:$0xff]
    %v931 = vld [vmem:[#allocation9 + $0x470] sm:$0xff]
    %v932 = vld [vmem:[#allocation9 + $0x478] sm:$0xff]
    %v933 = vld [vmem:[#allocation9 + $0x498] sm:$0xff]
    %v934 = vld [vmem:[#allocation9 + $0x4a0] sm:$0xff]
    %v935 = vld [vmem:[#allocation9 + $0x4a8] sm:$0xff]
    %v936 = vld [vmem:[#allocation9 + $0x4c8] sm:$0xff]
    %v937 = vld [vmem:[#allocation9 + $0x4d0] sm:$0xff]
    %v938 = vld [vmem:[#allocation9 + $0x4d8] sm:$0xff]
    %v939 = vld [vmem:[#allocation9 + $0x4f8] sm:$0xff]
    %v940 = vld [vmem:[#allocation9 + $0x500] sm:$0xff]
    %v941 = vld [vmem:[#allocation9 + $0x508] sm:$0xff]
    %v942 = vld [vmem:[#allocation9 + $0x528] sm:$0xff]
    %v943 = vld [vmem:[#allocation9 + $0x530] sm:$0xff]
    %v944 = vld [vmem:[#allocation9 + $0x538] sm:$0xff]
    %v945 = vld [vmem:[#allocation9 + $0x558] sm:$0xff]
    %v946 = vld [vmem:[#allocation9 + $0x560] sm:$0xff]
    %v947 = vld [vmem:[#allocation9 + $0x568] sm:$0xff]
    %v948 = vld [vmem:[#allocation9 + $0x588] sm:$0xff]
    %v949 = vld [vmem:[#allocation9 + $0x590] sm:$0xff]
    %v950 = vld [vmem:[#allocation9 + $0x598] sm:$0xff]
    %v951 = vld [vmem:[#allocation9 + $0x5b8] sm:$0xff]
    %v952 = vld [vmem:[#allocation9 + $0x5c0] sm:$0xff]
    %v953 = vld [vmem:[#allocation9 + $0x5c8] sm:$0xff]
    %v954 = vld [vmem:[#allocation9 + $0x5e8] sm:$0xff]
    %v955 = vld [vmem:[#allocation9 + $0x5f0] sm:$0xff]
    %v956 = vld [vmem:[#allocation9 + $0x5f8] sm:$0xff]
    %957 = vmatprep.subr.mxu0 %v910
    %958 = vmatpush1.msra.mxu0 %v909
    %959 = vmatprep.subr.mxu0 %v913
    %960 = vmatpush1.msra.mxu0 %v912
    %961 = vmatprep.subr.mxu0 %v916
    %962 = vmatpush1.msra.mxu0 %v915
    %963 = vmatprep.subr.mxu0 %v919
    %964 = vmatpush1.msra.mxu0 %v918
    %965 = vmatprep.subr.mxu0 %v922
    %966 = vmatpush1.msra.mxu0 %v921
    %967 = vmatprep.subr.mxu0 %v925
    %968 = vmatpush1.msra.mxu0 %v924
    %969 = vmatprep.subr.mxu0 %v928
    %970 = vmatpush1.msra.mxu0 %v927
    %971 = vmatprep.subr.mxu0 %v931
    %972 = vmatpush1.msra.mxu0 %v930
    %973 = vmatprep.subr.mxu0 %v934
    %974 = vmatpush1.msra.mxu0 %v933
    %975 = vmatprep.subr.mxu0 %v937
    %976 = vmatpush1.msra.mxu0 %v936
    %977 = vmatprep.subr.mxu0 %v940
    %978 = vmatpush1.msra.mxu0 %v939
    %979 = vmatprep.subr.mxu0 %v943
    %980 = vmatpush1.msra.mxu0 %v942
    %981 = vmatprep.subr.mxu0 %v946
    %982 = vmatpush1.msra.mxu0 %v945
    %983 = vmatprep.subr.mxu0 %v949
    %984 = vmatpush1.msra.mxu0 %v948
    %985 = vmatprep.subr.mxu0 %v952
    %986 = vmatpush1.msra.mxu0 %v951
    %987 = vmatprep.subr.mxu0 %v955
    %988 = vmatpush1.msra.mxu0 %v954
    %989 = vmatprep.subr.mxu0 0.0
    %990 = vmatpush1.msra.mxu0 0.0
    %991 = vmatprep.subr.mxu0 0.0
    %992 = vmatpush1.msra.mxu0 0.0
    %993 = vmatprep.subr.mxu0 0.0
    %994 = vmatpush1.msra.mxu0 0.0
    %995 = vmatprep.subr.mxu0 0.0
    %996 = vmatpush1.msra.mxu0 0.0
    %997 = vmatprep.subr.mxu0 0.0
    %998 = vmatpush1.msra.mxu0 0.0
    %999 = vmatprep.subr.mxu0 0.0
    %1000 = vmatpush1.msra.mxu0 0.0
    %1001 = vmatprep.subr.mxu0 0.0
    %1002 = vmatpush1.msra.mxu0 0.0
    %1003 = vmatprep.subr.mxu0 0.0
    %1004 = vmatpush1.msra.mxu0 0.0
    %1005 = vmatprep.subr.mxu0 0.0
    %1006 = vmatpush1.msra.mxu0 0.0
    %1007 = vmatprep.subr.mxu0 0.0
    %1008 = vmatpush1.msra.mxu0 0.0
    %1009 = vmatprep.subr.mxu0 0.0
    %1010 = vmatpush1.msra.mxu0 0.0
    %1011 = vmatprep.subr.mxu0 0.0
    %1012 = vmatpush1.msra.mxu0 0.0
    %1013 = vmatprep.subr.mxu0 0.0
    %1014 = vmatpush1.msra.mxu0 0.0
    %1015 = vmatprep.subr.mxu0 0.0
    %1016 = vmatpush1.msra.mxu0 0.0
    %1017 = vmatprep.subr.mxu0 0.0
    %1018 = vmatpush1.msra.mxu0 0.0
    %1019 = vmatprep.subr.mxu0 0.0
    %1020 = vmatpush1.msra.mxu0 0.0
    %1021 = vmatprep.mubr.f32.mxu0 0.0
    %1022 = vmatmul.mubr.f32.gmra.mrb[0].mxu0 %v719
    %v1023 = vpop.f32.mrb[0].mxu0
    %v1024 = vadd.f32 0.0, %v1023
    %v1025 = vpop.f32.mrb[0].mxu0
    %v1026 = vadd.f32 0.0, %v1025
    %1027 = vdwg.mxu0
    %1028 = vmatprep.subr.mxu0 0.0
    %1029 = vmatpush1.msra.mxu0 %v911
    %1030 = vmatprep.subr.mxu0 0.0
    %1031 = vmatpush1.msra.mxu0 %v914
    %1032 = vmatprep.subr.mxu0 0.0
    %1033 = vmatpush1.msra.mxu0 %v917
    %1034 = vmatprep.subr.mxu0 0.0
    %1035 = vmatpush1.msra.mxu0 %v920
    %1036 = vmatprep.subr.mxu0 0.0
    %1037 = vmatpush1.msra.mxu0 %v923
    %1038 = vmatprep.subr.mxu0 0.0
    %1039 = vmatpush1.msra.mxu0 %v926
    %1040 = vmatprep.subr.mxu0 0.0
    %1041 = vmatpush1.msra.mxu0 %v929
    %1042 = vmatprep.subr.mxu0 0.0
    %1043 = vmatpush1.msra.mxu0 %v932
    %1044 = vmatprep.subr.mxu0 0.0
    %1045 = vmatpush1.msra.mxu0 %v935
    %1046 = vmatprep.subr.mxu0 0.0
    %1047 = vmatpush1.msra.mxu0 %v938
    %1048 = vmatprep.subr.mxu0 0.0
    %1049 = vmatpush1.msra.mxu0 %v941
    %1050 = vmatprep.subr.mxu0 0.0
    %1051 = vmatpush1.msra.mxu0 %v944
    %1052 = vmatprep.subr.mxu0 0.0
    %1053 = vmatpush1.msra.mxu0 %v947
    %1054 = vmatprep.subr.mxu0 0.0
    %1055 = vmatpush1.msra.mxu0 %v950
    %1056 = vmatprep.subr.mxu0 0.0
    %1057 = vmatpush1.msra.mxu0 %v953
    %1058 = vmatprep.subr.mxu0 0.0
    %1059 = vmatpush1.msra.mxu0 %v956
    %1060 = vmatprep.subr.mxu0 0.0
    %1061 = vmatpush1.msra.mxu0 0.0
    %1062 = vmatprep.subr.mxu0 0.0
    %1063 = vmatpush1.msra.mxu0 0.0
    %1064 = vmatprep.subr.mxu0 0.0
    %1065 = vmatpush1.msra.mxu0 0.0
    %1066 = vmatprep.subr.mxu0 0.0
    %1067 = vmatpush1.msra.mxu0 0.0
    %1068 = vmatprep.subr.mxu0 0.0
    %1069 = vmatpush1.msra.mxu0 0.0
    %1070 = vmatprep.subr.mxu0 0.0
    %1071 = vmatpush1.msra.mxu0 0.0
    %1072 = vmatprep.subr.mxu0 0.0
    %1073 = vmatpush1.msra.mxu0 0.0
    %1074 = vmatprep.subr.mxu0 0.0
    %1075 = vmatpush1.msra.mxu0 0.0
    %1076 = vmatprep.subr.mxu0 0.0
    %1077 = vmatpush1.msra.mxu0 0.0
    %1078 = vmatprep.subr.mxu0 0.0
    %1079 = vmatpush1.msra.mxu0 0.0
    %1080 = vmatprep.subr.mxu0 0.0
    %1081 = vmatpush1.msra.mxu0 0.0
    %1082 = vmatprep.subr.mxu0 0.0
    %1083 = vmatpush1.msra.mxu0 0.0
    %1084 = vmatprep.subr.mxu0 0.0
    %1085 = vmatpush1.msra.mxu0 0.0
    %1086 = vmatprep.subr.mxu0 0.0
    %1087 = vmatpush1.msra.mxu0 0.0
    %1088 = vmatprep.subr.mxu0 0.0
    %1089 = vmatpush1.msra.mxu0 0.0
    %1090 = vmatprep.subr.mxu0 0.0
    %1091 = vmatpush1.msra.mxu0 0.0
    %1092 = vmatprep.mubr.f32.mxu0 0.0
    %1093 = vmatmul.mubr.f32.gmra.mrb[0].mxu0 %v719
    %v1094 = vpop.f32.mrb[0].mxu0
    %v1095 = vadd.f32 0.0, %v1094
    %v1096 = vpop.f32.mrb[0].mxu0
    %1097 = vdwg.mxu0
    %s1098 = smul.u32 0, 3
    %s1099 = smul.addr %s1098, 8
    %s1100 = scalar_lea.vmem [#allocation2], %s1099
    %v1101 = vld [vmem:[%s1100] sm:$0xff]
    %v1102 = vld [vmem:[%s1100 + $0x8] sm:$0xff]
    %v1103 = vld [vmem:[%s1100 + $0x10] sm:$0xff]
    %v1104 = vadd.f32 %v1101, %v835
    %v1105 = vxor.u32 %v1104, 2147483648
    %v1106 = vmul.f32 %v1105, 1.442695
    %v1107 = vpow.pop %v1106
    %v1108 = vadd.f32 %v1107, 1.0
    %v1109 = vrcp.pop %v1108
    %v1110 = vmul.f32 1.0, %v1109
    %v1111 = vadd.f32 %v1102, %v837
    %v1112 = vxor.u32 %v1111, 2147483648
    %v1113 = vmul.f32 %v1112, 1.442695
    %v1114 = vpow.pop %v1113
    %v1115 = vadd.f32 %v1114, 1.0
    %v1116 = vrcp.pop %v1115
    %v1117 = vmul.f32 1.0, %v1116
    %v1118 = vadd.f32 %v906, %v709
    %v1119 = vmul.f32 %v1110, %v1118
    %v1120 = vadd.f32 %v1103, %v1119
    %v1121 = vtanh.pop %v1120
    %v1122 = vsub.f32 %v718, %v1121
    %v1123 = vmul.f32 %v1117, %v1122
    %v1124 = vadd.f32 %v1121, %v1123
    %s1125 = smul.u32 7, 3
    %s1126 = smul.addr %s1125, 8
    %s1127 = scalar_lea.vmem [#allocation3], %s1126
    %v1128 = vld [vmem:[%s1127] sm:$0xff]
    %v1129 = vld [vmem:[%s1127 + $0x8] sm:$0xff]
    %v1130 = vld [vmem:[%s1127 + $0x10] sm:$0xff]
    %v1131 = vadd.f32 %v1128, %v1024
    %v1132 = vxor.u32 %v1131, 2147483648
    %v1133 = vmul.f32 %v1132, 1.442695
    %v1134 = vpow.pop %v1133
    %v1135 = vadd.f32 %v1134, 1.0
    %v1136 = vrcp.pop %v1135
    %v1137 = vmul.f32 1.0, %v1136
    %v1138 = vadd.f32 %v1129, %v1026
    %v1139 = vxor.u32 %v1138, 2147483648
    %v1140 = vmul.f32 %v1139, 1.442695
    %v1141 = vpow.pop %v1140
    %v1142 = vadd.f32 %v1141, 1.0
    %v1143 = vrcp.pop %v1142
    %v1144 = vmul.f32 1.0, %v1143
    %v1145 = vadd.f32 %v1095, %v716
    %v1146 = vmul.f32 %v1137, %v1145
    %v1147 = vadd.f32 %v1130, %v1146
    %v1148 = vtanh.pop %v1147
    %v1149 = vsub.f32 %v719, %v1148
    %v1150 = vmul.f32 %v1144, %v1149
    %v1151 = vadd.f32 %v1148, %v1150
    %1152 = vst [vmem:[#allocation4] sm:$0xff] %v1124
    %1153 = vst [vmem:[#allocation4 + $0x8] sm:$0xff] %v1151
    %s1154 = smul.u32 0, 2
    %s1155 = smul.addr %s1154, 8
    %s1156 = scalar_lea.vmem [#allocation5], %s1155
    %1157 = vst [vmem:[%s1156] sm:$0xff] %v1124
    %s1158 = smul.u32 7, 2
    %s1159 = smul.addr %s1158, 8
    %s1160 = scalar_lea.vmem [#allocation5], %s1159
    %1161 = vst [vmem:[%s1160 + $0x8] sm:$0xff] %v1151
    %v1162 = vld [vmem:[#allocation4] sm:$0xff]
    %v1163 = vld [vmem:[#allocation4 + $0x8] sm:$0xff]
    %v1164 = vld [vmem:[#allocation9] sm:$0xff]
    %v1165 = vld [vmem:[#allocation9 + $0x8] sm:$0xff]
    %v1166 = vld [vmem:[#allocation9 + $0x10] sm:$0xff]
    %v1167 = vld [vmem:[#allocation9 + $0x30] sm:$0xff]
    %v1168 = vld [vmem:[#allocation9 + $0x38] sm:$0xff]
    %v1169 = vld [vmem:[#allocation9 + $0x40] sm:$0xff]
    %v1170 = vld [vmem:[#allocation9 + $0x60] sm:$0xff]
    %v1171 = vld [vmem:[#allocation9 + $0x68] sm:$0xff]
    %v1172 = vld [vmem:[#allocation9 + $0x70] sm:$0xff]
    %v1173 = vld [vmem:[#allocation9 + $0x90] sm:$0xff]
    %v1174 = vld [vmem:[#allocation9 + $0x98] sm:$0xff]
    %v1175 = vld [vmem:[#allocation9 + $0xa0] sm:$0xff]
    %v1176 = vld [vmem:[#allocation9 + $0xc0] sm:$0xff]
    %v1177 = vld [vmem:[#allocation9 + $0xc8] sm:$0xff]
    %v1178 = vld [vmem:[#allocation9 + $0xd0] sm:$0xff]
    %v1179 = vld [vmem:[#allocation9 + $0xf0] sm:$0xff]
    %v1180 = vld [vmem:[#allocation9 + $0xf8] sm:$0xff]
    %v1181 = vld [vmem:[#allocation9 + $0x100] sm:$0xff]
    %v1182 = vld [vmem:[#allocation9 + $0x120] sm:$0xff]
    %v1183 = vld [vmem:[#allocation9 + $0x128] sm:$0xff]
    %v1184 = vld [vmem:[#allocation9 + $0x130] sm:$0xff]
    %v1185 = vld [vmem:[#allocation9 + $0x150] sm:$0xff]
    %v1186 = vld [vmem:[#allocation9 + $0x158] sm:$0xff]
    %v1187 = vld [vmem:[#allocation9 + $0x160] sm:$0xff]
    %v1188 = vld [vmem:[#allocation9 + $0x180] sm:$0xff]
    %v1189 = vld [vmem:[#allocation9 + $0x188] sm:$0xff]
    %v1190 = vld [vmem:[#allocation9 + $0x190] sm:$0xff]
    %v1191 = vld [vmem:[#allocation9 + $0x1b0] sm:$0xff]
    %v1192 = vld [vmem:[#allocation9 + $0x1b8] sm:$0xff]
    %v1193 = vld [vmem:[#allocation9 + $0x1c0] sm:$0xff]
    %v1194 = vld [vmem:[#allocation9 + $0x1e0] sm:$0xff]
    %v1195 = vld [vmem:[#allocation9 + $0x1e8] sm:$0xff]
    %v1196 = vld [vmem:[#allocation9 + $0x1f0] sm:$0xff]
    %v1197 = vld [vmem:[#allocation9 + $0x210] sm:$0xff]
    %v1198 = vld [vmem:[#allocation9 + $0x218] sm:$0xff]
    %v1199 = vld [vmem:[#allocation9 + $0x220] sm:$0xff]
    %v1200 = vld [vmem:[#allocation9 + $0x240] sm:$0xff]
    %v1201 = vld [vmem:[#allocation9 + $0x248] sm:$0xff]
    %v1202 = vld [vmem:[#allocation9 + $0x250] sm:$0xff]
    %v1203 = vld [vmem:[#allocation9 + $0x270] sm:$0xff]
    %v1204 = vld [vmem:[#allocation9 + $0x278] sm:$0xff]
    %v1205 = vld [vmem:[#allocation9 + $0x280] sm:$0xff]
    %v1206 = vld [vmem:[#allocation9 + $0x2a0] sm:$0xff]
    %v1207 = vld [vmem:[#allocation9 + $0x2a8] sm:$0xff]
    %v1208 = vld [vmem:[#allocation9 + $0x2b0] sm:$0xff]
    %v1209 = vld [vmem:[#allocation9 + $0x2d0] sm:$0xff]
    %v1210 = vld [vmem:[#allocation9 + $0x2d8] sm:$0xff]
    %v1211 = vld [vmem:[#allocation9 + $0x2e0] sm:$0xff]
    %1212 = vmatprep.subr.mxu0 %v1165
    %1213 = vmatpush1.msra.mxu0 %v1164
    %1214 = vmatprep.subr.mxu0 %v1168
    %1215 = vmatpush1.msra.mxu0 %v1167
    %1216 = vmatprep.subr.mxu0 %v1171
    %1217 = vmatpush1.msra.mxu0 %v1170
    %1218 = vmatprep.subr.mxu0 %v1174
    %1219 = vmatpush1.msra.mxu0 %v1173
    %1220 = vmatprep.subr.mxu0 %v1177
    %1221 = vmatpush1.msra.mxu0 %v1176
    %1222 = vmatprep.subr.mxu0 %v1180
    %1223 = vmatpush1.msra.mxu0 %v1179
    %1224 = vmatprep.subr.mxu0 %v1183
    %1225 = vmatpush1.msra.mxu0 %v1182
    %1226 = vmatprep.subr.mxu0 %v1186
    %1227 = vmatpush1.msra.mxu0 %v1185
    %1228 = vmatprep.subr.mxu0 %v1189
    %1229 = vmatpush1.msra.mxu0 %v1188
    %1230 = vmatprep.subr.mxu0 %v1192
    %1231 = vmatpush1.msra.mxu0 %v1191
    %1232 = vmatprep.subr.mxu0 %v1195
    %1233 = vmatpush1.msra.mxu0 %v1194
    %1234 = vmatprep.subr.mxu0 %v1198
    %1235 = vmatpush1.msra.mxu0 %v1197
    %1236 = vmatprep.subr.mxu0 %v1201
    %1237 = vmatpush1.msra.mxu0 %v1200
    %1238 = vmatprep.subr.mxu0 %v1204
    %1239 = vmatpush1.msra.mxu0 %v1203
    %1240 = vmatprep.subr.mxu0 %v1207
    %1241 = vmatpush1.msra.mxu0 %v1206
    %1242 = vmatprep.subr.mxu0 %v1210
    %1243 = vmatpush1.msra.mxu0 %v1209
    %1244 = vmatprep.subr.mxu0 0.0
    %1245 = vmatpush1.msra.mxu0 0.0
    %1246 = vmatprep.subr.mxu0 0.0
    %1247 = vmatpush1.msra.mxu0 0.0
    %1248 = vmatprep.subr.mxu0 0.0
    %1249 = vmatpush1.msra.mxu0 0.0
    %1250 = vmatprep.subr.mxu0 0.0
    %1251 = vmatpush1.msra.mxu0 0.0
    %1252 = vmatprep.subr.mxu0 0.0
    %1253 = vmatpush1.msra.mxu0 0.0
    %1254 = vmatprep.subr.mxu0 0.0
    %1255 = vmatpush1.msra.mxu0 0.0
    %1256 = vmatprep.subr.mxu0 0.0
    %1257 = vmatpush1.msra.mxu0 0.0
    %1258 = vmatprep.subr.mxu0 0.0
    %1259 = vmatpush1.msra.mxu0 0.0
    %1260 = vmatprep.subr.mxu0 0.0
    %1261 = vmatpush1.msra.mxu0 0.0
    %1262 = vmatprep.subr.mxu0 0.0
    %1263 = vmatpush1.msra.mxu0 0.0
    %1264 = vmatprep.subr.mxu0 0.0
    %1265 = vmatpush1.msra.mxu0 0.0
    %1266 = vmatprep.subr.mxu0 0.0
    %1267 = vmatpush1.msra.mxu0 0.0
    %1268 = vmatprep.subr.mxu0 0.0
    %1269 = vmatpush1.msra.mxu0 0.0
    %1270 = vmatprep.subr.mxu0 0.0
    %1271 = vmatpush1.msra.mxu0 0.0
    %1272 = vmatprep.subr.mxu0 0.0
    %1273 = vmatpush1.msra.mxu0 0.0
    %1274 = vmatprep.subr.mxu0 0.0
    %1275 = vmatpush1.msra.mxu0 0.0
    %1276 = vmatprep.mubr.f32.mxu0 0.0
    %1277 = vmatmul.mubr.f32.gmra.mrb[0].mxu0 %v1162
    %v1278 = vpop.f32.mrb[0].mxu0
    %v1279 = vadd.f32 0.0, %v1278
    %v1280 = vpop.f32.mrb[0].mxu0
    %v1281 = vadd.f32 0.0, %v1280
    %1282 = vdwg.mxu0
    %1283 = vmatprep.subr.mxu0 0.0
    %1284 = vmatpush1.msra.mxu0 %v1166
    %1285 = vmatprep.subr.mxu0 0.0
    %1286 = vmatpush1.msra.mxu0 %v1169
    %1287 = vmatprep.subr.mxu0 0.0
    %1288 = vmatpush1.msra.mxu0 %v1172
    %1289 = vmatprep.subr.mxu0 0.0
    %1290 = vmatpush1.msra.mxu0 %v1175
    %1291 = vmatprep.subr.mxu0 0.0
    %1292 = vmatpush1.msra.mxu0 %v1178
    %1293 = vmatprep.subr.mxu0 0.0
    %1294 = vmatpush1.msra.mxu0 %v1181
    %1295 = vmatprep.subr.mxu0 0.0
    %1296 = vmatpush1.msra.mxu0 %v1184
    %1297 = vmatprep.subr.mxu0 0.0
    %1298 = vmatpush1.msra.mxu0 %v1187
    %1299 = vmatprep.subr.mxu0 0.0
    %1300 = vmatpush1.msra.mxu0 %v1190
    %1301 = vmatprep.subr.mxu0 0.0
    %1302 = vmatpush1.msra.mxu0 %v1193
    %1303 = vmatprep.subr.mxu0 0.0
    %1304 = vmatpush1.msra.mxu0 %v1196
    %1305 = vmatprep.subr.mxu0 0.0
    %1306 = vmatpush1.msra.mxu0 %v1199
    %1307 = vmatprep.subr.mxu0 0.0
    %1308 = vmatpush1.msra.mxu0 %v1202
    %1309 = vmatprep.subr.mxu0 0.0
    %1310 = vmatpush1.msra.mxu0 %v1205
    %1311 = vmatprep.subr.mxu0 0.0
    %1312 = vmatpush1.msra.mxu0 %v1208
    %1313 = vmatprep.subr.mxu0 0.0
    %1314 = vmatpush1.msra.mxu0 %v1211
    %1315 = vmatprep.subr.mxu0 0.0
    %1316 = vmatpush1.msra.mxu0 0.0
    %1317 = vmatprep.subr.mxu0 0.0
    %1318 = vmatpush1.msra.mxu0 0.0
    %1319 = vmatprep.subr.mxu0 0.0
    %1320 = vmatpush1.msra.mxu0 0.0
    %1321 = vmatprep.subr.mxu0 0.0
    %1322 = vmatpush1.msra.mxu0 0.0
    %1323 = vmatprep.subr.mxu0 0.0
    %1324 = vmatpush1.msra.mxu0 0.0
    %1325 = vmatprep.subr.mxu0 0.0
    %1326 = vmatpush1.msra.mxu0 0.0
    %1327 = vmatprep.subr.mxu0 0.0
    %1328 = vmatpush1.msra.mxu0 0.0
    %1329 = vmatprep.subr.mxu0 0.0
    %1330 = vmatpush1.msra.mxu0 0.0
    %1331 = vmatprep.subr.mxu0 0.0
    %1332 = vmatpush1.msra.mxu0 0.0
    %1333 = vmatprep.subr.mxu0 0.0
    %1334 = vmatpush1.msra.mxu0 0.0
    %1335 = vmatprep.subr.mxu0 0.0
    %1336 = vmatpush1.msra.mxu0 0.0
    %1337 = vmatprep.subr.mxu0 0.0
    %1338 = vmatpush1.msra.mxu0 0.0
    %1339 = vmatprep.subr.mxu0 0.0
    %1340 = vmatpush1.msra.mxu0 0.0
    %1341 = vmatprep.subr.mxu0 0.0
    %1342 = vmatpush1.msra.mxu0 0.0
    %1343 = vmatprep.subr.mxu0 0.0
    %1344 = vmatpush1.msra.mxu0 0.0
    %1345 = vmatprep.subr.mxu0 0.0
    %1346 = vmatpush1.msra.mxu0 0.0
    %1347 = vmatprep.mubr.f32.mxu0 0.0
    %1348 = vmatmul.mubr.f32.gmra.mrb[0].mxu0 %v1162
    %v1349 = vpop.f32.mrb[0].mxu0
    %v1350 = vadd.f32 0.0, %v1349
    %v1351 = vpop.f32.mrb[0].mxu0
    %1352 = vdwg.mxu0
    %v1353 = vld [vmem:[#allocation9 + $0x318] sm:$0xff]
    %v1354 = vld [vmem:[#allocation9 + $0x320] sm:$0xff]
    %v1355 = vld [vmem:[#allocation9 + $0x328] sm:$0xff]
    %v1356 = vld [vmem:[#allocation9 + $0x348] sm:$0xff]
    %v1357 = vld [vmem:[#allocation9 + $0x350] sm:$0xff]
    %v1358 = vld [vmem:[#allocation9 + $0x358] sm:$0xff]
    %v1359 = vld [vmem:[#allocation9 + $0x378] sm:$0xff]
    %v1360 = vld [vmem:[#allocation9 + $0x380] sm:$0xff]
    %v1361 = vld [vmem:[#allocation9 + $0x388] sm:$0xff]
    %v1362 = vld [vmem:[#allocation9 + $0x3a8] sm:$0xff]
    %v1363 = vld [vmem:[#allocation9 + $0x3b0] sm:$0xff]
    %v1364 = vld [vmem:[#allocation9 + $0x3b8] sm:$0xff]
    %v1365 = vld [vmem:[#allocation9 + $0x3d8] sm:$0xff]
    %v1366 = vld [vmem:[#allocation9 + $0x3e0] sm:$0xff]
    %v1367 = vld [vmem:[#allocation9 + $0x3e8] sm:$0xff]
    %v1368 = vld [vmem:[#allocation9 + $0x408] sm:$0xff]
    %v1369 = vld [vmem:[#allocation9 + $0x410] sm:$0xff]
    %v1370 = vld [vmem:[#allocation9 + $0x418] sm:$0xff]
    %v1371 = vld [vmem:[#allocation9 + $0x438] sm:$0xff]
    %v1372 = vld [vmem:[#allocation9 + $0x440] sm:$0xff]
    %v1373 = vld [vmem:[#allocation9 + $0x448] sm:$0xff]
    %v1374 = vld [vmem:[#allocation9 + $0x468] sm:$0xff]
    %v1375 = vld [vmem:[#allocation9 + $0x470] sm:$0xff]
    %v1376 = vld [vmem:[#allocation9 + $0x478] sm:$0xff]
    %v1377 = vld [vmem:[#allocation9 + $0x498] sm:$0xff]
    %v1378 = vld [vmem:[#allocation9 + $0x4a0] sm:$0xff]
    %v1379 = vld [vmem:[#allocation9 + $0x4a8] sm:$0xff]
    %v1380 = vld [vmem:[#allocation9 + $0x4c8] sm:$0xff]
    %v1381 = vld [vmem:[#allocation9 + $0x4d0] sm:$0xff]
    %v1382 = vld [vmem:[#allocation9 + $0x4d8] sm:$0xff]
    %v1383 = vld [vmem:[#allocation9 + $0x4f8] sm:$0xff]
    %v1384 = vld [vmem:[#allocation9 + $0x500] sm:$0xff]
    %v1385 = vld [vmem:[#allocation9 + $0x508] sm:$0xff]
    %v1386 = vld [vmem:[#allocation9 + $0x528] sm:$0xff]
    %v1387 = vld [vmem:[#allocation9 + $0x530] sm:$0xff]
    %v1388 = vld [vmem:[#allocation9 + $0x538] sm:$0xff]
    %v1389 = vld [vmem:[#allocation9 + $0x558] sm:$0xff]
    %v1390 = vld [vmem:[#allocation9 + $0x560] sm:$0xff]
    %v1391 = vld [vmem:[#allocation9 + $0x568] sm:$0xff]
    %v1392 = vld [vmem:[#allocation9 + $0x588] sm:$0xff]
    %v1393 = vld [vmem:[#allocation9 + $0x590] sm:$0xff]
    %v1394 = vld [vmem:[#allocation9 + $0x598] sm:$0xff]
    %v1395 = vld [vmem:[#allocation9 + $0x5b8] sm:$0xff]
    %v1396 = vld [vmem:[#allocation9 + $0x5c0] sm:$0xff]
    %v1397 = vld [vmem:[#allocation9 + $0x5c8] sm:$0xff]
    %v1398 = vld [vmem:[#allocation9 + $0x5e8] sm:$0xff]
    %v1399 = vld [vmem:[#allocation9 + $0x5f0] sm:$0xff]
    %v1400 = vld [vmem:[#allocation9 + $0x5f8] sm:$0xff]
    %1401 = vmatprep.subr.mxu0 %v1354
    %1402 = vmatpush1.msra.mxu0 %v1353
    %1403 = vmatprep.subr.mxu0 %v1357
    %1404 = vmatpush1.msra.mxu0 %v1356
    %1405 = vmatprep.subr.mxu0 %v1360
    %1406 = vmatpush1.msra.mxu0 %v1359
    %1407 = vmatprep.subr.mxu0 %v1363
    %1408 = vmatpush1.msra.mxu0 %v1362
    %1409 = vmatprep.subr.mxu0 %v1366
    %1410 = vmatpush1.msra.mxu0 %v1365
    %1411 = vmatprep.subr.mxu0 %v1369
    %1412 = vmatpush1.msra.mxu0 %v1368
    %1413 = vmatprep.subr.mxu0 %v1372
    %1414 = vmatpush1.msra.mxu0 %v1371
    %1415 = vmatprep.subr.mxu0 %v1375
    %1416 = vmatpush1.msra.mxu0 %v1374
    %1417 = vmatprep.subr.mxu0 %v1378
    %1418 = vmatpush1.msra.mxu0 %v1377
    %1419 = vmatprep.subr.mxu0 %v1381
    %1420 = vmatpush1.msra.mxu0 %v1380
    %1421 = vmatprep.subr.mxu0 %v1384
    %1422 = vmatpush1.msra.mxu0 %v1383
    %1423 = vmatprep.subr.mxu0 %v1387
    %1424 = vmatpush1.msra.mxu0 %v1386
    %1425 = vmatprep.subr.mxu0 %v1390
    %1426 = vmatpush1.msra.mxu0 %v1389
    %1427 = vmatprep.subr.mxu0 %v1393
    %1428 = vmatpush1.msra.mxu0 %v1392
    %1429 = vmatprep.subr.mxu0 %v1396
    %1430 = vmatpush1.msra.mxu0 %v1395
    %1431 = vmatprep.subr.mxu0 %v1399
    %1432 = vmatpush1.msra.mxu0 %v1398
    %1433 = vmatprep.subr.mxu0 0.0
    %1434 = vmatpush1.msra.mxu0 0.0
    %1435 = vmatprep.subr.mxu0 0.0
    %1436 = vmatpush1.msra.mxu0 0.0
    %1437 = vmatprep.subr.mxu0 0.0
    %1438 = vmatpush1.msra.mxu0 0.0
    %1439 = vmatprep.subr.mxu0 0.0
    %1440 = vmatpush1.msra.mxu0 0.0
    %1441 = vmatprep.subr.mxu0 0.0
    %1442 = vmatpush1.msra.mxu0 0.0
    %1443 = vmatprep.subr.mxu0 0.0
    %1444 = vmatpush1.msra.mxu0 0.0
    %1445 = vmatprep.subr.mxu0 0.0
    %1446 = vmatpush1.msra.mxu0 0.0
    %1447 = vmatprep.subr.mxu0 0.0
    %1448 = vmatpush1.msra.mxu0 0.0
    %1449 = vmatprep.subr.mxu0 0.0
    %1450 = vmatpush1.msra.mxu0 0.0
    %1451 = vmatprep.subr.mxu0 0.0
    %1452 = vmatpush1.msra.mxu0 0.0
    %1453 = vmatprep.subr.mxu0 0.0
    %1454 = vmatpush1.msra.mxu0 0.0
    %1455 = vmatprep.subr.mxu0 0.0
    %1456 = vmatpush1.msra.mxu0 0.0
    %1457 = vmatprep.subr.mxu0 0.0
    %1458 = vmatpush1.msra.mxu0 0.0
    %1459 = vmatprep.subr.mxu0 0.0
    %1460 = vmatpush1.msra.mxu0 0.0
    %1461 = vmatprep.subr.mxu0 0.0
    %1462 = vmatpush1.msra.mxu0 0.0
    %1463 = vmatprep.subr.mxu0 0.0
    %1464 = vmatpush1.msra.mxu0 0.0
    %1465 = vmatprep.mubr.f32.mxu0 0.0
    %1466 = vmatmul.mubr.f32.gmra.mrb[0].mxu0 %v1163
    %v1467 = vpop.f32.mrb[0].mxu0
    %v1468 = vadd.f32 0.0, %v1467
    %v1469 = vpop.f32.mrb[0].mxu0
    %v1470 = vadd.f32 0.0, %v1469
    %1471 = vdwg.mxu0
    %1472 = vmatprep.subr.mxu0 0.0
    %1473 = vmatpush1.msra.mxu0 %v1355
    %1474 = vmatprep.subr.mxu0 0.0
    %1475 = vmatpush1.msra.mxu0 %v1358
    %1476 = vmatprep.subr.mxu0 0.0
    %1477 = vmatpush1.msra.mxu0 %v1361
    %1478 = vmatprep.subr.mxu0 0.0
    %1479 = vmatpush1.msra.mxu0 %v1364
    %1480 = vmatprep.subr.mxu0 0.0
    %1481 = vmatpush1.msra.mxu0 %v1367
    %1482 = vmatprep.subr.mxu0 0.0
    %1483 = vmatpush1.msra.mxu0 %v1370
    %1484 = vmatprep.subr.mxu0 0.0
    %1485 = vmatpush1.msra.mxu0 %v1373
    %1486 = vmatprep.subr.mxu0 0.0
    %1487 = vmatpush1.msra.mxu0 %v1376
    %1488 = vmatprep.subr.mxu0 0.0
    %1489 = vmatpush1.msra.mxu0 %v1379
    %1490 = vmatprep.subr.mxu0 0.0
    %1491 = vmatpush1.msra.mxu0 %v1382
    %1492 = vmatprep.subr.mxu0 0.0
    %1493 = vmatpush1.msra.mxu0 %v1385
    %1494 = vmatprep.subr.mxu0 0.0
    %1495 = vmatpush1.msra.mxu0 %v1388
    %1496 = vmatprep.subr.mxu0 0.0
    %1497 = vmatpush1.msra.mxu0 %v1391
    %1498 = vmatprep.subr.mxu0 0.0
    %1499 = vmatpush1.msra.mxu0 %v1394
    %1500 = vmatprep.subr.mxu0 0.0
    %1501 = vmatpush1.msra.mxu0 %v1397
    %1502 = vmatprep.subr.mxu0 0.0
    %1503 = vmatpush1.msra.mxu0 %v1400
    %1504 = vmatprep.subr.mxu0 0.0
    %1505 = vmatpush1.msra.mxu0 0.0
    %1506 = vmatprep.subr.mxu0 0.0
    %1507 = vmatpush1.msra.mxu0 0.0
    %1508 = vmatprep.subr.mxu0 0.0
    %1509 = vmatpush1.msra.mxu0 0.0
    %1510 = vmatprep.subr.mxu0 0.0
    %1511 = vmatpush1.msra.mxu0 0.0
    %1512 = vmatprep.subr.mxu0 0.0
    %1513 = vmatpush1.msra.mxu0 0.0
    %1514 = vmatprep.subr.mxu0 0.0
    %1515 = vmatpush1.msra.mxu0 0.0
    %1516 = vmatprep.subr.mxu0 0.0
    %1517 = vmatpush1.msra.mxu0 0.0
    %1518 = vmatprep.subr.mxu0 0.0
    %1519 = vmatpush1.msra.mxu0 0.0
    %1520 = vmatprep.subr.mxu0 0.0
    %1521 = vmatpush1.msra.mxu0 0.0
    %1522 = vmatprep.subr.mxu0 0.0
    %1523 = vmatpush1.msra.mxu0 0.0
    %1524 = vmatprep.subr.mxu0 0.0
    %1525 = vmatpush1.msra.mxu0 0.0
    %1526 = vmatprep.subr.mxu0 0.0
    %1527 = vmatpush1.msra.mxu0 0.0
    %1528 = vmatprep.subr.mxu0 0.0
    %1529 = vmatpush1.msra.mxu0 0.0
    %1530 = vmatprep.subr.mxu0 0.0
    %1531 = vmatpush1.msra.mxu0 0.0
    %1532 = vmatprep.subr.mxu0 0.0
    %1533 = vmatpush1.msra.mxu0 0.0
    %1534 = vmatprep.subr.mxu0 0.0
    %1535 = vmatpush1.msra.mxu0 0.0
    %1536 = vmatprep.mubr.f32.mxu0 0.0
    %1537 = vmatmul.mubr.f32.gmra.mrb[0].mxu0 %v1163
    %v1538 = vpop.f32.mrb[0].mxu0
    %v1539 = vadd.f32 0.0, %v1538
    %v1540 = vpop.f32.mrb[0].mxu0
    %1541 = vdwg.mxu0
    %s1542 = smul.u32 1, 3
    %s1543 = smul.addr %s1542, 8
    %s1544 = scalar_lea.vmem [#allocation2], %s1543
    %v1545 = vld [vmem:[%s1544] sm:$0xff]
    %v1546 = vld [vmem:[%s1544 + $0x8] sm:$0xff]
    %v1547 = vld [vmem:[%s1544 + $0x10] sm:$0xff]
    %v1548 = vadd.f32 %v1545, %v1279
    %v1549 = vxor.u32 %v1548, 2147483648
    %v1550 = vmul.f32 %v1549, 1.442695
    %v1551 = vpow.pop %v1550
    %v1552 = vadd.f32 %v1551, 1.0
    %v1553 = vrcp.pop %v1552
    %v1554 = vmul.f32 1.0, %v1553
    %v1555 = vadd.f32 %v1546, %v1281
    %v1556 = vxor.u32 %v1555, 2147483648
    %v1557 = vmul.f32 %v1556, 1.442695
    %v1558 = vpow.pop %v1557
    %v1559 = vadd.f32 %v1558, 1.0
    %v1560 = vrcp.pop %v1559
    %v1561 = vmul.f32 1.0, %v1560
    %v1562 = vadd.f32 %v1350, %v709
    %v1563 = vmul.f32 %v1554, %v1562
    %v1564 = vadd.f32 %v1547, %v1563
    %v1565 = vtanh.pop %v1564
    %v1566 = vsub.f32 %v1162, %v1565
    %v1567 = vmul.f32 %v1561, %v1566
    %v1568 = vadd.f32 %v1565, %v1567
    %s1569 = smul.u32 6, 3
    %s1570 = smul.addr %s1569, 8
    %s1571 = scalar_lea.vmem [#allocation3], %s1570
    %v1572 = vld [vmem:[%s1571] sm:$0xff]
    %v1573 = vld [vmem:[%s1571 + $0x8] sm:$0xff]
    %v1574 = vld [vmem:[%s1571 + $0x10] sm:$0xff]
    %v1575 = vadd.f32 %v1572, %v1468
    %v1576 = vxor.u32 %v1575, 2147483648
    %v1577 = vmul.f32 %v1576, 1.442695
    %v1578 = vpow.pop %v1577
    %v1579 = vadd.f32 %v1578, 1.0
    %v1580 = vrcp.pop %v1579
    %v1581 = vmul.f32 1.0, %v1580
    %v1582 = vadd.f32 %v1573, %v1470
    %v1583 = vxor.u32 %v1582, 2147483648
    %v1584 = vmul.f32 %v1583, 1.442695
    %v1585 = vpow.pop %v1584
    %v1586 = vadd.f32 %v1585, 1.0
    %v1587 = vrcp.pop %v1586
    %v1588 = vmul.f32 1.0, %v1587
    %v1589 = vadd.f32 %v1539, %v716
    %v1590 = vmul.f32 %v1581, %v1589
    %v1591 = vadd.f32 %v1574, %v1590
    %v1592 = vtanh.pop %v1591
    %v1593 = vsub.f32 %v1163, %v1592
    %v1594 = vmul.f32 %v1588, %v1593
    %v1595 = vadd.f32 %v1592, %v1594
    %1596 = vst [vmem:[#allocation4] sm:$0xff] %v1568
    %1597 = vst [vmem:[#allocation4 + $0x8] sm:$0xff] %v1595
    %s1598 = smul.u32 1, 2
    %s1599 = smul.addr %s1598, 8
    %s1600 = scalar_lea.vmem [#allocation5], %s1599
    %1601 = vst [vmem:[%s1600] sm:$0xff] %v1568
    %s1602 = smul.u32 6, 2
    %s1603 = smul.addr %s1602, 8
    %s1604 = scalar_lea.vmem [#allocation5], %s1603
    %1605 = vst [vmem:[%s1604 + $0x8] sm:$0xff] %v1595
    %v1606 = vld [vmem:[#allocation4] sm:$0xff]
    %v1607 = vld [vmem:[#allocation4 + $0x8] sm:$0xff]
    %v1608 = vld [vmem:[#allocation9] sm:$0xff]
    %v1609 = vld [vmem:[#allocation9 + $0x8] sm:$0xff]
    %v1610 = vld [vmem:[#allocation9 + $0x10] sm:$0xff]
    %v1611 = vld [vmem:[#allocation9 + $0x30] sm:$0xff]
    %v1612 = vld [vmem:[#allocation9 + $0x38] sm:$0xff]
    %v1613 = vld [vmem:[#allocation9 + $0x40] sm:$0xff]
    %v1614 = vld [vmem:[#allocation9 + $0x60] sm:$0xff]
    %v1615 = vld [vmem:[#allocation9 + $0x68] sm:$0xff]
    %v1616 = vld [vmem:[#allocation9 + $0x70] sm:$0xff]
    %v1617 = vld [vmem:[#allocation9 + $0x90] sm:$0xff]
    %v1618 = vld [vmem:[#allocation9 + $0x98] sm:$0xff]
    %v1619 = vld [vmem:[#allocation9 + $0xa0] sm:$0xff]
    %v1620 = vld [vmem:[#allocation9 + $0xc0] sm:$0xff]
    %v1621 = vld [vmem:[#allocation9 + $0xc8] sm:$0xff]
    %v1622 = vld [vmem:[#allocation9 + $0xd0] sm:$0xff]
    %v1623 = vld [vmem:[#allocation9 + $0xf0] sm:$0xff]
    %v1624 = vld [vmem:[#allocation9 + $0xf8] sm:$0xff]
    %v1625 = vld [vmem:[#allocation9 + $0x100] sm:$0xff]
    %v1626 = vld [vmem:[#allocation9 + $0x120] sm:$0xff]
    %v1627 = vld [vmem:[#allocation9 + $0x128] sm:$0xff]
    %v1628 = vld [vmem:[#allocation9 + $0x130] sm:$0xff]
    %v1629 = vld [vmem:[#allocation9 + $0x150] sm:$0xff]
    %v1630 = vld [vmem:[#allocation9 + $0x158] sm:$0xff]
    %v1631 = vld [vmem:[#allocation9 + $0x160] sm:$0xff]
    %v1632 = vld [vmem:[#allocation9 + $0x180] sm:$0xff]
    %v1633 = vld [vmem:[#allocation9 + $0x188] sm:$0xff]
    %v1634 = vld [vmem:[#allocation9 + $0x190] sm:$0xff]
    %v1635 = vld [vmem:[#allocation9 + $0x1b0] sm:$0xff]
    %v1636 = vld [vmem:[#allocation9 + $0x1b8] sm:$0xff]
    %v1637 = vld [vmem:[#allocation9 + $0x1c0] sm:$0xff]
    %v1638 = vld [vmem:[#allocation9 + $0x1e0] sm:$0xff]
    %v1639 = vld [vmem:[#allocation9 + $0x1e8] sm:$0xff]
    %v1640 = vld [vmem:[#allocation9 + $0x1f0] sm:$0xff]
    %v1641 = vld [vmem:[#allocation9 + $0x210] sm:$0xff]
    %v1642 = vld [vmem:[#allocation9 + $0x218] sm:$0xff]
    %v1643 = vld [vmem:[#allocation9 + $0x220] sm:$0xff]
    %v1644 = vld [vmem:[#allocation9 + $0x240] sm:$0xff]
    %v1645 = vld [vmem:[#allocation9 + $0x248] sm:$0xff]
    %v1646 = vld [vmem:[#allocation9 + $0x250] sm:$0xff]
    %v1647 = vld [vmem:[#allocation9 + $0x270] sm:$0xff]
    %v1648 = vld [vmem:[#allocation9 + $0x278] sm:$0xff]
    %v1649 = vld [vmem:[#allocation9 + $0x280] sm:$0xff]
    %v1650 = vld [vmem:[#allocation9 + $0x2a0] sm:$0xff]
    %v1651 = vld [vmem:[#allocation9 + $0x2a8] sm:$0xff]
    %v1652 = vld [vmem:[#allocation9 + $0x2b0] sm:$0xff]
    %v1653 = vld [vmem:[#allocation9 + $0x2d0] sm:$0xff]
    %v1654 = vld [vmem:[#allocation9 + $0x2d8] sm:$0xff]
    %v1655 = vld [vmem:[#allocation9 + $0x2e0] sm:$0xff]
    %1656 = vmatprep.subr.mxu0 %v1609
    %1657 = vmatpush1.msra.mxu0 %v1608
    %1658 = vmatprep.subr.mxu0 %v1612
    %1659 = vmatpush1.msra.mxu0 %v1611
    %1660 = vmatprep.subr.mxu0 %v1615
    %1661 = vmatpush1.msra.mxu0 %v1614
    %1662 = vmatprep.subr.mxu0 %v1618
    %1663 = vmatpush1.msra.mxu0 %v1617
    %1664 = vmatprep.subr.mxu0 %v1621
    %1665 = vmatpush1.msra.mxu0 %v1620
    %1666 = vmatprep.subr.mxu0 %v1624
    %1667 = vmatpush1.msra.mxu0 %v1623
    %1668 = vmatprep.subr.mxu0 %v1627
    %1669 = vmatpush1.msra.mxu0 %v1626
    %1670 = vmatprep.subr.mxu0 %v1630
    %1671 = vmatpush1.msra.mxu0 %v1629
    %1672 = vmatprep.subr.mxu0 %v1633
    %1673 = vmatpush1.msra.mxu0 %v1632
    %1674 = vmatprep.subr.mxu0 %v1636
    %1675 = vmatpush1.msra.mxu0 %v1635
    %1676 = vmatprep.subr.mxu0 %v1639
    %1677 = vmatpush1.msra.mxu0 %v1638
    %1678 = vmatprep.subr.mxu0 %v1642
    %1679 = vmatpush1.msra.mxu0 %v1641
    %1680 = vmatprep.subr.mxu0 %v1645
    %1681 = vmatpush1.msra.mxu0 %v1644
    %1682 = vmatprep.subr.mxu0 %v1648
    %1683 = vmatpush1.msra.mxu0 %v1647
    %1684 = vmatprep.subr.mxu0 %v1651
    %1685 = vmatpush1.msra.mxu0 %v1650
    %1686 = vmatprep.subr.mxu0 %v1654
    %1687 = vmatpush1.msra.mxu0 %v1653
    %1688 = vmatprep.subr.mxu0 0.0
    %1689 = vmatpush1.msra.mxu0 0.0
    %1690 = vmatprep.subr.mxu0 0.0
    %1691 = vmatpush1.msra.mxu0 0.0
    %1692 = vmatprep.subr.mxu0 0.0
    %1693 = vmatpush1.msra.mxu0 0.0
    %1694 = vmatprep.subr.mxu0 0.0
    %1695 = vmatpush1.msra.mxu0 0.0
    %1696 = vmatprep.subr.mxu0 0.0
    %1697 = vmatpush1.msra.mxu0 0.0
    %1698 = vmatprep.subr.mxu0 0.0
    %1699 = vmatpush1.msra.mxu0 0.0
    %1700 = vmatprep.subr.mxu0 0.0
    %1701 = vmatpush1.msra.mxu0 0.0
    %1702 = vmatprep.subr.mxu0 0.0
    %1703 = vmatpush1.msra.mxu0 0.0
    %1704 = vmatprep.subr.mxu0 0.0
    %1705 = vmatpush1.msra.mxu0 0.0
    %1706 = vmatprep.subr.mxu0 0.0
    %1707 = vmatpush1.msra.mxu0 0.0
    %1708 = vmatprep.subr.mxu0 0.0
    %1709 = vmatpush1.msra.mxu0 0.0
    %1710 = vmatprep.subr.mxu0 0.0
    %1711 = vmatpush1.msra.mxu0 0.0
    %1712 = vmatprep.subr.mxu0 0.0
    %1713 = vmatpush1.msra.mxu0 0.0
    %1714 = vmatprep.subr.mxu0 0.0
    %1715 = vmatpush1.msra.mxu0 0.0
    %1716 = vmatprep.subr.mxu0 0.0
    %1717 = vmatpush1.msra.mxu0 0.0
    %1718 = vmatprep.subr.mxu0 0.0
    %1719 = vmatpush1.msra.mxu0 0.0
    %1720 = vmatprep.mubr.f32.mxu0 0.0
    %1721 = vmatmul.mubr.f32.gmra.mrb[0].mxu0 %v1606
    %v1722 = vpop.f32.mrb[0].mxu0
    %v1723 = vadd.f32 0.0, %v1722
    %v1724 = vpop.f32.mrb[0].mxu0
    %v1725 = vadd.f32 0.0, %v1724
    %1726 = vdwg.mxu0
    %1727 = vmatprep.subr.mxu0 0.0
    %1728 = vmatpush1.msra.mxu0 %v1610
    %1729 = vmatprep.subr.mxu0 0.0
    %1730 = vmatpush1.msra.mxu0 %v1613
    %1731 = vmatprep.subr.mxu0 0.0
    %1732 = vmatpush1.msra.mxu0 %v1616
    %1733 = vmatprep.subr.mxu0 0.0
    %1734 = vmatpush1.msra.mxu0 %v1619
    %1735 = vmatprep.subr.mxu0 0.0
    %1736 = vmatpush1.msra.mxu0 %v1622
    %1737 = vmatprep.subr.mxu0 0.0
    %1738 = vmatpush1.msra.mxu0 %v1625
    %1739 = vmatprep.subr.mxu0 0.0
    %1740 = vmatpush1.msra.mxu0 %v1628
    %1741 = vmatprep.subr.mxu0 0.0
    %1742 = vmatpush1.msra.mxu0 %v1631
    %1743 = vmatprep.subr.mxu0 0.0
    %1744 = vmatpush1.msra.mxu0 %v1634
    %1745 = vmatprep.subr.mxu0 0.0
    %1746 = vmatpush1.msra.mxu0 %v1637
    %1747 = vmatprep.subr.mxu0 0.0
    %1748 = vmatpush1.msra.mxu0 %v1640
    %1749 = vmatprep.subr.mxu0 0.0
    %1750 = vmatpush1.msra.mxu0 %v1643
    %1751 = vmatprep.subr.mxu0 0.0
    %1752 = vmatpush1.msra.mxu0 %v1646
    %1753 = vmatprep.subr.mxu0 0.0
    %1754 = vmatpush1.msra.mxu0 %v1649
    %1755 = vmatprep.subr.mxu0 0.0
    %1756 = vmatpush1.msra.mxu0 %v1652
    %1757 = vmatprep.subr.mxu0 0.0
    %1758 = vmatpush1.msra.mxu0 %v1655
    %1759 = vmatprep.subr.mxu0 0.0
    %1760 = vmatpush1.msra.mxu0 0.0
    %1761 = vmatprep.subr.mxu0 0.0
    %1762 = vmatpush1.msra.mxu0 0.0
    %1763 = vmatprep.subr.mxu0 0.0
    %1764 = vmatpush1.msra.mxu0 0.0
    %1765 = vmatprep.subr.mxu0 0.0
    %1766 = vmatpush1.msra.mxu0 0.0
    %1767 = vmatprep.subr.mxu0 0.0
    %1768 = vmatpush1.msra.mxu0 0.0
    %1769 = vmatprep.subr.mxu0 0.0
    %1770 = vmatpush1.msra.mxu0 0.0
    %1771 = vmatprep.subr.mxu0 0.0
    %1772 = vmatpush1.msra.mxu0 0.0
    %1773 = vmatprep.subr.mxu0 0.0
    %1774 = vmatpush1.msra.mxu0 0.0
    %1775 = vmatprep.subr.mxu0 0.0
    %1776 = vmatpush1.msra.mxu0 0.0
    %1777 = vmatprep.subr.mxu0 0.0
    %1778 = vmatpush1.msra.mxu0 0.0
    %1779 = vmatprep.subr.mxu0 0.0
    %1780 = vmatpush1.msra.mxu0 0.0
    %1781 = vmatprep.subr.mxu0 0.0
    %1782 = vmatpush1.msra.mxu0 0.0
    %1783 = vmatprep.subr.mxu0 0.0
    %1784 = vmatpush1.msra.mxu0 0.0
    %1785 = vmatprep.subr.mxu0 0.0
    %1786 = vmatpush1.msra.mxu0 0.0
    %1787 = vmatprep.subr.mxu0 0.0
    %1788 = vmatpush1.msra.mxu0 0.0
    %1789 = vmatprep.subr.mxu0 0.0
    %1790 = vmatpush1.msra.mxu0 0.0
    %1791 = vmatprep.mubr.f32.mxu0 0.0
    %1792 = vmatmul.mubr.f32.gmra.mrb[0].mxu0 %v1606
    %v1793 = vpop.f32.mrb[0].mxu0
    %v1794 = vadd.f32 0.0, %v1793
    %v1795 = vpop.f32.mrb[0].mxu0
    %1796 = vdwg.mxu0
    %v1797 = vld [vmem:[#allocation9 + $0x318] sm:$0xff]
    %v1798 = vld [vmem:[#allocation9 + $0x320] sm:$0xff]
    %v1799 = vld [vmem:[#allocation9 + $0x328] sm:$0xff]
    %v1800 = vld [vmem:[#allocation9 + $0x348] sm:$0xff]
    %v1801 = vld [vmem:[#allocation9 + $0x350] sm:$0xff]
    %v1802 = vld [vmem:[#allocation9 + $0x358] sm:$0xff]
    %v1803 = vld [vmem:[#allocation9 + $0x378] sm:$0xff]
    %v1804 = vld [vmem:[#allocation9 + $0x380] sm:$0xff]
    %v1805 = vld [vmem:[#allocation9 + $0x388] sm:$0xff]
    %v1806 = vld [vmem:[#allocation9 + $0x3a8] sm:$0xff]
    %v1807 = vld [vmem:[#allocation9 + $0x3b0] sm:$0xff]
    %v1808 = vld [vmem:[#allocation9 + $0x3b8] sm:$0xff]
    %v1809 = vld [vmem:[#allocation9 + $0x3d8] sm:$0xff]
    %v1810 = vld [vmem:[#allocation9 + $0x3e0] sm:$0xff]
    %v1811 = vld [vmem:[#allocation9 + $0x3e8] sm:$0xff]
    %v1812 = vld [vmem:[#allocation9 + $0x408] sm:$0xff]
    %v1813 = vld [vmem:[#allocation9 + $0x410] sm:$0xff]
    %v1814 = vld [vmem:[#allocation9 + $0x418] sm:$0xff]
    %v1815 = vld [vmem:[#allocation9 + $0x438] sm:$0xff]
    %v1816 = vld [vmem:[#allocation9 + $0x440] sm:$0xff]
    %v1817 = vld [vmem:[#allocation9 + $0x448] sm:$0xff]
    %v1818 = vld [vmem:[#allocation9 + $0x468] sm:$0xff]
    %v1819 = vld [vmem:[#allocation9 + $0x470] sm:$0xff]
    %v1820 = vld [vmem:[#allocation9 + $0x478] sm:$0xff]
    %v1821 = vld [vmem:[#allocation9 + $0x498] sm:$0xff]
    %v1822 = vld [vmem:[#allocation9 + $0x4a0] sm:$0xff]
    %v1823 = vld [vmem:[#allocation9 + $0x4a8] sm:$0xff]
    %v1824 = vld [vmem:[#allocation9 + $0x4c8] sm:$0xff]
    %v1825 = vld [vmem:[#allocation9 + $0x4d0] sm:$0xff]
    %v1826 = vld [vmem:[#allocation9 + $0x4d8] sm:$0xff]
    %v1827 = vld [vmem:[#allocation9 + $0x4f8] sm:$0xff]
    %v1828 = vld [vmem:[#allocation9 + $0x500] sm:$0xff]
    %v1829 = vld [vmem:[#allocation9 + $0x508] sm:$0xff]
    %v1830 = vld [vmem:[#allocation9 + $0x528] sm:$0xff]
    %v1831 = vld [vmem:[#allocation9 + $0x530] sm:$0xff]
    %v1832 = vld [vmem:[#allocation9 + $0x538] sm:$0xff]
    %v1833 = vld [vmem:[#allocation9 + $0x558] sm:$0xff]
    %v1834 = vld [vmem:[#allocation9 + $0x560] sm:$0xff]
    %v1835 = vld [vmem:[#allocation9 + $0x568] sm:$0xff]
    %v1836 = vld [vmem:[#allocation9 + $0x588] sm:$0xff]
    %v1837 = vld [vmem:[#allocation9 + $0x590] sm:$0xff]
    %v1838 = vld [vmem:[#allocation9 + $0x598] sm:$0xff]
    %v1839 = vld [vmem:[#allocation9 + $0x5b8] sm:$0xff]
    %v1840 = vld [vmem:[#allocation9 + $0x5c0] sm:$0xff]
    %v1841 = vld [vmem:[#allocation9 + $0x5c8] sm:$0xff]
    %v1842 = vld [vmem:[#allocation9 + $0x5e8] sm:$0xff]
    %v1843 = vld [vmem:[#allocation9 + $0x5f0] sm:$0xff]
    %v1844 = vld [vmem:[#allocation9 + $0x5f8] sm:$0xff]
    %1845 = vmatprep.subr.mxu0 %v1798
    %1846 = vmatpush1.msra.mxu0 %v1797
    %1847 = vmatprep.subr.mxu0 %v1801
    %1848 = vmatpush1.msra.mxu0 %v1800
    %1849 = vmatprep.subr.mxu0 %v1804
    %1850 = vmatpush1.msra.mxu0 %v1803
    %1851 = vmatprep.subr.mxu0 %v1807
    %1852 = vmatpush1.msra.mxu0 %v1806
    %1853 = vmatprep.subr.mxu0 %v1810
    %1854 = vmatpush1.msra.mxu0 %v1809
    %1855 = vmatprep.subr.mxu0 %v1813
    %1856 = vmatpush1.msra.mxu0 %v1812
    %1857 = vmatprep.subr.mxu0 %v1816
    %1858 = vmatpush1.msra.mxu0 %v1815
    %1859 = vmatprep.subr.mxu0 %v1819
    %1860 = vmatpush1.msra.mxu0 %v1818
    %1861 = vmatprep.subr.mxu0 %v1822
    %1862 = vmatpush1.msra.mxu0 %v1821
    %1863 = vmatprep.subr.mxu0 %v1825
    %1864 = vmatpush1.msra.mxu0 %v1824
    %1865 = vmatprep.subr.mxu0 %v1828
    %1866 = vmatpush1.msra.mxu0 %v1827
    %1867 = vmatprep.subr.mxu0 %v1831
    %1868 = vmatpush1.msra.mxu0 %v1830
    %1869 = vmatprep.subr.mxu0 %v1834
    %1870 = vmatpush1.msra.mxu0 %v1833
    %1871 = vmatprep.subr.mxu0 %v1837
    %1872 = vmatpush1.msra.mxu0 %v1836
    %1873 = vmatprep.subr.mxu0 %v1840
    %1874 = vmatpush1.msra.mxu0 %v1839
    %1875 = vmatprep.subr.mxu0 %v1843
    %1876 = vmatpush1.msra.mxu0 %v1842
    %1877 = vmatprep.subr.mxu0 0.0
    %1878 = vmatpush1.msra.mxu0 0.0
    %1879 = vmatprep.subr.mxu0 0.0
    %1880 = vmatpush1.msra.mxu0 0.0
    %1881 = vmatprep.subr.mxu0 0.0
    %1882 = vmatpush1.msra.mxu0 0.0
    %1883 = vmatprep.subr.mxu0 0.0
    %1884 = vmatpush1.msra.mxu0 0.0
    %1885 = vmatprep.subr.mxu0 0.0
    %1886 = vmatpush1.msra.mxu0 0.0
    %1887 = vmatprep.subr.mxu0 0.0
    %1888 = vmatpush1.msra.mxu0 0.0
    %1889 = vmatprep.subr.mxu0 0.0
    %1890 = vmatpush1.msra.mxu0 0.0
    %1891 = vmatprep.subr.mxu0 0.0
    %1892 = vmatpush1.msra.mxu0 0.0
    %1893 = vmatprep.subr.mxu0 0.0
    %1894 = vmatpush1.msra.mxu0 0.0
    %1895 = vmatprep.subr.mxu0 0.0
    %1896 = vmatpush1.msra.mxu0 0.0
    %1897 = vmatprep.subr.mxu0 0.0
    %1898 = vmatpush1.msra.mxu0 0.0
    %1899 = vmatprep.subr.mxu0 0.0
    %1900 = vmatpush1.msra.mxu0 0.0
    %1901 = vmatprep.subr.mxu0 0.0
    %1902 = vmatpush1.msra.mxu0 0.0
    %1903 = vmatprep.subr.mxu0 0.0
    %1904 = vmatpush1.msra.mxu0 0.0
    %1905 = vmatprep.subr.mxu0 0.0
    %1906 = vmatpush1.msra.mxu0 0.0
    %1907 = vmatprep.subr.mxu0 0.0
    %1908 = vmatpush1.msra.mxu0 0.0
    %1909 = vmatprep.mubr.f32.mxu0 0.0
    %1910 = vmatmul.mubr.f32.gmra.mrb[0].mxu0 %v1607
    %v1911 = vpop.f32.mrb[0].mxu0
    %v1912 = vadd.f32 0.0, %v1911
    %v1913 = vpop.f32.mrb[0].mxu0
    %v1914 = vadd.f32 0.0, %v1913
    %1915 = vdwg.mxu0
    %1916 = vmatprep.subr.mxu0 0.0
    %1917 = vmatpush1.msra.mxu0 %v1799
    %1918 = vmatprep.subr.mxu0 0.0
    %1919 = vmatpush1.msra.mxu0 %v1802
    %1920 = vmatprep.subr.mxu0 0.0
    %1921 = vmatpush1.msra.mxu0 %v1805
    %1922 = vmatprep.subr.mxu0 0.0
    %1923 = vmatpush1.msra.mxu0 %v1808
    %1924 = vmatprep.subr.mxu0 0.0
    %1925 = vmatpush1.msra.mxu0 %v1811
    %1926 = vmatprep.subr.mxu0 0.0
    %1927 = vmatpush1.msra.mxu0 %v1814
    %1928 = vmatprep.subr.mxu0 0.0
    %1929 = vmatpush1.msra.mxu0 %v1817
    %1930 = vmatprep.subr.mxu0 0.0
    %1931 = vmatpush1.msra.mxu0 %v1820
    %1932 = vmatprep.subr.mxu0 0.0
    %1933 = vmatpush1.msra.mxu0 %v1823
    %1934 = vmatprep.subr.mxu0 0.0
    %1935 = vmatpush1.msra.mxu0 %v1826
    %1936 = vmatprep.subr.mxu0 0.0
    %1937 = vmatpush1.msra.mxu0 %v1829
    %1938 = vmatprep.subr.mxu0 0.0
    %1939 = vmatpush1.msra.mxu0 %v1832
    %1940 = vmatprep.subr.mxu0 0.0
    %1941 = vmatpush1.msra.mxu0 %v1835
    %1942 = vmatprep.subr.mxu0 0.0
    %1943 = vmatpush1.msra.mxu0 %v1838
    %1944 = vmatprep.subr.mxu0 0.0
    %1945 = vmatpush1.msra.mxu0 %v1841
    %1946 = vmatprep.subr.mxu0 0.0
    %1947 = vmatpush1.msra.mxu0 %v1844
    %1948 = vmatprep.subr.mxu0 0.0
    %1949 = vmatpush1.msra.mxu0 0.0
    %1950 = vmatprep.subr.mxu0 0.0
    %1951 = vmatpush1.msra.mxu0 0.0
    %1952 = vmatprep.subr.mxu0 0.0
    %1953 = vmatpush1.msra.mxu0 0.0
    %1954 = vmatprep.subr.mxu0 0.0
    %1955 = vmatpush1.msra.mxu0 0.0
    %1956 = vmatprep.subr.mxu0 0.0
    %1957 = vmatpush1.msra.mxu0 0.0
    %1958 = vmatprep.subr.mxu0 0.0
    %1959 = vmatpush1.msra.mxu0 0.0
    %1960 = vmatprep.subr.mxu0 0.0
    %1961 = vmatpush1.msra.mxu0 0.0
    %1962 = vmatprep.subr.mxu0 0.0
    %1963 = vmatpush1.msra.mxu0 0.0
    %1964 = vmatprep.subr.mxu0 0.0
    %1965 = vmatpush1.msra.mxu0 0.0
    %1966 = vmatprep.subr.mxu0 0.0
    %1967 = vmatpush1.msra.mxu0 0.0
    %1968 = vmatprep.subr.mxu0 0.0
    %1969 = vmatpush1.msra.mxu0 0.0
    %1970 = vmatprep.subr.mxu0 0.0
    %1971 = vmatpush1.msra.mxu0 0.0
    %1972 = vmatprep.subr.mxu0 0.0
    %1973 = vmatpush1.msra.mxu0 0.0
    %1974 = vmatprep.subr.mxu0 0.0
    %1975 = vmatpush1.msra.mxu0 0.0
    %1976 = vmatprep.subr.mxu0 0.0
    %1977 = vmatpush1.msra.mxu0 0.0
    %1978 = vmatprep.subr.mxu0 0.0
    %1979 = vmatpush1.msra.mxu0 0.0
    %1980 = vmatprep.mubr.f32.mxu0 0.0
    %1981 = vmatmul.mubr.f32.gmra.mrb[0].mxu0 %v1607
    %v1982 = vpop.f32.mrb[0].mxu0
    %v1983 = vadd.f32 0.0, %v1982
    %v1984 = vpop.f32.mrb[0].mxu0
    %1985 = vdwg.mxu0
    %s1986 = smul.u32 2, 3
    %s1987 = smul.addr %s1986, 8
    %s1988 = scalar_lea.vmem [#allocation2], %s1987
    %v1989 = vld [vmem:[%s1988] sm:$0xff]
    %v1990 = vld [vmem:[%s1988 + $0x8] sm:$0xff]
    %v1991 = vld [vmem:[%s1988 + $0x10] sm:$0xff]
    %v1992 = vadd.f32 %v1989, %v1723
    %v1993 = vxor.u32 %v1992, 2147483648
    %v1994 = vmul.f32 %v1993, 1.442695
    %v1995 = vpow.pop %v1994
    %v1996 = vadd.f32 %v1995, 1.0
    %v1997 = vrcp.pop %v1996
    %v1998 = vmul.f32 1.0, %v1997
    %v1999 = vadd.f32 %v1990, %v1725
    %v2000 = vxor.u32 %v1999, 2147483648
    %v2001 = vmul.f32 %v2000, 1.442695
    %v2002 = vpow.pop %v2001
    %v2003 = vadd.f32 %v2002, 1.0
    %v2004 = vrcp.pop %v2003
    %v2005 = vmul.f32 1.0, %v2004
    %v2006 = vadd.f32 %v1794, %v709
    %v2007 = vmul.f32 %v1998, %v2006
    %v2008 = vadd.f32 %v1991, %v2007
    %v2009 = vtanh.pop %v2008
    %v2010 = vsub.f32 %v1606, %v2009
    %v2011 = vmul.f32 %v2005, %v2010
    %v2012 = vadd.f32 %v2009, %v2011
    %s2013 = smul.u32 5, 3
    %s2014 = smul.addr %s2013, 8
    %s2015 = scalar_lea.vmem [#allocation3], %s2014
    %v2016 = vld [vmem:[%s2015] sm:$0xff]
    %v2017 = vld [vmem:[%s2015 + $0x8] sm:$0xff]
    %v2018 = vld [vmem:[%s2015 + $0x10] sm:$0xff]
    %v2019 = vadd.f32 %v2016, %v1912
    %v2020 = vxor.u32 %v2019, 2147483648
    %v2021 = vmul.f32 %v2020, 1.442695
    %v2022 = vpow.pop %v2021
    %v2023 = vadd.f32 %v2022, 1.0
    %v2024 = vrcp.pop %v2023
    %v2025 = vmul.f32 1.0, %v2024
    %v2026 = vadd.f32 %v2017, %v1914
    %v2027 = vxor.u32 %v2026, 2147483648
    %v2028 = vmul.f32 %v2027, 1.442695
    %v2029 = vpow.pop %v2028
    %v2030 = vadd.f32 %v2029, 1.0
    %v2031 = vrcp.pop %v2030
    %v2032 = vmul.f32 1.0, %v2031
    %v2033 = vadd.f32 %v1983, %v716
    %v2034 = vmul.f32 %v2025, %v2033
    %v2035 = vadd.f32 %v2018, %v2034
    %v2036 = vtanh.pop %v2035
    %v2037 = vsub.f32 %v1607, %v2036
    %v2038 = vmul.f32 %v2032, %v2037
    %v2039 = vadd.f32 %v2036, %v2038
    %2040 = vst [vmem:[#allocation4] sm:$0xff] %v2012
    %2041 = vst [vmem:[#allocation4 + $0x8] sm:$0xff] %v2039
    %s2042 = smul.u32 2, 2
    %s2043 = smul.addr %s2042, 8
    %s2044 = scalar_lea.vmem [#allocation5], %s2043
    %2045 = vst [vmem:[%s2044] sm:$0xff] %v2012
    %s2046 = smul.u32 5, 2
    %s2047 = smul.addr %s2046, 8
    %s2048 = scalar_lea.vmem [#allocation5], %s2047
    %2049 = vst [vmem:[%s2048 + $0x8] sm:$0xff] %v2039
    %v2050 = vld [vmem:[#allocation4] sm:$0xff]
    %v2051 = vld [vmem:[#allocation4 + $0x8] sm:$0xff]
    %v2052 = vld [vmem:[#allocation9] sm:$0xff]
    %v2053 = vld [vmem:[#allocation9 + $0x8] sm:$0xff]
    %v2054 = vld [vmem:[#allocation9 + $0x10] sm:$0xff]
    %v2055 = vld [vmem:[#allocation9 + $0x30] sm:$0xff]
    %v2056 = vld [vmem:[#allocation9 + $0x38] sm:$0xff]
    %v2057 = vld [vmem:[#allocation9 + $0x40] sm:$0xff]
    %v2058 = vld [vmem:[#allocation9 + $0x60] sm:$0xff]
    %v2059 = vld [vmem:[#allocation9 + $0x68] sm:$0xff]
    %v2060 = vld [vmem:[#allocation9 + $0x70] sm:$0xff]
    %v2061 = vld [vmem:[#allocation9 + $0x90] sm:$0xff]
    %v2062 = vld [vmem:[#allocation9 + $0x98] sm:$0xff]
    %v2063 = vld [vmem:[#allocation9 + $0xa0] sm:$0xff]
    %v2064 = vld [vmem:[#allocation9 + $0xc0] sm:$0xff]
    %v2065 = vld [vmem:[#allocation9 + $0xc8] sm:$0xff]
    %v2066 = vld [vmem:[#allocation9 + $0xd0] sm:$0xff]
    %v2067 = vld [vmem:[#allocation9 + $0xf0] sm:$0xff]
    %v2068 = vld [vmem:[#allocation9 + $0xf8] sm:$0xff]
    %v2069 = vld [vmem:[#allocation9 + $0x100] sm:$0xff]
    %v2070 = vld [vmem:[#allocation9 + $0x120] sm:$0xff]
    %v2071 = vld [vmem:[#allocation9 + $0x128] sm:$0xff]
    %v2072 = vld [vmem:[#allocation9 + $0x130] sm:$0xff]
    %v2073 = vld [vmem:[#allocation9 + $0x150] sm:$0xff]
    %v2074 = vld [vmem:[#allocation9 + $0x158] sm:$0xff]
    %v2075 = vld [vmem:[#allocation9 + $0x160] sm:$0xff]
    %v2076 = vld [vmem:[#allocation9 + $0x180] sm:$0xff]
    %v2077 = vld [vmem:[#allocation9 + $0x188] sm:$0xff]
    %v2078 = vld [vmem:[#allocation9 + $0x190] sm:$0xff]
    %v2079 = vld [vmem:[#allocation9 + $0x1b0] sm:$0xff]
    %v2080 = vld [vmem:[#allocation9 + $0x1b8] sm:$0xff]
    %v2081 = vld [vmem:[#allocation9 + $0x1c0] sm:$0xff]
    %v2082 = vld [vmem:[#allocation9 + $0x1e0] sm:$0xff]
    %v2083 = vld [vmem:[#allocation9 + $0x1e8] sm:$0xff]
    %v2084 = vld [vmem:[#allocation9 + $0x1f0] sm:$0xff]
    %v2085 = vld [vmem:[#allocation9 + $0x210] sm:$0xff]
    %v2086 = vld [vmem:[#allocation9 + $0x218] sm:$0xff]
    %v2087 = vld [vmem:[#allocation9 + $0x220] sm:$0xff]
    %v2088 = vld [vmem:[#allocation9 + $0x240] sm:$0xff]
    %v2089 = vld [vmem:[#allocation9 + $0x248] sm:$0xff]
    %v2090 = vld [vmem:[#allocation9 + $0x250] sm:$0xff]
    %v2091 = vld [vmem:[#allocation9 + $0x270] sm:$0xff]
    %v2092 = vld [vmem:[#allocation9 + $0x278] sm:$0xff]
    %v2093 = vld [vmem:[#allocation9 + $0x280] sm:$0xff]
    %v2094 = vld [vmem:[#allocation9 + $0x2a0] sm:$0xff]
    %v2095 = vld [vmem:[#allocation9 + $0x2a8] sm:$0xff]
    %v2096 = vld [vmem:[#allocation9 + $0x2b0] sm:$0xff]
    %v2097 = vld [vmem:[#allocation9 + $0x2d0] sm:$0xff]
    %v2098 = vld [vmem:[#allocation9 + $0x2d8] sm:$0xff]
    %v2099 = vld [vmem:[#allocation9 + $0x2e0] sm:$0xff]
    %2100 = vmatprep.subr.mxu0 %v2053
    %2101 = vmatpush1.msra.mxu0 %v2052
    %2102 = vmatprep.subr.mxu0 %v2056
    %2103 = vmatpush1.msra.mxu0 %v2055
    %2104 = vmatprep.subr.mxu0 %v2059
    %2105 = vmatpush1.msra.mxu0 %v2058
    %2106 = vmatprep.subr.mxu0 %v2062
    %2107 = vmatpush1.msra.mxu0 %v2061
    %2108 = vmatprep.subr.mxu0 %v2065
    %2109 = vmatpush1.msra.mxu0 %v2064
    %2110 = vmatprep.subr.mxu0 %v2068
    %2111 = vmatpush1.msra.mxu0 %v2067
    %2112 = vmatprep.subr.mxu0 %v2071
    %2113 = vmatpush1.msra.mxu0 %v2070
    %2114 = vmatprep.subr.mxu0 %v2074
    %2115 = vmatpush1.msra.mxu0 %v2073
    %2116 = vmatprep.subr.mxu0 %v2077
    %2117 = vmatpush1.msra.mxu0 %v2076
    %2118 = vmatprep.subr.mxu0 %v2080
    %2119 = vmatpush1.msra.mxu0 %v2079
    %2120 = vmatprep.subr.mxu0 %v2083
    %2121 = vmatpush1.msra.mxu0 %v2082
    %2122 = vmatprep.subr.mxu0 %v2086
    %2123 = vmatpush1.msra.mxu0 %v2085
    %2124 = vmatprep.subr.mxu0 %v2089
    %2125 = vmatpush1.msra.mxu0 %v2088
    %2126 = vmatprep.subr.mxu0 %v2092
    %2127 = vmatpush1.msra.mxu0 %v2091
    %2128 = vmatprep.subr.mxu0 %v2095
    %2129 = vmatpush1.msra.mxu0 %v2094
    %2130 = vmatprep.subr.mxu0 %v2098
    %2131 = vmatpush1.msra.mxu0 %v2097
    %2132 = vmatprep.subr.mxu0 0.0
    %2133 = vmatpush1.msra.mxu0 0.0
    %2134 = vmatprep.subr.mxu0 0.0
    %2135 = vmatpush1.msra.mxu0 0.0
    %2136 = vmatprep.subr.mxu0 0.0
    %2137 = vmatpush1.msra.mxu0 0.0
    %2138 = vmatprep.subr.mxu0 0.0
    %2139 = vmatpush1.msra.mxu0 0.0
    %2140 = vmatprep.subr.mxu0 0.0
    %2141 = vmatpush1.msra.mxu0 0.0
    %2142 = vmatprep.subr.mxu0 0.0
    %2143 = vmatpush1.msra.mxu0 0.0
    %2144 = vmatprep.subr.mxu0 0.0
    %2145 = vmatpush1.msra.mxu0 0.0
    %2146 = vmatprep.subr.mxu0 0.0
    %2147 = vmatpush1.msra.mxu0 0.0
    %2148 = vmatprep.subr.mxu0 0.0
    %2149 = vmatpush1.msra.mxu0 0.0
    %2150 = vmatprep.subr.mxu0 0.0
    %2151 = vmatpush1.msra.mxu0 0.0
    %2152 = vmatprep.subr.mxu0 0.0
    %2153 = vmatpush1.msra.mxu0 0.0
    %2154 = vmatprep.subr.mxu0 0.0
    %2155 = vmatpush1.msra.mxu0 0.0
    %2156 = vmatprep.subr.mxu0 0.0
    %2157 = vmatpush1.msra.mxu0 0.0
    %2158 = vmatprep.subr.mxu0 0.0
    %2159 = vmatpush1.msra.mxu0 0.0
    %2160 = vmatprep.subr.mxu0 0.0
    %2161 = vmatpush1.msra.mxu0 0.0
    %2162 = vmatprep.subr.mxu0 0.0
    %2163 = vmatpush1.msra.mxu0 0.0
    %2164 = vmatprep.mubr.f32.mxu0 0.0
    %2165 = vmatmul.mubr.f32.gmra.mrb[0].mxu0 %v2050
    %v2166 = vpop.f32.mrb[0].mxu0
    %v2167 = vadd.f32 0.0, %v2166
    %v2168 = vpop.f32.mrb[0].mxu0
    %v2169 = vadd.f32 0.0, %v2168
    %2170 = vdwg.mxu0
    %2171 = vmatprep.subr.mxu0 0.0
    %2172 = vmatpush1.msra.mxu0 %v2054
    %2173 = vmatprep.subr.mxu0 0.0
    %2174 = vmatpush1.msra.mxu0 %v2057
    %2175 = vmatprep.subr.mxu0 0.0
    %2176 = vmatpush1.msra.mxu0 %v2060
    %2177 = vmatprep.subr.mxu0 0.0
    %2178 = vmatpush1.msra.mxu0 %v2063
    %2179 = vmatprep.subr.mxu0 0.0
    %2180 = vmatpush1.msra.mxu0 %v2066
    %2181 = vmatprep.subr.mxu0 0.0
    %2182 = vmatpush1.msra.mxu0 %v2069
    %2183 = vmatprep.subr.mxu0 0.0
    %2184 = vmatpush1.msra.mxu0 %v2072
    %2185 = vmatprep.subr.mxu0 0.0
    %2186 = vmatpush1.msra.mxu0 %v2075
    %2187 = vmatprep.subr.mxu0 0.0
    %2188 = vmatpush1.msra.mxu0 %v2078
    %2189 = vmatprep.subr.mxu0 0.0
    %2190 = vmatpush1.msra.mxu0 %v2081
    %2191 = vmatprep.subr.mxu0 0.0
    %2192 = vmatpush1.msra.mxu0 %v2084
    %2193 = vmatprep.subr.mxu0 0.0
    %2194 = vmatpush1.msra.mxu0 %v2087
    %2195 = vmatprep.subr.mxu0 0.0
    %2196 = vmatpush1.msra.mxu0 %v2090
    %2197 = vmatprep.subr.mxu0 0.0
    %2198 = vmatpush1.msra.mxu0 %v2093
    %2199 = vmatprep.subr.mxu0 0.0
    %2200 = vmatpush1.msra.mxu0 %v2096
    %2201 = vmatprep.subr.mxu0 0.0
    %2202 = vmatpush1.msra.mxu0 %v2099
    %2203 = vmatprep.subr.mxu0 0.0
    %2204 = vmatpush1.msra.mxu0 0.0
    %2205 = vmatprep.subr.mxu0 0.0
    %2206 = vmatpush1.msra.mxu0 0.0
    %2207 = vmatprep.subr.mxu0 0.0
    %2208 = vmatpush1.msra.mxu0 0.0
    %2209 = vmatprep.subr.mxu0 0.0
    %2210 = vmatpush1.msra.mxu0 0.0
    %2211 = vmatprep.subr.mxu0 0.0
    %2212 = vmatpush1.msra.mxu0 0.0
    %2213 = vmatprep.subr.mxu0 0.0
    %2214 = vmatpush1.msra.mxu0 0.0
    %2215 = vmatprep.subr.mxu0 0.0
    %2216 = vmatpush1.msra.mxu0 0.0
    %2217 = vmatprep.subr.mxu0 0.0
    %2218 = vmatpush1.msra.mxu0 0.0
    %2219 = vmatprep.subr.mxu0 0.0
    %2220 = vmatpush1.msra.mxu0 0.0
    %2221 = vmatprep.subr.mxu0 0.0
    %2222 = vmatpush1.msra.mxu0 0.0
    %2223 = vmatprep.subr.mxu0 0.0
    %2224 = vmatpush1.msra.mxu0 0.0
    %2225 = vmatprep.subr.mxu0 0.0
    %2226 = vmatpush1.msra.mxu0 0.0
    %2227 = vmatprep.subr.mxu0 0.0
    %2228 = vmatpush1.msra.mxu0 0.0
    %2229 = vmatprep.subr.mxu0 0.0
    %2230 = vmatpush1.msra.mxu0 0.0
    %2231 = vmatprep.subr.mxu0 0.0
    %2232 = vmatpush1.msra.mxu0 0.0
    %2233 = vmatprep.subr.mxu0 0.0
    %2234 = vmatpush1.msra.mxu0 0.0
    %2235 = vmatprep.mubr.f32.mxu0 0.0
    %2236 = vmatmul.mubr.f32.gmra.mrb[0].mxu0 %v2050
    %v2237 = vpop.f32.mrb[0].mxu0
    %v2238 = vadd.f32 0.0, %v2237
    %v2239 = vpop.f32.mrb[0].mxu0
    %2240 = vdwg.mxu0
    %v2241 = vld [vmem:[#allocation9 + $0x318] sm:$0xff]
    %v2242 = vld [vmem:[#allocation9 + $0x320] sm:$0xff]
    %v2243 = vld [vmem:[#allocation9 + $0x328] sm:$0xff]
    %v2244 = vld [vmem:[#allocation9 + $0x348] sm:$0xff]
    %v2245 = vld [vmem:[#allocation9 + $0x350] sm:$0xff]
    %v2246 = vld [vmem:[#allocation9 + $0x358] sm:$0xff]
    %v2247 = vld [vmem:[#allocation9 + $0x378] sm:$0xff]
    %v2248 = vld [vmem:[#allocation9 + $0x380] sm:$0xff]
    %v2249 = vld [vmem:[#allocation9 + $0x388] sm:$0xff]
    %v2250 = vld [vmem:[#allocation9 + $0x3a8] sm:$0xff]
    %v2251 = vld [vmem:[#allocation9 + $0x3b0] sm:$0xff]
    %v2252 = vld [vmem:[#allocation9 + $0x3b8] sm:$0xff]
    %v2253 = vld [vmem:[#allocation9 + $0x3d8] sm:$0xff]
    %v2254 = vld [vmem:[#allocation9 + $0x3e0] sm:$0xff]
    %v2255 = vld [vmem:[#allocation9 + $0x3e8] sm:$0xff]
    %v2256 = vld [vmem:[#allocation9 + $0x408] sm:$0xff]
    %v2257 = vld [vmem:[#allocation9 + $0x410] sm:$0xff]
    %v2258 = vld [vmem:[#allocation9 + $0x418] sm:$0xff]
    %v2259 = vld [vmem:[#allocation9 + $0x438] sm:$0xff]
    %v2260 = vld [vmem:[#allocation9 + $0x440] sm:$0xff]
    %v2261 = vld [vmem:[#allocation9 + $0x448] sm:$0xff]
    %v2262 = vld [vmem:[#allocation9 + $0x468] sm:$0xff]
    %v2263 = vld [vmem:[#allocation9 + $0x470] sm:$0xff]
    %v2264 = vld [vmem:[#allocation9 + $0x478] sm:$0xff]
    %v2265 = vld [vmem:[#allocation9 + $0x498] sm:$0xff]
    %v2266 = vld [vmem:[#allocation9 + $0x4a0] sm:$0xff]
    %v2267 = vld [vmem:[#allocation9 + $0x4a8] sm:$0xff]
    %v2268 = vld [vmem:[#allocation9 + $0x4c8] sm:$0xff]
    %v2269 = vld [vmem:[#allocation9 + $0x4d0] sm:$0xff]
    %v2270 = vld [vmem:[#allocation9 + $0x4d8] sm:$0xff]
    %v2271 = vld [vmem:[#allocation9 + $0x4f8] sm:$0xff]
    %v2272 = vld [vmem:[#allocation9 + $0x500] sm:$0xff]
    %v2273 = vld [vmem:[#allocation9 + $0x508] sm:$0xff]
    %v2274 = vld [vmem:[#allocation9 + $0x528] sm:$0xff]
    %v2275 = vld [vmem:[#allocation9 + $0x530] sm:$0xff]
    %v2276 = vld [vmem:[#allocation9 + $0x538] sm:$0xff]
    %v2277 = vld [vmem:[#allocation9 + $0x558] sm:$0xff]
    %v2278 = vld [vmem:[#allocation9 + $0x560] sm:$0xff]
    %v2279 = vld [vmem:[#allocation9 + $0x568] sm:$0xff]
    %v2280 = vld [vmem:[#allocation9 + $0x588] sm:$0xff]
    %v2281 = vld [vmem:[#allocation9 + $0x590] sm:$0xff]
    %v2282 = vld [vmem:[#allocation9 + $0x598] sm:$0xff]
    %v2283 = vld [vmem:[#allocation9 + $0x5b8] sm:$0xff]
    %v2284 = vld [vmem:[#allocation9 + $0x5c0] sm:$0xff]
    %v2285 = vld [vmem:[#allocation9 + $0x5c8] sm:$0xff]
    %v2286 = vld [vmem:[#allocation9 + $0x5e8] sm:$0xff]
    %v2287 = vld [vmem:[#allocation9 + $0x5f0] sm:$0xff]
    %v2288 = vld [vmem:[#allocation9 + $0x5f8] sm:$0xff]
    %2289 = vmatprep.subr.mxu0 %v2242
    %2290 = vmatpush1.msra.mxu0 %v2241
    %2291 = vmatprep.subr.mxu0 %v2245
    %2292 = vmatpush1.msra.mxu0 %v2244
    %2293 = vmatprep.subr.mxu0 %v2248
    %2294 = vmatpush1.msra.mxu0 %v2247
    %2295 = vmatprep.subr.mxu0 %v2251
    %2296 = vmatpush1.msra.mxu0 %v2250
    %2297 = vmatprep.subr.mxu0 %v2254
    %2298 = vmatpush1.msra.mxu0 %v2253
    %2299 = vmatprep.subr.mxu0 %v2257
    %2300 = vmatpush1.msra.mxu0 %v2256
    %2301 = vmatprep.subr.mxu0 %v2260
    %2302 = vmatpush1.msra.mxu0 %v2259
    %2303 = vmatprep.subr.mxu0 %v2263
    %2304 = vmatpush1.msra.mxu0 %v2262
    %2305 = vmatprep.subr.mxu0 %v2266
    %2306 = vmatpush1.msra.mxu0 %v2265
    %2307 = vmatprep.subr.mxu0 %v2269
    %2308 = vmatpush1.msra.mxu0 %v2268
    %2309 = vmatprep.subr.mxu0 %v2272
    %2310 = vmatpush1.msra.mxu0 %v2271
    %2311 = vmatprep.subr.mxu0 %v2275
    %2312 = vmatpush1.msra.mxu0 %v2274
    %2313 = vmatprep.subr.mxu0 %v2278
    %2314 = vmatpush1.msra.mxu0 %v2277
    %2315 = vmatprep.subr.mxu0 %v2281
    %2316 = vmatpush1.msra.mxu0 %v2280
    %2317 = vmatprep.subr.mxu0 %v2284
    %2318 = vmatpush1.msra.mxu0 %v2283
    %2319 = vmatprep.subr.mxu0 %v2287
    %2320 = vmatpush1.msra.mxu0 %v2286
    %2321 = vmatprep.subr.mxu0 0.0
    %2322 = vmatpush1.msra.mxu0 0.0
    %2323 = vmatprep.subr.mxu0 0.0
    %2324 = vmatpush1.msra.mxu0 0.0
    %2325 = vmatprep.subr.mxu0 0.0
    %2326 = vmatpush1.msra.mxu0 0.0
    %2327 = vmatprep.subr.mxu0 0.0
    %2328 = vmatpush1.msra.mxu0 0.0
    %2329 = vmatprep.subr.mxu0 0.0
    %2330 = vmatpush1.msra.mxu0 0.0
    %2331 = vmatprep.subr.mxu0 0.0
    %2332 = vmatpush1.msra.mxu0 0.0
    %2333 = vmatprep.subr.mxu0 0.0
    %2334 = vmatpush1.msra.mxu0 0.0
    %2335 = vmatprep.subr.mxu0 0.0
    %2336 = vmatpush1.msra.mxu0 0.0
    %2337 = vmatprep.subr.mxu0 0.0
    %2338 = vmatpush1.msra.mxu0 0.0
    %2339 = vmatprep.subr.mxu0 0.0
    %2340 = vmatpush1.msra.mxu0 0.0
    %2341 = vmatprep.subr.mxu0 0.0
    %2342 = vmatpush1.msra.mxu0 0.0
    %2343 = vmatprep.subr.mxu0 0.0
    %2344 = vmatpush1.msra.mxu0 0.0
    %2345 = vmatprep.subr.mxu0 0.0
    %2346 = vmatpush1.msra.mxu0 0.0
    %2347 = vmatprep.subr.mxu0 0.0
    %2348 = vmatpush1.msra.mxu0 0.0
    %2349 = vmatprep.subr.mxu0 0.0
    %2350 = vmatpush1.msra.mxu0 0.0
    %2351 = vmatprep.subr.mxu0 0.0
    %2352 = vmatpush1.msra.mxu0 0.0
    %2353 = vmatprep.mubr.f32.mxu0 0.0
    %2354 = vmatmul.mubr.f32.gmra.mrb[0].mxu0 %v2051
    %v2355 = vpop.f32.mrb[0].mxu0
    %v2356 = vadd.f32 0.0, %v2355
    %v2357 = vpop.f32.mrb[0].mxu0
    %v2358 = vadd.f32 0.0, %v2357
    %2359 = vdwg.mxu0
    %2360 = vmatprep.subr.mxu0 0.0
    %2361 = vmatpush1.msra.mxu0 %v2243
    %2362 = vmatprep.subr.mxu0 0.0
    %2363 = vmatpush1.msra.mxu0 %v2246
    %2364 = vmatprep.subr.mxu0 0.0
    %2365 = vmatpush1.msra.mxu0 %v2249
    %2366 = vmatprep.subr.mxu0 0.0
    %2367 = vmatpush1.msra.mxu0 %v2252
    %2368 = vmatprep.subr.mxu0 0.0
    %2369 = vmatpush1.msra.mxu0 %v2255
    %2370 = vmatprep.subr.mxu0 0.0
    %2371 = vmatpush1.msra.mxu0 %v2258
    %2372 = vmatprep.subr.mxu0 0.0
    %2373 = vmatpush1.msra.mxu0 %v2261
    %2374 = vmatprep.subr.mxu0 0.0
    %2375 = vmatpush1.msra.mxu0 %v2264
    %2376 = vmatprep.subr.mxu0 0.0
    %2377 = vmatpush1.msra.mxu0 %v2267
    %2378 = vmatprep.subr.mxu0 0.0
    %2379 = vmatpush1.msra.mxu0 %v2270
    %2380 = vmatprep.subr.mxu0 0.0
    %2381 = vmatpush1.msra.mxu0 %v2273
    %2382 = vmatprep.subr.mxu0 0.0
    %2383 = vmatpush1.msra.mxu0 %v2276
    %2384 = vmatprep.subr.mxu0 0.0
    %2385 = vmatpush1.msra.mxu0 %v2279
    %2386 = vmatprep.subr.mxu0 0.0
    %2387 = vmatpush1.msra.mxu0 %v2282
    %2388 = vmatprep.subr.mxu0 0.0
    %2389 = vmatpush1.msra.mxu0 %v2285
    %2390 = vmatprep.subr.mxu0 0.0
    %2391 = vmatpush1.msra.mxu0 %v2288
    %2392 = vmatprep.subr.mxu0 0.0
    %2393 = vmatpush1.msra.mxu0 0.0
    %2394 = vmatprep.subr.mxu0 0.0
    %2395 = vmatpush1.msra.mxu0 0.0
    %2396 = vmatprep.subr.mxu0 0.0
    %2397 = vmatpush1.msra.mxu0 0.0
    %2398 = vmatprep.subr.mxu0 0.0
    %2399 = vmatpush1.msra.mxu0 0.0
    %2400 = vmatprep.subr.mxu0 0.0
    %2401 = vmatpush1.msra.mxu0 0.0
    %2402 = vmatprep.subr.mxu0 0.0
    %2403 = vmatpush1.msra.mxu0 0.0
    %2404 = vmatprep.subr.mxu0 0.0
    %2405 = vmatpush1.msra.mxu0 0.0
    %2406 = vmatprep.subr.mxu0 0.0
    %2407 = vmatpush1.msra.mxu0 0.0
    %2408 = vmatprep.subr.mxu0 0.0
    %2409 = vmatpush1.msra.mxu0 0.0
    %2410 = vmatprep.subr.mxu0 0.0
    %2411 = vmatpush1.msra.mxu0 0.0
    %2412 = vmatprep.subr.mxu0 0.0
    %2413 = vmatpush1.msra.mxu0 0.0
    %2414 = vmatprep.subr.mxu0 0.0
    %2415 = vmatpush1.msra.mxu0 0.0
    %2416 = vmatprep.subr.mxu0 0.0
    %2417 = vmatpush1.msra.mxu0 0.0
    %2418 = vmatprep.subr.mxu0 0.0
    %2419 = vmatpush1.msra.mxu0 0.0
    %2420 = vmatprep.subr.mxu0 0.0
    %2421 = vmatpush1.msra.mxu0 0.0
    %2422 = vmatprep.subr.mxu0 0.0
    %2423 = vmatpush1.msra.mxu0 0.0
    %2424 = vmatprep.mubr.f32.mxu0 0.0
    %2425 = vmatmul.mubr.f32.gmra.mrb[0].mxu0 %v2051
    %v2426 = vpop.f32.mrb[0].mxu0
    %v2427 = vadd.f32 0.0, %v2426
    %v2428 = vpop.f32.mrb[0].mxu0
    %2429 = vdwg.mxu0
    %s2430 = smul.u32 3, 3
    %s2431 = smul.addr %s2430, 8
    %s2432 = scalar_lea.vmem [#allocation2], %s2431
    %v2433 = vld [vmem:[%s2432] sm:$0xff]
    %v2434 = vld [vmem:[%s2432 + $0x8] sm:$0xff]
    %v2435 = vld [vmem:[%s2432 + $0x10] sm:$0xff]
    %v2436 = vadd.f32 %v2433, %v2167
    %v2437 = vxor.u32 %v2436, 2147483648
    %v2438 = vmul.f32 %v2437, 1.442695
    %v2439 = vpow.pop %v2438
    %v2440 = vadd.f32 %v2439, 1.0
    %v2441 = vrcp.pop %v2440
    %v2442 = vmul.f32 1.0, %v2441
    %v2443 = vadd.f32 %v2434, %v2169
    %v2444 = vxor.u32 %v2443, 2147483648
    %v2445 = vmul.f32 %v2444, 1.442695
    %v2446 = vpow.pop %v2445
    %v2447 = vadd.f32 %v2446, 1.0
    %v2448 = vrcp.pop %v2447
    %v2449 = vmul.f32 1.0, %v2448
    %v2450 = vadd.f32 %v2238, %v709
    %v2451 = vmul.f32 %v2442, %v2450
    %v2452 = vadd.f32 %v2435, %v2451
    %v2453 = vtanh.pop %v2452
    %v2454 = vsub.f32 %v2050, %v2453
    %v2455 = vmul.f32 %v2449, %v2454
    %v2456 = vadd.f32 %v2453, %v2455
    %s2457 = smul.u32 4, 3
    %s2458 = smul.addr %s2457, 8
    %s2459 = scalar_lea.vmem [#allocation3], %s2458
    %v2460 = vld [vmem:[%s2459] sm:$0xff]
    %v2461 = vld [vmem:[%s2459 + $0x8] sm:$0xff]
    %v2462 = vld [vmem:[%s2459 + $0x10] sm:$0xff]
    %v2463 = vadd.f32 %v2460, %v2356
    %v2464 = vxor.u32 %v2463, 2147483648
    %v2465 = vmul.f32 %v2464, 1.442695
    %v2466 = vpow.pop %v2465
    %v2467 = vadd.f32 %v2466, 1.0
    %v2468 = vrcp.pop %v2467
    %v2469 = vmul.f32 1.0, %v2468
    %v2470 = vadd.f32 %v2461, %v2358
    %v2471 = vxor.u32 %v2470, 2147483648
    %v2472 = vmul.f32 %v2471, 1.442695
    %v2473 = vpow.pop %v2472
    %v2474 = vadd.f32 %v2473, 1.0
    %v2475 = vrcp.pop %v2474
    %v2476 = vmul.f32 1.0, %v2475
    %v2477 = vadd.f32 %v2427, %v716
    %v2478 = vmul.f32 %v2469, %v2477
    %v2479 = vadd.f32 %v2462, %v2478
    %v2480 = vtanh.pop %v2479
    %v2481 = vsub.f32 %v2051, %v2480
    %v2482 = vmul.f32 %v2476, %v2481
    %v2483 = vadd.f32 %v2480, %v2482
    %2484 = vst [vmem:[#allocation4] sm:$0xff] %v2456
    %2485 = vst [vmem:[#allocation4 + $0x8] sm:$0xff] %v2483
    %s2486 = smul.u32 3, 2
    %s2487 = smul.addr %s2486, 8
    %s2488 = scalar_lea.vmem [#allocation5], %s2487
    %2489 = vst [vmem:[%s2488] sm:$0xff] %v2456
    %s2490 = smul.u32 4, 2
    %s2491 = smul.addr %s2490, 8
    %s2492 = scalar_lea.vmem [#allocation5], %s2491
    %2493 = vst [vmem:[%s2492 + $0x8] sm:$0xff] %v2483
    %v2494 = vld [vmem:[#allocation4] sm:$0xff]
    %v2495 = vld [vmem:[#allocation4 + $0x8] sm:$0xff]
    %v2496 = vld [vmem:[#allocation9] sm:$0xff]
    %v2497 = vld [vmem:[#allocation9 + $0x8] sm:$0xff]
    %v2498 = vld [vmem:[#allocation9 + $0x10] sm:$0xff]
    %v2499 = vld [vmem:[#allocation9 + $0x30] sm:$0xff]
    %v2500 = vld [vmem:[#allocation9 + $0x38] sm:$0xff]
    %v2501 = vld [vmem:[#allocation9 + $0x40] sm:$0xff]
    %v2502 = vld [vmem:[#allocation9 + $0x60] sm:$0xff]
    %v2503 = vld [vmem:[#allocation9 + $0x68] sm:$0xff]
    %v2504 = vld [vmem:[#allocation9 + $0x70] sm:$0xff]
    %v2505 = vld [vmem:[#allocation9 + $0x90] sm:$0xff]
    %v2506 = vld [vmem:[#allocation9 + $0x98] sm:$0xff]
    %v2507 = vld [vmem:[#allocation9 + $0xa0] sm:$0xff]
    %v2508 = vld [vmem:[#allocation9 + $0xc0] sm:$0xff]
    %v2509 = vld [vmem:[#allocation9 + $0xc8] sm:$0xff]
    %v2510 = vld [vmem:[#allocation9 + $0xd0] sm:$0xff]
    %v2511 = vld [vmem:[#allocation9 + $0xf0] sm:$0xff]
    %v2512 = vld [vmem:[#allocation9 + $0xf8] sm:$0xff]
    %v2513 = vld [vmem:[#allocation9 + $0x100] sm:$0xff]
    %v2514 = vld [vmem:[#allocation9 + $0x120] sm:$0xff]
    %v2515 = vld [vmem:[#allocation9 + $0x128] sm:$0xff]
    %v2516 = vld [vmem:[#allocation9 + $0x130] sm:$0xff]
    %v2517 = vld [vmem:[#allocation9 + $0x150] sm:$0xff]
    %v2518 = vld [vmem:[#allocation9 + $0x158] sm:$0xff]
    %v2519 = vld [vmem:[#allocation9 + $0x160] sm:$0xff]
    %v2520 = vld [vmem:[#allocation9 + $0x180] sm:$0xff]
    %v2521 = vld [vmem:[#allocation9 + $0x188] sm:$0xff]
    %v2522 = vld [vmem:[#allocation9 + $0x190] sm:$0xff]
    %v2523 = vld [vmem:[#allocation9 + $0x1b0] sm:$0xff]
    %v2524 = vld [vmem:[#allocation9 + $0x1b8] sm:$0xff]
    %v2525 = vld [vmem:[#allocation9 + $0x1c0] sm:$0xff]
    %v2526 = vld [vmem:[#allocation9 + $0x1e0] sm:$0xff]
    %v2527 = vld [vmem:[#allocation9 + $0x1e8] sm:$0xff]
    %v2528 = vld [vmem:[#allocation9 + $0x1f0] sm:$0xff]
    %v2529 = vld [vmem:[#allocation9 + $0x210] sm:$0xff]
    %v2530 = vld [vmem:[#allocation9 + $0x218] sm:$0xff]
    %v2531 = vld [vmem:[#allocation9 + $0x220] sm:$0xff]
    %v2532 = vld [vmem:[#allocation9 + $0x240] sm:$0xff]
    %v2533 = vld [vmem:[#allocation9 + $0x248] sm:$0xff]
    %v2534 = vld [vmem:[#allocation9 + $0x250] sm:$0xff]
    %v2535 = vld [vmem:[#allocation9 + $0x270] sm:$0xff]
    %v2536 = vld [vmem:[#allocation9 + $0x278] sm:$0xff]
    %v2537 = vld [vmem:[#allocation9 + $0x280] sm:$0xff]
    %v2538 = vld [vmem:[#allocation9 + $0x2a0] sm:$0xff]
    %v2539 = vld [vmem:[#allocation9 + $0x2a8] sm:$0xff]
    %v2540 = vld [vmem:[#allocation9 + $0x2b0] sm:$0xff]
    %v2541 = vld [vmem:[#allocation9 + $0x2d0] sm:$0xff]
    %v2542 = vld [vmem:[#allocation9 + $0x2d8] sm:$0xff]
    %v2543 = vld [vmem:[#allocation9 + $0x2e0] sm:$0xff]
    %2544 = vmatprep.subr.mxu0 %v2497
    %2545 = vmatpush1.msra.mxu0 %v2496
    %2546 = vmatprep.subr.mxu0 %v2500
    %2547 = vmatpush1.msra.mxu0 %v2499
    %2548 = vmatprep.subr.mxu0 %v2503
    %2549 = vmatpush1.msra.mxu0 %v2502
    %2550 = vmatprep.subr.mxu0 %v2506
    %2551 = vmatpush1.msra.mxu0 %v2505
    %2552 = vmatprep.subr.mxu0 %v2509
    %2553 = vmatpush1.msra.mxu0 %v2508
    %2554 = vmatprep.subr.mxu0 %v2512
    %2555 = vmatpush1.msra.mxu0 %v2511
    %2556 = vmatprep.subr.mxu0 %v2515
    %2557 = vmatpush1.msra.mxu0 %v2514
    %2558 = vmatprep.subr.mxu0 %v2518
    %2559 = vmatpush1.msra.mxu0 %v2517
    %2560 = vmatprep.subr.mxu0 %v2521
    %2561 = vmatpush1.msra.mxu0 %v2520
    %2562 = vmatprep.subr.mxu0 %v2524
    %2563 = vmatpush1.msra.mxu0 %v2523
    %2564 = vmatprep.subr.mxu0 %v2527
    %2565 = vmatpush1.msra.mxu0 %v2526
    %2566 = vmatprep.subr.mxu0 %v2530
    %2567 = vmatpush1.msra.mxu0 %v2529
    %2568 = vmatprep.subr.mxu0 %v2533
    %2569 = vmatpush1.msra.mxu0 %v2532
    %2570 = vmatprep.subr.mxu0 %v2536
    %2571 = vmatpush1.msra.mxu0 %v2535
    %2572 = vmatprep.subr.mxu0 %v2539
    %2573 = vmatpush1.msra.mxu0 %v2538
    %2574 = vmatprep.subr.mxu0 %v2542
    %2575 = vmatpush1.msra.mxu0 %v2541
    %2576 = vmatprep.subr.mxu0 0.0
    %2577 = vmatpush1.msra.mxu0 0.0
    %2578 = vmatprep.subr.mxu0 0.0
    %2579 = vmatpush1.msra.mxu0 0.0
    %2580 = vmatprep.subr.mxu0 0.0
    %2581 = vmatpush1.msra.mxu0 0.0
    %2582 = vmatprep.subr.mxu0 0.0
    %2583 = vmatpush1.msra.mxu0 0.0
    %2584 = vmatprep.subr.mxu0 0.0
    %2585 = vmatpush1.msra.mxu0 0.0
    %2586 = vmatprep.subr.mxu0 0.0
    %2587 = vmatpush1.msra.mxu0 0.0
    %2588 = vmatprep.subr.mxu0 0.0
    %2589 = vmatpush1.msra.mxu0 0.0
    %2590 = vmatprep.subr.mxu0 0.0
    %2591 = vmatpush1.msra.mxu0 0.0
    %2592 = vmatprep.subr.mxu0 0.0
    %2593 = vmatpush1.msra.mxu0 0.0
    %2594 = vmatprep.subr.mxu0 0.0
    %2595 = vmatpush1.msra.mxu0 0.0
    %2596 = vmatprep.subr.mxu0 0.0
    %2597 = vmatpush1.msra.mxu0 0.0
    %2598 = vmatprep.subr.mxu0 0.0
    %2599 = vmatpush1.msra.mxu0 0.0
    %2600 = vmatprep.subr.mxu0 0.0
    %2601 = vmatpush1.msra.mxu0 0.0
    %2602 = vmatprep.subr.mxu0 0.0
    %2603 = vmatpush1.msra.mxu0 0.0
    %2604 = vmatprep.subr.mxu0 0.0
    %2605 = vmatpush1.msra.mxu0 0.0
    %2606 = vmatprep.subr.mxu0 0.0
    %2607 = vmatpush1.msra.mxu0 0.0
    %2608 = vmatprep.mubr.f32.mxu0 0.0
    %2609 = vmatmul.mubr.f32.gmra.mrb[0].mxu0 %v2494
    %v2610 = vpop.f32.mrb[0].mxu0
    %v2611 = vadd.f32 0.0, %v2610
    %v2612 = vpop.f32.mrb[0].mxu0
    %v2613 = vadd.f32 0.0, %v2612
    %2614 = vdwg.mxu0
    %2615 = vmatprep.subr.mxu0 0.0
    %2616 = vmatpush1.msra.mxu0 %v2498
    %2617 = vmatprep.subr.mxu0 0.0
    %2618 = vmatpush1.msra.mxu0 %v2501
    %2619 = vmatprep.subr.mxu0 0.0
    %2620 = vmatpush1.msra.mxu0 %v2504
    %2621 = vmatprep.subr.mxu0 0.0
    %2622 = vmatpush1.msra.mxu0 %v2507
    %2623 = vmatprep.subr.mxu0 0.0
    %2624 = vmatpush1.msra.mxu0 %v2510
    %2625 = vmatprep.subr.mxu0 0.0
    %2626 = vmatpush1.msra.mxu0 %v2513
    %2627 = vmatprep.subr.mxu0 0.0
    %2628 = vmatpush1.msra.mxu0 %v2516
    %2629 = vmatprep.subr.mxu0 0.0
    %2630 = vmatpush1.msra.mxu0 %v2519
    %2631 = vmatprep.subr.mxu0 0.0
    %2632 = vmatpush1.msra.mxu0 %v2522
    %2633 = vmatprep.subr.mxu0 0.0
    %2634 = vmatpush1.msra.mxu0 %v2525
    %2635 = vmatprep.subr.mxu0 0.0
    %2636 = vmatpush1.msra.mxu0 %v2528
    %2637 = vmatprep.subr.mxu0 0.0
    %2638 = vmatpush1.msra.mxu0 %v2531
    %2639 = vmatprep.subr.mxu0 0.0
    %2640 = vmatpush1.msra.mxu0 %v2534
    %2641 = vmatprep.subr.mxu0 0.0
    %2642 = vmatpush1.msra.mxu0 %v2537
    %2643 = vmatprep.subr.mxu0 0.0
    %2644 = vmatpush1.msra.mxu0 %v2540
    %2645 = vmatprep.subr.mxu0 0.0
    %2646 = vmatpush1.msra.mxu0 %v2543
    %2647 = vmatprep.subr.mxu0 0.0
    %2648 = vmatpush1.msra.mxu0 0.0
    %2649 = vmatprep.subr.mxu0 0.0
    %2650 = vmatpush1.msra.mxu0 0.0
    %2651 = vmatprep.subr.mxu0 0.0
    %2652 = vmatpush1.msra.mxu0 0.0
    %2653 = vmatprep.subr.mxu0 0.0
    %2654 = vmatpush1.msra.mxu0 0.0
    %2655 = vmatprep.subr.mxu0 0.0
    %2656 = vmatpush1.msra.mxu0 0.0
    %2657 = vmatprep.subr.mxu0 0.0
    %2658 = vmatpush1.msra.mxu0 0.0
    %2659 = vmatprep.subr.mxu0 0.0
    %2660 = vmatpush1.msra.mxu0 0.0
    %2661 = vmatprep.subr.mxu0 0.0
    %2662 = vmatpush1.msra.mxu0 0.0
    %2663 = vmatprep.subr.mxu0 0.0
    %2664 = vmatpush1.msra.mxu0 0.0
    %2665 = vmatprep.subr.mxu0 0.0
    %2666 = vmatpush1.msra.mxu0 0.0
    %2667 = vmatprep.subr.mxu0 0.0
    %2668 = vmatpush1.msra.mxu0 0.0
    %2669 = vmatprep.subr.mxu0 0.0
    %2670 = vmatpush1.msra.mxu0 0.0
    %2671 = vmatprep.subr.mxu0 0.0
    %2672 = vmatpush1.msra.mxu0 0.0
    %2673 = vmatprep.subr.mxu0 0.0
    %2674 = vmatpush1.msra.mxu0 0.0
    %2675 = vmatprep.subr.mxu0 0.0
    %2676 = vmatpush1.msra.mxu0 0.0
    %2677 = vmatprep.subr.mxu0 0.0
    %2678 = vmatpush1.msra.mxu0 0.0
    %2679 = vmatprep.mubr.f32.mxu0 0.0
    %2680 = vmatmul.mubr.f32.gmra.mrb[0].mxu0 %v2494
    %v2681 = vpop.f32.mrb[0].mxu0
    %v2682 = vadd.f32 0.0, %v2681
    %v2683 = vpop.f32.mrb[0].mxu0
    %2684 = vdwg.mxu0
    %v2685 = vld [vmem:[#allocation9 + $0x318] sm:$0xff]
    %v2686 = vld [vmem:[#allocation9 + $0x320] sm:$0xff]
    %v2687 = vld [vmem:[#allocation9 + $0x328] sm:$0xff]
    %v2688 = vld [vmem:[#allocation9 + $0x348] sm:$0xff]
    %v2689 = vld [vmem:[#allocation9 + $0x350] sm:$0xff]
    %v2690 = vld [vmem:[#allocation9 + $0x358] sm:$0xff]
    %v2691 = vld [vmem:[#allocation9 + $0x378] sm:$0xff]
    %v2692 = vld [vmem:[#allocation9 + $0x380] sm:$0xff]
    %v2693 = vld [vmem:[#allocation9 + $0x388] sm:$0xff]
    %v2694 = vld [vmem:[#allocation9 + $0x3a8] sm:$0xff]
    %v2695 = vld [vmem:[#allocation9 + $0x3b0] sm:$0xff]
    %v2696 = vld [vmem:[#allocation9 + $0x3b8] sm:$0xff]
    %v2697 = vld [vmem:[#allocation9 + $0x3d8] sm:$0xff]
    %v2698 = vld [vmem:[#allocation9 + $0x3e0] sm:$0xff]
    %v2699 = vld [vmem:[#allocation9 + $0x3e8] sm:$0xff]
    %v2700 = vld [vmem:[#allocation9 + $0x408] sm:$0xff]
    %v2701 = vld [vmem:[#allocation9 + $0x410] sm:$0xff]
    %v2702 = vld [vmem:[#allocation9 + $0x418] sm:$0xff]
    %v2703 = vld [vmem:[#allocation9 + $0x438] sm:$0xff]
    %v2704 = vld [vmem:[#allocation9 + $0x440] sm:$0xff]
    %v2705 = vld [vmem:[#allocation9 + $0x448] sm:$0xff]
    %v2706 = vld [vmem:[#allocation9 + $0x468] sm:$0xff]
    %v2707 = vld [vmem:[#allocation9 + $0x470] sm:$0xff]
    %v2708 = vld [vmem:[#allocation9 + $0x478] sm:$0xff]
    %v2709 = vld [vmem:[#allocation9 + $0x498] sm:$0xff]
    %v2710 = vld [vmem:[#allocation9 + $0x4a0] sm:$0xff]
    %v2711 = vld [vmem:[#allocation9 + $0x4a8] sm:$0xff]
    %v2712 = vld [vmem:[#allocation9 + $0x4c8] sm:$0xff]
    %v2713 = vld [vmem:[#allocation9 + $0x4d0] sm:$0xff]
    %v2714 = vld [vmem:[#allocation9 + $0x4d8] sm:$0xff]
    %v2715 = vld [vmem:[#allocation9 + $0x4f8] sm:$0xff]
    %v2716 = vld [vmem:[#allocation9 + $0x500] sm:$0xff]
    %v2717 = vld [vmem:[#allocation9 + $0x508] sm:$0xff]
    %v2718 = vld [vmem:[#allocation9 + $0x528] sm:$0xff]
    %v2719 = vld [vmem:[#allocation9 + $0x530] sm:$0xff]
    %v2720 = vld [vmem:[#allocation9 + $0x538] sm:$0xff]
    %v2721 = vld [vmem:[#allocation9 + $0x558] sm:$0xff]
    %v2722 = vld [vmem:[#allocation9 + $0x560] sm:$0xff]
    %v2723 = vld [vmem:[#allocation9 + $0x568] sm:$0xff]
    %v2724 = vld [vmem:[#allocation9 + $0x588] sm:$0xff]
    %v2725 = vld [vmem:[#allocation9 + $0x590] sm:$0xff]
    %v2726 = vld [vmem:[#allocation9 + $0x598] sm:$0xff]
    %v2727 = vld [vmem:[#allocation9 + $0x5b8] sm:$0xff]
    %v2728 = vld [vmem:[#allocation9 + $0x5c0] sm:$0xff]
    %v2729 = vld [vmem:[#allocation9 + $0x5c8] sm:$0xff]
    %v2730 = vld [vmem:[#allocation9 + $0x5e8] sm:$0xff]
    %v2731 = vld [vmem:[#allocation9 + $0x5f0] sm:$0xff]
    %v2732 = vld [vmem:[#allocation9 + $0x5f8] sm:$0xff]
    %2733 = vmatprep.subr.mxu0 %v2686
    %2734 = vmatpush1.msra.mxu0 %v2685
    %2735 = vmatprep.subr.mxu0 %v2689
    %2736 = vmatpush1.msra.mxu0 %v2688
    %2737 = vmatprep.subr.mxu0 %v2692
    %2738 = vmatpush1.msra.mxu0 %v2691
    %2739 = vmatprep.subr.mxu0 %v2695
    %2740 = vmatpush1.msra.mxu0 %v2694
    %2741 = vmatprep.subr.mxu0 %v2698
    %2742 = vmatpush1.msra.mxu0 %v2697
    %2743 = vmatprep.subr.mxu0 %v2701
    %2744 = vmatpush1.msra.mxu0 %v2700
    %2745 = vmatprep.subr.mxu0 %v2704
    %2746 = vmatpush1.msra.mxu0 %v2703
    %2747 = vmatprep.subr.mxu0 %v2707
    %2748 = vmatpush1.msra.mxu0 %v2706
    %2749 = vmatprep.subr.mxu0 %v2710
    %2750 = vmatpush1.msra.mxu0 %v2709
    %2751 = vmatprep.subr.mxu0 %v2713
    %2752 = vmatpush1.msra.mxu0 %v2712
    %2753 = vmatprep.subr.mxu0 %v2716
    %2754 = vmatpush1.msra.mxu0 %v2715
    %2755 = vmatprep.subr.mxu0 %v2719
    %2756 = vmatpush1.msra.mxu0 %v2718
    %2757 = vmatprep.subr.mxu0 %v2722
    %2758 = vmatpush1.msra.mxu0 %v2721
    %2759 = vmatprep.subr.mxu0 %v2725
    %2760 = vmatpush1.msra.mxu0 %v2724
    %2761 = vmatprep.subr.mxu0 %v2728
    %2762 = vmatpush1.msra.mxu0 %v2727
    %2763 = vmatprep.subr.mxu0 %v2731
    %2764 = vmatpush1.msra.mxu0 %v2730
    %2765 = vmatprep.subr.mxu0 0.0
    %2766 = vmatpush1.msra.mxu0 0.0
    %2767 = vmatprep.subr.mxu0 0.0
    %2768 = vmatpush1.msra.mxu0 0.0
    %2769 = vmatprep.subr.mxu0 0.0
    %2770 = vmatpush1.msra.mxu0 0.0
    %2771 = vmatprep.subr.mxu0 0.0
    %2772 = vmatpush1.msra.mxu0 0.0
    %2773 = vmatprep.subr.mxu0 0.0
    %2774 = vmatpush1.msra.mxu0 0.0
    %2775 = vmatprep.subr.mxu0 0.0
    %2776 = vmatpush1.msra.mxu0 0.0
    %2777 = vmatprep.subr.mxu0 0.0
    %2778 = vmatpush1.msra.mxu0 0.0
    %2779 = vmatprep.subr.mxu0 0.0
    %2780 = vmatpush1.msra.mxu0 0.0
    %2781 = vmatprep.subr.mxu0 0.0
    %2782 = vmatpush1.msra.mxu0 0.0
    %2783 = vmatprep.subr.mxu0 0.0
    %2784 = vmatpush1.msra.mxu0 0.0
    %2785 = vmatprep.subr.mxu0 0.0
    %2786 = vmatpush1.msra.mxu0 0.0
    %2787 = vmatprep.subr.mxu0 0.0
    %2788 = vmatpush1.msra.mxu0 0.0
    %2789 = vmatprep.subr.mxu0 0.0
    %2790 = vmatpush1.msra.mxu0 0.0
    %2791 = vmatprep.subr.mxu0 0.0
    %2792 = vmatpush1.msra.mxu0 0.0
    %2793 = vmatprep.subr.mxu0 0.0
    %2794 = vmatpush1.msra.mxu0 0.0
    %2795 = vmatprep.subr.mxu0 0.0
    %2796 = vmatpush1.msra.mxu0 0.0
    %2797 = vmatprep.mubr.f32.mxu0 0.0
    %2798 = vmatmul.mubr.f32.gmra.mrb[0].mxu0 %v2495
    %v2799 = vpop.f32.mrb[0].mxu0
    %v2800 = vadd.f32 0.0, %v2799
    %v2801 = vpop.f32.mrb[0].mxu0
    %v2802 = vadd.f32 0.0, %v2801
    %2803 = vdwg.mxu0
    %2804 = vmatprep.subr.mxu0 0.0
    %2805 = vmatpush1.msra.mxu0 %v2687
    %2806 = vmatprep.subr.mxu0 0.0
    %2807 = vmatpush1.msra.mxu0 %v2690
    %2808 = vmatprep.subr.mxu0 0.0
    %2809 = vmatpush1.msra.mxu0 %v2693
    %2810 = vmatprep.subr.mxu0 0.0
    %2811 = vmatpush1.msra.mxu0 %v2696
    %2812 = vmatprep.subr.mxu0 0.0
    %2813 = vmatpush1.msra.mxu0 %v2699
    %2814 = vmatprep.subr.mxu0 0.0
    %2815 = vmatpush1.msra.mxu0 %v2702
    %2816 = vmatprep.subr.mxu0 0.0
    %2817 = vmatpush1.msra.mxu0 %v2705
    %2818 = vmatprep.subr.mxu0 0.0
    %2819 = vmatpush1.msra.mxu0 %v2708
    %2820 = vmatprep.subr.mxu0 0.0
    %2821 = vmatpush1.msra.mxu0 %v2711
    %2822 = vmatprep.subr.mxu0 0.0
    %2823 = vmatpush1.msra.mxu0 %v2714
    %2824 = vmatprep.subr.mxu0 0.0
    %2825 = vmatpush1.msra.mxu0 %v2717
    %2826 = vmatprep.subr.mxu0 0.0
    %2827 = vmatpush1.msra.mxu0 %v2720
    %2828 = vmatprep.subr.mxu0 0.0
    %2829 = vmatpush1.msra.mxu0 %v2723
    %2830 = vmatprep.subr.mxu0 0.0
    %2831 = vmatpush1.msra.mxu0 %v2726
    %2832 = vmatprep.subr.mxu0 0.0
    %2833 = vmatpush1.msra.mxu0 %v2729
    %2834 = vmatprep.subr.mxu0 0.0
    %2835 = vmatpush1.msra.mxu0 %v2732
    %2836 = vmatprep.subr.mxu0 0.0
    %2837 = vmatpush1.msra.mxu0 0.0
    %2838 = vmatprep.subr.mxu0 0.0
    %2839 = vmatpush1.msra.mxu0 0.0
    %2840 = vmatprep.subr.mxu0 0.0
    %2841 = vmatpush1.msra.mxu0 0.0
    %2842 = vmatprep.subr.mxu0 0.0
    %2843 = vmatpush1.msra.mxu0 0.0
    %2844 = vmatprep.subr.mxu0 0.0
    %2845 = vmatpush1.msra.mxu0 0.0
    %2846 = vmatprep.subr.mxu0 0.0
    %2847 = vmatpush1.msra.mxu0 0.0
    %2848 = vmatprep.subr.mxu0 0.0
    %2849 = vmatpush1.msra.mxu0 0.0
    %2850 = vmatprep.subr.mxu0 0.0
    %2851 = vmatpush1.msra.mxu0 0.0
    %2852 = vmatprep.subr.mxu0 0.0
    %2853 = vmatpush1.msra.mxu0 0.0
    %2854 = vmatprep.subr.mxu0 0.0
    %2855 = vmatpush1.msra.mxu0 0.0
    %2856 = vmatprep.subr.mxu0 0.0
    %2857 = vmatpush1.msra.mxu0 0.0
    %2858 = vmatprep.subr.mxu0 0.0
    %2859 = vmatpush1.msra.mxu0 0.0
    %2860 = vmatprep.subr.mxu0 0.0
    %2861 = vmatpush1.msra.mxu0 0.0
    %2862 = vmatprep.subr.mxu0 0.0
    %2863 = vmatpush1.msra.mxu0 0.0
    %2864 = vmatprep.subr.mxu0 0.0
    %2865 = vmatpush1.msra.mxu0 0.0
    %2866 = vmatprep.subr.mxu0 0.0
    %2867 = vmatpush1.msra.mxu0 0.0
    %2868 = vmatprep.mubr.f32.mxu0 0.0
    %2869 = vmatmul.mubr.f32.gmra.mrb[0].mxu0 %v2495
    %v2870 = vpop.f32.mrb[0].mxu0
    %v2871 = vadd.f32 0.0, %v2870
    %v2872 = vpop.f32.mrb[0].mxu0
    %2873 = vdwg.mxu0
    %s2874 = smul.addr %s2457, 8
    %s2875 = scalar_lea.vmem [#allocation2], %s2874
    %v2876 = vld [vmem:[%s2875] sm:$0xff]
    %v2877 = vld [vmem:[%s2875 + $0x8] sm:$0xff]
    %v2878 = vld [vmem:[%s2875 + $0x10] sm:$0xff]
    %v2879 = vadd.f32 %v2876, %v2611
    %v2880 = vxor.u32 %v2879, 2147483648
    %v2881 = vmul.f32 %v2880, 1.442695
    %v2882 = vpow.pop %v2881
    %v2883 = vadd.f32 %v2882, 1.0
    %v2884 = vrcp.pop %v2883
    %v2885 = vmul.f32 1.0, %v2884
    %v2886 = vadd.f32 %v2877, %v2613
    %v2887 = vxor.u32 %v2886, 2147483648
    %v2888 = vmul.f32 %v2887, 1.442695
    %v2889 = vpow.pop %v2888
    %v2890 = vadd.f32 %v2889, 1.0
    %v2891 = vrcp.pop %v2890
    %v2892 = vmul.f32 1.0, %v2891
    %v2893 = vadd.f32 %v2682, %v709
    %v2894 = vmul.f32 %v2885, %v2893
    %v2895 = vadd.f32 %v2878, %v2894
    %v2896 = vtanh.pop %v2895
    %v2897 = vsub.f32 %v2494, %v2896
    %v2898 = vmul.f32 %v2892, %v2897
    %v2899 = vadd.f32 %v2896, %v2898
    %s2900 = smul.addr %s2430, 8
    %s2901 = scalar_lea.vmem [#allocation3], %s2900
    %v2902 = vld [vmem:[%s2901] sm:$0xff]
    %v2903 = vld [vmem:[%s2901 + $0x8] sm:$0xff]
    %v2904 = vld [vmem:[%s2901 + $0x10] sm:$0xff]
    %v2905 = vadd.f32 %v2902, %v2800
    %v2906 = vxor.u32 %v2905, 2147483648
    %v2907 = vmul.f32 %v2906, 1.442695
    %v2908 = vpow.pop %v2907
    %v2909 = vadd.f32 %v2908, 1.0
    %v2910 = vrcp.pop %v2909
    %v2911 = vmul.f32 1.0, %v2910
    %v2912 = vadd.f32 %v2903, %v2802
    %v2913 = vxor.u32 %v2912, 2147483648
    %v2914 = vmul.f32 %v2913, 1.442695
    %v2915 = vpow.pop %v2914
    %v2916 = vadd.f32 %v2915, 1.0
    %v2917 = vrcp.pop %v2916
    %v2918 = vmul.f32 1.0, %v2917
    %v2919 = vadd.f32 %v2871, %v716
    %v2920 = vmul.f32 %v2911, %v2919
    %v2921 = vadd.f32 %v2904, %v2920
    %v2922 = vtanh.pop %v2921
    %v2923 = vsub.f32 %v2495, %v2922
    %v2924 = vmul.f32 %v2918, %v2923
    %v2925 = vadd.f32 %v2922, %v2924
    %2926 = vst [vmem:[#allocation4] sm:$0xff] %v2899
    %2927 = vst [vmem:[#allocation4 + $0x8] sm:$0xff] %v2925
    %2928 = vst [vmem:[%s2492] sm:$0xff] %v2899
    %2929 = vst [vmem:[%s2488 + $0x8] sm:$0xff] %v2925
    %v2930 = vld [vmem:[#allocation4] sm:$0xff]
    %v2931 = vld [vmem:[#allocation4 + $0x8] sm:$0xff]
    %v2932 = vld [vmem:[#allocation9] sm:$0xff]
    %v2933 = vld [vmem:[#allocation9 + $0x8] sm:$0xff]
    %v2934 = vld [vmem:[#allocation9 + $0x10] sm:$0xff]
    %v2935 = vld [vmem:[#allocation9 + $0x30] sm:$0xff]
    %v2936 = vld [vmem:[#allocation9 + $0x38] sm:$0xff]
    %v2937 = vld [vmem:[#allocation9 + $0x40] sm:$0xff]
    %v2938 = vld [vmem:[#allocation9 + $0x60] sm:$0xff]
    %v2939 = vld [vmem:[#allocation9 + $0x68] sm:$0xff]
    %v2940 = vld [vmem:[#allocation9 + $0x70] sm:$0xff]
    %v2941 = vld [vmem:[#allocation9 + $0x90] sm:$0xff]
    %v2942 = vld [vmem:[#allocation9 + $0x98] sm:$0xff]
    %v2943 = vld [vmem:[#allocation9 + $0xa0] sm:$0xff]
    %v2944 = vld [vmem:[#allocation9 + $0xc0] sm:$0xff]
    %v2945 = vld [vmem:[#allocation9 + $0xc8] sm:$0xff]
    %v2946 = vld [vmem:[#allocation9 + $0xd0] sm:$0xff]
    %v2947 = vld [vmem:[#allocation9 + $0xf0] sm:$0xff]
    %v2948 = vld [vmem:[#allocation9 + $0xf8] sm:$0xff]
    %v2949 = vld [vmem:[#allocation9 + $0x100] sm:$0xff]
    %v2950 = vld [vmem:[#allocation9 + $0x120] sm:$0xff]
    %v2951 = vld [vmem:[#allocation9 + $0x128] sm:$0xff]
    %v2952 = vld [vmem:[#allocation9 + $0x130] sm:$0xff]
    %v2953 = vld [vmem:[#allocation9 + $0x150] sm:$0xff]
    %v2954 = vld [vmem:[#allocation9 + $0x158] sm:$0xff]
    %v2955 = vld [vmem:[#allocation9 + $0x160] sm:$0xff]
    %v2956 = vld [vmem:[#allocation9 + $0x180] sm:$0xff]
    %v2957 = vld [vmem:[#allocation9 + $0x188] sm:$0xff]
    %v2958 = vld [vmem:[#allocation9 + $0x190] sm:$0xff]
    %v2959 = vld [vmem:[#allocation9 + $0x1b0] sm:$0xff]
    %v2960 = vld [vmem:[#allocation9 + $0x1b8] sm:$0xff]
    %v2961 = vld [vmem:[#allocation9 + $0x1c0] sm:$0xff]
    %v2962 = vld [vmem:[#allocation9 + $0x1e0] sm:$0xff]
    %v2963 = vld [vmem:[#allocation9 + $0x1e8] sm:$0xff]
    %v2964 = vld [vmem:[#allocation9 + $0x1f0] sm:$0xff]
    %v2965 = vld [vmem:[#allocation9 + $0x210] sm:$0xff]
    %v2966 = vld [vmem:[#allocation9 + $0x218] sm:$0xff]
    %v2967 = vld [vmem:[#allocation9 + $0x220] sm:$0xff]
    %v2968 = vld [vmem:[#allocation9 + $0x240] sm:$0xff]
    %v2969 = vld [vmem:[#allocation9 + $0x248] sm:$0xff]
    %v2970 = vld [vmem:[#allocation9 + $0x250] sm:$0xff]
    %v2971 = vld [vmem:[#allocation9 + $0x270] sm:$0xff]
    %v2972 = vld [vmem:[#allocation9 + $0x278] sm:$0xff]
    %v2973 = vld [vmem:[#allocation9 + $0x280] sm:$0xff]
    %v2974 = vld [vmem:[#allocation9 + $0x2a0] sm:$0xff]
    %v2975 = vld [vmem:[#allocation9 + $0x2a8] sm:$0xff]
    %v2976 = vld [vmem:[#allocation9 + $0x2b0] sm:$0xff]
    %v2977 = vld [vmem:[#allocation9 + $0x2d0] sm:$0xff]
    %v2978 = vld [vmem:[#allocation9 + $0x2d8] sm:$0xff]
    %v2979 = vld [vmem:[#allocation9 + $0x2e0] sm:$0xff]
    %2980 = vmatprep.subr.mxu0 %v2933
    %2981 = vmatpush1.msra.mxu0 %v2932
    %2982 = vmatprep.subr.mxu0 %v2936
    %2983 = vmatpush1.msra.mxu0 %v2935
    %2984 = vmatprep.subr.mxu0 %v2939
    %2985 = vmatpush1.msra.mxu0 %v2938
    %2986 = vmatprep.subr.mxu0 %v2942
    %2987 = vmatpush1.msra.mxu0 %v2941
    %2988 = vmatprep.subr.mxu0 %v2945
    %2989 = vmatpush1.msra.mxu0 %v2944
    %2990 = vmatprep.subr.mxu0 %v2948
    %2991 = vmatpush1.msra.mxu0 %v2947
    %2992 = vmatprep.subr.mxu0 %v2951
    %2993 = vmatpush1.msra.mxu0 %v2950
    %2994 = vmatprep.subr.mxu0 %v2954
    %2995 = vmatpush1.msra.mxu0 %v2953
    %2996 = vmatprep.subr.mxu0 %v2957
    %2997 = vmatpush1.msra.mxu0 %v2956
    %2998 = vmatprep.subr.mxu0 %v2960
    %2999 = vmatpush1.msra.mxu0 %v2959
    %3000 = vmatprep.subr.mxu0 %v2963
    %3001 = vmatpush1.msra.mxu0 %v2962
    %3002 = vmatprep.subr.mxu0 %v2966
    %3003 = vmatpush1.msra.mxu0 %v2965
    %3004 = vmatprep.subr.mxu0 %v2969
    %3005 = vmatpush1.msra.mxu0 %v2968
    %3006 = vmatprep.subr.mxu0 %v2972
    %3007 = vmatpush1.msra.mxu0 %v2971
    %3008 = vmatprep.subr.mxu0 %v2975
    %3009 = vmatpush1.msra.mxu0 %v2974
    %3010 = vmatprep.subr.mxu0 %v2978
    %3011 = vmatpush1.msra.mxu0 %v2977
    %3012 = vmatprep.subr.mxu0 0.0
    %3013 = vmatpush1.msra.mxu0 0.0
    %3014 = vmatprep.subr.mxu0 0.0
    %3015 = vmatpush1.msra.mxu0 0.0
    %3016 = vmatprep.subr.mxu0 0.0
    %3017 = vmatpush1.msra.mxu0 0.0
    %3018 = vmatprep.subr.mxu0 0.0
    %3019 = vmatpush1.msra.mxu0 0.0
    %3020 = vmatprep.subr.mxu0 0.0
    %3021 = vmatpush1.msra.mxu0 0.0
    %3022 = vmatprep.subr.mxu0 0.0
    %3023 = vmatpush1.msra.mxu0 0.0
    %3024 = vmatprep.subr.mxu0 0.0
    %3025 = vmatpush1.msra.mxu0 0.0
    %3026 = vmatprep.subr.mxu0 0.0
    %3027 = vmatpush1.msra.mxu0 0.0
    %3028 = vmatprep.subr.mxu0 0.0
    %3029 = vmatpush1.msra.mxu0 0.0
    %3030 = vmatprep.subr.mxu0 0.0
    %3031 = vmatpush1.msra.mxu0 0.0
    %3032 = vmatprep.subr.mxu0 0.0
    %3033 = vmatpush1.msra.mxu0 0.0
    %3034 = vmatprep.subr.mxu0 0.0
    %3035 = vmatpush1.msra.mxu0 0.0
    %3036 = vmatprep.subr.mxu0 0.0
    %3037 = vmatpush1.msra.mxu0 0.0
    %3038 = vmatprep.subr.mxu0 0.0
    %3039 = vmatpush1.msra.mxu0 0.0
    %3040 = vmatprep.subr.mxu0 0.0
    %3041 = vmatpush1.msra.mxu0 0.0
    %3042 = vmatprep.subr.mxu0 0.0
    %3043 = vmatpush1.msra.mxu0 0.0
    %3044 = vmatprep.mubr.f32.mxu0 0.0
    %3045 = vmatmul.mubr.f32.gmra.mrb[0].mxu0 %v2930
    %v3046 = vpop.f32.mrb[0].mxu0
    %v3047 = vadd.f32 0.0, %v3046
    %v3048 = vpop.f32.mrb[0].mxu0
    %v3049 = vadd.f32 0.0, %v3048
    %3050 = vdwg.mxu0
    %3051 = vmatprep.subr.mxu0 0.0
    %3052 = vmatpush1.msra.mxu0 %v2934
    %3053 = vmatprep.subr.mxu0 0.0
    %3054 = vmatpush1.msra.mxu0 %v2937
    %3055 = vmatprep.subr.mxu0 0.0
    %3056 = vmatpush1.msra.mxu0 %v2940
    %3057 = vmatprep.subr.mxu0 0.0
    %3058 = vmatpush1.msra.mxu0 %v2943
    %3059 = vmatprep.subr.mxu0 0.0
    %3060 = vmatpush1.msra.mxu0 %v2946
    %3061 = vmatprep.subr.mxu0 0.0
    %3062 = vmatpush1.msra.mxu0 %v2949
    %3063 = vmatprep.subr.mxu0 0.0
    %3064 = vmatpush1.msra.mxu0 %v2952
    %3065 = vmatprep.subr.mxu0 0.0
    %3066 = vmatpush1.msra.mxu0 %v2955
    %3067 = vmatprep.subr.mxu0 0.0
    %3068 = vmatpush1.msra.mxu0 %v2958
    %3069 = vmatprep.subr.mxu0 0.0
    %3070 = vmatpush1.msra.mxu0 %v2961
    %3071 = vmatprep.subr.mxu0 0.0
    %3072 = vmatpush1.msra.mxu0 %v2964
    %3073 = vmatprep.subr.mxu0 0.0
    %3074 = vmatpush1.msra.mxu0 %v2967
    %3075 = vmatprep.subr.mxu0 0.0
    %3076 = vmatpush1.msra.mxu0 %v2970
    %3077 = vmatprep.subr.mxu0 0.0
    %3078 = vmatpush1.msra.mxu0 %v2973
    %3079 = vmatprep.subr.mxu0 0.0
    %3080 = vmatpush1.msra.mxu0 %v2976
    %3081 = vmatprep.subr.mxu0 0.0
    %3082 = vmatpush1.msra.mxu0 %v2979
    %3083 = vmatprep.subr.mxu0 0.0
    %3084 = vmatpush1.msra.mxu0 0.0
    %3085 = vmatprep.subr.mxu0 0.0
    %3086 = vmatpush1.msra.mxu0 0.0
    %3087 = vmatprep.subr.mxu0 0.0
    %3088 = vmatpush1.msra.mxu0 0.0
    %3089 = vmatprep.subr.mxu0 0.0
    %3090 = vmatpush1.msra.mxu0 0.0
    %3091 = vmatprep.subr.mxu0 0.0
    %3092 = vmatpush1.msra.mxu0 0.0
    %3093 = vmatprep.subr.mxu0 0.0
    %3094 = vmatpush1.msra.mxu0 0.0
    %3095 = vmatprep.subr.mxu0 0.0
    %3096 = vmatpush1.msra.mxu0 0.0
    %3097 = vmatprep.subr.mxu0 0.0
    %3098 = vmatpush1.msra.mxu0 0.0
    %3099 = vmatprep.subr.mxu0 0.0
    %3100 = vmatpush1.msra.mxu0 0.0
    %3101 = vmatprep.subr.mxu0 0.0
    %3102 = vmatpush1.msra.mxu0 0.0
    %3103 = vmatprep.subr.mxu0 0.0
    %3104 = vmatpush1.msra.mxu0 0.0
    %3105 = vmatprep.subr.mxu0 0.0
    %3106 = vmatpush1.msra.mxu0 0.0
    %3107 = vmatprep.subr.mxu0 0.0
    %3108 = vmatpush1.msra.mxu0 0.0
    %3109 = vmatprep.subr.mxu0 0.0
    %3110 = vmatpush1.msra.mxu0 0.0
    %3111 = vmatprep.subr.mxu0 0.0
    %3112 = vmatpush1.msra.mxu0 0.0
    %3113 = vmatprep.subr.mxu0 0.0
    %3114 = vmatpush1.msra.mxu0 0.0
    %3115 = vmatprep.mubr.f32.mxu0 0.0
    %3116 = vmatmul.mubr.f32.gmra.mrb[0].mxu0 %v2930
    %v3117 = vpop.f32.mrb[0].mxu0
    %v3118 = vadd.f32 0.0, %v3117
    %v3119 = vpop.f32.mrb[0].mxu0
    %3120 = vdwg.mxu0
    %v3121 = vld [vmem:[#allocation9 + $0x318] sm:$0xff]
    %v3122 = vld [vmem:[#allocation9 + $0x320] sm:$0xff]
    %v3123 = vld [vmem:[#allocation9 + $0x328] sm:$0xff]
    %v3124 = vld [vmem:[#allocation9 + $0x348] sm:$0xff]
    %v3125 = vld [vmem:[#allocation9 + $0x350] sm:$0xff]
    %v3126 = vld [vmem:[#allocation9 + $0x358] sm:$0xff]
    %v3127 = vld [vmem:[#allocation9 + $0x378] sm:$0xff]
    %v3128 = vld [vmem:[#allocation9 + $0x380] sm:$0xff]
    %v3129 = vld [vmem:[#allocation9 + $0x388] sm:$0xff]
    %v3130 = vld [vmem:[#allocation9 + $0x3a8] sm:$0xff]
    %v3131 = vld [vmem:[#allocation9 + $0x3b0] sm:$0xff]
    %v3132 = vld [vmem:[#allocation9 + $0x3b8] sm:$0xff]
    %v3133 = vld [vmem:[#allocation9 + $0x3d8] sm:$0xff]
    %v3134 = vld [vmem:[#allocation9 + $0x3e0] sm:$0xff]
    %v3135 = vld [vmem:[#allocation9 + $0x3e8] sm:$0xff]
    %v3136 = vld [vmem:[#allocation9 + $0x408] sm:$0xff]
    %v3137 = vld [vmem:[#allocation9 + $0x410] sm:$0xff]
    %v3138 = vld [vmem:[#allocation9 + $0x418] sm:$0xff]
    %v3139 = vld [vmem:[#allocation9 + $0x438] sm:$0xff]
    %v3140 = vld [vmem:[#allocation9 + $0x440] sm:$0xff]
    %v3141 = vld [vmem:[#allocation9 + $0x448] sm:$0xff]
    %v3142 = vld [vmem:[#allocation9 + $0x468] sm:$0xff]
    %v3143 = vld [vmem:[#allocation9 + $0x470] sm:$0xff]
    %v3144 = vld [vmem:[#allocation9 + $0x478] sm:$0xff]
    %v3145 = vld [vmem:[#allocation9 + $0x498] sm:$0xff]
    %v3146 = vld [vmem:[#allocation9 + $0x4a0] sm:$0xff]
    %v3147 = vld [vmem:[#allocation9 + $0x4a8] sm:$0xff]
    %v3148 = vld [vmem:[#allocation9 + $0x4c8] sm:$0xff]
    %v3149 = vld [vmem:[#allocation9 + $0x4d0] sm:$0xff]
    %v3150 = vld [vmem:[#allocation9 + $0x4d8] sm:$0xff]
    %v3151 = vld [vmem:[#allocation9 + $0x4f8] sm:$0xff]
    %v3152 = vld [vmem:[#allocation9 + $0x500] sm:$0xff]
    %v3153 = vld [vmem:[#allocation9 + $0x508] sm:$0xff]
    %v3154 = vld [vmem:[#allocation9 + $0x528] sm:$0xff]
    %v3155 = vld [vmem:[#allocation9 + $0x530] sm:$0xff]
    %v3156 = vld [vmem:[#allocation9 + $0x538] sm:$0xff]
    %v3157 = vld [vmem:[#allocation9 + $0x558] sm:$0xff]
    %v3158 = vld [vmem:[#allocation9 + $0x560] sm:$0xff]
    %v3159 = vld [vmem:[#allocation9 + $0x568] sm:$0xff]
    %v3160 = vld [vmem:[#allocation9 + $0x588] sm:$0xff]
    %v3161 = vld [vmem:[#allocation9 + $0x590] sm:$0xff]
    %v3162 = vld [vmem:[#allocation9 + $0x598] sm:$0xff]
    %v3163 = vld [vmem:[#allocation9 + $0x5b8] sm:$0xff]
    %v3164 = vld [vmem:[#allocation9 + $0x5c0] sm:$0xff]
    %v3165 = vld [vmem:[#allocation9 + $0x5c8] sm:$0xff]
    %v3166 = vld [vmem:[#allocation9 + $0x5e8] sm:$0xff]
    %v3167 = vld [vmem:[#allocation9 + $0x5f0] sm:$0xff]
    %v3168 = vld [vmem:[#allocation9 + $0x5f8] sm:$0xff]
    %3169 = vmatprep.subr.mxu0 %v3122
    %3170 = vmatpush1.msra.mxu0 %v3121
    %3171 = vmatprep.subr.mxu0 %v3125
    %3172 = vmatpush1.msra.mxu0 %v3124
    %3173 = vmatprep.subr.mxu0 %v3128
    %3174 = vmatpush1.msra.mxu0 %v3127
    %3175 = vmatprep.subr.mxu0 %v3131
    %3176 = vmatpush1.msra.mxu0 %v3130
    %3177 = vmatprep.subr.mxu0 %v3134
    %3178 = vmatpush1.msra.mxu0 %v3133
    %3179 = vmatprep.subr.mxu0 %v3137
    %3180 = vmatpush1.msra.mxu0 %v3136
    %3181 = vmatprep.subr.mxu0 %v3140
    %3182 = vmatpush1.msra.mxu0 %v3139
    %3183 = vmatprep.subr.mxu0 %v3143
    %3184 = vmatpush1.msra.mxu0 %v3142
    %3185 = vmatprep.subr.mxu0 %v3146
    %3186 = vmatpush1.msra.mxu0 %v3145
    %3187 = vmatprep.subr.mxu0 %v3149
    %3188 = vmatpush1.msra.mxu0 %v3148
    %3189 = vmatprep.subr.mxu0 %v3152
    %3190 = vmatpush1.msra.mxu0 %v3151
    %3191 = vmatprep.subr.mxu0 %v3155
    %3192 = vmatpush1.msra.mxu0 %v3154
    %3193 = vmatprep.subr.mxu0 %v3158
    %3194 = vmatpush1.msra.mxu0 %v3157
    %3195 = vmatprep.subr.mxu0 %v3161
    %3196 = vmatpush1.msra.mxu0 %v3160
    %3197 = vmatprep.subr.mxu0 %v3164
    %3198 = vmatpush1.msra.mxu0 %v3163
    %3199 = vmatprep.subr.mxu0 %v3167
    %3200 = vmatpush1.msra.mxu0 %v3166
    %3201 = vmatprep.subr.mxu0 0.0
    %3202 = vmatpush1.msra.mxu0 0.0
    %3203 = vmatprep.subr.mxu0 0.0
    %3204 = vmatpush1.msra.mxu0 0.0
    %3205 = vmatprep.subr.mxu0 0.0
    %3206 = vmatpush1.msra.mxu0 0.0
    %3207 = vmatprep.subr.mxu0 0.0
    %3208 = vmatpush1.msra.mxu0 0.0
    %3209 = vmatprep.subr.mxu0 0.0
    %3210 = vmatpush1.msra.mxu0 0.0
    %3211 = vmatprep.subr.mxu0 0.0
    %3212 = vmatpush1.msra.mxu0 0.0
    %3213 = vmatprep.subr.mxu0 0.0
    %3214 = vmatpush1.msra.mxu0 0.0
    %3215 = vmatprep.subr.mxu0 0.0
    %3216 = vmatpush1.msra.mxu0 0.0
    %3217 = vmatprep.subr.mxu0 0.0
    %3218 = vmatpush1.msra.mxu0 0.0
    %3219 = vmatprep.subr.mxu0 0.0
    %3220 = vmatpush1.msra.mxu0 0.0
    %3221 = vmatprep.subr.mxu0 0.0
    %3222 = vmatpush1.msra.mxu0 0.0
    %3223 = vmatprep.subr.mxu0 0.0
    %3224 = vmatpush1.msra.mxu0 0.0
    %3225 = vmatprep.subr.mxu0 0.0
    %3226 = vmatpush1.msra.mxu0 0.0
    %3227 = vmatprep.subr.mxu0 0.0
    %3228 = vmatpush1.msra.mxu0 0.0
    %3229 = vmatprep.subr.mxu0 0.0
    %3230 = vmatpush1.msra.mxu0 0.0
    %3231 = vmatprep.subr.mxu0 0.0
    %3232 = vmatpush1.msra.mxu0 0.0
    %3233 = vmatprep.mubr.f32.mxu0 0.0
    %3234 = vmatmul.mubr.f32.gmra.mrb[0].mxu0 %v2931
    %v3235 = vpop.f32.mrb[0].mxu0
    %v3236 = vadd.f32 0.0, %v3235
    %v3237 = vpop.f32.mrb[0].mxu0
    %v3238 = vadd.f32 0.0, %v3237
    %3239 = vdwg.mxu0
    %3240 = vmatprep.subr.mxu0 0.0
    %3241 = vmatpush1.msra.mxu0 %v3123
    %3242 = vmatprep.subr.mxu0 0.0
    %3243 = vmatpush1.msra.mxu0 %v3126
    %3244 = vmatprep.subr.mxu0 0.0
    %3245 = vmatpush1.msra.mxu0 %v3129
    %3246 = vmatprep.subr.mxu0 0.0
    %3247 = vmatpush1.msra.mxu0 %v3132
    %3248 = vmatprep.subr.mxu0 0.0
    %3249 = vmatpush1.msra.mxu0 %v3135
    %3250 = vmatprep.subr.mxu0 0.0
    %3251 = vmatpush1.msra.mxu0 %v3138
    %3252 = vmatprep.subr.mxu0 0.0
    %3253 = vmatpush1.msra.mxu0 %v3141
    %3254 = vmatprep.subr.mxu0 0.0
    %3255 = vmatpush1.msra.mxu0 %v3144
    %3256 = vmatprep.subr.mxu0 0.0
    %3257 = vmatpush1.msra.mxu0 %v3147
    %3258 = vmatprep.subr.mxu0 0.0
    %3259 = vmatpush1.msra.mxu0 %v3150
    %3260 = vmatprep.subr.mxu0 0.0
    %3261 = vmatpush1.msra.mxu0 %v3153
    %3262 = vmatprep.subr.mxu0 0.0
    %3263 = vmatpush1.msra.mxu0 %v3156
    %3264 = vmatprep.subr.mxu0 0.0
    %3265 = vmatpush1.msra.mxu0 %v3159
    %3266 = vmatprep.subr.mxu0 0.0
    %3267 = vmatpush1.msra.mxu0 %v3162
    %3268 = vmatprep.subr.mxu0 0.0
    %3269 = vmatpush1.msra.mxu0 %v3165
    %3270 = vmatprep.subr.mxu0 0.0
    %3271 = vmatpush1.msra.mxu0 %v3168
    %3272 = vmatprep.subr.mxu0 0.0
    %3273 = vmatpush1.msra.mxu0 0.0
    %3274 = vmatprep.subr.mxu0 0.0
    %3275 = vmatpush1.msra.mxu0 0.0
    %3276 = vmatprep.subr.mxu0 0.0
    %3277 = vmatpush1.msra.mxu0 0.0
    %3278 = vmatprep.subr.mxu0 0.0
    %3279 = vmatpush1.msra.mxu0 0.0
    %3280 = vmatprep.subr.mxu0 0.0
    %3281 = vmatpush1.msra.mxu0 0.0
    %3282 = vmatprep.subr.mxu0 0.0
    %3283 = vmatpush1.msra.mxu0 0.0
    %3284 = vmatprep.subr.mxu0 0.0
    %3285 = vmatpush1.msra.mxu0 0.0
    %3286 = vmatprep.subr.mxu0 0.0
    %3287 = vmatpush1.msra.mxu0 0.0
    %3288 = vmatprep.subr.mxu0 0.0
    %3289 = vmatpush1.msra.mxu0 0.0
    %3290 = vmatprep.subr.mxu0 0.0
    %3291 = vmatpush1.msra.mxu0 0.0
    %3292 = vmatprep.subr.mxu0 0.0
    %3293 = vmatpush1.msra.mxu0 0.0
    %3294 = vmatprep.subr.mxu0 0.0
    %3295 = vmatpush1.msra.mxu0 0.0
    %3296 = vmatprep.subr.mxu0 0.0
    %3297 = vmatpush1.msra.mxu0 0.0
    %3298 = vmatprep.subr.mxu0 0.0
    %3299 = vmatpush1.msra.mxu0 0.0
    %3300 = vmatprep.subr.mxu0 0.0
    %3301 = vmatpush1.msra.mxu0 0.0
    %3302 = vmatprep.subr.mxu0 0.0
    %3303 = vmatpush1.msra.mxu0 0.0
    %3304 = vmatprep.mubr.f32.mxu0 0.0
    %3305 = vmatmul.mubr.f32.gmra.mrb[0].mxu0 %v2931
    %v3306 = vpop.f32.mrb[0].mxu0
    %v3307 = vadd.f32 0.0, %v3306
    %v3308 = vpop.f32.mrb[0].mxu0
    %3309 = vdwg.mxu0
    %s3310 = smul.addr %s2013, 8
    %s3311 = scalar_lea.vmem [#allocation2], %s3310
    %v3312 = vld [vmem:[%s3311] sm:$0xff]
    %v3313 = vld [vmem:[%s3311 + $0x8] sm:$0xff]
    %v3314 = vld [vmem:[%s3311 + $0x10] sm:$0xff]
    %v3315 = vadd.f32 %v3312, %v3047
    %v3316 = vxor.u32 %v3315, 2147483648
    %v3317 = vmul.f32 %v3316, 1.442695
    %v3318 = vpow.pop %v3317
    %v3319 = vadd.f32 %v3318, 1.0
    %v3320 = vrcp.pop %v3319
    %v3321 = vmul.f32 1.0, %v3320
    %v3322 = vadd.f32 %v3313, %v3049
    %v3323 = vxor.u32 %v3322, 2147483648
    %v3324 = vmul.f32 %v3323, 1.442695
    %v3325 = vpow.pop %v3324
    %v3326 = vadd.f32 %v3325, 1.0
    %v3327 = vrcp.pop %v3326
    %v3328 = vmul.f32 1.0, %v3327
    %v3329 = vadd.f32 %v3118, %v709
    %v3330 = vmul.f32 %v3321, %v3329
    %v3331 = vadd.f32 %v3314, %v3330
    %v3332 = vtanh.pop %v3331
    %v3333 = vsub.f32 %v2930, %v3332
    %v3334 = vmul.f32 %v3328, %v3333
    %v3335 = vadd.f32 %v3332, %v3334
    %s3336 = smul.addr %s1986, 8
    %s3337 = scalar_lea.vmem [#allocation3], %s3336
    %v3338 = vld [vmem:[%s3337] sm:$0xff]
    %v3339 = vld [vmem:[%s3337 + $0x8] sm:$0xff]
    %v3340 = vld [vmem:[%s3337 + $0x10] sm:$0xff]
    %v3341 = vadd.f32 %v3338, %v3236
    %v3342 = vxor.u32 %v3341, 2147483648
    %v3343 = vmul.f32 %v3342, 1.442695
    %v3344 = vpow.pop %v3343
    %v3345 = vadd.f32 %v3344, 1.0
    %v3346 = vrcp.pop %v3345
    %v3347 = vmul.f32 1.0, %v3346
    %v3348 = vadd.f32 %v3339, %v3238
    %v3349 = vxor.u32 %v3348, 2147483648
    %v3350 = vmul.f32 %v3349, 1.442695
    %v3351 = vpow.pop %v3350
    %v3352 = vadd.f32 %v3351, 1.0
    %v3353 = vrcp.pop %v3352
    %v3354 = vmul.f32 1.0, %v3353
    %v3355 = vadd.f32 %v3307, %v716
    %v3356 = vmul.f32 %v3347, %v3355
    %v3357 = vadd.f32 %v3340, %v3356
    %v3358 = vtanh.pop %v3357
    %v3359 = vsub.f32 %v2931, %v3358
    %v3360 = vmul.f32 %v3354, %v3359
    %v3361 = vadd.f32 %v3358, %v3360
    %3362 = vst [vmem:[#allocation4] sm:$0xff] %v3335
    %3363 = vst [vmem:[#allocation4 + $0x8] sm:$0xff] %v3361
    %3364 = vst [vmem:[%s2048] sm:$0xff] %v3335
    %3365 = vst [vmem:[%s2044 + $0x8] sm:$0xff] %v3361
    %v3366 = vld [vmem:[#allocation4] sm:$0xff]
    %v3367 = vld [vmem:[#allocation4 + $0x8] sm:$0xff]
    %v3368 = vld [vmem:[#allocation9] sm:$0xff]
    %v3369 = vld [vmem:[#allocation9 + $0x8] sm:$0xff]
    %v3370 = vld [vmem:[#allocation9 + $0x10] sm:$0xff]
    %v3371 = vld [vmem:[#allocation9 + $0x30] sm:$0xff]
    %v3372 = vld [vmem:[#allocation9 + $0x38] sm:$0xff]
    %v3373 = vld [vmem:[#allocation9 + $0x40] sm:$0xff]
    %v3374 = vld [vmem:[#allocation9 + $0x60] sm:$0xff]
    %v3375 = vld [vmem:[#allocation9 + $0x68] sm:$0xff]
    %v3376 = vld [vmem:[#allocation9 + $0x70] sm:$0xff]
    %v3377 = vld [vmem:[#allocation9 + $0x90] sm:$0xff]
    %v3378 = vld [vmem:[#allocation9 + $0x98] sm:$0xff]
    %v3379 = vld [vmem:[#allocation9 + $0xa0] sm:$0xff]
    %v3380 = vld [vmem:[#allocation9 + $0xc0] sm:$0xff]
    %v3381 = vld [vmem:[#allocation9 + $0xc8] sm:$0xff]
    %v3382 = vld [vmem:[#allocation9 + $0xd0] sm:$0xff]
    %v3383 = vld [vmem:[#allocation9 + $0xf0] sm:$0xff]
    %v3384 = vld [vmem:[#allocation9 + $0xf8] sm:$0xff]
    %v3385 = vld [vmem:[#allocation9 + $0x100] sm:$0xff]
    %v3386 = vld [vmem:[#allocation9 + $0x120] sm:$0xff]
    %v3387 = vld [vmem:[#allocation9 + $0x128] sm:$0xff]
    %v3388 = vld [vmem:[#allocation9 + $0x130] sm:$0xff]
    %v3389 = vld [vmem:[#allocation9 + $0x150] sm:$0xff]
    %v3390 = vld [vmem:[#allocation9 + $0x158] sm:$0xff]
    %v3391 = vld [vmem:[#allocation9 + $0x160] sm:$0xff]
    %v3392 = vld [vmem:[#allocation9 + $0x180] sm:$0xff]
    %v3393 = vld [vmem:[#allocation9 + $0x188] sm:$0xff]
    %v3394 = vld [vmem:[#allocation9 + $0x190] sm:$0xff]
    %v3395 = vld [vmem:[#allocation9 + $0x1b0] sm:$0xff]
    %v3396 = vld [vmem:[#allocation9 + $0x1b8] sm:$0xff]
    %v3397 = vld [vmem:[#allocation9 + $0x1c0] sm:$0xff]
    %v3398 = vld [vmem:[#allocation9 + $0x1e0] sm:$0xff]
    %v3399 = vld [vmem:[#allocation9 + $0x1e8] sm:$0xff]
    %v3400 = vld [vmem:[#allocation9 + $0x1f0] sm:$0xff]
    %v3401 = vld [vmem:[#allocation9 + $0x210] sm:$0xff]
    %v3402 = vld [vmem:[#allocation9 + $0x218] sm:$0xff]
    %v3403 = vld [vmem:[#allocation9 + $0x220] sm:$0xff]
    %v3404 = vld [vmem:[#allocation9 + $0x240] sm:$0xff]
    %v3405 = vld [vmem:[#allocation9 + $0x248] sm:$0xff]
    %v3406 = vld [vmem:[#allocation9 + $0x250] sm:$0xff]
    %v3407 = vld [vmem:[#allocation9 + $0x270] sm:$0xff]
    %v3408 = vld [vmem:[#allocation9 + $0x278] sm:$0xff]
    %v3409 = vld [vmem:[#allocation9 + $0x280] sm:$0xff]
    %v3410 = vld [vmem:[#allocation9 + $0x2a0] sm:$0xff]
    %v3411 = vld [vmem:[#allocation9 + $0x2a8] sm:$0xff]
    %v3412 = vld [vmem:[#allocation9 + $0x2b0] sm:$0xff]
    %v3413 = vld [vmem:[#allocation9 + $0x2d0] sm:$0xff]
    %v3414 = vld [vmem:[#allocation9 + $0x2d8] sm:$0xff]
    %v3415 = vld [vmem:[#allocation9 + $0x2e0] sm:$0xff]
    %3416 = vmatprep.subr.mxu0 %v3369
    %3417 = vmatpush1.msra.mxu0 %v3368
    %3418 = vmatprep.subr.mxu0 %v3372
    %3419 = vmatpush1.msra.mxu0 %v3371
    %3420 = vmatprep.subr.mxu0 %v3375
    %3421 = vmatpush1.msra.mxu0 %v3374
    %3422 = vmatprep.subr.mxu0 %v3378
    %3423 = vmatpush1.msra.mxu0 %v3377
    %3424 = vmatprep.subr.mxu0 %v3381
    %3425 = vmatpush1.msra.mxu0 %v3380
    %3426 = vmatprep.subr.mxu0 %v3384
    %3427 = vmatpush1.msra.mxu0 %v3383
    %3428 = vmatprep.subr.mxu0 %v3387
    %3429 = vmatpush1.msra.mxu0 %v3386
    %3430 = vmatprep.subr.mxu0 %v3390
    %3431 = vmatpush1.msra.mxu0 %v3389
    %3432 = vmatprep.subr.mxu0 %v3393
    %3433 = vmatpush1.msra.mxu0 %v3392
    %3434 = vmatprep.subr.mxu0 %v3396
    %3435 = vmatpush1.msra.mxu0 %v3395
    %3436 = vmatprep.subr.mxu0 %v3399
    %3437 = vmatpush1.msra.mxu0 %v3398
    %3438 = vmatprep.subr.mxu0 %v3402
    %3439 = vmatpush1.msra.mxu0 %v3401
    %3440 = vmatprep.subr.mxu0 %v3405
    %3441 = vmatpush1.msra.mxu0 %v3404
    %3442 = vmatprep.subr.mxu0 %v3408
    %3443 = vmatpush1.msra.mxu0 %v3407
    %3444 = vmatprep.subr.mxu0 %v3411
    %3445 = vmatpush1.msra.mxu0 %v3410
    %3446 = vmatprep.subr.mxu0 %v3414
    %3447 = vmatpush1.msra.mxu0 %v3413
    %3448 = vmatprep.subr.mxu0 0.0
    %3449 = vmatpush1.msra.mxu0 0.0
    %3450 = vmatprep.subr.mxu0 0.0
    %3451 = vmatpush1.msra.mxu0 0.0
    %3452 = vmatprep.subr.mxu0 0.0
    %3453 = vmatpush1.msra.mxu0 0.0
    %3454 = vmatprep.subr.mxu0 0.0
    %3455 = vmatpush1.msra.mxu0 0.0
    %3456 = vmatprep.subr.mxu0 0.0
    %3457 = vmatpush1.msra.mxu0 0.0
    %3458 = vmatprep.subr.mxu0 0.0
    %3459 = vmatpush1.msra.mxu0 0.0
    %3460 = vmatprep.subr.mxu0 0.0
    %3461 = vmatpush1.msra.mxu0 0.0
    %3462 = vmatprep.subr.mxu0 0.0
    %3463 = vmatpush1.msra.mxu0 0.0
    %3464 = vmatprep.subr.mxu0 0.0
    %3465 = vmatpush1.msra.mxu0 0.0
    %3466 = vmatprep.subr.mxu0 0.0
    %3467 = vmatpush1.msra.mxu0 0.0
    %3468 = vmatprep.subr.mxu0 0.0
    %3469 = vmatpush1.msra.mxu0 0.0
    %3470 = vmatprep.subr.mxu0 0.0
    %3471 = vmatpush1.msra.mxu0 0.0
    %3472 = vmatprep.subr.mxu0 0.0
    %3473 = vmatpush1.msra.mxu0 0.0
    %3474 = vmatprep.subr.mxu0 0.0
    %3475 = vmatpush1.msra.mxu0 0.0
    %3476 = vmatprep.subr.mxu0 0.0
    %3477 = vmatpush1.msra.mxu0 0.0
    %3478 = vmatprep.subr.mxu0 0.0
    %3479 = vmatpush1.msra.mxu0 0.0
    %3480 = vmatprep.mubr.f32.mxu0 0.0
    %3481 = vmatmul.mubr.f32.gmra.mrb[0].mxu0 %v3366
    %v3482 = vpop.f32.mrb[0].mxu0
    %v3483 = vadd.f32 0.0, %v3482
    %v3484 = vpop.f32.mrb[0].mxu0
    %v3485 = vadd.f32 0.0, %v3484
    %3486 = vdwg.mxu0
    %3487 = vmatprep.subr.mxu0 0.0
    %3488 = vmatpush1.msra.mxu0 %v3370
    %3489 = vmatprep.subr.mxu0 0.0
    %3490 = vmatpush1.msra.mxu0 %v3373
    %3491 = vmatprep.subr.mxu0 0.0
    %3492 = vmatpush1.msra.mxu0 %v3376
    %3493 = vmatprep.subr.mxu0 0.0
    %3494 = vmatpush1.msra.mxu0 %v3379
    %3495 = vmatprep.subr.mxu0 0.0
    %3496 = vmatpush1.msra.mxu0 %v3382
    %3497 = vmatprep.subr.mxu0 0.0
    %3498 = vmatpush1.msra.mxu0 %v3385
    %3499 = vmatprep.subr.mxu0 0.0
    %3500 = vmatpush1.msra.mxu0 %v3388
    %3501 = vmatprep.subr.mxu0 0.0
    %3502 = vmatpush1.msra.mxu0 %v3391
    %3503 = vmatprep.subr.mxu0 0.0
    %3504 = vmatpush1.msra.mxu0 %v3394
    %3505 = vmatprep.subr.mxu0 0.0
    %3506 = vmatpush1.msra.mxu0 %v3397
    %3507 = vmatprep.subr.mxu0 0.0
    %3508 = vmatpush1.msra.mxu0 %v3400
    %3509 = vmatprep.subr.mxu0 0.0
    %3510 = vmatpush1.msra.mxu0 %v3403
    %3511 = vmatprep.subr.mxu0 0.0
    %3512 = vmatpush1.msra.mxu0 %v3406
    %3513 = vmatprep.subr.mxu0 0.0
    %3514 = vmatpush1.msra.mxu0 %v3409
    %3515 = vmatprep.subr.mxu0 0.0
    %3516 = vmatpush1.msra.mxu0 %v3412
    %3517 = vmatprep.subr.mxu0 0.0
    %3518 = vmatpush1.msra.mxu0 %v3415
    %3519 = vmatprep.subr.mxu0 0.0
    %3520 = vmatpush1.msra.mxu0 0.0
    %3521 = vmatprep.subr.mxu0 0.0
    %3522 = vmatpush1.msra.mxu0 0.0
    %3523 = vmatprep.subr.mxu0 0.0
    %3524 = vmatpush1.msra.mxu0 0.0
    %3525 = vmatprep.subr.mxu0 0.0
    %3526 = vmatpush1.msra.mxu0 0.0
    %3527 = vmatprep.subr.mxu0 0.0
    %3528 = vmatpush1.msra.mxu0 0.0
    %3529 = vmatprep.subr.mxu0 0.0
    %3530 = vmatpush1.msra.mxu0 0.0
    %3531 = vmatprep.subr.mxu0 0.0
    %3532 = vmatpush1.msra.mxu0 0.0
    %3533 = vmatprep.subr.mxu0 0.0
    %3534 = vmatpush1.msra.mxu0 0.0
    %3535 = vmatprep.subr.mxu0 0.0
    %3536 = vmatpush1.msra.mxu0 0.0
    %3537 = vmatprep.subr.mxu0 0.0
    %3538 = vmatpush1.msra.mxu0 0.0
    %3539 = vmatprep.subr.mxu0 0.0
    %3540 = vmatpush1.msra.mxu0 0.0
    %3541 = vmatprep.subr.mxu0 0.0
    %3542 = vmatpush1.msra.mxu0 0.0
    %3543 = vmatprep.subr.mxu0 0.0
    %3544 = vmatpush1.msra.mxu0 0.0
    %3545 = vmatprep.subr.mxu0 0.0
    %3546 = vmatpush1.msra.mxu0 0.0
    %3547 = vmatprep.subr.mxu0 0.0
    %3548 = vmatpush1.msra.mxu0 0.0
    %3549 = vmatprep.subr.mxu0 0.0
    %3550 = vmatpush1.msra.mxu0 0.0
    %3551 = vmatprep.mubr.f32.mxu0 0.0
    %3552 = vmatmul.mubr.f32.gmra.mrb[0].mxu0 %v3366
    %v3553 = vpop.f32.mrb[0].mxu0
    %v3554 = vadd.f32 0.0, %v3553
    %v3555 = vpop.f32.mrb[0].mxu0
    %3556 = vdwg.mxu0
    %v3557 = vld [vmem:[#allocation9 + $0x318] sm:$0xff]
    %v3558 = vld [vmem:[#allocation9 + $0x320] sm:$0xff]
    %v3559 = vld [vmem:[#allocation9 + $0x328] sm:$0xff]
    %v3560 = vld [vmem:[#allocation9 + $0x348] sm:$0xff]
    %v3561 = vld [vmem:[#allocation9 + $0x350] sm:$0xff]
    %v3562 = vld [vmem:[#allocation9 + $0x358] sm:$0xff]
    %v3563 = vld [vmem:[#allocation9 + $0x378] sm:$0xff]
    %v3564 = vld [vmem:[#allocation9 + $0x380] sm:$0xff]
    %v3565 = vld [vmem:[#allocation9 + $0x388] sm:$0xff]
    %v3566 = vld [vmem:[#allocation9 + $0x3a8] sm:$0xff]
    %v3567 = vld [vmem:[#allocation9 + $0x3b0] sm:$0xff]
    %v3568 = vld [vmem:[#allocation9 + $0x3b8] sm:$0xff]
    %v3569 = vld [vmem:[#allocation9 + $0x3d8] sm:$0xff]
    %v3570 = vld [vmem:[#allocation9 + $0x3e0] sm:$0xff]
    %v3571 = vld [vmem:[#allocation9 + $0x3e8] sm:$0xff]
    %v3572 = vld [vmem:[#allocation9 + $0x408] sm:$0xff]
    %v3573 = vld [vmem:[#allocation9 + $0x410] sm:$0xff]
    %v3574 = vld [vmem:[#allocation9 + $0x418] sm:$0xff]
    %v3575 = vld [vmem:[#allocation9 + $0x438] sm:$0xff]
    %v3576 = vld [vmem:[#allocation9 + $0x440] sm:$0xff]
    %v3577 = vld [vmem:[#allocation9 + $0x448] sm:$0xff]
    %v3578 = vld [vmem:[#allocation9 + $0x468] sm:$0xff]
    %v3579 = vld [vmem:[#allocation9 + $0x470] sm:$0xff]
    %v3580 = vld [vmem:[#allocation9 + $0x478] sm:$0xff]
    %v3581 = vld [vmem:[#allocation9 + $0x498] sm:$0xff]
    %v3582 = vld [vmem:[#allocation9 + $0x4a0] sm:$0xff]
    %v3583 = vld [vmem:[#allocation9 + $0x4a8] sm:$0xff]
    %v3584 = vld [vmem:[#allocation9 + $0x4c8] sm:$0xff]
    %v3585 = vld [vmem:[#allocation9 + $0x4d0] sm:$0xff]
    %v3586 = vld [vmem:[#allocation9 + $0x4d8] sm:$0xff]
    %v3587 = vld [vmem:[#allocation9 + $0x4f8] sm:$0xff]
    %v3588 = vld [vmem:[#allocation9 + $0x500] sm:$0xff]
    %v3589 = vld [vmem:[#allocation9 + $0x508] sm:$0xff]
    %v3590 = vld [vmem:[#allocation9 + $0x528] sm:$0xff]
    %v3591 = vld [vmem:[#allocation9 + $0x530] sm:$0xff]
    %v3592 = vld [vmem:[#allocation9 + $0x538] sm:$0xff]
    %v3593 = vld [vmem:[#allocation9 + $0x558] sm:$0xff]
    %v3594 = vld [vmem:[#allocation9 + $0x560] sm:$0xff]
    %v3595 = vld [vmem:[#allocation9 + $0x568] sm:$0xff]
    %v3596 = vld [vmem:[#allocation9 + $0x588] sm:$0xff]
    %v3597 = vld [vmem:[#allocation9 + $0x590] sm:$0xff]
    %v3598 = vld [vmem:[#allocation9 + $0x598] sm:$0xff]
    %v3599 = vld [vmem:[#allocation9 + $0x5b8] sm:$0xff]
    %v3600 = vld [vmem:[#allocation9 + $0x5c0] sm:$0xff]
    %v3601 = vld [vmem:[#allocation9 + $0x5c8] sm:$0xff]
    %v3602 = vld [vmem:[#allocation9 + $0x5e8] sm:$0xff]
    %v3603 = vld [vmem:[#allocation9 + $0x5f0] sm:$0xff]
    %v3604 = vld [vmem:[#allocation9 + $0x5f8] sm:$0xff]
    %3605 = vmatprep.subr.mxu0 %v3558
    %3606 = vmatpush1.msra.mxu0 %v3557
    %3607 = vmatprep.subr.mxu0 %v3561
    %3608 = vmatpush1.msra.mxu0 %v3560
    %3609 = vmatprep.subr.mxu0 %v3564
    %3610 = vmatpush1.msra.mxu0 %v3563
    %3611 = vmatprep.subr.mxu0 %v3567
    %3612 = vmatpush1.msra.mxu0 %v3566
    %3613 = vmatprep.subr.mxu0 %v3570
    %3614 = vmatpush1.msra.mxu0 %v3569
    %3615 = vmatprep.subr.mxu0 %v3573
    %3616 = vmatpush1.msra.mxu0 %v3572
    %3617 = vmatprep.subr.mxu0 %v3576
    %3618 = vmatpush1.msra.mxu0 %v3575
    %3619 = vmatprep.subr.mxu0 %v3579
    %3620 = vmatpush1.msra.mxu0 %v3578
    %3621 = vmatprep.subr.mxu0 %v3582
    %3622 = vmatpush1.msra.mxu0 %v3581
    %3623 = vmatprep.subr.mxu0 %v3585
    %3624 = vmatpush1.msra.mxu0 %v3584
    %3625 = vmatprep.subr.mxu0 %v3588
    %3626 = vmatpush1.msra.mxu0 %v3587
    %3627 = vmatprep.subr.mxu0 %v3591
    %3628 = vmatpush1.msra.mxu0 %v3590
    %3629 = vmatprep.subr.mxu0 %v3594
    %3630 = vmatpush1.msra.mxu0 %v3593
    %3631 = vmatprep.subr.mxu0 %v3597
    %3632 = vmatpush1.msra.mxu0 %v3596
    %3633 = vmatprep.subr.mxu0 %v3600
    %3634 = vmatpush1.msra.mxu0 %v3599
    %3635 = vmatprep.subr.mxu0 %v3603
    %3636 = vmatpush1.msra.mxu0 %v3602
    %3637 = vmatprep.subr.mxu0 0.0
    %3638 = vmatpush1.msra.mxu0 0.0
    %3639 = vmatprep.subr.mxu0 0.0
    %3640 = vmatpush1.msra.mxu0 0.0
    %3641 = vmatprep.subr.mxu0 0.0
    %3642 = vmatpush1.msra.mxu0 0.0
    %3643 = vmatprep.subr.mxu0 0.0
    %3644 = vmatpush1.msra.mxu0 0.0
    %3645 = vmatprep.subr.mxu0 0.0
    %3646 = vmatpush1.msra.mxu0 0.0
    %3647 = vmatprep.subr.mxu0 0.0
    %3648 = vmatpush1.msra.mxu0 0.0
    %3649 = vmatprep.subr.mxu0 0.0
    %3650 = vmatpush1.msra.mxu0 0.0
    %3651 = vmatprep.subr.mxu0 0.0
    %3652 = vmatpush1.msra.mxu0 0.0
    %3653 = vmatprep.subr.mxu0 0.0
    %3654 = vmatpush1.msra.mxu0 0.0
    %3655 = vmatprep.subr.mxu0 0.0
    %3656 = vmatpush1.msra.mxu0 0.0
    %3657 = vmatprep.subr.mxu0 0.0
    %3658 = vmatpush1.msra.mxu0 0.0
    %3659 = vmatprep.subr.mxu0 0.0
    %3660 = vmatpush1.msra.mxu0 0.0
    %3661 = vmatprep.subr.mxu0 0.0
    %3662 = vmatpush1.msra.mxu0 0.0
    %3663 = vmatprep.subr.mxu0 0.0
    %3664 = vmatpush1.msra.mxu0 0.0
    %3665 = vmatprep.subr.mxu0 0.0
    %3666 = vmatpush1.msra.mxu0 0.0
    %3667 = vmatprep.subr.mxu0 0.0
    %3668 = vmatpush1.msra.mxu0 0.0
    %3669 = vmatprep.mubr.f32.mxu0 0.0
    %3670 = vmatmul.mubr.f32.gmra.mrb[0].mxu0 %v3367
    %v3671 = vpop.f32.mrb[0].mxu0
    %v3672 = vadd.f32 0.0, %v3671
    %v3673 = vpop.f32.mrb[0].mxu0
    %v3674 = vadd.f32 0.0, %v3673
    %3675 = vdwg.mxu0
    %3676 = vmatprep.subr.mxu0 0.0
    %3677 = vmatpush1.msra.mxu0 %v3559
    %3678 = vmatprep.subr.mxu0 0.0
    %3679 = vmatpush1.msra.mxu0 %v3562
    %3680 = vmatprep.subr.mxu0 0.0
    %3681 = vmatpush1.msra.mxu0 %v3565
    %3682 = vmatprep.subr.mxu0 0.0
    %3683 = vmatpush1.msra.mxu0 %v3568
    %3684 = vmatprep.subr.mxu0 0.0
    %3685 = vmatpush1.msra.mxu0 %v3571
    %3686 = vmatprep.subr.mxu0 0.0
    %3687 = vmatpush1.msra.mxu0 %v3574
    %3688 = vmatprep.subr.mxu0 0.0
    %3689 = vmatpush1.msra.mxu0 %v3577
    %3690 = vmatprep.subr.mxu0 0.0
    %3691 = vmatpush1.msra.mxu0 %v3580
    %3692 = vmatprep.subr.mxu0 0.0
    %3693 = vmatpush1.msra.mxu0 %v3583
    %3694 = vmatprep.subr.mxu0 0.0
    %3695 = vmatpush1.msra.mxu0 %v3586
    %3696 = vmatprep.subr.mxu0 0.0
    %3697 = vmatpush1.msra.mxu0 %v3589
    %3698 = vmatprep.subr.mxu0 0.0
    %3699 = vmatpush1.msra.mxu0 %v3592
    %3700 = vmatprep.subr.mxu0 0.0
    %3701 = vmatpush1.msra.mxu0 %v3595
    %3702 = vmatprep.subr.mxu0 0.0
    %3703 = vmatpush1.msra.mxu0 %v3598
    %3704 = vmatprep.subr.mxu0 0.0
    %3705 = vmatpush1.msra.mxu0 %v3601
    %3706 = vmatprep.subr.mxu0 0.0
    %3707 = vmatpush1.msra.mxu0 %v3604
    %3708 = vmatprep.subr.mxu0 0.0
    %3709 = vmatpush1.msra.mxu0 0.0
    %3710 = vmatprep.subr.mxu0 0.0
    %3711 = vmatpush1.msra.mxu0 0.0
    %3712 = vmatprep.subr.mxu0 0.0
    %3713 = vmatpush1.msra.mxu0 0.0
    %3714 = vmatprep.subr.mxu0 0.0
    %3715 = vmatpush1.msra.mxu0 0.0
    %3716 = vmatprep.subr.mxu0 0.0
    %3717 = vmatpush1.msra.mxu0 0.0
    %3718 = vmatprep.subr.mxu0 0.0
    %3719 = vmatpush1.msra.mxu0 0.0
    %3720 = vmatprep.subr.mxu0 0.0
    %3721 = vmatpush1.msra.mxu0 0.0
    %3722 = vmatprep.subr.mxu0 0.0
    %3723 = vmatpush1.msra.mxu0 0.0
    %3724 = vmatprep.subr.mxu0 0.0
    %3725 = vmatpush1.msra.mxu0 0.0
    %3726 = vmatprep.subr.mxu0 0.0
    %3727 = vmatpush1.msra.mxu0 0.0
    %3728 = vmatprep.subr.mxu0 0.0
    %3729 = vmatpush1.msra.mxu0 0.0
    %3730 = vmatprep.subr.mxu0 0.0
    %3731 = vmatpush1.msra.mxu0 0.0
    %3732 = vmatprep.subr.mxu0 0.0
    %3733 = vmatpush1.msra.mxu0 0.0
    %3734 = vmatprep.subr.mxu0 0.0
    %3735 = vmatpush1.msra.mxu0 0.0
    %3736 = vmatprep.subr.mxu0 0.0
    %3737 = vmatpush1.msra.mxu0 0.0
    %3738 = vmatprep.subr.mxu0 0.0
    %3739 = vmatpush1.msra.mxu0 0.0
    %3740 = vmatprep.mubr.f32.mxu0 0.0
    %3741 = vmatmul.mubr.f32.gmra.mrb[0].mxu0 %v3367
    %v3742 = vpop.f32.mrb[0].mxu0
    %v3743 = vadd.f32 0.0, %v3742
    %v3744 = vpop.f32.mrb[0].mxu0
    %3745 = vdwg.mxu0
    %s3746 = smul.addr %s1569, 8
    %s3747 = scalar_lea.vmem [#allocation2], %s3746
    %v3748 = vld [vmem:[%s3747] sm:$0xff]
    %v3749 = vld [vmem:[%s3747 + $0x8] sm:$0xff]
    %v3750 = vld [vmem:[%s3747 + $0x10] sm:$0xff]
    %v3751 = vadd.f32 %v3748, %v3483
    %v3752 = vxor.u32 %v3751, 2147483648
    %v3753 = vmul.f32 %v3752, 1.442695
    %v3754 = vpow.pop %v3753
    %v3755 = vadd.f32 %v3754, 1.0
    %v3756 = vrcp.pop %v3755
    %v3757 = vmul.f32 1.0, %v3756
    %v3758 = vadd.f32 %v3749, %v3485
    %v3759 = vxor.u32 %v3758, 2147483648
    %v3760 = vmul.f32 %v3759, 1.442695
    %v3761 = vpow.pop %v3760
    %v3762 = vadd.f32 %v3761, 1.0
    %v3763 = vrcp.pop %v3762
    %v3764 = vmul.f32 1.0, %v3763
    %v3765 = vadd.f32 %v3554, %v709
    %v3766 = vmul.f32 %v3757, %v3765
    %v3767 = vadd.f32 %v3750, %v3766
    %v3768 = vtanh.pop %v3767
    %v3769 = vsub.f32 %v3366, %v3768
    %v3770 = vmul.f32 %v3764, %v3769
    %v3771 = vadd.f32 %v3768, %v3770
    %s3772 = smul.addr %s1542, 8
    %s3773 = scalar_lea.vmem [#allocation3], %s3772
    %v3774 = vld [vmem:[%s3773] sm:$0xff]
    %v3775 = vld [vmem:[%s3773 + $0x8] sm:$0xff]
    %v3776 = vld [vmem:[%s3773 + $0x10] sm:$0xff]
    %v3777 = vadd.f32 %v3774, %v3672
    %v3778 = vxor.u32 %v3777, 2147483648
    %v3779 = vmul.f32 %v3778, 1.442695
    %v3780 = vpow.pop %v3779
    %v3781 = vadd.f32 %v3780, 1.0
    %v3782 = vrcp.pop %v3781
    %v3783 = vmul.f32 1.0, %v3782
    %v3784 = vadd.f32 %v3775, %v3674
    %v3785 = vxor.u32 %v3784, 2147483648
    %v3786 = vmul.f32 %v3785, 1.442695
    %v3787 = vpow.pop %v3786
    %v3788 = vadd.f32 %v3787, 1.0
    %v3789 = vrcp.pop %v3788
    %v3790 = vmul.f32 1.0, %v3789
    %v3791 = vadd.f32 %v3743, %v716
    %v3792 = vmul.f32 %v3783, %v3791
    %v3793 = vadd.f32 %v3776, %v3792
    %v3794 = vtanh.pop %v3793
    %v3795 = vsub.f32 %v3367, %v3794
    %v3796 = vmul.f32 %v3790, %v3795
    %v3797 = vadd.f32 %v3794, %v3796
    %3798 = vst [vmem:[#allocation4] sm:$0xff] %v3771
    %3799 = vst [vmem:[#allocation4 + $0x8] sm:$0xff] %v3797
    %3800 = vst [vmem:[%s1604] sm:$0xff] %v3771
    %3801 = vst [vmem:[%s1600 + $0x8] sm:$0xff] %v3797
    %v3802 = vld [vmem:[#allocation4] sm:$0xff]
    %v3803 = vld [vmem:[#allocation4 + $0x8] sm:$0xff]
    %v3804 = vld [vmem:[#allocation9] sm:$0xff]
    %v3805 = vld [vmem:[#allocation9 + $0x8] sm:$0xff]
    %v3806 = vld [vmem:[#allocation9 + $0x10] sm:$0xff]
    %v3807 = vld [vmem:[#allocation9 + $0x30] sm:$0xff]
    %v3808 = vld [vmem:[#allocation9 + $0x38] sm:$0xff]
    %v3809 = vld [vmem:[#allocation9 + $0x40] sm:$0xff]
    %v3810 = vld [vmem:[#allocation9 + $0x60] sm:$0xff]
    %v3811 = vld [vmem:[#allocation9 + $0x68] sm:$0xff]
    %v3812 = vld [vmem:[#allocation9 + $0x70] sm:$0xff]
    %v3813 = vld [vmem:[#allocation9 + $0x90] sm:$0xff]
    %v3814 = vld [vmem:[#allocation9 + $0x98] sm:$0xff]
    %v3815 = vld [vmem:[#allocation9 + $0xa0] sm:$0xff]
    %v3816 = vld [vmem:[#allocation9 + $0xc0] sm:$0xff]
    %v3817 = vld [vmem:[#allocation9 + $0xc8] sm:$0xff]
    %v3818 = vld [vmem:[#allocation9 + $0xd0] sm:$0xff]
    %v3819 = vld [vmem:[#allocation9 + $0xf0] sm:$0xff]
    %v3820 = vld [vmem:[#allocation9 + $0xf8] sm:$0xff]
    %v3821 = vld [vmem:[#allocation9 + $0x100] sm:$0xff]
    %v3822 = vld [vmem:[#allocation9 + $0x120] sm:$0xff]
    %v3823 = vld [vmem:[#allocation9 + $0x128] sm:$0xff]
    %v3824 = vld [vmem:[#allocation9 + $0x130] sm:$0xff]
    %v3825 = vld [vmem:[#allocation9 + $0x150] sm:$0xff]
    %v3826 = vld [vmem:[#allocation9 + $0x158] sm:$0xff]
    %v3827 = vld [vmem:[#allocation9 + $0x160] sm:$0xff]
    %v3828 = vld [vmem:[#allocation9 + $0x180] sm:$0xff]
    %v3829 = vld [vmem:[#allocation9 + $0x188] sm:$0xff]
    %v3830 = vld [vmem:[#allocation9 + $0x190] sm:$0xff]
    %v3831 = vld [vmem:[#allocation9 + $0x1b0] sm:$0xff]
    %v3832 = vld [vmem:[#allocation9 + $0x1b8] sm:$0xff]
    %v3833 = vld [vmem:[#allocation9 + $0x1c0] sm:$0xff]
    %v3834 = vld [vmem:[#allocation9 + $0x1e0] sm:$0xff]
    %v3835 = vld [vmem:[#allocation9 + $0x1e8] sm:$0xff]
    %v3836 = vld [vmem:[#allocation9 + $0x1f0] sm:$0xff]
    %v3837 = vld [vmem:[#allocation9 + $0x210] sm:$0xff]
    %v3838 = vld [vmem:[#allocation9 + $0x218] sm:$0xff]
    %v3839 = vld [vmem:[#allocation9 + $0x220] sm:$0xff]
    %v3840 = vld [vmem:[#allocation9 + $0x240] sm:$0xff]
    %v3841 = vld [vmem:[#allocation9 + $0x248] sm:$0xff]
    %v3842 = vld [vmem:[#allocation9 + $0x250] sm:$0xff]
    %v3843 = vld [vmem:[#allocation9 + $0x270] sm:$0xff]
    %v3844 = vld [vmem:[#allocation9 + $0x278] sm:$0xff]
    %v3845 = vld [vmem:[#allocation9 + $0x280] sm:$0xff]
    %v3846 = vld [vmem:[#allocation9 + $0x2a0] sm:$0xff]
    %v3847 = vld [vmem:[#allocation9 + $0x2a8] sm:$0xff]
    %v3848 = vld [vmem:[#allocation9 + $0x2b0] sm:$0xff]
    %v3849 = vld [vmem:[#allocation9 + $0x2d0] sm:$0xff]
    %v3850 = vld [vmem:[#allocation9 + $0x2d8] sm:$0xff]
    %v3851 = vld [vmem:[#allocation9 + $0x2e0] sm:$0xff]
    %3852 = vmatprep.subr.mxu0 %v3805
    %3853 = vmatpush1.msra.mxu0 %v3804
    %3854 = vmatprep.subr.mxu0 %v3808
    %3855 = vmatpush1.msra.mxu0 %v3807
    %3856 = vmatprep.subr.mxu0 %v3811
    %3857 = vmatpush1.msra.mxu0 %v3810
    %3858 = vmatprep.subr.mxu0 %v3814
    %3859 = vmatpush1.msra.mxu0 %v3813
    %3860 = vmatprep.subr.mxu0 %v3817
    %3861 = vmatpush1.msra.mxu0 %v3816
    %3862 = vmatprep.subr.mxu0 %v3820
    %3863 = vmatpush1.msra.mxu0 %v3819
    %3864 = vmatprep.subr.mxu0 %v3823
    %3865 = vmatpush1.msra.mxu0 %v3822
    %3866 = vmatprep.subr.mxu0 %v3826
    %3867 = vmatpush1.msra.mxu0 %v3825
    %3868 = vmatprep.subr.mxu0 %v3829
    %3869 = vmatpush1.msra.mxu0 %v3828
    %3870 = vmatprep.subr.mxu0 %v3832
    %3871 = vmatpush1.msra.mxu0 %v3831
    %3872 = vmatprep.subr.mxu0 %v3835
    %3873 = vmatpush1.msra.mxu0 %v3834
    %3874 = vmatprep.subr.mxu0 %v3838
    %3875 = vmatpush1.msra.mxu0 %v3837
    %3876 = vmatprep.subr.mxu0 %v3841
    %3877 = vmatpush1.msra.mxu0 %v3840
    %3878 = vmatprep.subr.mxu0 %v3844
    %3879 = vmatpush1.msra.mxu0 %v3843
    %3880 = vmatprep.subr.mxu0 %v3847
    %3881 = vmatpush1.msra.mxu0 %v3846
    %3882 = vmatprep.subr.mxu0 %v3850
    %3883 = vmatpush1.msra.mxu0 %v3849
    %3884 = vmatprep.subr.mxu0 0.0
    %3885 = vmatpush1.msra.mxu0 0.0
    %3886 = vmatprep.subr.mxu0 0.0
    %3887 = vmatpush1.msra.mxu0 0.0
    %3888 = vmatprep.subr.mxu0 0.0
    %3889 = vmatpush1.msra.mxu0 0.0
    %3890 = vmatprep.subr.mxu0 0.0
    %3891 = vmatpush1.msra.mxu0 0.0
    %3892 = vmatprep.subr.mxu0 0.0
    %3893 = vmatpush1.msra.mxu0 0.0
    %3894 = vmatprep.subr.mxu0 0.0
    %3895 = vmatpush1.msra.mxu0 0.0
    %3896 = vmatprep.subr.mxu0 0.0
    %3897 = vmatpush1.msra.mxu0 0.0
    %3898 = vmatprep.subr.mxu0 0.0
    %3899 = vmatpush1.msra.mxu0 0.0
    %3900 = vmatprep.subr.mxu0 0.0
    %3901 = vmatpush1.msra.mxu0 0.0
    %3902 = vmatprep.subr.mxu0 0.0
    %3903 = vmatpush1.msra.mxu0 0.0
    %3904 = vmatprep.subr.mxu0 0.0
    %3905 = vmatpush1.msra.mxu0 0.0
    %3906 = vmatprep.subr.mxu0 0.0
    %3907 = vmatpush1.msra.mxu0 0.0
    %3908 = vmatprep.subr.mxu0 0.0
    %3909 = vmatpush1.msra.mxu0 0.0
    %3910 = vmatprep.subr.mxu0 0.0
    %3911 = vmatpush1.msra.mxu0 0.0
    %3912 = vmatprep.subr.mxu0 0.0
    %3913 = vmatpush1.msra.mxu0 0.0
    %3914 = vmatprep.subr.mxu0 0.0
    %3915 = vmatpush1.msra.mxu0 0.0
    %3916 = vmatprep.mubr.f32.mxu0 0.0
    %3917 = vmatmul.mubr.f32.gmra.mrb[0].mxu0 %v3802
    %v3918 = vpop.f32.mrb[0].mxu0
    %v3919 = vadd.f32 0.0, %v3918
    %v3920 = vpop.f32.mrb[0].mxu0
    %v3921 = vadd.f32 0.0, %v3920
    %3922 = vdwg.mxu0
    %3923 = vmatprep.subr.mxu0 0.0
    %3924 = vmatpush1.msra.mxu0 %v3806
    %3925 = vmatprep.subr.mxu0 0.0
    %3926 = vmatpush1.msra.mxu0 %v3809
    %3927 = vmatprep.subr.mxu0 0.0
    %3928 = vmatpush1.msra.mxu0 %v3812
    %3929 = vmatprep.subr.mxu0 0.0
    %3930 = vmatpush1.msra.mxu0 %v3815
    %3931 = vmatprep.subr.mxu0 0.0
    %3932 = vmatpush1.msra.mxu0 %v3818
    %3933 = vmatprep.subr.mxu0 0.0
    %3934 = vmatpush1.msra.mxu0 %v3821
    %3935 = vmatprep.subr.mxu0 0.0
    %3936 = vmatpush1.msra.mxu0 %v3824
    %3937 = vmatprep.subr.mxu0 0.0
    %3938 = vmatpush1.msra.mxu0 %v3827
    %3939 = vmatprep.subr.mxu0 0.0
    %3940 = vmatpush1.msra.mxu0 %v3830
    %3941 = vmatprep.subr.mxu0 0.0
    %3942 = vmatpush1.msra.mxu0 %v3833
    %3943 = vmatprep.subr.mxu0 0.0
    %3944 = vmatpush1.msra.mxu0 %v3836
    %3945 = vmatprep.subr.mxu0 0.0
    %3946 = vmatpush1.msra.mxu0 %v3839
    %3947 = vmatprep.subr.mxu0 0.0
    %3948 = vmatpush1.msra.mxu0 %v3842
    %3949 = vmatprep.subr.mxu0 0.0
    %3950 = vmatpush1.msra.mxu0 %v3845
    %3951 = vmatprep.subr.mxu0 0.0
    %3952 = vmatpush1.msra.mxu0 %v3848
    %3953 = vmatprep.subr.mxu0 0.0
    %3954 = vmatpush1.msra.mxu0 %v3851
    %3955 = vmatprep.subr.mxu0 0.0
    %3956 = vmatpush1.msra.mxu0 0.0
    %3957 = vmatprep.subr.mxu0 0.0
    %3958 = vmatpush1.msra.mxu0 0.0
    %3959 = vmatprep.subr.mxu0 0.0
    %3960 = vmatpush1.msra.mxu0 0.0
    %3961 = vmatprep.subr.mxu0 0.0
    %3962 = vmatpush1.msra.mxu0 0.0
    %3963 = vmatprep.subr.mxu0 0.0
    %3964 = vmatpush1.msra.mxu0 0.0
    %3965 = vmatprep.subr.mxu0 0.0
    %3966 = vmatpush1.msra.mxu0 0.0
    %3967 = vmatprep.subr.mxu0 0.0
    %3968 = vmatpush1.msra.mxu0 0.0
    %3969 = vmatprep.subr.mxu0 0.0
    %3970 = vmatpush1.msra.mxu0 0.0
    %3971 = vmatprep.subr.mxu0 0.0
    %3972 = vmatpush1.msra.mxu0 0.0
    %3973 = vmatprep.subr.mxu0 0.0
    %3974 = vmatpush1.msra.mxu0 0.0
    %3975 = vmatprep.subr.mxu0 0.0
    %3976 = vmatpush1.msra.mxu0 0.0
    %3977 = vmatprep.subr.mxu0 0.0
    %3978 = vmatpush1.msra.mxu0 0.0
    %3979 = vmatprep.subr.mxu0 0.0
    %3980 = vmatpush1.msra.mxu0 0.0
    %3981 = vmatprep.subr.mxu0 0.0
    %3982 = vmatpush1.msra.mxu0 0.0
    %3983 = vmatprep.subr.mxu0 0.0
    %3984 = vmatpush1.msra.mxu0 0.0
    %3985 = vmatprep.subr.mxu0 0.0
    %3986 = vmatpush1.msra.mxu0 0.0
    %3987 = vmatprep.mubr.f32.mxu0 0.0
    %3988 = vmatmul.mubr.f32.gmra.mrb[0].mxu0 %v3802
    %v3989 = vpop.f32.mrb[0].mxu0
    %v3990 = vadd.f32 0.0, %v3989
    %v3991 = vpop.f32.mrb[0].mxu0
    %3992 = vdwg.mxu0
    %v3993 = vld [vmem:[#allocation9 + $0x318] sm:$0xff]
    %v3994 = vld [vmem:[#allocation9 + $0x320] sm:$0xff]
    %v3995 = vld [vmem:[#allocation9 + $0x328] sm:$0xff]
    %v3996 = vld [vmem:[#allocation9 + $0x348] sm:$0xff]
    %v3997 = vld [vmem:[#allocation9 + $0x350] sm:$0xff]
    %v3998 = vld [vmem:[#allocation9 + $0x358] sm:$0xff]
    %v3999 = vld [vmem:[#allocation9 + $0x378] sm:$0xff]
    %v4000 = vld [vmem:[#allocation9 + $0x380] sm:$0xff]
    %v4001 = vld [vmem:[#allocation9 + $0x388] sm:$0xff]
    %v4002 = vld [vmem:[#allocation9 + $0x3a8] sm:$0xff]
    %v4003 = vld [vmem:[#allocation9 + $0x3b0] sm:$0xff]
    %v4004 = vld [vmem:[#allocation9 + $0x3b8] sm:$0xff]
    %v4005 = vld [vmem:[#allocation9 + $0x3d8] sm:$0xff]
    %v4006 = vld [vmem:[#allocation9 + $0x3e0] sm:$0xff]
    %v4007 = vld [vmem:[#allocation9 + $0x3e8] sm:$0xff]
    %v4008 = vld [vmem:[#allocation9 + $0x408] sm:$0xff]
    %v4009 = vld [vmem:[#allocation9 + $0x410] sm:$0xff]
    %v4010 = vld [vmem:[#allocation9 + $0x418] sm:$0xff]
    %v4011 = vld [vmem:[#allocation9 + $0x438] sm:$0xff]
    %v4012 = vld [vmem:[#allocation9 + $0x440] sm:$0xff]
    %v4013 = vld [vmem:[#allocation9 + $0x448] sm:$0xff]
    %v4014 = vld [vmem:[#allocation9 + $0x468] sm:$0xff]
    %v4015 = vld [vmem:[#allocation9 + $0x470] sm:$0xff]
    %v4016 = vld [vmem:[#allocation9 + $0x478] sm:$0xff]
    %v4017 = vld [vmem:[#allocation9 + $0x498] sm:$0xff]
    %v4018 = vld [vmem:[#allocation9 + $0x4a0] sm:$0xff]
    %v4019 = vld [vmem:[#allocation9 + $0x4a8] sm:$0xff]
    %v4020 = vld [vmem:[#allocation9 + $0x4c8] sm:$0xff]
    %v4021 = vld [vmem:[#allocation9 + $0x4d0] sm:$0xff]
    %v4022 = vld [vmem:[#allocation9 + $0x4d8] sm:$0xff]
    %v4023 = vld [vmem:[#allocation9 + $0x4f8] sm:$0xff]
    %v4024 = vld [vmem:[#allocation9 + $0x500] sm:$0xff]
    %v4025 = vld [vmem:[#allocation9 + $0x508] sm:$0xff]
    %v4026 = vld [vmem:[#allocation9 + $0x528] sm:$0xff]
    %v4027 = vld [vmem:[#allocation9 + $0x530] sm:$0xff]
    %v4028 = vld [vmem:[#allocation9 + $0x538] sm:$0xff]
    %v4029 = vld [vmem:[#allocation9 + $0x558] sm:$0xff]
    %v4030 = vld [vmem:[#allocation9 + $0x560] sm:$0xff]
    %v4031 = vld [vmem:[#allocation9 + $0x568] sm:$0xff]
    %v4032 = vld [vmem:[#allocation9 + $0x588] sm:$0xff]
    %v4033 = vld [vmem:[#allocation9 + $0x590] sm:$0xff]
    %v4034 = vld [vmem:[#allocation9 + $0x598] sm:$0xff]
    %v4035 = vld [vmem:[#allocation9 + $0x5b8] sm:$0xff]
    %v4036 = vld [vmem:[#allocation9 + $0x5c0] sm:$0xff]
    %v4037 = vld [vmem:[#allocation9 + $0x5c8] sm:$0xff]
    %v4038 = vld [vmem:[#allocation9 + $0x5e8] sm:$0xff]
    %v4039 = vld [vmem:[#allocation9 + $0x5f0] sm:$0xff]
    %v4040 = vld [vmem:[#allocation9 + $0x5f8] sm:$0xff]
    %4041 = vmatprep.subr.mxu0 %v3994
    %4042 = vmatpush1.msra.mxu0 %v3993
    %4043 = vmatprep.subr.mxu0 %v3997
    %4044 = vmatpush1.msra.mxu0 %v3996
    %4045 = vmatprep.subr.mxu0 %v4000
    %4046 = vmatpush1.msra.mxu0 %v3999
    %4047 = vmatprep.subr.mxu0 %v4003
    %4048 = vmatpush1.msra.mxu0 %v4002
    %4049 = vmatprep.subr.mxu0 %v4006
    %4050 = vmatpush1.msra.mxu0 %v4005
    %4051 = vmatprep.subr.mxu0 %v4009
    %4052 = vmatpush1.msra.mxu0 %v4008
    %4053 = vmatprep.subr.mxu0 %v4012
    %4054 = vmatpush1.msra.mxu0 %v4011
    %4055 = vmatprep.subr.mxu0 %v4015
    %4056 = vmatpush1.msra.mxu0 %v4014
    %4057 = vmatprep.subr.mxu0 %v4018
    %4058 = vmatpush1.msra.mxu0 %v4017
    %4059 = vmatprep.subr.mxu0 %v4021
    %4060 = vmatpush1.msra.mxu0 %v4020
    %4061 = vmatprep.subr.mxu0 %v4024
    %4062 = vmatpush1.msra.mxu0 %v4023
    %4063 = vmatprep.subr.mxu0 %v4027
    %4064 = vmatpush1.msra.mxu0 %v4026
    %4065 = vmatprep.subr.mxu0 %v4030
    %4066 = vmatpush1.msra.mxu0 %v4029
    %4067 = vmatprep.subr.mxu0 %v4033
    %4068 = vmatpush1.msra.mxu0 %v4032
    %4069 = vmatprep.subr.mxu0 %v4036
    %4070 = vmatpush1.msra.mxu0 %v4035
    %4071 = vmatprep.subr.mxu0 %v4039
    %4072 = vmatpush1.msra.mxu0 %v4038
    %4073 = vmatprep.subr.mxu0 0.0
    %4074 = vmatpush1.msra.mxu0 0.0
    %4075 = vmatprep.subr.mxu0 0.0
    %4076 = vmatpush1.msra.mxu0 0.0
    %4077 = vmatprep.subr.mxu0 0.0
    %4078 = vmatpush1.msra.mxu0 0.0
    %4079 = vmatprep.subr.mxu0 0.0
    %4080 = vmatpush1.msra.mxu0 0.0
    %4081 = vmatprep.subr.mxu0 0.0
    %4082 = vmatpush1.msra.mxu0 0.0
    %4083 = vmatprep.subr.mxu0 0.0
    %4084 = vmatpush1.msra.mxu0 0.0
    %4085 = vmatprep.subr.mxu0 0.0
    %4086 = vmatpush1.msra.mxu0 0.0
    %4087 = vmatprep.subr.mxu0 0.0
    %4088 = vmatpush1.msra.mxu0 0.0
    %4089 = vmatprep.subr.mxu0 0.0
    %4090 = vmatpush1.msra.mxu0 0.0
    %4091 = vmatprep.subr.mxu0 0.0
    %4092 = vmatpush1.msra.mxu0 0.0
    %4093 = vmatprep.subr.mxu0 0.0
    %4094 = vmatpush1.msra.mxu0 0.0
    %4095 = vmatprep.subr.mxu0 0.0
    %4096 = vmatpush1.msra.mxu0 0.0
    %4097 = vmatprep.subr.mxu0 0.0
    %4098 = vmatpush1.msra.mxu0 0.0
    %4099 = vmatprep.subr.mxu0 0.0
    %4100 = vmatpush1.msra.mxu0 0.0
    %4101 = vmatprep.subr.mxu0 0.0
    %4102 = vmatpush1.msra.mxu0 0.0
    %4103 = vmatprep.subr.mxu0 0.0
    %4104 = vmatpush1.msra.mxu0 0.0
    %4105 = vmatprep.mubr.f32.mxu0 0.0
    %4106 = vmatmul.mubr.f32.gmra.mrb[0].mxu0 %v3803
    %v4107 = vpop.f32.mrb[0].mxu0
    %v4108 = vadd.f32 0.0, %v4107
    %v4109 = vpop.f32.mrb[0].mxu0
    %v4110 = vadd.f32 0.0, %v4109
    %4111 = vdwg.mxu0
    %4112 = vmatprep.subr.mxu0 0.0
    %4113 = vmatpush1.msra.mxu0 %v3995
    %4114 = vmatprep.subr.mxu0 0.0
    %4115 = vmatpush1.msra.mxu0 %v3998
    %4116 = vmatprep.subr.mxu0 0.0
    %4117 = vmatpush1.msra.mxu0 %v4001
    %4118 = vmatprep.subr.mxu0 0.0
    %4119 = vmatpush1.msra.mxu0 %v4004
    %4120 = vmatprep.subr.mxu0 0.0
    %4121 = vmatpush1.msra.mxu0 %v4007
    %4122 = vmatprep.subr.mxu0 0.0
    %4123 = vmatpush1.msra.mxu0 %v4010
    %4124 = vmatprep.subr.mxu0 0.0
    %4125 = vmatpush1.msra.mxu0 %v4013
    %4126 = vmatprep.subr.mxu0 0.0
    %4127 = vmatpush1.msra.mxu0 %v4016
    %4128 = vmatprep.subr.mxu0 0.0
    %4129 = vmatpush1.msra.mxu0 %v4019
    %4130 = vmatprep.subr.mxu0 0.0
    %4131 = vmatpush1.msra.mxu0 %v4022
    %4132 = vmatprep.subr.mxu0 0.0
    %4133 = vmatpush1.msra.mxu0 %v4025
    %4134 = vmatprep.subr.mxu0 0.0
    %4135 = vmatpush1.msra.mxu0 %v4028
    %4136 = vmatprep.subr.mxu0 0.0
    %4137 = vmatpush1.msra.mxu0 %v4031
    %4138 = vmatprep.subr.mxu0 0.0
    %4139 = vmatpush1.msra.mxu0 %v4034
    %4140 = vmatprep.subr.mxu0 0.0
    %4141 = vmatpush1.msra.mxu0 %v4037
    %4142 = vmatprep.subr.mxu0 0.0
    %4143 = vmatpush1.msra.mxu0 %v4040
    %4144 = vmatprep.subr.mxu0 0.0
    %4145 = vmatpush1.msra.mxu0 0.0
    %4146 = vmatprep.subr.mxu0 0.0
    %4147 = vmatpush1.msra.mxu0 0.0
    %4148 = vmatprep.subr.mxu0 0.0
    %4149 = vmatpush1.msra.mxu0 0.0
    %4150 = vmatprep.subr.mxu0 0.0
    %4151 = vmatpush1.msra.mxu0 0.0
    %4152 = vmatprep.subr.mxu0 0.0
    %4153 = vmatpush1.msra.mxu0 0.0
    %4154 = vmatprep.subr.mxu0 0.0
    %4155 = vmatpush1.msra.mxu0 0.0
    %4156 = vmatprep.subr.mxu0 0.0
    %4157 = vmatpush1.msra.mxu0 0.0
    %4158 = vmatprep.subr.mxu0 0.0
    %4159 = vmatpush1.msra.mxu0 0.0
    %4160 = vmatprep.subr.mxu0 0.0
    %4161 = vmatpush1.msra.mxu0 0.0
    %4162 = vmatprep.subr.mxu0 0.0
    %4163 = vmatpush1.msra.mxu0 0.0
    %4164 = vmatprep.subr.mxu0 0.0
    %4165 = vmatpush1.msra.mxu0 0.0
    %4166 = vmatprep.subr.mxu0 0.0
    %4167 = vmatpush1.msra.mxu0 0.0
    %4168 = vmatprep.subr.mxu0 0.0
    %4169 = vmatpush1.msra.mxu0 0.0
    %4170 = vmatprep.subr.mxu0 0.0
    %4171 = vmatpush1.msra.mxu0 0.0
    %4172 = vmatprep.subr.mxu0 0.0
    %4173 = vmatpush1.msra.mxu0 0.0
    %4174 = vmatprep.subr.mxu0 0.0
    %4175 = vmatpush1.msra.mxu0 0.0
    %4176 = vmatprep.mubr.f32.mxu0 0.0
    %4177 = vmatmul.mubr.f32.gmra.mrb[0].mxu0 %v3803
    %v4178 = vpop.f32.mrb[0].mxu0
    %v4179 = vadd.f32 0.0, %v4178
    %v4180 = vpop.f32.mrb[0].mxu0
    %4181 = vdwg.mxu0
    %s4182 = smul.addr %s1125, 8
    %s4183 = scalar_lea.vmem [#allocation2], %s4182
    %v4184 = vld [vmem:[%s4183] sm:$0xff]
    %v4185 = vld [vmem:[%s4183 + $0x8] sm:$0xff]
    %v4186 = vld [vmem:[%s4183 + $0x10] sm:$0xff]
    %v4187 = vadd.f32 %v4184, %v3919
    %v4188 = vxor.u32 %v4187, 2147483648
    %v4189 = vmul.f32 %v4188, 1.442695
    %v4190 = vpow.pop %v4189
    %v4191 = vadd.f32 %v4190, 1.0
    %v4192 = vrcp.pop %v4191
    %v4193 = vmul.f32 1.0, %v4192
    %v4194 = vadd.f32 %v4185, %v3921
    %v4195 = vxor.u32 %v4194, 2147483648
    %v4196 = vmul.f32 %v4195, 1.442695
    %v4197 = vpow.pop %v4196
    %v4198 = vadd.f32 %v4197, 1.0
    %v4199 = vrcp.pop %v4198
    %v4200 = vmul.f32 1.0, %v4199
    %v4201 = vadd.f32 %v3990, %v709
    %v4202 = vmul.f32 %v4193, %v4201
    %v4203 = vadd.f32 %v4186, %v4202
    %v4204 = vtanh.pop %v4203
    %v4205 = vsub.f32 %v3802, %v4204
    %v4206 = vmul.f32 %v4200, %v4205
    %v4207 = vadd.f32 %v4204, %v4206
    %s4208 = smul.addr %s1098, 8
    %s4209 = scalar_lea.vmem [#allocation3], %s4208
    %v4210 = vld [vmem:[%s4209] sm:$0xff]
    %v4211 = vld [vmem:[%s4209 + $0x8] sm:$0xff]
    %v4212 = vld [vmem:[%s4209 + $0x10] sm:$0xff]
    %v4213 = vadd.f32 %v4210, %v4108
    %v4214 = vxor.u32 %v4213, 2147483648
    %v4215 = vmul.f32 %v4214, 1.442695
    %v4216 = vpow.pop %v4215
    %v4217 = vadd.f32 %v4216, 1.0
    %v4218 = vrcp.pop %v4217
    %v4219 = vmul.f32 1.0, %v4218
    %v4220 = vadd.f32 %v4211, %v4110
    %v4221 = vxor.u32 %v4220, 2147483648
    %v4222 = vmul.f32 %v4221, 1.442695
    %v4223 = vpow.pop %v4222
    %v4224 = vadd.f32 %v4223, 1.0
    %v4225 = vrcp.pop %v4224
    %v4226 = vmul.f32 1.0, %v4225
    %v4227 = vadd.f32 %v4179, %v716
    %v4228 = vmul.f32 %v4219, %v4227
    %v4229 = vadd.f32 %v4212, %v4228
    %v4230 = vtanh.pop %v4229
    %v4231 = vsub.f32 %v3803, %v4230
    %v4232 = vmul.f32 %v4226, %v4231
    %v4233 = vadd.f32 %v4230, %v4232
    %4234 = vst [vmem:[#allocation4] sm:$0xff] %v4207
    %4235 = vst [vmem:[#allocation4 + $0x8] sm:$0xff] %v4233
    %4236 = vst [vmem:[%s1160] sm:$0xff] %v4207
    %4237 = vst [vmem:[%s1156 + $0x8] sm:$0xff] %v4233
    %v4238 = vld [vmem:[#allocation5] sm:$0xff]
    %v4239 = vld [vmem:[#allocation5 + $0x8] sm:$0xff]
    %v4240 = vld [vmem:[#allocation5 + $0x10] sm:$0xff]
    %v4241 = vld [vmem:[#allocation5 + $0x18] sm:$0xff]
    %v4242 = vld [vmem:[#allocation5 + $0x20] sm:$0xff]
    %v4243 = vld [vmem:[#allocation5 + $0x28] sm:$0xff]
    %v4244 = vld [vmem:[#allocation5 + $0x30] sm:$0xff]
    %v4245 = vld [vmem:[#allocation5 + $0x38] sm:$0xff]
    %v4246 = vld [vmem:[#allocation5 + $0x40] sm:$0xff]
    %v4247 = vld [vmem:[#allocation5 + $0x48] sm:$0xff]
    %v4248 = vld [vmem:[#allocation5 + $0x50] sm:$0xff]
    %v4249 = vld [vmem:[#allocation5 + $0x58] sm:$0xff]
    %v4250 = vld [vmem:[#allocation5 + $0x60] sm:$0xff]
    %v4251 = vld [vmem:[#allocation5 + $0x68] sm:$0xff]
    %v4252 = vld [vmem:[#allocation5 + $0x70] sm:$0xff]
    %v4253 = vld [vmem:[#allocation5 + $0x78] sm:$0xff]
    %v4254 = vld [vmem:[#allocation11] sm:$0xff]
    %v4255 = vld [vmem:[#allocation11 + $0x8] sm:$0xff]
    %v4256 = vld [vmem:[#allocation11 + $0x10] sm:$0xff]
    %v4257 = vld [vmem:[#allocation11 + $0x18] sm:$0xff]
    %v4258 = vld [vmem:[#allocation11 + $0x20] sm:$0xff]
    %v4259 = vld [vmem:[#allocation11 + $0x28] sm:$0xff]
    %v4260 = vld [vmem:[#allocation11 + $0x30] sm:$0xff]
    %v4261 = vld [vmem:[#allocation11 + $0x38] sm:$0xff]
    %v4262 = vld [vmem:[#allocation11 + $0x40] sm:$0xff]
    %v4263 = vld [vmem:[#allocation11 + $0x48] sm:$0xff]
    %v4264 = vld [vmem:[#allocation11 + $0x50] sm:$0xff]
    %v4265 = vld [vmem:[#allocation11 + $0x58] sm:$0xff]
    %v4266 = vld [vmem:[#allocation11 + $0x60] sm:$0xff]
    %v4267 = vld [vmem:[#allocation11 + $0x68] sm:$0xff]
    %v4268 = vld [vmem:[#allocation11 + $0x70] sm:$0xff]
    %v4269 = vld [vmem:[#allocation11 + $0x78] sm:$0xff]
    %v4270 = vld [vmem:[#allocation11 + $0x80] sm:$0xff]
    %v4271 = vld [vmem:[#allocation11 + $0x88] sm:$0xff]
    %v4272 = vld [vmem:[#allocation11 + $0x90] sm:$0xff]
    %v4273 = vld [vmem:[#allocation11 + $0x98] sm:$0xff]
    %v4274 = vld [vmem:[#allocation11 + $0xa0] sm:$0xff]
    %v4275 = vld [vmem:[#allocation11 + $0xa8] sm:$0xff]
    %v4276 = vld [vmem:[#allocation11 + $0xb0] sm:$0xff]
    %v4277 = vld [vmem:[#allocation11 + $0xb8] sm:$0xff]
    %v4278 = vld [vmem:[#allocation11 + $0xc0] sm:$0xff]
    %v4279 = vld [vmem:[#allocation11 + $0xc8] sm:$0xff]
    %v4280 = vld [vmem:[#allocation11 + $0xd0] sm:$0xff]
    %v4281 = vld [vmem:[#allocation11 + $0xd8] sm:$0xff]
    %v4282 = vld [vmem:[#allocation11 + $0xe0] sm:$0xff]
    %v4283 = vld [vmem:[#allocation11 + $0xe8] sm:$0xff]
    %v4284 = vld [vmem:[#allocation11 + $0xf0] sm:$0xff]
    %v4285 = vld [vmem:[#allocation11 + $0xf8] sm:$0xff]
    %v4286 = vld [vmem:[#allocation11 + $0x100] sm:$0xff]
    %v4287 = vld [vmem:[#allocation11 + $0x108] sm:$0xff]
    %v4288 = vld [vmem:[#allocation11 + $0x110] sm:$0xff]
    %v4289 = vld [vmem:[#allocation11 + $0x118] sm:$0xff]
    %v4290 = vld [vmem:[#allocation11 + $0x120] sm:$0xff]
    %v4291 = vld [vmem:[#allocation11 + $0x128] sm:$0xff]
    %v4292 = vld [vmem:[#allocation11 + $0x130] sm:$0xff]
    %v4293 = vld [vmem:[#allocation11 + $0x138] sm:$0xff]
    %v4294 = vld [vmem:[#allocation11 + $0x140] sm:$0xff]
    %v4295 = vld [vmem:[#allocation11 + $0x148] sm:$0xff]
    %v4296 = vld [vmem:[#allocation11 + $0x150] sm:$0xff]
    %v4297 = vld [vmem:[#allocation11 + $0x158] sm:$0xff]
    %v4298 = vld [vmem:[#allocation11 + $0x160] sm:$0xff]
    %v4299 = vld [vmem:[#allocation11 + $0x168] sm:$0xff]
    %v4300 = vld [vmem:[#allocation11 + $0x170] sm:$0xff]
    %v4301 = vld [vmem:[#allocation11 + $0x178] sm:$0xff]
    %v4302 = vld [vmem:[#allocation11 + $0x180] sm:$0xff]
    %v4303 = vld [vmem:[#allocation11 + $0x188] sm:$0xff]
    %v4304 = vld [vmem:[#allocation11 + $0x190] sm:$0xff]
    %v4305 = vld [vmem:[#allocation11 + $0x198] sm:$0xff]
    %v4306 = vld [vmem:[#allocation11 + $0x1a0] sm:$0xff]
    %v4307 = vld [vmem:[#allocation11 + $0x1a8] sm:$0xff]
    %v4308 = vld [vmem:[#allocation11 + $0x1b0] sm:$0xff]
    %v4309 = vld [vmem:[#allocation11 + $0x1b8] sm:$0xff]
    %v4310 = vld [vmem:[#allocation11 + $0x1c0] sm:$0xff]
    %v4311 = vld [vmem:[#allocation11 + $0x1c8] sm:$0xff]
    %v4312 = vld [vmem:[#allocation11 + $0x1d0] sm:$0xff]
    %v4313 = vld [vmem:[#allocation11 + $0x1d8] sm:$0xff]
    %v4314 = vld [vmem:[#allocation11 + $0x1e0] sm:$0xff]
    %v4315 = vld [vmem:[#allocation11 + $0x1e8] sm:$0xff]
    %v4316 = vld [vmem:[#allocation11 + $0x1f0] sm:$0xff]
    %v4317 = vld [vmem:[#allocation11 + $0x1f8] sm:$0xff]
    %v4318 = vld [vmem:[#allocation11 + $0x200] sm:$0xff]
    %v4319 = vld [vmem:[#allocation11 + $0x208] sm:$0xff]
    %v4320 = vld [vmem:[#allocation11 + $0x210] sm:$0xff]
    %v4321 = vld [vmem:[#allocation11 + $0x218] sm:$0xff]
    %v4322 = vld [vmem:[#allocation11 + $0x220] sm:$0xff]
    %v4323 = vld [vmem:[#allocation11 + $0x228] sm:$0xff]
    %v4324 = vld [vmem:[#allocation11 + $0x230] sm:$0xff]
    %v4325 = vld [vmem:[#allocation11 + $0x238] sm:$0xff]
    %v4326 = vld [vmem:[#allocation11 + $0x240] sm:$0xff]
    %v4327 = vld [vmem:[#allocation11 + $0x248] sm:$0xff]
    %v4328 = vld [vmem:[#allocation11 + $0x250] sm:$0xff]
    %v4329 = vld [vmem:[#allocation11 + $0x258] sm:$0xff]
    %v4330 = vld [vmem:[#allocation11 + $0x260] sm:$0xff]
    %v4331 = vld [vmem:[#allocation11 + $0x268] sm:$0xff]
    %v4332 = vld [vmem:[#allocation11 + $0x270] sm:$0xff]
    %v4333 = vld [vmem:[#allocation11 + $0x278] sm:$0xff]
    %v4334 = vld [vmem:[#allocation11 + $0x280] sm:$0xff]
    %v4335 = vld [vmem:[#allocation11 + $0x288] sm:$0xff]
    %v4336 = vld [vmem:[#allocation11 + $0x290] sm:$0xff]
    %v4337 = vld [vmem:[#allocation11 + $0x298] sm:$0xff]
    %v4338 = vld [vmem:[#allocation11 + $0x2a0] sm:$0xff]
    %v4339 = vld [vmem:[#allocation11 + $0x2a8] sm:$0xff]
    %v4340 = vld [vmem:[#allocation11 + $0x2b0] sm:$0xff]
    %v4341 = vld [vmem:[#allocation11 + $0x2b8] sm:$0xff]
    %v4342 = vld [vmem:[#allocation11 + $0x2c0] sm:$0xff]
    %v4343 = vld [vmem:[#allocation11 + $0x2c8] sm:$0xff]
    %v4344 = vld [vmem:[#allocation11 + $0x2d0] sm:$0xff]
    %v4345 = vld [vmem:[#allocation11 + $0x2d8] sm:$0xff]
    %v4346 = vld [vmem:[#allocation11 + $0x2e0] sm:$0xff]
    %v4347 = vld [vmem:[#allocation11 + $0x2e8] sm:$0xff]
    %v4348 = vld [vmem:[#allocation11 + $0x2f0] sm:$0xff]
    %v4349 = vld [vmem:[#allocation11 + $0x2f8] sm:$0xff]
    %v4350 = vld [vmem:[%s11] sm:$0x7]
    %v4352 = vlaneseq
    %v4353 = vshrl.u32 %v4352, 7
    %v4354 = vsub.s32 0, %v4353
    %v4355 = vrot.slane %v4350, %v4354
    %v4356 = vlaneseq
    %v4357 = vshrl.u32 %v4356, 7
    %v4358 = vsub.s32 1, %v4357
    %v4359 = vrot.slane %v4350, %v4358
    %v4360 = vlaneseq
    %v4361 = vshrl.u32 %v4360, 7
    %v4362 = vsub.s32 2, %v4361
    %v4363 = vrot.slane %v4350, %v4362
    %4367 = vmatprep.subr.mxu0 %v4255
    %4368 = vmatpush1.msra.mxu0 %v4254
    %4369 = vmatprep.subr.mxu0 %v4258
    %4370 = vmatpush1.msra.mxu0 %v4257
    %4371 = vmatprep.subr.mxu0 %v4261
    %4372 = vmatpush1.msra.mxu0 %v4260
    %4373 = vmatprep.subr.mxu0 %v4264
    %4374 = vmatpush1.msra.mxu0 %v4263
    %4375 = vmatprep.subr.mxu0 %v4267
    %4376 = vmatpush1.msra.mxu0 %v4266
    %4377 = vmatprep.subr.mxu0 %v4270
    %4378 = vmatpush1.msra.mxu0 %v4269
    %4379 = vmatprep.subr.mxu0 %v4273
    %4380 = vmatpush1.msra.mxu0 %v4272
    %4381 = vmatprep.subr.mxu0 %v4276
    %4382 = vmatpush1.msra.mxu0 %v4275
    %4383 = vmatprep.subr.mxu0 %v4279
    %4384 = vmatpush1.msra.mxu0 %v4278
    %4385 = vmatprep.subr.mxu0 %v4282
    %4386 = vmatpush1.msra.mxu0 %v4281
    %4387 = vmatprep.subr.mxu0 %v4285
    %4388 = vmatpush1.msra.mxu0 %v4284
    %4389 = vmatprep.subr.mxu0 %v4288
    %4390 = vmatpush1.msra.mxu0 %v4287
    %4391 = vmatprep.subr.mxu0 %v4291
    %4392 = vmatpush1.msra.mxu0 %v4290
    %4393 = vmatprep.subr.mxu0 %v4294
    %4394 = vmatpush1.msra.mxu0 %v4293
    %4395 = vmatprep.subr.mxu0 %v4297
    %4396 = vmatpush1.msra.mxu0 %v4296
    %4397 = vmatprep.subr.mxu0 %v4300
    %4398 = vmatpush1.msra.mxu0 %v4299
    %4399 = vmatprep.subr.mxu0 %v4303
    %4400 = vmatpush1.msra.mxu0 %v4302
    %4401 = vmatprep.subr.mxu0 %v4306
    %4402 = vmatpush1.msra.mxu0 %v4305
    %4403 = vmatprep.subr.mxu0 %v4309
    %4404 = vmatpush1.msra.mxu0 %v4308
    %4405 = vmatprep.subr.mxu0 %v4312
    %4406 = vmatpush1.msra.mxu0 %v4311
    %4407 = vmatprep.subr.mxu0 %v4315
    %4408 = vmatpush1.msra.mxu0 %v4314
    %4409 = vmatprep.subr.mxu0 %v4318
    %4410 = vmatpush1.msra.mxu0 %v4317
    %4411 = vmatprep.subr.mxu0 %v4321
    %4412 = vmatpush1.msra.mxu0 %v4320
    %4413 = vmatprep.subr.mxu0 %v4324
    %4414 = vmatpush1.msra.mxu0 %v4323
    %4415 = vmatprep.subr.mxu0 %v4327
    %4416 = vmatpush1.msra.mxu0 %v4326
    %4417 = vmatprep.subr.mxu0 %v4330
    %4418 = vmatpush1.msra.mxu0 %v4329
    %4419 = vmatprep.subr.mxu0 %v4333
    %4420 = vmatpush1.msra.mxu0 %v4332
    %4421 = vmatprep.subr.mxu0 %v4336
    %4422 = vmatpush1.msra.mxu0 %v4335
    %4423 = vmatprep.subr.mxu0 %v4339
    %4424 = vmatpush1.msra.mxu0 %v4338
    %4425 = vmatprep.subr.mxu0 %v4342
    %4426 = vmatpush1.msra.mxu0 %v4341
    %4427 = vmatprep.subr.mxu0 %v4345
    %4428 = vmatpush1.msra.mxu0 %v4344
    %4429 = vmatprep.subr.mxu0 %v4348
    %4430 = vmatpush1.msra.mxu0 %v4347
    %4431 = vmatprep.mubr.f32.mxu0 %v4239
    %4432 = vmatmul.mubr.f32.gmra.mrb[0].mxu0 %v4238
    %v4433 = vpop.f32.mrb[0].mxu0
    %v4434 = vadd.f32 %v4355, %v4433
    %v4435 = vpop.f32.mrb[0].mxu0
    %v4436 = vadd.f32 %v4359, %v4435
    %4437 = vmatprep.mubr.f32.mxu0 %v4241
    %4438 = vmatmul.mubr.f32.gmra.mrb[0].mxu0 %v4240
    %v4439 = vpop.f32.mrb[0].mxu0
    %v4440 = vadd.f32 %v4355, %v4439
    %v4441 = vpop.f32.mrb[0].mxu0
    %v4442 = vadd.f32 %v4359, %v4441
    %4443 = vmatprep.mubr.f32.mxu0 %v4243
    %4444 = vmatmul.mubr.f32.gmra.mrb[0].mxu0 %v4242
    %v4445 = vpop.f32.mrb[0].mxu0
    %v4446 = vadd.f32 %v4355, %v4445
    %v4447 = vpop.f32.mrb[0].mxu0
    %v4448 = vadd.f32 %v4359, %v4447
    %4449 = vmatprep.mubr.f32.mxu0 %v4245
    %4450 = vmatmul.mubr.f32.gmra.mrb[0].mxu0 %v4244
    %v4451 = vpop.f32.mrb[0].mxu0
    %v4452 = vadd.f32 %v4355, %v4451
    %v4453 = vpop.f32.mrb[0].mxu0
    %v4454 = vadd.f32 %v4359, %v4453
    %4455 = vmatprep.mubr.f32.mxu0 %v4247
    %4456 = vmatmul.mubr.f32.gmra.mrb[0].mxu0 %v4246
    %v4457 = vpop.f32.mrb[0].mxu0
    %v4458 = vadd.f32 %v4355, %v4457
    %v4459 = vpop.f32.mrb[0].mxu0
    %v4460 = vadd.f32 %v4359, %v4459
    %4461 = vmatprep.mubr.f32.mxu0 %v4249
    %4462 = vmatmul.mubr.f32.gmra.mrb[0].mxu0 %v4248
    %v4463 = vpop.f32.mrb[0].mxu0
    %v4464 = vadd.f32 %v4355, %v4463
    %v4465 = vpop.f32.mrb[0].mxu0
    %v4466 = vadd.f32 %v4359, %v4465
    %4467 = vmatprep.mubr.f32.mxu0 %v4251
    %4468 = vmatmul.mubr.f32.gmra.mrb[0].mxu0 %v4250
    %v4469 = vpop.f32.mrb[0].mxu0
    %v4470 = vadd.f32 %v4355, %v4469
    %v4471 = vpop.f32.mrb[0].mxu0
    %v4472 = vadd.f32 %v4359, %v4471
    %4473 = vmatprep.mubr.f32.mxu0 %v4253
    %4474 = vmatmul.mubr.f32.gmra.mrb[0].mxu0 %v4252
    %v4475 = vpop.f32.mrb[0].mxu0
    %v4476 = vadd.f32 %v4355, %v4475
    %v4477 = vpop.f32.mrb[0].mxu0
    %v4478 = vadd.f32 %v4359, %v4477
    %4479 = vdwg.mxu0
    %4480 = vmatprep.subr.mxu0 0.0
    %4481 = vmatpush1.msra.mxu0 %v4256
    %4482 = vmatprep.subr.mxu0 0.0
    %4483 = vmatpush1.msra.mxu0 %v4259
    %4484 = vmatprep.subr.mxu0 0.0
    %4485 = vmatpush1.msra.mxu0 %v4262
    %4486 = vmatprep.subr.mxu0 0.0
    %4487 = vmatpush1.msra.mxu0 %v4265
    %4488 = vmatprep.subr.mxu0 0.0
    %4489 = vmatpush1.msra.mxu0 %v4268
    %4490 = vmatprep.subr.mxu0 0.0
    %4491 = vmatpush1.msra.mxu0 %v4271
    %4492 = vmatprep.subr.mxu0 0.0
    %4493 = vmatpush1.msra.mxu0 %v4274
    %4494 = vmatprep.subr.mxu0 0.0
    %4495 = vmatpush1.msra.mxu0 %v4277
    %4496 = vmatprep.subr.mxu0 0.0
    %4497 = vmatpush1.msra.mxu0 %v4280
    %4498 = vmatprep.subr.mxu0 0.0
    %4499 = vmatpush1.msra.mxu0 %v4283
    %4500 = vmatprep.subr.mxu0 0.0
    %4501 = vmatpush1.msra.mxu0 %v4286
    %4502 = vmatprep.subr.mxu0 0.0
    %4503 = vmatpush1.msra.mxu0 %v4289
    %4504 = vmatprep.subr.mxu0 0.0
    %4505 = vmatpush1.msra.mxu0 %v4292
    %4506 = vmatprep.subr.mxu0 0.0
    %4507 = vmatpush1.msra.mxu0 %v4295
    %4508 = vmatprep.subr.mxu0 0.0
    %4509 = vmatpush1.msra.mxu0 %v4298
    %4510 = vmatprep.subr.mxu0 0.0
    %4511 = vmatpush1.msra.mxu0 %v4301
    %4512 = vmatprep.subr.mxu0 0.0
    %4513 = vmatpush1.msra.mxu0 %v4304
    %4514 = vmatprep.subr.mxu0 0.0
    %4515 = vmatpush1.msra.mxu0 %v4307
    %4516 = vmatprep.subr.mxu0 0.0
    %4517 = vmatpush1.msra.mxu0 %v4310
    %4518 = vmatprep.subr.mxu0 0.0
    %4519 = vmatpush1.msra.mxu0 %v4313
    %4520 = vmatprep.subr.mxu0 0.0
    %4521 = vmatpush1.msra.mxu0 %v4316
    %4522 = vmatprep.subr.mxu0 0.0
    %4523 = vmatpush1.msra.mxu0 %v4319
    %4524 = vmatprep.subr.mxu0 0.0
    %4525 = vmatpush1.msra.mxu0 %v4322
    %4526 = vmatprep.subr.mxu0 0.0
    %4527 = vmatpush1.msra.mxu0 %v4325
    %4528 = vmatprep.subr.mxu0 0.0
    %4529 = vmatpush1.msra.mxu0 %v4328
    %4530 = vmatprep.subr.mxu0 0.0
    %4531 = vmatpush1.msra.mxu0 %v4331
    %4532 = vmatprep.subr.mxu0 0.0
    %4533 = vmatpush1.msra.mxu0 %v4334
    %4534 = vmatprep.subr.mxu0 0.0
    %4535 = vmatpush1.msra.mxu0 %v4337
    %4536 = vmatprep.subr.mxu0 0.0
    %4537 = vmatpush1.msra.mxu0 %v4340
    %4538 = vmatprep.subr.mxu0 0.0
    %4539 = vmatpush1.msra.mxu0 %v4343
    %4540 = vmatprep.subr.mxu0 0.0
    %4541 = vmatpush1.msra.mxu0 %v4346
    %4542 = vmatprep.subr.mxu0 0.0
    %4543 = vmatpush1.msra.mxu0 %v4349
    %4544 = vmatprep.mubr.f32.mxu0 %v4239
    %4545 = vmatmul.mubr.f32.gmra.mrb[0].mxu0 %v4238
    %v4546 = vpop.f32.mrb[0].mxu0
    %v4547 = vadd.f32 %v4363, %v4546
    %v4548 = vpop.f32.mrb[0].mxu0
    %4549 = vmatprep.mubr.f32.mxu0 %v4241
    %4550 = vmatmul.mubr.f32.gmra.mrb[0].mxu0 %v4240
    %v4551 = vpop.f32.mrb[0].mxu0
    %v4552 = vadd.f32 %v4363, %v4551
    %v4553 = vpop.f32.mrb[0].mxu0
    %4554 = vmatprep.mubr.f32.mxu0 %v4243
    %4555 = vmatmul.mubr.f32.gmra.mrb[0].mxu0 %v4242
    %v4556 = vpop.f32.mrb[0].mxu0
    %v4557 = vadd.f32 %v4363, %v4556
    %v4558 = vpop.f32.mrb[0].mxu0
    %4559 = vmatprep.mubr.f32.mxu0 %v4245
    %4560 = vmatmul.mubr.f32.gmra.mrb[0].mxu0 %v4244
    %v4561 = vpop.f32.mrb[0].mxu0
    %v4562 = vadd.f32 %v4363, %v4561
    %v4563 = vpop.f32.mrb[0].mxu0
    %4564 = vmatprep.mubr.f32.mxu0 %v4247
    %4565 = vmatmul.mubr.f32.gmra.mrb[0].mxu0 %v4246
    %v4566 = vpop.f32.mrb[0].mxu0
    %v4567 = vadd.f32 %v4363, %v4566
    %v4568 = vpop.f32.mrb[0].mxu0
    %4569 = vmatprep.mubr.f32.mxu0 %v4249
    %4570 = vmatmul.mubr.f32.gmra.mrb[0].mxu0 %v4248
    %v4571 = vpop.f32.mrb[0].mxu0
    %v4572 = vadd.f32 %v4363, %v4571
    %v4573 = vpop.f32.mrb[0].mxu0
    %4574 = vmatprep.mubr.f32.mxu0 %v4251
    %4575 = vmatmul.mubr.f32.gmra.mrb[0].mxu0 %v4250
    %v4576 = vpop.f32.mrb[0].mxu0
    %v4577 = vadd.f32 %v4363, %v4576
    %v4578 = vpop.f32.mrb[0].mxu0
    %4579 = vmatprep.mubr.f32.mxu0 %v4253
    %4580 = vmatmul.mubr.f32.gmra.mrb[0].mxu0 %v4252
    %v4581 = vpop.f32.mrb[0].mxu0
    %v4582 = vadd.f32 %v4363, %v4581
    %v4583 = vpop.f32.mrb[0].mxu0
    %4584 = vdwg.mxu0
    %4585 = vst [vmem:[#allocation2] sm:$0xff] %v4434
    %4586 = vst [vmem:[#allocation2 + $0x8] sm:$0xff] %v4436
    %4587 = vst [vmem:[#allocation2 + $0x10] sm:$0xff] %v4547
    %4588 = vst [vmem:[#allocation2 + $0x18] sm:$0xff] %v4440
    %4589 = vst [vmem:[#allocation2 + $0x20] sm:$0xff] %v4442
    %4590 = vst [vmem:[#allocation2 + $0x28] sm:$0xff] %v4552
    %4591 = vst [vmem:[#allocation2 + $0x30] sm:$0xff] %v4446
    %4592 = vst [vmem:[#allocation2 + $0x38] sm:$0xff] %v4448
    %4593 = vst [vmem:[#allocation2 + $0x40] sm:$0xff] %v4557
    %4594 = vst [vmem:[#allocation2 + $0x48] sm:$0xff] %v4452
    %4595 = vst [vmem:[#allocation2 + $0x50] sm:$0xff] %v4454
    %4596 = vst [vmem:[#allocation2 + $0x58] sm:$0xff] %v4562
    %4597 = vst [vmem:[#allocation2 + $0x60] sm:$0xff] %v4458
    %4598 = vst [vmem:[#allocation2 + $0x68] sm:$0xff] %v4460
    %4599 = vst [vmem:[#allocation2 + $0x70] sm:$0xff] %v4567
    %4600 = vst [vmem:[#allocation2 + $0x78] sm:$0xff] %v4464
    %4601 = vst [vmem:[#allocation2 + $0x80] sm:$0xff] %v4466
    %4602 = vst [vmem:[#allocation2 + $0x88] sm:$0xff] %v4572
    %4603 = vst [vmem:[#allocation2 + $0x90] sm:$0xff] %v4470
    %4604 = vst [vmem:[#allocation2 + $0x98] sm:$0xff] %v4472
    %4605 = vst [vmem:[#allocation2 + $0xa0] sm:$0xff] %v4577
    %4606 = vst [vmem:[#allocation2 + $0xa8] sm:$0xff] %v4476
    %4607 = vst [vmem:[#allocation2 + $0xb0] sm:$0xff] %v4478
    %4608 = vst [vmem:[#allocation2 + $0xb8] sm:$0xff] %v4582
    %4609 = vst [vmem:[#allocation4] sm:$0xff] 0.0
    %4610 = vst [vmem:[#allocation4 + $0x8] sm:$0xff] 0.0
    %v4611 = vld [vmem:[%s13] sm:$0x1]
    %v4613 = vlaneseq
    %v4614 = vshrl.u32 %v4613, 7
    %v4615 = vsub.s32 0, %v4614
    %v4616 = vrot.slane %v4611, %v4615
    %v4618 = vld [vmem:[#allocation4] sm:$0xff]
    %v4619 = vld [vmem:[#allocation14] sm:$0xff]
    %v4620 = vld [vmem:[#allocation14 + $0x8] sm:$0xff]
    %v4621 = vld [vmem:[#allocation14 + $0x10] sm:$0xff]
    %v4622 = vld [vmem:[#allocation14 + $0x30] sm:$0xff]
    %v4623 = vld [vmem:[#allocation14 + $0x38] sm:$0xff]
    %v4624 = vld [vmem:[#allocation14 + $0x40] sm:$0xff]
    %v4625 = vld [vmem:[#allocation14 + $0x60] sm:$0xff]
    %v4626 = vld [vmem:[#allocation14 + $0x68] sm:$0xff]
    %v4627 = vld [vmem:[#allocation14 + $0x70] sm:$0xff]
    %v4628 = vld [vmem:[#allocation14 + $0x90] sm:$0xff]
    %v4629 = vld [vmem:[#allocation14 + $0x98] sm:$0xff]
    %v4630 = vld [vmem:[#allocation14 + $0xa0] sm:$0xff]
    %v4631 = vld [vmem:[#allocation14 + $0xc0] sm:$0xff]
    %v4632 = vld [vmem:[#allocation14 + $0xc8] sm:$0xff]
    %v4633 = vld [vmem:[#allocation14 + $0xd0] sm:$0xff]
    %v4634 = vld [vmem:[#allocation14 + $0xf0] sm:$0xff]
    %v4635 = vld [vmem:[#allocation14 + $0xf8] sm:$0xff]
    %v4636 = vld [vmem:[#allocation14 + $0x100] sm:$0xff]
    %v4637 = vld [vmem:[#allocation14 + $0x120] sm:$0xff]
    %v4638 = vld [vmem:[#allocation14 + $0x128] sm:$0xff]
    %v4639 = vld [vmem:[#allocation14 + $0x130] sm:$0xff]
    %v4640 = vld [vmem:[#allocation14 + $0x150] sm:$0xff]
    %v4641 = vld [vmem:[#allocation14 + $0x158] sm:$0xff]
    %v4642 = vld [vmem:[#allocation14 + $0x160] sm:$0xff]
    %v4643 = vld [vmem:[#allocation14 + $0x180] sm:$0xff]
    %v4644 = vld [vmem:[#allocation14 + $0x188] sm:$0xff]
    %v4645 = vld [vmem:[#allocation14 + $0x190] sm:$0xff]
    %v4646 = vld [vmem:[#allocation14 + $0x1b0] sm:$0xff]
    %v4647 = vld [vmem:[#allocation14 + $0x1b8] sm:$0xff]
    %v4648 = vld [vmem:[#allocation14 + $0x1c0] sm:$0xff]
    %v4649 = vld [vmem:[#allocation14 + $0x1e0] sm:$0xff]
    %v4650 = vld [vmem:[#allocation14 + $0x1e8] sm:$0xff]
    %v4651 = vld [vmem:[#allocation14 + $0x1f0] sm:$0xff]
    %v4652 = vld [vmem:[#allocation14 + $0x210] sm:$0xff]
    %v4653 = vld [vmem:[#allocation14 + $0x218] sm:$0xff]
    %v4654 = vld [vmem:[#allocation14 + $0x220] sm:$0xff]
    %v4655 = vld [vmem:[#allocation14 + $0x240] sm:$0xff]
    %v4656 = vld [vmem:[#allocation14 + $0x248] sm:$0xff]
    %v4657 = vld [vmem:[#allocation14 + $0x250] sm:$0xff]
    %v4658 = vld [vmem:[#allocation14 + $0x270] sm:$0xff]
    %v4659 = vld [vmem:[#allocation14 + $0x278] sm:$0xff]
    %v4660 = vld [vmem:[#allocation14 + $0x280] sm:$0xff]
    %v4661 = vld [vmem:[#allocation14 + $0x2a0] sm:$0xff]
    %v4662 = vld [vmem:[#allocation14 + $0x2a8] sm:$0xff]
    %v4663 = vld [vmem:[#allocation14 + $0x2b0] sm:$0xff]
    %v4664 = vld [vmem:[#allocation14 + $0x2d0] sm:$0xff]
    %v4665 = vld [vmem:[#allocation14 + $0x2d8] sm:$0xff]
    %v4666 = vld [vmem:[#allocation14 + $0x2e0] sm:$0xff]
    %4667 = vmatprep.subr.mxu0 %v4620
    %4668 = vmatpush1.msra.mxu0 %v4619
    %4669 = vmatprep.subr.mxu0 %v4623
    %4670 = vmatpush1.msra.mxu0 %v4622
    %4671 = vmatprep.subr.mxu0 %v4626
    %4672 = vmatpush1.msra.mxu0 %v4625
    %4673 = vmatprep.subr.mxu0 %v4629
    %4674 = vmatpush1.msra.mxu0 %v4628
    %4675 = vmatprep.subr.mxu0 %v4632
    %4676 = vmatpush1.msra.mxu0 %v4631
    %4677 = vmatprep.subr.mxu0 %v4635
    %4678 = vmatpush1.msra.mxu0 %v4634
    %4679 = vmatprep.subr.mxu0 %v4638
    %4680 = vmatpush1.msra.mxu0 %v4637
    %4681 = vmatprep.subr.mxu0 %v4641
    %4682 = vmatpush1.msra.mxu0 %v4640
    %4683 = vmatprep.subr.mxu0 %v4644
    %4684 = vmatpush1.msra.mxu0 %v4643
    %4685 = vmatprep.subr.mxu0 %v4647
    %4686 = vmatpush1.msra.mxu0 %v4646
    %4687 = vmatprep.subr.mxu0 %v4650
    %4688 = vmatpush1.msra.mxu0 %v4649
    %4689 = vmatprep.subr.mxu0 %v4653
    %4690 = vmatpush1.msra.mxu0 %v4652
    %4691 = vmatprep.subr.mxu0 %v4656
    %4692 = vmatpush1.msra.mxu0 %v4655
    %4693 = vmatprep.subr.mxu0 %v4659
    %4694 = vmatpush1.msra.mxu0 %v4658
    %4695 = vmatprep.subr.mxu0 %v4662
    %4696 = vmatpush1.msra.mxu0 %v4661
    %4697 = vmatprep.subr.mxu0 %v4665
    %4698 = vmatpush1.msra.mxu0 %v4664
    %4699 = vmatprep.subr.mxu0 0.0
    %4700 = vmatpush1.msra.mxu0 0.0
    %4701 = vmatprep.subr.mxu0 0.0
    %4702 = vmatpush1.msra.mxu0 0.0
    %4703 = vmatprep.subr.mxu0 0.0
    %4704 = vmatpush1.msra.mxu0 0.0
    %4705 = vmatprep.subr.mxu0 0.0
    %4706 = vmatpush1.msra.mxu0 0.0
    %4707 = vmatprep.subr.mxu0 0.0
    %4708 = vmatpush1.msra.mxu0 0.0
    %4709 = vmatprep.subr.mxu0 0.0
    %4710 = vmatpush1.msra.mxu0 0.0
    %4711 = vmatprep.subr.mxu0 0.0
    %4712 = vmatpush1.msra.mxu0 0.0
    %4713 = vmatprep.subr.mxu0 0.0
    %4714 = vmatpush1.msra.mxu0 0.0
    %4715 = vmatprep.subr.mxu0 0.0
    %4716 = vmatpush1.msra.mxu0 0.0
    %4717 = vmatprep.subr.mxu0 0.0
    %4718 = vmatpush1.msra.mxu0 0.0
    %4719 = vmatprep.subr.mxu0 0.0
    %4720 = vmatpush1.msra.mxu0 0.0
    %4721 = vmatprep.subr.mxu0 0.0
    %4722 = vmatpush1.msra.mxu0 0.0
    %4723 = vmatprep.subr.mxu0 0.0
    %4724 = vmatpush1.msra.mxu0 0.0
    %4725 = vmatprep.subr.mxu0 0.0
    %4726 = vmatpush1.msra.mxu0 0.0
    %4727 = vmatprep.subr.mxu0 0.0
    %4728 = vmatpush1.msra.mxu0 0.0
    %4729 = vmatprep.subr.mxu0 0.0
    %4730 = vmatpush1.msra.mxu0 0.0
    %4731 = vmatprep.mubr.f32.mxu0 0.0
    %4732 = vmatmul.mubr.f32.gmra.mrb[0].mxu0 %v4618
    %v4733 = vpop.f32.mrb[0].mxu0
    %v4734 = vadd.f32 0.0, %v4733
    %v4735 = vpop.f32.mrb[0].mxu0
    %v4736 = vadd.f32 0.0, %v4735
    %4737 = vdwg.mxu0
    %4738 = vmatprep.subr.mxu0 0.0
    %4739 = vmatpush1.msra.mxu0 %v4621
    %4740 = vmatprep.subr.mxu0 0.0
    %4741 = vmatpush1.msra.mxu0 %v4624
    %4742 = vmatprep.subr.mxu0 0.0
    %4743 = vmatpush1.msra.mxu0 %v4627
    %4744 = vmatprep.subr.mxu0 0.0
    %4745 = vmatpush1.msra.mxu0 %v4630
    %4746 = vmatprep.subr.mxu0 0.0
    %4747 = vmatpush1.msra.mxu0 %v4633
    %4748 = vmatprep.subr.mxu0 0.0
    %4749 = vmatpush1.msra.mxu0 %v4636
    %4750 = vmatprep.subr.mxu0 0.0
    %4751 = vmatpush1.msra.mxu0 %v4639
    %4752 = vmatprep.subr.mxu0 0.0
    %4753 = vmatpush1.msra.mxu0 %v4642
    %4754 = vmatprep.subr.mxu0 0.0
    %4755 = vmatpush1.msra.mxu0 %v4645
    %4756 = vmatprep.subr.mxu0 0.0
    %4757 = vmatpush1.msra.mxu0 %v4648
    %4758 = vmatprep.subr.mxu0 0.0
    %4759 = vmatpush1.msra.mxu0 %v4651
    %4760 = vmatprep.subr.mxu0 0.0
    %4761 = vmatpush1.msra.mxu0 %v4654
    %4762 = vmatprep.subr.mxu0 0.0
    %4763 = vmatpush1.msra.mxu0 %v4657
    %4764 = vmatprep.subr.mxu0 0.0
    %4765 = vmatpush1.msra.mxu0 %v4660
    %4766 = vmatprep.subr.mxu0 0.0
    %4767 = vmatpush1.msra.mxu0 %v4663
    %4768 = vmatprep.subr.mxu0 0.0
    %4769 = vmatpush1.msra.mxu0 %v4666
    %4770 = vmatprep.subr.mxu0 0.0
    %4771 = vmatpush1.msra.mxu0 0.0
    %4772 = vmatprep.subr.mxu0 0.0
    %4773 = vmatpush1.msra.mxu0 0.0
    %4774 = vmatprep.subr.mxu0 0.0
    %4775 = vmatpush1.msra.mxu0 0.0
    %4776 = vmatprep.subr.mxu0 0.0
    %4777 = vmatpush1.msra.mxu0 0.0
    %4778 = vmatprep.subr.mxu0 0.0
    %4779 = vmatpush1.msra.mxu0 0.0
    %4780 = vmatprep.subr.mxu0 0.0
    %4781 = vmatpush1.msra.mxu0 0.0
    %4782 = vmatprep.subr.mxu0 0.0
    %4783 = vmatpush1.msra.mxu0 0.0
    %4784 = vmatprep.subr.mxu0 0.0
    %4785 = vmatpush1.msra.mxu0 0.0
    %4786 = vmatprep.subr.mxu0 0.0
    %4787 = vmatpush1.msra.mxu0 0.0
    %4788 = vmatprep.subr.mxu0 0.0
    %4789 = vmatpush1.msra.mxu0 0.0
    %4790 = vmatprep.subr.mxu0 0.0
    %4791 = vmatpush1.msra.mxu0 0.0
    %4792 = vmatprep.subr.mxu0 0.0
    %4793 = vmatpush1.msra.mxu0 0.0
    %4794 = vmatprep.subr.mxu0 0.0
    %4795 = vmatpush1.msra.mxu0 0.0
    %4796 = vmatprep.subr.mxu0 0.0
    %4797 = vmatpush1.msra.mxu0 0.0
    %4798 = vmatprep.subr.mxu0 0.0
    %4799 = vmatpush1.msra.mxu0 0.0
    %4800 = vmatprep.subr.mxu0 0.0
    %4801 = vmatpush1.msra.mxu0 0.0
    %4802 = vmatprep.mubr.f32.mxu0 0.0
    %4803 = vmatmul.mubr.f32.gmra.mrb[0].mxu0 %v4618
    %v4804 = vpop.f32.mrb[0].mxu0
    %v4805 = vadd.f32 0.0, %v4804
    %v4806 = vpop.f32.mrb[0].mxu0
    %4807 = vdwg.mxu0
    %v4808 = vld [vmem:[%s1100] sm:$0xff]
    %v4809 = vld [vmem:[%s1100 + $0x8] sm:$0xff]
    %v4810 = vld [vmem:[%s1100 + $0x10] sm:$0xff]
    %v4811 = vadd.f32 %v4808, %v4734
    %v4812 = vxor.u32 %v4811, 2147483648
    %v4813 = vmul.f32 %v4812, 1.442695
    %v4814 = vpow.pop %v4813
    %v4815 = vadd.f32 %v4814, 1.0
    %v4816 = vrcp.pop %v4815
    %v4817 = vmul.f32 1.0, %v4816
    %v4818 = vadd.f32 %v4809, %v4736
    %v4819 = vxor.u32 %v4818, 2147483648
    %v4820 = vmul.f32 %v4819, 1.442695
    %v4821 = vpow.pop %v4820
    %v4822 = vadd.f32 %v4821, 1.0
    %v4823 = vrcp.pop %v4822
    %v4824 = vmul.f32 1.0, %v4823
    %v4825 = vadd.f32 %v4805, %v4616
    %v4826 = vmul.f32 %v4817, %v4825
    %v4827 = vadd.f32 %v4810, %v4826
    %v4828 = vtanh.pop %v4827
    %v4829 = vsub.f32 %v4618, %v4828
    %v4830 = vmul.f32 %v4824, %v4829
    %v4831 = vadd.f32 %v4828, %v4830
    %4832 = vst [vmem:[#allocation4] sm:$0xff] %v4831
    %v4833 = vld [vmem:[#allocation4] sm:$0xff]
    %v4834 = vld [vmem:[#allocation14] sm:$0xff]
    %v4835 = vld [vmem:[#allocation14 + $0x8] sm:$0xff]
    %v4836 = vld [vmem:[#allocation14 + $0x10] sm:$0xff]
    %v4837 = vld [vmem:[#allocation14 + $0x30] sm:$0xff]
    %v4838 = vld [vmem:[#allocation14 + $0x38] sm:$0xff]
    %v4839 = vld [vmem:[#allocation14 + $0x40] sm:$0xff]
    %v4840 = vld [vmem:[#allocation14 + $0x60] sm:$0xff]
    %v4841 = vld [vmem:[#allocation14 + $0x68] sm:$0xff]
    %v4842 = vld [vmem:[#allocation14 + $0x70] sm:$0xff]
    %v4843 = vld [vmem:[#allocation14 + $0x90] sm:$0xff]
    %v4844 = vld [vmem:[#allocation14 + $0x98] sm:$0xff]
    %v4845 = vld [vmem:[#allocation14 + $0xa0] sm:$0xff]
    %v4846 = vld [vmem:[#allocation14 + $0xc0] sm:$0xff]
    %v4847 = vld [vmem:[#allocation14 + $0xc8] sm:$0xff]
    %v4848 = vld [vmem:[#allocation14 + $0xd0] sm:$0xff]
    %v4849 = vld [vmem:[#allocation14 + $0xf0] sm:$0xff]
    %v4850 = vld [vmem:[#allocation14 + $0xf8] sm:$0xff]
    %v4851 = vld [vmem:[#allocation14 + $0x100] sm:$0xff]
    %v4852 = vld [vmem:[#allocation14 + $0x120] sm:$0xff]
    %v4853 = vld [vmem:[#allocation14 + $0x128] sm:$0xff]
    %v4854 = vld [vmem:[#allocation14 + $0x130] sm:$0xff]
    %v4855 = vld [vmem:[#allocation14 + $0x150] sm:$0xff]
    %v4856 = vld [vmem:[#allocation14 + $0x158] sm:$0xff]
    %v4857 = vld [vmem:[#allocation14 + $0x160] sm:$0xff]
    %v4858 = vld [vmem:[#allocation14 + $0x180] sm:$0xff]
    %v4859 = vld [vmem:[#allocation14 + $0x188] sm:$0xff]
    %v4860 = vld [vmem:[#allocation14 + $0x190] sm:$0xff]
    %v4861 = vld [vmem:[#allocation14 + $0x1b0] sm:$0xff]
    %v4862 = vld [vmem:[#allocation14 + $0x1b8] sm:$0xff]
    %v4863 = vld [vmem:[#allocation14 + $0x1c0] sm:$0xff]
    %v4864 = vld [vmem:[#allocation14 + $0x1e0] sm:$0xff]
    %v4865 = vld [vmem:[#allocation14 + $0x1e8] sm:$0xff]
    %v4866 = vld [vmem:[#allocation14 + $0x1f0] sm:$0xff]
    %v4867 = vld [vmem:[#allocation14 + $0x210] sm:$0xff]
    %v4868 = vld [vmem:[#allocation14 + $0x218] sm:$0xff]
    %v4869 = vld [vmem:[#allocation14 + $0x220] sm:$0xff]
    %v4870 = vld [vmem:[#allocation14 + $0x240] sm:$0xff]
    %v4871 = vld [vmem:[#allocation14 + $0x248] sm:$0xff]
    %v4872 = vld [vmem:[#allocation14 + $0x250] sm:$0xff]
    %v4873 = vld [vmem:[#allocation14 + $0x270] sm:$0xff]
    %v4874 = vld [vmem:[#allocation14 + $0x278] sm:$0xff]
    %v4875 = vld [vmem:[#allocation14 + $0x280] sm:$0xff]
    %v4876 = vld [vmem:[#allocation14 + $0x2a0] sm:$0xff]
    %v4877 = vld [vmem:[#allocation14 + $0x2a8] sm:$0xff]
    %v4878 = vld [vmem:[#allocation14 + $0x2b0] sm:$0xff]
    %v4879 = vld [vmem:[#allocation14 + $0x2d0] sm:$0xff]
    %v4880 = vld [vmem:[#allocation14 + $0x2d8] sm:$0xff]
    %v4881 = vld [vmem:[#allocation14 + $0x2e0] sm:$0xff]
    %4882 = vmatprep.subr.mxu0 %v4835
    %4883 = vmatpush1.msra.mxu0 %v4834
    %4884 = vmatprep.subr.mxu0 %v4838
    %4885 = vmatpush1.msra.mxu0 %v4837
    %4886 = vmatprep.subr.mxu0 %v4841
    %4887 = vmatpush1.msra.mxu0 %v4840
    %4888 = vmatprep.subr.mxu0 %v4844
    %4889 = vmatpush1.msra.mxu0 %v4843
    %4890 = vmatprep.subr.mxu0 %v4847
    %4891 = vmatpush1.msra.mxu0 %v4846
    %4892 = vmatprep.subr.mxu0 %v4850
    %4893 = vmatpush1.msra.mxu0 %v4849
    %4894 = vmatprep.subr.mxu0 %v4853
    %4895 = vmatpush1.msra.mxu0 %v4852
    %4896 = vmatprep.subr.mxu0 %v4856
    %4897 = vmatpush1.msra.mxu0 %v4855
    %4898 = vmatprep.subr.mxu0 %v4859
    %4899 = vmatpush1.msra.mxu0 %v4858
    %4900 = vmatprep.subr.mxu0 %v4862
    %4901 = vmatpush1.msra.mxu0 %v4861
    %4902 = vmatprep.subr.mxu0 %v4865
    %4903 = vmatpush1.msra.mxu0 %v4864
    %4904 = vmatprep.subr.mxu0 %v4868
    %4905 = vmatpush1.msra.mxu0 %v4867
    %4906 = vmatprep.subr.mxu0 %v4871
    %4907 = vmatpush1.msra.mxu0 %v4870
    %4908 = vmatprep.subr.mxu0 %v4874
    %4909 = vmatpush1.msra.mxu0 %v4873
    %4910 = vmatprep.subr.mxu0 %v4877
    %4911 = vmatpush1.msra.mxu0 %v4876
    %4912 = vmatprep.subr.mxu0 %v4880
    %4913 = vmatpush1.msra.mxu0 %v4879
    %4914 = vmatprep.subr.mxu0 0.0
    %4915 = vmatpush1.msra.mxu0 0.0
    %4916 = vmatprep.subr.mxu0 0.0
    %4917 = vmatpush1.msra.mxu0 0.0
    %4918 = vmatprep.subr.mxu0 0.0
    %4919 = vmatpush1.msra.mxu0 0.0
    %4920 = vmatprep.subr.mxu0 0.0
    %4921 = vmatpush1.msra.mxu0 0.0
    %4922 = vmatprep.subr.mxu0 0.0
    %4923 = vmatpush1.msra.mxu0 0.0
    %4924 = vmatprep.subr.mxu0 0.0
    %4925 = vmatpush1.msra.mxu0 0.0
    %4926 = vmatprep.subr.mxu0 0.0
    %4927 = vmatpush1.msra.mxu0 0.0
    %4928 = vmatprep.subr.mxu0 0.0
    %4929 = vmatpush1.msra.mxu0 0.0
    %4930 = vmatprep.subr.mxu0 0.0
    %4931 = vmatpush1.msra.mxu0 0.0
    %4932 = vmatprep.subr.mxu0 0.0
    %4933 = vmatpush1.msra.mxu0 0.0
    %4934 = vmatprep.subr.mxu0 0.0
    %4935 = vmatpush1.msra.mxu0 0.0
    %4936 = vmatprep.subr.mxu0 0.0
    %4937 = vmatpush1.msra.mxu0 0.0
    %4938 = vmatprep.subr.mxu0 0.0
    %4939 = vmatpush1.msra.mxu0 0.0
    %4940 = vmatprep.subr.mxu0 0.0
    %4941 = vmatpush1.msra.mxu0 0.0
    %4942 = vmatprep.subr.mxu0 0.0
    %4943 = vmatpush1.msra.mxu0 0.0
    %4944 = vmatprep.subr.mxu0 0.0
    %4945 = vmatpush1.msra.mxu0 0.0
    %4946 = vmatprep.mubr.f32.mxu0 0.0
    %4947 = vmatmul.mubr.f32.gmra.mrb[0].mxu0 %v4833
    %v4948 = vpop.f32.mrb[0].mxu0
    %v4949 = vadd.f32 0.0, %v4948
    %v4950 = vpop.f32.mrb[0].mxu0
    %v4951 = vadd.f32 0.0, %v4950
    %4952 = vdwg.mxu0
    %4953 = vmatprep.subr.mxu0 0.0
    %4954 = vmatpush1.msra.mxu0 %v4836
    %4955 = vmatprep.subr.mxu0 0.0
    %4956 = vmatpush1.msra.mxu0 %v4839
    %4957 = vmatprep.subr.mxu0 0.0
    %4958 = vmatpush1.msra.mxu0 %v4842
    %4959 = vmatprep.subr.mxu0 0.0
    %4960 = vmatpush1.msra.mxu0 %v4845
    %4961 = vmatprep.subr.mxu0 0.0
    %4962 = vmatpush1.msra.mxu0 %v4848
    %4963 = vmatprep.subr.mxu0 0.0
    %4964 = vmatpush1.msra.mxu0 %v4851
    %4965 = vmatprep.subr.mxu0 0.0
    %4966 = vmatpush1.msra.mxu0 %v4854
    %4967 = vmatprep.subr.mxu0 0.0
    %4968 = vmatpush1.msra.mxu0 %v4857
    %4969 = vmatprep.subr.mxu0 0.0
    %4970 = vmatpush1.msra.mxu0 %v4860
    %4971 = vmatprep.subr.mxu0 0.0
    %4972 = vmatpush1.msra.mxu0 %v4863
    %4973 = vmatprep.subr.mxu0 0.0
    %4974 = vmatpush1.msra.mxu0 %v4866
    %4975 = vmatprep.subr.mxu0 0.0
    %4976 = vmatpush1.msra.mxu0 %v4869
    %4977 = vmatprep.subr.mxu0 0.0
    %4978 = vmatpush1.msra.mxu0 %v4872
    %4979 = vmatprep.subr.mxu0 0.0
    %4980 = vmatpush1.msra.mxu0 %v4875
    %4981 = vmatprep.subr.mxu0 0.0
    %4982 = vmatpush1.msra.mxu0 %v4878
    %4983 = vmatprep.subr.mxu0 0.0
    %4984 = vmatpush1.msra.mxu0 %v4881
    %4985 = vmatprep.subr.mxu0 0.0
    %4986 = vmatpush1.msra.mxu0 0.0
    %4987 = vmatprep.subr.mxu0 0.0
    %4988 = vmatpush1.msra.mxu0 0.0
    %4989 = vmatprep.subr.mxu0 0.0
    %4990 = vmatpush1.msra.mxu0 0.0
    %4991 = vmatprep.subr.mxu0 0.0
    %4992 = vmatpush1.msra.mxu0 0.0
    %4993 = vmatprep.subr.mxu0 0.0
    %4994 = vmatpush1.msra.mxu0 0.0
    %4995 = vmatprep.subr.mxu0 0.0
    %4996 = vmatpush1.msra.mxu0 0.0
    %4997 = vmatprep.subr.mxu0 0.0
    %4998 = vmatpush1.msra.mxu0 0.0
    %4999 = vmatprep.subr.mxu0 0.0
    %5000 = vmatpush1.msra.mxu0 0.0
    %5001 = vmatprep.subr.mxu0 0.0
    %5002 = vmatpush1.msra.mxu0 0.0
    %5003 = vmatprep.subr.mxu0 0.0
    %5004 = vmatpush1.msra.mxu0 0.0
    %5005 = vmatprep.subr.mxu0 0.0
    %5006 = vmatpush1.msra.mxu0 0.0
    %5007 = vmatprep.subr.mxu0 0.0
    %5008 = vmatpush1.msra.mxu0 0.0
    %5009 = vmatprep.subr.mxu0 0.0
    %5010 = vmatpush1.msra.mxu0 0.0
    %5011 = vmatprep.subr.mxu0 0.0
    %5012 = vmatpush1.msra.mxu0 0.0
    %5013 = vmatprep.subr.mxu0 0.0
    %5014 = vmatpush1.msra.mxu0 0.0
    %5015 = vmatprep.subr.mxu0 0.0
    %5016 = vmatpush1.msra.mxu0 0.0
    %5017 = vmatprep.mubr.f32.mxu0 0.0
    %5018 = vmatmul.mubr.f32.gmra.mrb[0].mxu0 %v4833
    %v5019 = vpop.f32.mrb[0].mxu0
    %v5020 = vadd.f32 0.0, %v5019
    %v5021 = vpop.f32.mrb[0].mxu0
    %5022 = vdwg.mxu0
    %v5023 = vld [vmem:[%s1544] sm:$0xff]
    %v5024 = vld [vmem:[%s1544 + $0x8] sm:$0xff]
    %v5025 = vld [vmem:[%s1544 + $0x10] sm:$0xff]
    %v5026 = vadd.f32 %v5023, %v4949
    %v5027 = vxor.u32 %v5026, 2147483648
    %v5028 = vmul.f32 %v5027, 1.442695
    %v5029 = vpow.pop %v5028
    %v5030 = vadd.f32 %v5029, 1.0
    %v5031 = vrcp.pop %v5030
    %v5032 = vmul.f32 1.0, %v5031
    %v5033 = vadd.f32 %v5024, %v4951
    %v5034 = vxor.u32 %v5033, 2147483648
    %v5035 = vmul.f32 %v5034, 1.442695
    %v5036 = vpow.pop %v5035
    %v5037 = vadd.f32 %v5036, 1.0
    %v5038 = vrcp.pop %v5037
    %v5039 = vmul.f32 1.0, %v5038
    %v5040 = vadd.f32 %v5020, %v4616
    %v5041 = vmul.f32 %v5032, %v5040
    %v5042 = vadd.f32 %v5025, %v5041
    %v5043 = vtanh.pop %v5042
    %v5044 = vsub.f32 %v4833, %v5043
    %v5045 = vmul.f32 %v5039, %v5044
    %v5046 = vadd.f32 %v5043, %v5045
    %5047 = vst [vmem:[#allocation4] sm:$0xff] %v5046
    %v5048 = vld [vmem:[#allocation4] sm:$0xff]
    %v5049 = vld [vmem:[#allocation14] sm:$0xff]
    %v5050 = vld [vmem:[#allocation14 + $0x8] sm:$0xff]
    %v5051 = vld [vmem:[#allocation14 + $0x10] sm:$0xff]
    %v5052 = vld [vmem:[#allocation14 + $0x30] sm:$0xff]
    %v5053 = vld [vmem:[#allocation14 + $0x38] sm:$0xff]
    %v5054 = vld [vmem:[#allocation14 + $0x40] sm:$0xff]
    %v5055 = vld [vmem:[#allocation14 + $0x60] sm:$0xff]
    %v5056 = vld [vmem:[#allocation14 + $0x68] sm:$0xff]
    %v5057 = vld [vmem:[#allocation14 + $0x70] sm:$0xff]
    %v5058 = vld [vmem:[#allocation14 + $0x90] sm:$0xff]
    %v5059 = vld [vmem:[#allocation14 + $0x98] sm:$0xff]
    %v5060 = vld [vmem:[#allocation14 + $0xa0] sm:$0xff]
    %v5061 = vld [vmem:[#allocation14 + $0xc0] sm:$0xff]
    %v5062 = vld [vmem:[#allocation14 + $0xc8] sm:$0xff]
    %v5063 = vld [vmem:[#allocation14 + $0xd0] sm:$0xff]
    %v5064 = vld [vmem:[#allocation14 + $0xf0] sm:$0xff]
    %v5065 = vld [vmem:[#allocation14 + $0xf8] sm:$0xff]
    %v5066 = vld [vmem:[#allocation14 + $0x100] sm:$0xff]
    %v5067 = vld [vmem:[#allocation14 + $0x120] sm:$0xff]
    %v5068 = vld [vmem:[#allocation14 + $0x128] sm:$0xff]
    %v5069 = vld [vmem:[#allocation14 + $0x130] sm:$0xff]
    %v5070 = vld [vmem:[#allocation14 + $0x150] sm:$0xff]
    %v5071 = vld [vmem:[#allocation14 + $0x158] sm:$0xff]
    %v5072 = vld [vmem:[#allocation14 + $0x160] sm:$0xff]
    %v5073 = vld [vmem:[#allocation14 + $0x180] sm:$0xff]
    %v5074 = vld [vmem:[#allocation14 + $0x188] sm:$0xff]
    %v5075 = vld [vmem:[#allocation14 + $0x190] sm:$0xff]
    %v5076 = vld [vmem:[#allocation14 + $0x1b0] sm:$0xff]
    %v5077 = vld [vmem:[#allocation14 + $0x1b8] sm:$0xff]
    %v5078 = vld [vmem:[#allocation14 + $0x1c0] sm:$0xff]
    %v5079 = vld [vmem:[#allocation14 + $0x1e0] sm:$0xff]
    %v5080 = vld [vmem:[#allocation14 + $0x1e8] sm:$0xff]
    %v5081 = vld [vmem:[#allocation14 + $0x1f0] sm:$0xff]
    %v5082 = vld [vmem:[#allocation14 + $0x210] sm:$0xff]
    %v5083 = vld [vmem:[#allocation14 + $0x218] sm:$0xff]
    %v5084 = vld [vmem:[#allocation14 + $0x220] sm:$0xff]
    %v5085 = vld [vmem:[#allocation14 + $0x240] sm:$0xff]
    %v5086 = vld [vmem:[#allocation14 + $0x248] sm:$0xff]
    %v5087 = vld [vmem:[#allocation14 + $0x250] sm:$0xff]
    %v5088 = vld [vmem:[#allocation14 + $0x270] sm:$0xff]
    %v5089 = vld [vmem:[#allocation14 + $0x278] sm:$0xff]
    %v5090 = vld [vmem:[#allocation14 + $0x280] sm:$0xff]
    %v5091 = vld [vmem:[#allocation14 + $0x2a0] sm:$0xff]
    %v5092 = vld [vmem:[#allocation14 + $0x2a8] sm:$0xff]
    %v5093 = vld [vmem:[#allocation14 + $0x2b0] sm:$0xff]
    %v5094 = vld [vmem:[#allocation14 + $0x2d0] sm:$0xff]
    %v5095 = vld [vmem:[#allocation14 + $0x2d8] sm:$0xff]
    %v5096 = vld [vmem:[#allocation14 + $0x2e0] sm:$0xff]
    %5097 = vmatprep.subr.mxu0 %v5050
    %5098 = vmatpush1.msra.mxu0 %v5049
    %5099 = vmatprep.subr.mxu0 %v5053
    %5100 = vmatpush1.msra.mxu0 %v5052
    %5101 = vmatprep.subr.mxu0 %v5056
    %5102 = vmatpush1.msra.mxu0 %v5055
    %5103 = vmatprep.subr.mxu0 %v5059
    %5104 = vmatpush1.msra.mxu0 %v5058
    %5105 = vmatprep.subr.mxu0 %v5062
    %5106 = vmatpush1.msra.mxu0 %v5061
    %5107 = vmatprep.subr.mxu0 %v5065
    %5108 = vmatpush1.msra.mxu0 %v5064
    %5109 = vmatprep.subr.mxu0 %v5068
    %5110 = vmatpush1.msra.mxu0 %v5067
    %5111 = vmatprep.subr.mxu0 %v5071
    %5112 = vmatpush1.msra.mxu0 %v5070
    %5113 = vmatprep.subr.mxu0 %v5074
    %5114 = vmatpush1.msra.mxu0 %v5073
    %5115 = vmatprep.subr.mxu0 %v5077
    %5116 = vmatpush1.msra.mxu0 %v5076
    %5117 = vmatprep.subr.mxu0 %v5080
    %5118 = vmatpush1.msra.mxu0 %v5079
    %5119 = vmatprep.subr.mxu0 %v5083
    %5120 = vmatpush1.msra.mxu0 %v5082
    %5121 = vmatprep.subr.mxu0 %v5086
    %5122 = vmatpush1.msra.mxu0 %v5085
    %5123 = vmatprep.subr.mxu0 %v5089
    %5124 = vmatpush1.msra.mxu0 %v5088
    %5125 = vmatprep.subr.mxu0 %v5092
    %5126 = vmatpush1.msra.mxu0 %v5091
    %5127 = vmatprep.subr.mxu0 %v5095
    %5128 = vmatpush1.msra.mxu0 %v5094
    %5129 = vmatprep.subr.mxu0 0.0
    %5130 = vmatpush1.msra.mxu0 0.0
    %5131 = vmatprep.subr.mxu0 0.0
    %5132 = vmatpush1.msra.mxu0 0.0
    %5133 = vmatprep.subr.mxu0 0.0
    %5134 = vmatpush1.msra.mxu0 0.0
    %5135 = vmatprep.subr.mxu0 0.0
    %5136 = vmatpush1.msra.mxu0 0.0
    %5137 = vmatprep.subr.mxu0 0.0
    %5138 = vmatpush1.msra.mxu0 0.0
    %5139 = vmatprep.subr.mxu0 0.0
    %5140 = vmatpush1.msra.mxu0 0.0
    %5141 = vmatprep.subr.mxu0 0.0
    %5142 = vmatpush1.msra.mxu0 0.0
    %5143 = vmatprep.subr.mxu0 0.0
    %5144 = vmatpush1.msra.mxu0 0.0
    %5145 = vmatprep.subr.mxu0 0.0
    %5146 = vmatpush1.msra.mxu0 0.0
    %5147 = vmatprep.subr.mxu0 0.0
    %5148 = vmatpush1.msra.mxu0 0.0
    %5149 = vmatprep.subr.mxu0 0.0
    %5150 = vmatpush1.msra.mxu0 0.0
    %5151 = vmatprep.subr.mxu0 0.0
    %5152 = vmatpush1.msra.mxu0 0.0
    %5153 = vmatprep.subr.mxu0 0.0
    %5154 = vmatpush1.msra.mxu0 0.0
    %5155 = vmatprep.subr.mxu0 0.0
    %5156 = vmatpush1.msra.mxu0 0.0
    %5157 = vmatprep.subr.mxu0 0.0
    %5158 = vmatpush1.msra.mxu0 0.0
    %5159 = vmatprep.subr.mxu0 0.0
    %5160 = vmatpush1.msra.mxu0 0.0
    %5161 = vmatprep.mubr.f32.mxu0 0.0
    %5162 = vmatmul.mubr.f32.gmra.mrb[0].mxu0 %v5048
    %v5163 = vpop.f32.mrb[0].mxu0
    %v5164 = vadd.f32 0.0, %v5163
    %v5165 = vpop.f32.mrb[0].mxu0
    %v5166 = vadd.f32 0.0, %v5165
    %5167 = vdwg.mxu0
    %5168 = vmatprep.subr.mxu0 0.0
    %5169 = vmatpush1.msra.mxu0 %v5051
    %5170 = vmatprep.subr.mxu0 0.0
    %5171 = vmatpush1.msra.mxu0 %v5054
    %5172 = vmatprep.subr.mxu0 0.0
    %5173 = vmatpush1.msra.mxu0 %v5057
    %5174 = vmatprep.subr.mxu0 0.0
    %5175 = vmatpush1.msra.mxu0 %v5060
    %5176 = vmatprep.subr.mxu0 0.0
    %5177 = vmatpush1.msra.mxu0 %v5063
    %5178 = vmatprep.subr.mxu0 0.0
    %5179 = vmatpush1.msra.mxu0 %v5066
    %5180 = vmatprep.subr.mxu0 0.0
    %5181 = vmatpush1.msra.mxu0 %v5069
    %5182 = vmatprep.subr.mxu0 0.0
    %5183 = vmatpush1.msra.mxu0 %v5072
    %5184 = vmatprep.subr.mxu0 0.0
    %5185 = vmatpush1.msra.mxu0 %v5075
    %5186 = vmatprep.subr.mxu0 0.0
    %5187 = vmatpush1.msra.mxu0 %v5078
    %5188 = vmatprep.subr.mxu0 0.0
    %5189 = vmatpush1.msra.mxu0 %v5081
    %5190 = vmatprep.subr.mxu0 0.0
    %5191 = vmatpush1.msra.mxu0 %v5084
    %5192 = vmatprep.subr.mxu0 0.0
    %5193 = vmatpush1.msra.mxu0 %v5087
    %5194 = vmatprep.subr.mxu0 0.0
    %5195 = vmatpush1.msra.mxu0 %v5090
    %5196 = vmatprep.subr.mxu0 0.0
    %5197 = vmatpush1.msra.mxu0 %v5093
    %5198 = vmatprep.subr.mxu0 0.0
    %5199 = vmatpush1.msra.mxu0 %v5096
    %5200 = vmatprep.subr.mxu0 0.0
    %5201 = vmatpush1.msra.mxu0 0.0
    %5202 = vmatprep.subr.mxu0 0.0
    %5203 = vmatpush1.msra.mxu0 0.0
    %5204 = vmatprep.subr.mxu0 0.0
    %5205 = vmatpush1.msra.mxu0 0.0
    %5206 = vmatprep.subr.mxu0 0.0
    %5207 = vmatpush1.msra.mxu0 0.0
    %5208 = vmatprep.subr.mxu0 0.0
    %5209 = vmatpush1.msra.mxu0 0.0
    %5210 = vmatprep.subr.mxu0 0.0
    %5211 = vmatpush1.msra.mxu0 0.0
    %5212 = vmatprep.subr.mxu0 0.0
    %5213 = vmatpush1.msra.mxu0 0.0
    %5214 = vmatprep.subr.mxu0 0.0
    %5215 = vmatpush1.msra.mxu0 0.0
    %5216 = vmatprep.subr.mxu0 0.0
    %5217 = vmatpush1.msra.mxu0 0.0
    %5218 = vmatprep.subr.mxu0 0.0
    %5219 = vmatpush1.msra.mxu0 0.0
    %5220 = vmatprep.subr.mxu0 0.0
    %5221 = vmatpush1.msra.mxu0 0.0
    %5222 = vmatprep.subr.mxu0 0.0
    %5223 = vmatpush1.msra.mxu0 0.0
    %5224 = vmatprep.subr.mxu0 0.0
    %5225 = vmatpush1.msra.mxu0 0.0
    %5226 = vmatprep.subr.mxu0 0.0
    %5227 = vmatpush1.msra.mxu0 0.0
    %5228 = vmatprep.subr.mxu0 0.0
    %5229 = vmatpush1.msra.mxu0 0.0
    %5230 = vmatprep.subr.mxu0 0.0
    %5231 = vmatpush1.msra.mxu0 0.0
    %5232 = vmatprep.mubr.f32.mxu0 0.0
    %5233 = vmatmul.mubr.f32.gmra.mrb[0].mxu0 %v5048
    %v5234 = vpop.f32.mrb[0].mxu0
    %v5235 = vadd.f32 0.0, %v5234
    %v5236 = vpop.f32.mrb[0].mxu0
    %5237 = vdwg.mxu0
    %v5238 = vld [vmem:[%s1988] sm:$0xff]
    %v5239 = vld [vmem:[%s1988 + $0x8] sm:$0xff]
    %v5240 = vld [vmem:[%s1988 + $0x10] sm:$0xff]
    %v5241 = vadd.f32 %v5238, %v5164
    %v5242 = vxor.u32 %v5241, 2147483648
    %v5243 = vmul.f32 %v5242, 1.442695
    %v5244 = vpow.pop %v5243
    %v5245 = vadd.f32 %v5244, 1.0
    %v5246 = vrcp.pop %v5245
    %v5247 = vmul.f32 1.0, %v5246
    %v5248 = vadd.f32 %v5239, %v5166
    %v5249 = vxor.u32 %v5248, 2147483648
    %v5250 = vmul.f32 %v5249, 1.442695
    %v5251 = vpow.pop %v5250
    %v5252 = vadd.f32 %v5251, 1.0
    %v5253 = vrcp.pop %v5252
    %v5254 = vmul.f32 1.0, %v5253
    %v5255 = vadd.f32 %v5235, %v4616
    %v5256 = vmul.f32 %v5247, %v5255
    %v5257 = vadd.f32 %v5240, %v5256
    %v5258 = vtanh.pop %v5257
    %v5259 = vsub.f32 %v5048, %v5258
    %v5260 = vmul.f32 %v5254, %v5259
    %v5261 = vadd.f32 %v5258, %v5260
    %5262 = vst [vmem:[#allocation4] sm:$0xff] %v5261
    %v5263 = vld [vmem:[#allocation4] sm:$0xff]
    %v5264 = vld [vmem:[#allocation14] sm:$0xff]
    %v5265 = vld [vmem:[#allocation14 + $0x8] sm:$0xff]
    %v5266 = vld [vmem:[#allocation14 + $0x10] sm:$0xff]
    %v5267 = vld [vmem:[#allocation14 + $0x30] sm:$0xff]
    %v5268 = vld [vmem:[#allocation14 + $0x38] sm:$0xff]
    %v5269 = vld [vmem:[#allocation14 + $0x40] sm:$0xff]
    %v5270 = vld [vmem:[#allocation14 + $0x60] sm:$0xff]
    %v5271 = vld [vmem:[#allocation14 + $0x68] sm:$0xff]
    %v5272 = vld [vmem:[#allocation14 + $0x70] sm:$0xff]
    %v5273 = vld [vmem:[#allocation14 + $0x90] sm:$0xff]
    %v5274 = vld [vmem:[#allocation14 + $0x98] sm:$0xff]
    %v5275 = vld [vmem:[#allocation14 + $0xa0] sm:$0xff]
    %v5276 = vld [vmem:[#allocation14 + $0xc0] sm:$0xff]
    %v5277 = vld [vmem:[#allocation14 + $0xc8] sm:$0xff]
    %v5278 = vld [vmem:[#allocation14 + $0xd0] sm:$0xff]
    %v5279 = vld [vmem:[#allocation14 + $0xf0] sm:$0xff]
    %v5280 = vld [vmem:[#allocation14 + $0xf8] sm:$0xff]
    %v5281 = vld [vmem:[#allocation14 + $0x100] sm:$0xff]
    %v5282 = vld [vmem:[#allocation14 + $0x120] sm:$0xff]
    %v5283 = vld [vmem:[#allocation14 + $0x128] sm:$0xff]
    %v5284 = vld [vmem:[#allocation14 + $0x130] sm:$0xff]
    %v5285 = vld [vmem:[#allocation14 + $0x150] sm:$0xff]
    %v5286 = vld [vmem:[#allocation14 + $0x158] sm:$0xff]
    %v5287 = vld [vmem:[#allocation14 + $0x160] sm:$0xff]
    %v5288 = vld [vmem:[#allocation14 + $0x180] sm:$0xff]
    %v5289 = vld [vmem:[#allocation14 + $0x188] sm:$0xff]
    %v5290 = vld [vmem:[#allocation14 + $0x190] sm:$0xff]
    %v5291 = vld [vmem:[#allocation14 + $0x1b0] sm:$0xff]
    %v5292 = vld [vmem:[#allocation14 + $0x1b8] sm:$0xff]
    %v5293 = vld [vmem:[#allocation14 + $0x1c0] sm:$0xff]
    %v5294 = vld [vmem:[#allocation14 + $0x1e0] sm:$0xff]
    %v5295 = vld [vmem:[#allocation14 + $0x1e8] sm:$0xff]
    %v5296 = vld [vmem:[#allocation14 + $0x1f0] sm:$0xff]
    %v5297 = vld [vmem:[#allocation14 + $0x210] sm:$0xff]
    %v5298 = vld [vmem:[#allocation14 + $0x218] sm:$0xff]
    %v5299 = vld [vmem:[#allocation14 + $0x220] sm:$0xff]
    %v5300 = vld [vmem:[#allocation14 + $0x240] sm:$0xff]
    %v5301 = vld [vmem:[#allocation14 + $0x248] sm:$0xff]
    %v5302 = vld [vmem:[#allocation14 + $0x250] sm:$0xff]
    %v5303 = vld [vmem:[#allocation14 + $0x270] sm:$0xff]
    %v5304 = vld [vmem:[#allocation14 + $0x278] sm:$0xff]
    %v5305 = vld [vmem:[#allocation14 + $0x280] sm:$0xff]
    %v5306 = vld [vmem:[#allocation14 + $0x2a0] sm:$0xff]
    %v5307 = vld [vmem:[#allocation14 + $0x2a8] sm:$0xff]
    %v5308 = vld [vmem:[#allocation14 + $0x2b0] sm:$0xff]
    %v5309 = vld [vmem:[#allocation14 + $0x2d0] sm:$0xff]
    %v5310 = vld [vmem:[#allocation14 + $0x2d8] sm:$0xff]
    %v5311 = vld [vmem:[#allocation14 + $0x2e0] sm:$0xff]
    %5312 = vmatprep.subr.mxu0 %v5265
    %5313 = vmatpush1.msra.mxu0 %v5264
    %5314 = vmatprep.subr.mxu0 %v5268
    %5315 = vmatpush1.msra.mxu0 %v5267
    %5316 = vmatprep.subr.mxu0 %v5271
    %5317 = vmatpush1.msra.mxu0 %v5270
    %5318 = vmatprep.subr.mxu0 %v5274
    %5319 = vmatpush1.msra.mxu0 %v5273
    %5320 = vmatprep.subr.mxu0 %v5277
    %5321 = vmatpush1.msra.mxu0 %v5276
    %5322 = vmatprep.subr.mxu0 %v5280
    %5323 = vmatpush1.msra.mxu0 %v5279
    %5324 = vmatprep.subr.mxu0 %v5283
    %5325 = vmatpush1.msra.mxu0 %v5282
    %5326 = vmatprep.subr.mxu0 %v5286
    %5327 = vmatpush1.msra.mxu0 %v5285
    %5328 = vmatprep.subr.mxu0 %v5289
    %5329 = vmatpush1.msra.mxu0 %v5288
    %5330 = vmatprep.subr.mxu0 %v5292
    %5331 = vmatpush1.msra.mxu0 %v5291
    %5332 = vmatprep.subr.mxu0 %v5295
    %5333 = vmatpush1.msra.mxu0 %v5294
    %5334 = vmatprep.subr.mxu0 %v5298
    %5335 = vmatpush1.msra.mxu0 %v5297
    %5336 = vmatprep.subr.mxu0 %v5301
    %5337 = vmatpush1.msra.mxu0 %v5300
    %5338 = vmatprep.subr.mxu0 %v5304
    %5339 = vmatpush1.msra.mxu0 %v5303
    %5340 = vmatprep.subr.mxu0 %v5307
    %5341 = vmatpush1.msra.mxu0 %v5306
    %5342 = vmatprep.subr.mxu0 %v5310
    %5343 = vmatpush1.msra.mxu0 %v5309
    %5344 = vmatprep.subr.mxu0 0.0
    %5345 = vmatpush1.msra.mxu0 0.0
    %5346 = vmatprep.subr.mxu0 0.0
    %5347 = vmatpush1.msra.mxu0 0.0
    %5348 = vmatprep.subr.mxu0 0.0
    %5349 = vmatpush1.msra.mxu0 0.0
    %5350 = vmatprep.subr.mxu0 0.0
    %5351 = vmatpush1.msra.mxu0 0.0
    %5352 = vmatprep.subr.mxu0 0.0
    %5353 = vmatpush1.msra.mxu0 0.0
    %5354 = vmatprep.subr.mxu0 0.0
    %5355 = vmatpush1.msra.mxu0 0.0
    %5356 = vmatprep.subr.mxu0 0.0
    %5357 = vmatpush1.msra.mxu0 0.0
    %5358 = vmatprep.subr.mxu0 0.0
    %5359 = vmatpush1.msra.mxu0 0.0
    %5360 = vmatprep.subr.mxu0 0.0
    %5361 = vmatpush1.msra.mxu0 0.0
    %5362 = vmatprep.subr.mxu0 0.0
    %5363 = vmatpush1.msra.mxu0 0.0
    %5364 = vmatprep.subr.mxu0 0.0
    %5365 = vmatpush1.msra.mxu0 0.0
    %5366 = vmatprep.subr.mxu0 0.0
    %5367 = vmatpush1.msra.mxu0 0.0
    %5368 = vmatprep.subr.mxu0 0.0
    %5369 = vmatpush1.msra.mxu0 0.0
    %5370 = vmatprep.subr.mxu0 0.0
    %5371 = vmatpush1.msra.mxu0 0.0
    %5372 = vmatprep.subr.mxu0 0.0
    %5373 = vmatpush1.msra.mxu0 0.0
    %5374 = vmatprep.subr.mxu0 0.0
    %5375 = vmatpush1.msra.mxu0 0.0
    %5376 = vmatprep.mubr.f32.mxu0 0.0
    %5377 = vmatmul.mubr.f32.gmra.mrb[0].mxu0 %v5263
    %v5378 = vpop.f32.mrb[0].mxu0
    %v5379 = vadd.f32 0.0, %v5378
    %v5380 = vpop.f32.mrb[0].mxu0
    %v5381 = vadd.f32 0.0, %v5380
    %5382 = vdwg.mxu0
    %5383 = vmatprep.subr.mxu0 0.0
    %5384 = vmatpush1.msra.mxu0 %v5266
    %5385 = vmatprep.subr.mxu0 0.0
    %5386 = vmatpush1.msra.mxu0 %v5269
    %5387 = vmatprep.subr.mxu0 0.0
    %5388 = vmatpush1.msra.mxu0 %v5272
    %5389 = vmatprep.subr.mxu0 0.0
    %5390 = vmatpush1.msra.mxu0 %v5275
    %5391 = vmatprep.subr.mxu0 0.0
    %5392 = vmatpush1.msra.mxu0 %v5278
    %5393 = vmatprep.subr.mxu0 0.0
    %5394 = vmatpush1.msra.mxu0 %v5281
    %5395 = vmatprep.subr.mxu0 0.0
    %5396 = vmatpush1.msra.mxu0 %v5284
    %5397 = vmatprep.subr.mxu0 0.0
    %5398 = vmatpush1.msra.mxu0 %v5287
    %5399 = vmatprep.subr.mxu0 0.0
    %5400 = vmatpush1.msra.mxu0 %v5290
    %5401 = vmatprep.subr.mxu0 0.0
    %5402 = vmatpush1.msra.mxu0 %v5293
    %5403 = vmatprep.subr.mxu0 0.0
    %5404 = vmatpush1.msra.mxu0 %v5296
    %5405 = vmatprep.subr.mxu0 0.0
    %5406 = vmatpush1.msra.mxu0 %v5299
    %5407 = vmatprep.subr.mxu0 0.0
    %5408 = vmatpush1.msra.mxu0 %v5302
    %5409 = vmatprep.subr.mxu0 0.0
    %5410 = vmatpush1.msra.mxu0 %v5305
    %5411 = vmatprep.subr.mxu0 0.0
    %5412 = vmatpush1.msra.mxu0 %v5308
    %5413 = vmatprep.subr.mxu0 0.0
    %5414 = vmatpush1.msra.mxu0 %v5311
    %5415 = vmatprep.subr.mxu0 0.0
    %5416 = vmatpush1.msra.mxu0 0.0
    %5417 = vmatprep.subr.mxu0 0.0
    %5418 = vmatpush1.msra.mxu0 0.0
    %5419 = vmatprep.subr.mxu0 0.0
    %5420 = vmatpush1.msra.mxu0 0.0
    %5421 = vmatprep.subr.mxu0 0.0
    %5422 = vmatpush1.msra.mxu0 0.0
    %5423 = vmatprep.subr.mxu0 0.0
    %5424 = vmatpush1.msra.mxu0 0.0
    %5425 = vmatprep.subr.mxu0 0.0
    %5426 = vmatpush1.msra.mxu0 0.0
    %5427 = vmatprep.subr.mxu0 0.0
    %5428 = vmatpush1.msra.mxu0 0.0
    %5429 = vmatprep.subr.mxu0 0.0
    %5430 = vmatpush1.msra.mxu0 0.0
    %5431 = vmatprep.subr.mxu0 0.0
    %5432 = vmatpush1.msra.mxu0 0.0
    %5433 = vmatprep.subr.mxu0 0.0
    %5434 = vmatpush1.msra.mxu0 0.0
    %5435 = vmatprep.subr.mxu0 0.0
    %5436 = vmatpush1.msra.mxu0 0.0
    %5437 = vmatprep.subr.mxu0 0.0
    %5438 = vmatpush1.msra.mxu0 0.0
    %5439 = vmatprep.subr.mxu0 0.0
    %5440 = vmatpush1.msra.mxu0 0.0
    %5441 = vmatprep.subr.mxu0 0.0
    %5442 = vmatpush1.msra.mxu0 0.0
    %5443 = vmatprep.subr.mxu0 0.0
    %5444 = vmatpush1.msra.mxu0 0.0
    %5445 = vmatprep.subr.mxu0 0.0
    %5446 = vmatpush1.msra.mxu0 0.0
    %5447 = vmatprep.mubr.f32.mxu0 0.0
    %5448 = vmatmul.mubr.f32.gmra.mrb[0].mxu0 %v5263
    %v5449 = vpop.f32.mrb[0].mxu0
    %v5450 = vadd.f32 0.0, %v5449
    %v5451 = vpop.f32.mrb[0].mxu0
    %5452 = vdwg.mxu0
    %v5453 = vld [vmem:[%s2432] sm:$0xff]
    %v5454 = vld [vmem:[%s2432 + $0x8] sm:$0xff]
    %v5455 = vld [vmem:[%s2432 + $0x10] sm:$0xff]
    %v5456 = vadd.f32 %v5453, %v5379
    %v5457 = vxor.u32 %v5456, 2147483648
    %v5458 = vmul.f32 %v5457, 1.442695
    %v5459 = vpow.pop %v5458
    %v5460 = vadd.f32 %v5459, 1.0
    %v5461 = vrcp.pop %v5460
    %v5462 = vmul.f32 1.0, %v5461
    %v5463 = vadd.f32 %v5454, %v5381
    %v5464 = vxor.u32 %v5463, 2147483648
    %v5465 = vmul.f32 %v5464, 1.442695
    %v5466 = vpow.pop %v5465
    %v5467 = vadd.f32 %v5466, 1.0
    %v5468 = vrcp.pop %v5467
    %v5469 = vmul.f32 1.0, %v5468
    %v5470 = vadd.f32 %v5450, %v4616
    %v5471 = vmul.f32 %v5462, %v5470
    %v5472 = vadd.f32 %v5455, %v5471
    %v5473 = vtanh.pop %v5472
    %v5474 = vsub.f32 %v5263, %v5473
    %v5475 = vmul.f32 %v5469, %v5474
    %v5476 = vadd.f32 %v5473, %v5475
    %5477 = vst [vmem:[#allocation4] sm:$0xff] %v5476
    %v5478 = vld [vmem:[#allocation4] sm:$0xff]
    %v5479 = vld [vmem:[#allocation14] sm:$0xff]
    %v5480 = vld [vmem:[#allocation14 + $0x8] sm:$0xff]
    %v5481 = vld [vmem:[#allocation14 + $0x10] sm:$0xff]
    %v5482 = vld [vmem:[#allocation14 + $0x30] sm:$0xff]
    %v5483 = vld [vmem:[#allocation14 + $0x38] sm:$0xff]
    %v5484 = vld [vmem:[#allocation14 + $0x40] sm:$0xff]
    %v5485 = vld [vmem:[#allocation14 + $0x60] sm:$0xff]
    %v5486 = vld [vmem:[#allocation14 + $0x68] sm:$0xff]
    %v5487 = vld [vmem:[#allocation14 + $0x70] sm:$0xff]
    %v5488 = vld [vmem:[#allocation14 + $0x90] sm:$0xff]
    %v5489 = vld [vmem:[#allocation14 + $0x98] sm:$0xff]
    %v5490 = vld [vmem:[#allocation14 + $0xa0] sm:$0xff]
    %v5491 = vld [vmem:[#allocation14 + $0xc0] sm:$0xff]
    %v5492 = vld [vmem:[#allocation14 + $0xc8] sm:$0xff]
    %v5493 = vld [vmem:[#allocation14 + $0xd0] sm:$0xff]
    %v5494 = vld [vmem:[#allocation14 + $0xf0] sm:$0xff]
    %v5495 = vld [vmem:[#allocation14 + $0xf8] sm:$0xff]
    %v5496 = vld [vmem:[#allocation14 + $0x100] sm:$0xff]
    %v5497 = vld [vmem:[#allocation14 + $0x120] sm:$0xff]
    %v5498 = vld [vmem:[#allocation14 + $0x128] sm:$0xff]
    %v5499 = vld [vmem:[#allocation14 + $0x130] sm:$0xff]
    %v5500 = vld [vmem:[#allocation14 + $0x150] sm:$0xff]
    %v5501 = vld [vmem:[#allocation14 + $0x158] sm:$0xff]
    %v5502 = vld [vmem:[#allocation14 + $0x160] sm:$0xff]
    %v5503 = vld [vmem:[#allocation14 + $0x180] sm:$0xff]
    %v5504 = vld [vmem:[#allocation14 + $0x188] sm:$0xff]
    %v5505 = vld [vmem:[#allocation14 + $0x190] sm:$0xff]
    %v5506 = vld [vmem:[#allocation14 + $0x1b0] sm:$0xff]
    %v5507 = vld [vmem:[#allocation14 + $0x1b8] sm:$0xff]
    %v5508 = vld [vmem:[#allocation14 + $0x1c0] sm:$0xff]
    %v5509 = vld [vmem:[#allocation14 + $0x1e0] sm:$0xff]
    %v5510 = vld [vmem:[#allocation14 + $0x1e8] sm:$0xff]
    %v5511 = vld [vmem:[#allocation14 + $0x1f0] sm:$0xff]
    %v5512 = vld [vmem:[#allocation14 + $0x210] sm:$0xff]
    %v5513 = vld [vmem:[#allocation14 + $0x218] sm:$0xff]
    %v5514 = vld [vmem:[#allocation14 + $0x220] sm:$0xff]
    %v5515 = vld [vmem:[#allocation14 + $0x240] sm:$0xff]
    %v5516 = vld [vmem:[#allocation14 + $0x248] sm:$0xff]
    %v5517 = vld [vmem:[#allocation14 + $0x250] sm:$0xff]
    %v5518 = vld [vmem:[#allocation14 + $0x270] sm:$0xff]
    %v5519 = vld [vmem:[#allocation14 + $0x278] sm:$0xff]
    %v5520 = vld [vmem:[#allocation14 + $0x280] sm:$0xff]
    %v5521 = vld [vmem:[#allocation14 + $0x2a0] sm:$0xff]
    %v5522 = vld [vmem:[#allocation14 + $0x2a8] sm:$0xff]
    %v5523 = vld [vmem:[#allocation14 + $0x2b0] sm:$0xff]
    %v5524 = vld [vmem:[#allocation14 + $0x2d0] sm:$0xff]
    %v5525 = vld [vmem:[#allocation14 + $0x2d8] sm:$0xff]
    %v5526 = vld [vmem:[#allocation14 + $0x2e0] sm:$0xff]
    %5527 = vmatprep.subr.mxu0 %v5480
    %5528 = vmatpush1.msra.mxu0 %v5479
    %5529 = vmatprep.subr.mxu0 %v5483
    %5530 = vmatpush1.msra.mxu0 %v5482
    %5531 = vmatprep.subr.mxu0 %v5486
    %5532 = vmatpush1.msra.mxu0 %v5485
    %5533 = vmatprep.subr.mxu0 %v5489
    %5534 = vmatpush1.msra.mxu0 %v5488
    %5535 = vmatprep.subr.mxu0 %v5492
    %5536 = vmatpush1.msra.mxu0 %v5491
    %5537 = vmatprep.subr.mxu0 %v5495
    %5538 = vmatpush1.msra.mxu0 %v5494
    %5539 = vmatprep.subr.mxu0 %v5498
    %5540 = vmatpush1.msra.mxu0 %v5497
    %5541 = vmatprep.subr.mxu0 %v5501
    %5542 = vmatpush1.msra.mxu0 %v5500
    %5543 = vmatprep.subr.mxu0 %v5504
    %5544 = vmatpush1.msra.mxu0 %v5503
    %5545 = vmatprep.subr.mxu0 %v5507
    %5546 = vmatpush1.msra.mxu0 %v5506
    %5547 = vmatprep.subr.mxu0 %v5510
    %5548 = vmatpush1.msra.mxu0 %v5509
    %5549 = vmatprep.subr.mxu0 %v5513
    %5550 = vmatpush1.msra.mxu0 %v5512
    %5551 = vmatprep.subr.mxu0 %v5516
    %5552 = vmatpush1.msra.mxu0 %v5515
    %5553 = vmatprep.subr.mxu0 %v5519
    %5554 = vmatpush1.msra.mxu0 %v5518
    %5555 = vmatprep.subr.mxu0 %v5522
    %5556 = vmatpush1.msra.mxu0 %v5521
    %5557 = vmatprep.subr.mxu0 %v5525
    %5558 = vmatpush1.msra.mxu0 %v5524
    %5559 = vmatprep.subr.mxu0 0.0
    %5560 = vmatpush1.msra.mxu0 0.0
    %5561 = vmatprep.subr.mxu0 0.0
    %5562 = vmatpush1.msra.mxu0 0.0
    %5563 = vmatprep.subr.mxu0 0.0
    %5564 = vmatpush1.msra.mxu0 0.0
    %5565 = vmatprep.subr.mxu0 0.0
    %5566 = vmatpush1.msra.mxu0 0.0
    %5567 = vmatprep.subr.mxu0 0.0
    %5568 = vmatpush1.msra.mxu0 0.0
    %5569 = vmatprep.subr.mxu0 0.0
    %5570 = vmatpush1.msra.mxu0 0.0
    %5571 = vmatprep.subr.mxu0 0.0
    %5572 = vmatpush1.msra.mxu0 0.0
    %5573 = vmatprep.subr.mxu0 0.0
    %5574 = vmatpush1.msra.mxu0 0.0
    %5575 = vmatprep.subr.mxu0 0.0
    %5576 = vmatpush1.msra.mxu0 0.0
    %5577 = vmatprep.subr.mxu0 0.0
    %5578 = vmatpush1.msra.mxu0 0.0
    %5579 = vmatprep.subr.mxu0 0.0
    %5580 = vmatpush1.msra.mxu0 0.0
    %5581 = vmatprep.subr.mxu0 0.0
    %5582 = vmatpush1.msra.mxu0 0.0
    %5583 = vmatprep.subr.mxu0 0.0
    %5584 = vmatpush1.msra.mxu0 0.0
    %5585 = vmatprep.subr.mxu0 0.0
    %5586 = vmatpush1.msra.mxu0 0.0
    %5587 = vmatprep.subr.mxu0 0.0
    %5588 = vmatpush1.msra.mxu0 0.0
    %5589 = vmatprep.subr.mxu0 0.0
    %5590 = vmatpush1.msra.mxu0 0.0
    %5591 = vmatprep.mubr.f32.mxu0 0.0
    %5592 = vmatmul.mubr.f32.gmra.mrb[0].mxu0 %v5478
    %v5593 = vpop.f32.mrb[0].mxu0
    %v5594 = vadd.f32 0.0, %v5593
    %v5595 = vpop.f32.mrb[0].mxu0
    %v5596 = vadd.f32 0.0, %v5595
    %5597 = vdwg.mxu0
    %5598 = vmatprep.subr.mxu0 0.0
    %5599 = vmatpush1.msra.mxu0 %v5481
    %5600 = vmatprep.subr.mxu0 0.0
    %5601 = vmatpush1.msra.mxu0 %v5484
    %5602 = vmatprep.subr.mxu0 0.0
    %5603 = vmatpush1.msra.mxu0 %v5487
    %5604 = vmatprep.subr.mxu0 0.0
    %5605 = vmatpush1.msra.mxu0 %v5490
    %5606 = vmatprep.subr.mxu0 0.0
    %5607 = vmatpush1.msra.mxu0 %v5493
    %5608 = vmatprep.subr.mxu0 0.0
    %5609 = vmatpush1.msra.mxu0 %v5496
    %5610 = vmatprep.subr.mxu0 0.0
    %5611 = vmatpush1.msra.mxu0 %v5499
    %5612 = vmatprep.subr.mxu0 0.0
    %5613 = vmatpush1.msra.mxu0 %v5502
    %5614 = vmatprep.subr.mxu0 0.0
    %5615 = vmatpush1.msra.mxu0 %v5505
    %5616 = vmatprep.subr.mxu0 0.0
    %5617 = vmatpush1.msra.mxu0 %v5508
    %5618 = vmatprep.subr.mxu0 0.0
    %5619 = vmatpush1.msra.mxu0 %v5511
    %5620 = vmatprep.subr.mxu0 0.0
    %5621 = vmatpush1.msra.mxu0 %v5514
    %5622 = vmatprep.subr.mxu0 0.0
    %5623 = vmatpush1.msra.mxu0 %v5517
    %5624 = vmatprep.subr.mxu0 0.0
    %5625 = vmatpush1.msra.mxu0 %v5520
    %5626 = vmatprep.subr.mxu0 0.0
    %5627 = vmatpush1.msra.mxu0 %v5523
    %5628 = vmatprep.subr.mxu0 0.0
    %5629 = vmatpush1.msra.mxu0 %v5526
    %5630 = vmatprep.subr.mxu0 0.0
    %5631 = vmatpush1.msra.mxu0 0.0
    %5632 = vmatprep.subr.mxu0 0.0
    %5633 = vmatpush1.msra.mxu0 0.0
    %5634 = vmatprep.subr.mxu0 0.0
    %5635 = vmatpush1.msra.mxu0 0.0
    %5636 = vmatprep.subr.mxu0 0.0
    %5637 = vmatpush1.msra.mxu0 0.0
    %5638 = vmatprep.subr.mxu0 0.0
    %5639 = vmatpush1.msra.mxu0 0.0
    %5640 = vmatprep.subr.mxu0 0.0
    %5641 = vmatpush1.msra.mxu0 0.0
    %5642 = vmatprep.subr.mxu0 0.0
    %5643 = vmatpush1.msra.mxu0 0.0
    %5644 = vmatprep.subr.mxu0 0.0
    %5645 = vmatpush1.msra.mxu0 0.0
    %5646 = vmatprep.subr.mxu0 0.0
    %5647 = vmatpush1.msra.mxu0 0.0
    %5648 = vmatprep.subr.mxu0 0.0
    %5649 = vmatpush1.msra.mxu0 0.0
    %5650 = vmatprep.subr.mxu0 0.0
    %5651 = vmatpush1.msra.mxu0 0.0
    %5652 = vmatprep.subr.mxu0 0.0
    %5653 = vmatpush1.msra.mxu0 0.0
    %5654 = vmatprep.subr.mxu0 0.0
    %5655 = vmatpush1.msra.mxu0 0.0
    %5656 = vmatprep.subr.mxu0 0.0
    %5657 = vmatpush1.msra.mxu0 0.0
    %5658 = vmatprep.subr.mxu0 0.0
    %5659 = vmatpush1.msra.mxu0 0.0
    %5660 = vmatprep.subr.mxu0 0.0
    %5661 = vmatpush1.msra.mxu0 0.0
    %5662 = vmatprep.mubr.f32.mxu0 0.0
    %5663 = vmatmul.mubr.f32.gmra.mrb[0].mxu0 %v5478
    %v5664 = vpop.f32.mrb[0].mxu0
    %v5665 = vadd.f32 0.0, %v5664
    %v5666 = vpop.f32.mrb[0].mxu0
    %5667 = vdwg.mxu0
    %v5668 = vld [vmem:[%s2875] sm:$0xff]
    %v5669 = vld [vmem:[%s2875 + $0x8] sm:$0xff]
    %v5670 = vld [vmem:[%s2875 + $0x10] sm:$0xff]
    %v5671 = vadd.f32 %v5668, %v5594
    %v5672 = vxor.u32 %v5671, 2147483648
    %v5673 = vmul.f32 %v5672, 1.442695
    %v5674 = vpow.pop %v5673
    %v5675 = vadd.f32 %v5674, 1.0
    %v5676 = vrcp.pop %v5675
    %v5677 = vmul.f32 1.0, %v5676
    %v5678 = vadd.f32 %v5669, %v5596
    %v5679 = vxor.u32 %v5678, 2147483648
    %v5680 = vmul.f32 %v5679, 1.442695
    %v5681 = vpow.pop %v5680
    %v5682 = vadd.f32 %v5681, 1.0
    %v5683 = vrcp.pop %v5682
    %v5684 = vmul.f32 1.0, %v5683
    %v5685 = vadd.f32 %v5665, %v4616
    %v5686 = vmul.f32 %v5677, %v5685
    %v5687 = vadd.f32 %v5670, %v5686
    %v5688 = vtanh.pop %v5687
    %v5689 = vsub.f32 %v5478, %v5688
    %v5690 = vmul.f32 %v5684, %v5689
    %v5691 = vadd.f32 %v5688, %v5690
    %5692 = vst [vmem:[#allocation4] sm:$0xff] %v5691
    %v5693 = vld [vmem:[#allocation4] sm:$0xff]
    %v5694 = vld [vmem:[#allocation14] sm:$0xff]
    %v5695 = vld [vmem:[#allocation14 + $0x8] sm:$0xff]
    %v5696 = vld [vmem:[#allocation14 + $0x10] sm:$0xff]
    %v5697 = vld [vmem:[#allocation14 + $0x30] sm:$0xff]
    %v5698 = vld [vmem:[#allocation14 + $0x38] sm:$0xff]
    %v5699 = vld [vmem:[#allocation14 + $0x40] sm:$0xff]
    %v5700 = vld [vmem:[#allocation14 + $0x60] sm:$0xff]
    %v5701 = vld [vmem:[#allocation14 + $0x68] sm:$0xff]
    %v5702 = vld [vmem:[#allocation14 + $0x70] sm:$0xff]
    %v5703 = vld [vmem:[#allocation14 + $0x90] sm:$0xff]
    %v5704 = vld [vmem:[#allocation14 + $0x98] sm:$0xff]
    %v5705 = vld [vmem:[#allocation14 + $0xa0] sm:$0xff]
    %v5706 = vld [vmem:[#allocation14 + $0xc0] sm:$0xff]
    %v5707 = vld [vmem:[#allocation14 + $0xc8] sm:$0xff]
    %v5708 = vld [vmem:[#allocation14 + $0xd0] sm:$0xff]
    %v5709 = vld [vmem:[#allocation14 + $0xf0] sm:$0xff]
    %v5710 = vld [vmem:[#allocation14 + $0xf8] sm:$0xff]
    %v5711 = vld [vmem:[#allocation14 + $0x100] sm:$0xff]
    %v5712 = vld [vmem:[#allocation14 + $0x120] sm:$0xff]
    %v5713 = vld [vmem:[#allocation14 + $0x128] sm:$0xff]
    %v5714 = vld [vmem:[#allocation14 + $0x130] sm:$0xff]
    %v5715 = vld [vmem:[#allocation14 + $0x150] sm:$0xff]
    %v5716 = vld [vmem:[#allocation14 + $0x158] sm:$0xff]
    %v5717 = vld [vmem:[#allocation14 + $0x160] sm:$0xff]
    %v5718 = vld [vmem:[#allocation14 + $0x180] sm:$0xff]
    %v5719 = vld [vmem:[#allocation14 + $0x188] sm:$0xff]
    %v5720 = vld [vmem:[#allocation14 + $0x190] sm:$0xff]
    %v5721 = vld [vmem:[#allocation14 + $0x1b0] sm:$0xff]
    %v5722 = vld [vmem:[#allocation14 + $0x1b8] sm:$0xff]
    %v5723 = vld [vmem:[#allocation14 + $0x1c0] sm:$0xff]
    %v5724 = vld [vmem:[#allocation14 + $0x1e0] sm:$0xff]
    %v5725 = vld [vmem:[#allocation14 + $0x1e8] sm:$0xff]
    %v5726 = vld [vmem:[#allocation14 + $0x1f0] sm:$0xff]
    %v5727 = vld [vmem:[#allocation14 + $0x210] sm:$0xff]
    %v5728 = vld [vmem:[#allocation14 + $0x218] sm:$0xff]
    %v5729 = vld [vmem:[#allocation14 + $0x220] sm:$0xff]
    %v5730 = vld [vmem:[#allocation14 + $0x240] sm:$0xff]
    %v5731 = vld [vmem:[#allocation14 + $0x248] sm:$0xff]
    %v5732 = vld [vmem:[#allocation14 + $0x250] sm:$0xff]
    %v5733 = vld [vmem:[#allocation14 + $0x270] sm:$0xff]
    %v5734 = vld [vmem:[#allocation14 + $0x278] sm:$0xff]
    %v5735 = vld [vmem:[#allocation14 + $0x280] sm:$0xff]
    %v5736 = vld [vmem:[#allocation14 + $0x2a0] sm:$0xff]
    %v5737 = vld [vmem:[#allocation14 + $0x2a8] sm:$0xff]
    %v5738 = vld [vmem:[#allocation14 + $0x2b0] sm:$0xff]
    %v5739 = vld [vmem:[#allocation14 + $0x2d0] sm:$0xff]
    %v5740 = vld [vmem:[#allocation14 + $0x2d8] sm:$0xff]
    %v5741 = vld [vmem:[#allocation14 + $0x2e0] sm:$0xff]
    %5742 = vmatprep.subr.mxu0 %v5695
    %5743 = vmatpush1.msra.mxu0 %v5694
    %5744 = vmatprep.subr.mxu0 %v5698
    %5745 = vmatpush1.msra.mxu0 %v5697
    %5746 = vmatprep.subr.mxu0 %v5701
    %5747 = vmatpush1.msra.mxu0 %v5700
    %5748 = vmatprep.subr.mxu0 %v5704
    %5749 = vmatpush1.msra.mxu0 %v5703
    %5750 = vmatprep.subr.mxu0 %v5707
    %5751 = vmatpush1.msra.mxu0 %v5706
    %5752 = vmatprep.subr.mxu0 %v5710
    %5753 = vmatpush1.msra.mxu0 %v5709
    %5754 = vmatprep.subr.mxu0 %v5713
    %5755 = vmatpush1.msra.mxu0 %v5712
    %5756 = vmatprep.subr.mxu0 %v5716
    %5757 = vmatpush1.msra.mxu0 %v5715
    %5758 = vmatprep.subr.mxu0 %v5719
    %5759 = vmatpush1.msra.mxu0 %v5718
    %5760 = vmatprep.subr.mxu0 %v5722
    %5761 = vmatpush1.msra.mxu0 %v5721
    %5762 = vmatprep.subr.mxu0 %v5725
    %5763 = vmatpush1.msra.mxu0 %v5724
    %5764 = vmatprep.subr.mxu0 %v5728
    %5765 = vmatpush1.msra.mxu0 %v5727
    %5766 = vmatprep.subr.mxu0 %v5731
    %5767 = vmatpush1.msra.mxu0 %v5730
    %5768 = vmatprep.subr.mxu0 %v5734
    %5769 = vmatpush1.msra.mxu0 %v5733
    %5770 = vmatprep.subr.mxu0 %v5737
    %5771 = vmatpush1.msra.mxu0 %v5736
    %5772 = vmatprep.subr.mxu0 %v5740
    %5773 = vmatpush1.msra.mxu0 %v5739
    %5774 = vmatprep.subr.mxu0 0.0
    %5775 = vmatpush1.msra.mxu0 0.0
    %5776 = vmatprep.subr.mxu0 0.0
    %5777 = vmatpush1.msra.mxu0 0.0
    %5778 = vmatprep.subr.mxu0 0.0
    %5779 = vmatpush1.msra.mxu0 0.0
    %5780 = vmatprep.subr.mxu0 0.0
    %5781 = vmatpush1.msra.mxu0 0.0
    %5782 = vmatprep.subr.mxu0 0.0
    %5783 = vmatpush1.msra.mxu0 0.0
    %5784 = vmatprep.subr.mxu0 0.0
    %5785 = vmatpush1.msra.mxu0 0.0
    %5786 = vmatprep.subr.mxu0 0.0
    %5787 = vmatpush1.msra.mxu0 0.0
    %5788 = vmatprep.subr.mxu0 0.0
    %5789 = vmatpush1.msra.mxu0 0.0
    %5790 = vmatprep.subr.mxu0 0.0
    %5791 = vmatpush1.msra.mxu0 0.0
    %5792 = vmatprep.subr.mxu0 0.0
    %5793 = vmatpush1.msra.mxu0 0.0
    %5794 = vmatprep.subr.mxu0 0.0
    %5795 = vmatpush1.msra.mxu0 0.0
    %5796 = vmatprep.subr.mxu0 0.0
    %5797 = vmatpush1.msra.mxu0 0.0
    %5798 = vmatprep.subr.mxu0 0.0
    %5799 = vmatpush1.msra.mxu0 0.0
    %5800 = vmatprep.subr.mxu0 0.0
    %5801 = vmatpush1.msra.mxu0 0.0
    %5802 = vmatprep.subr.mxu0 0.0
    %5803 = vmatpush1.msra.mxu0 0.0
    %5804 = vmatprep.subr.mxu0 0.0
    %5805 = vmatpush1.msra.mxu0 0.0
    %5806 = vmatprep.mubr.f32.mxu0 0.0
    %5807 = vmatmul.mubr.f32.gmra.mrb[0].mxu0 %v5693
    %v5808 = vpop.f32.mrb[0].mxu0
    %v5809 = vadd.f32 0.0, %v5808
    %v5810 = vpop.f32.mrb[0].mxu0
    %v5811 = vadd.f32 0.0, %v5810
    %5812 = vdwg.mxu0
    %5813 = vmatprep.subr.mxu0 0.0
    %5814 = vmatpush1.msra.mxu0 %v5696
    %5815 = vmatprep.subr.mxu0 0.0
    %5816 = vmatpush1.msra.mxu0 %v5699
    %5817 = vmatprep.subr.mxu0 0.0
    %5818 = vmatpush1.msra.mxu0 %v5702
    %5819 = vmatprep.subr.mxu0 0.0
    %5820 = vmatpush1.msra.mxu0 %v5705
    %5821 = vmatprep.subr.mxu0 0.0
    %5822 = vmatpush1.msra.mxu0 %v5708
    %5823 = vmatprep.subr.mxu0 0.0
    %5824 = vmatpush1.msra.mxu0 %v5711
    %5825 = vmatprep.subr.mxu0 0.0
    %5826 = vmatpush1.msra.mxu0 %v5714
    %5827 = vmatprep.subr.mxu0 0.0
    %5828 = vmatpush1.msra.mxu0 %v5717
    %5829 = vmatprep.subr.mxu0 0.0
    %5830 = vmatpush1.msra.mxu0 %v5720
    %5831 = vmatprep.subr.mxu0 0.0
    %5832 = vmatpush1.msra.mxu0 %v5723
    %5833 = vmatprep.subr.mxu0 0.0
    %5834 = vmatpush1.msra.mxu0 %v5726
    %5835 = vmatprep.subr.mxu0 0.0
    %5836 = vmatpush1.msra.mxu0 %v5729
    %5837 = vmatprep.subr.mxu0 0.0
    %5838 = vmatpush1.msra.mxu0 %v5732
    %5839 = vmatprep.subr.mxu0 0.0
    %5840 = vmatpush1.msra.mxu0 %v5735
    %5841 = vmatprep.subr.mxu0 0.0
    %5842 = vmatpush1.msra.mxu0 %v5738
    %5843 = vmatprep.subr.mxu0 0.0
    %5844 = vmatpush1.msra.mxu0 %v5741
    %5845 = vmatprep.subr.mxu0 0.0
    %5846 = vmatpush1.msra.mxu0 0.0
    %5847 = vmatprep.subr.mxu0 0.0
    %5848 = vmatpush1.msra.mxu0 0.0
    %5849 = vmatprep.subr.mxu0 0.0
    %5850 = vmatpush1.msra.mxu0 0.0
    %5851 = vmatprep.subr.mxu0 0.0
    %5852 = vmatpush1.msra.mxu0 0.0
    %5853 = vmatprep.subr.mxu0 0.0
    %5854 = vmatpush1.msra.mxu0 0.0
    %5855 = vmatprep.subr.mxu0 0.0
    %5856 = vmatpush1.msra.mxu0 0.0
    %5857 = vmatprep.subr.mxu0 0.0
    %5858 = vmatpush1.msra.mxu0 0.0
    %5859 = vmatprep.subr.mxu0 0.0
    %5860 = vmatpush1.msra.mxu0 0.0
    %5861 = vmatprep.subr.mxu0 0.0
    %5862 = vmatpush1.msra.mxu0 0.0
    %5863 = vmatprep.subr.mxu0 0.0
    %5864 = vmatpush1.msra.mxu0 0.0
    %5865 = vmatprep.subr.mxu0 0.0
    %5866 = vmatpush1.msra.mxu0 0.0
    %5867 = vmatprep.subr.mxu0 0.0
    %5868 = vmatpush1.msra.mxu0 0.0
    %5869 = vmatprep.subr.mxu0 0.0
    %5870 = vmatpush1.msra.mxu0 0.0
    %5871 = vmatprep.subr.mxu0 0.0
    %5872 = vmatpush1.msra.mxu0 0.0
    %5873 = vmatprep.subr.mxu0 0.0
    %5874 = vmatpush1.msra.mxu0 0.0
    %5875 = vmatprep.subr.mxu0 0.0
    %5876 = vmatpush1.msra.mxu0 0.0
    %5877 = vmatprep.mubr.f32.mxu0 0.0
    %5878 = vmatmul.mubr.f32.gmra.mrb[0].mxu0 %v5693
    %v5879 = vpop.f32.mrb[0].mxu0
    %v5880 = vadd.f32 0.0, %v5879
    %v5881 = vpop.f32.mrb[0].mxu0
    %5882 = vdwg.mxu0
    %v5883 = vld [vmem:[%s3311] sm:$0xff]
    %v5884 = vld [vmem:[%s3311 + $0x8] sm:$0xff]
    %v5885 = vld [vmem:[%s3311 + $0x10] sm:$0xff]
    %v5886 = vadd.f32 %v5883, %v5809
    %v5887 = vxor.u32 %v5886, 2147483648
    %v5888 = vmul.f32 %v5887, 1.442695
    %v5889 = vpow.pop %v5888
    %v5890 = vadd.f32 %v5889, 1.0
    %v5891 = vrcp.pop %v5890
    %v5892 = vmul.f32 1.0, %v5891
    %v5893 = vadd.f32 %v5884, %v5811
    %v5894 = vxor.u32 %v5893, 2147483648
    %v5895 = vmul.f32 %v5894, 1.442695
    %v5896 = vpow.pop %v5895
    %v5897 = vadd.f32 %v5896, 1.0
    %v5898 = vrcp.pop %v5897
    %v5899 = vmul.f32 1.0, %v5898
    %v5900 = vadd.f32 %v5880, %v4616
    %v5901 = vmul.f32 %v5892, %v5900
    %v5902 = vadd.f32 %v5885, %v5901
    %v5903 = vtanh.pop %v5902
    %v5904 = vsub.f32 %v5693, %v5903
    %v5905 = vmul.f32 %v5899, %v5904
    %v5906 = vadd.f32 %v5903, %v5905
    %5907 = vst [vmem:[#allocation4] sm:$0xff] %v5906
    %v5908 = vld [vmem:[#allocation4] sm:$0xff]
    %v5909 = vld [vmem:[#allocation14] sm:$0xff]
    %v5910 = vld [vmem:[#allocation14 + $0x8] sm:$0xff]
    %v5911 = vld [vmem:[#allocation14 + $0x10] sm:$0xff]
    %v5912 = vld [vmem:[#allocation14 + $0x30] sm:$0xff]
    %v5913 = vld [vmem:[#allocation14 + $0x38] sm:$0xff]
    %v5914 = vld [vmem:[#allocation14 + $0x40] sm:$0xff]
    %v5915 = vld [vmem:[#allocation14 + $0x60] sm:$0xff]
    %v5916 = vld [vmem:[#allocation14 + $0x68] sm:$0xff]
    %v5917 = vld [vmem:[#allocation14 + $0x70] sm:$0xff]
    %v5918 = vld [vmem:[#allocation14 + $0x90] sm:$0xff]
    %v5919 = vld [vmem:[#allocation14 + $0x98] sm:$0xff]
    %v5920 = vld [vmem:[#allocation14 + $0xa0] sm:$0xff]
    %v5921 = vld [vmem:[#allocation14 + $0xc0] sm:$0xff]
    %v5922 = vld [vmem:[#allocation14 + $0xc8] sm:$0xff]
    %v5923 = vld [vmem:[#allocation14 + $0xd0] sm:$0xff]
    %v5924 = vld [vmem:[#allocation14 + $0xf0] sm:$0xff]
    %v5925 = vld [vmem:[#allocation14 + $0xf8] sm:$0xff]
    %v5926 = vld [vmem:[#allocation14 + $0x100] sm:$0xff]
    %v5927 = vld [vmem:[#allocation14 + $0x120] sm:$0xff]
    %v5928 = vld [vmem:[#allocation14 + $0x128] sm:$0xff]
    %v5929 = vld [vmem:[#allocation14 + $0x130] sm:$0xff]
    %v5930 = vld [vmem:[#allocation14 + $0x150] sm:$0xff]
    %v5931 = vld [vmem:[#allocation14 + $0x158] sm:$0xff]
    %v5932 = vld [vmem:[#allocation14 + $0x160] sm:$0xff]
    %v5933 = vld [vmem:[#allocation14 + $0x180] sm:$0xff]
    %v5934 = vld [vmem:[#allocation14 + $0x188] sm:$0xff]
    %v5935 = vld [vmem:[#allocation14 + $0x190] sm:$0xff]
    %v5936 = vld [vmem:[#allocation14 + $0x1b0] sm:$0xff]
    %v5937 = vld [vmem:[#allocation14 + $0x1b8] sm:$0xff]
    %v5938 = vld [vmem:[#allocation14 + $0x1c0] sm:$0xff]
    %v5939 = vld [vmem:[#allocation14 + $0x1e0] sm:$0xff]
    %v5940 = vld [vmem:[#allocation14 + $0x1e8] sm:$0xff]
    %v5941 = vld [vmem:[#allocation14 + $0x1f0] sm:$0xff]
    %v5942 = vld [vmem:[#allocation14 + $0x210] sm:$0xff]
    %v5943 = vld [vmem:[#allocation14 + $0x218] sm:$0xff]
    %v5944 = vld [vmem:[#allocation14 + $0x220] sm:$0xff]
    %v5945 = vld [vmem:[#allocation14 + $0x240] sm:$0xff]
    %v5946 = vld [vmem:[#allocation14 + $0x248] sm:$0xff]
    %v5947 = vld [vmem:[#allocation14 + $0x250] sm:$0xff]
    %v5948 = vld [vmem:[#allocation14 + $0x270] sm:$0xff]
    %v5949 = vld [vmem:[#allocation14 + $0x278] sm:$0xff]
    %v5950 = vld [vmem:[#allocation14 + $0x280] sm:$0xff]
    %v5951 = vld [vmem:[#allocation14 + $0x2a0] sm:$0xff]
    %v5952 = vld [vmem:[#allocation14 + $0x2a8] sm:$0xff]
    %v5953 = vld [vmem:[#allocation14 + $0x2b0] sm:$0xff]
    %v5954 = vld [vmem:[#allocation14 + $0x2d0] sm:$0xff]
    %v5955 = vld [vmem:[#allocation14 + $0x2d8] sm:$0xff]
    %v5956 = vld [vmem:[#allocation14 + $0x2e0] sm:$0xff]
    %5957 = vmatprep.subr.mxu0 %v5910
    %5958 = vmatpush1.msra.mxu0 %v5909
    %5959 = vmatprep.subr.mxu0 %v5913
    %5960 = vmatpush1.msra.mxu0 %v5912
    %5961 = vmatprep.subr.mxu0 %v5916
    %5962 = vmatpush1.msra.mxu0 %v5915
    %5963 = vmatprep.subr.mxu0 %v5919
    %5964 = vmatpush1.msra.mxu0 %v5918
    %5965 = vmatprep.subr.mxu0 %v5922
    %5966 = vmatpush1.msra.mxu0 %v5921
    %5967 = vmatprep.subr.mxu0 %v5925
    %5968 = vmatpush1.msra.mxu0 %v5924
    %5969 = vmatprep.subr.mxu0 %v5928
    %5970 = vmatpush1.msra.mxu0 %v5927
    %5971 = vmatprep.subr.mxu0 %v5931
    %5972 = vmatpush1.msra.mxu0 %v5930
    %5973 = vmatprep.subr.mxu0 %v5934
    %5974 = vmatpush1.msra.mxu0 %v5933
    %5975 = vmatprep.subr.mxu0 %v5937
    %5976 = vmatpush1.msra.mxu0 %v5936
    %5977 = vmatprep.subr.mxu0 %v5940
    %5978 = vmatpush1.msra.mxu0 %v5939
    %5979 = vmatprep.subr.mxu0 %v5943
    %5980 = vmatpush1.msra.mxu0 %v5942
    %5981 = vmatprep.subr.mxu0 %v5946
    %5982 = vmatpush1.msra.mxu0 %v5945
    %5983 = vmatprep.subr.mxu0 %v5949
    %5984 = vmatpush1.msra.mxu0 %v5948
    %5985 = vmatprep.subr.mxu0 %v5952
    %5986 = vmatpush1.msra.mxu0 %v5951
    %5987 = vmatprep.subr.mxu0 %v5955
    %5988 = vmatpush1.msra.mxu0 %v5954
    %5989 = vmatprep.subr.mxu0 0.0
    %5990 = vmatpush1.msra.mxu0 0.0
    %5991 = vmatprep.subr.mxu0 0.0
    %5992 = vmatpush1.msra.mxu0 0.0
    %5993 = vmatprep.subr.mxu0 0.0
    %5994 = vmatpush1.msra.mxu0 0.0
    %5995 = vmatprep.subr.mxu0 0.0
    %5996 = vmatpush1.msra.mxu0 0.0
    %5997 = vmatprep.subr.mxu0 0.0
    %5998 = vmatpush1.msra.mxu0 0.0
    %5999 = vmatprep.subr.mxu0 0.0
    %6000 = vmatpush1.msra.mxu0 0.0
    %6001 = vmatprep.subr.mxu0 0.0
    %6002 = vmatpush1.msra.mxu0 0.0
    %6003 = vmatprep.subr.mxu0 0.0
    %6004 = vmatpush1.msra.mxu0 0.0
    %6005 = vmatprep.subr.mxu0 0.0
    %6006 = vmatpush1.msra.mxu0 0.0
    %6007 = vmatprep.subr.mxu0 0.0
    %6008 = vmatpush1.msra.mxu0 0.0
    %6009 = vmatprep.subr.mxu0 0.0
    %6010 = vmatpush1.msra.mxu0 0.0
    %6011 = vmatprep.subr.mxu0 0.0
    %6012 = vmatpush1.msra.mxu0 0.0
    %6013 = vmatprep.subr.mxu0 0.0
    %6014 = vmatpush1.msra.mxu0 0.0
    %6015 = vmatprep.subr.mxu0 0.0
    %6016 = vmatpush1.msra.mxu0 0.0
    %6017 = vmatprep.subr.mxu0 0.0
    %6018 = vmatpush1.msra.mxu0 0.0
    %6019 = vmatprep.subr.mxu0 0.0
    %6020 = vmatpush1.msra.mxu0 0.0
    %6021 = vmatprep.mubr.f32.mxu0 0.0
    %6022 = vmatmul.mubr.f32.gmra.mrb[0].mxu0 %v5908
    %v6023 = vpop.f32.mrb[0].mxu0
    %v6024 = vadd.f32 0.0, %v6023
    %v6025 = vpop.f32.mrb[0].mxu0
    %v6026 = vadd.f32 0.0, %v6025
    %6027 = vdwg.mxu0
    %6028 = vmatprep.subr.mxu0 0.0
    %6029 = vmatpush1.msra.mxu0 %v5911
    %6030 = vmatprep.subr.mxu0 0.0
    %6031 = vmatpush1.msra.mxu0 %v5914
    %6032 = vmatprep.subr.mxu0 0.0
    %6033 = vmatpush1.msra.mxu0 %v5917
    %6034 = vmatprep.subr.mxu0 0.0
    %6035 = vmatpush1.msra.mxu0 %v5920
    %6036 = vmatprep.subr.mxu0 0.0
    %6037 = vmatpush1.msra.mxu0 %v5923
    %6038 = vmatprep.subr.mxu0 0.0
    %6039 = vmatpush1.msra.mxu0 %v5926
    %6040 = vmatprep.subr.mxu0 0.0
    %6041 = vmatpush1.msra.mxu0 %v5929
    %6042 = vmatprep.subr.mxu0 0.0
    %6043 = vmatpush1.msra.mxu0 %v5932
    %6044 = vmatprep.subr.mxu0 0.0
    %6045 = vmatpush1.msra.mxu0 %v5935
    %6046 = vmatprep.subr.mxu0 0.0
    %6047 = vmatpush1.msra.mxu0 %v5938
    %6048 = vmatprep.subr.mxu0 0.0
    %6049 = vmatpush1.msra.mxu0 %v5941
    %6050 = vmatprep.subr.mxu0 0.0
    %6051 = vmatpush1.msra.mxu0 %v5944
    %6052 = vmatprep.subr.mxu0 0.0
    %6053 = vmatpush1.msra.mxu0 %v5947
    %6054 = vmatprep.subr.mxu0 0.0
    %6055 = vmatpush1.msra.mxu0 %v5950
    %6056 = vmatprep.subr.mxu0 0.0
    %6057 = vmatpush1.msra.mxu0 %v5953
    %6058 = vmatprep.subr.mxu0 0.0
    %6059 = vmatpush1.msra.mxu0 %v5956
    %6060 = vmatprep.subr.mxu0 0.0
    %6061 = vmatpush1.msra.mxu0 0.0
    %6062 = vmatprep.subr.mxu0 0.0
    %6063 = vmatpush1.msra.mxu0 0.0
    %6064 = vmatprep.subr.mxu0 0.0
    %6065 = vmatpush1.msra.mxu0 0.0
    %6066 = vmatprep.subr.mxu0 0.0
    %6067 = vmatpush1.msra.mxu0 0.0
    %6068 = vmatprep.subr.mxu0 0.0
    %6069 = vmatpush1.msra.mxu0 0.0
    %6070 = vmatprep.subr.mxu0 0.0
    %6071 = vmatpush1.msra.mxu0 0.0
    %6072 = vmatprep.subr.mxu0 0.0
    %6073 = vmatpush1.msra.mxu0 0.0
    %6074 = vmatprep.subr.mxu0 0.0
    %6075 = vmatpush1.msra.mxu0 0.0
    %6076 = vmatprep.subr.mxu0 0.0
    %6077 = vmatpush1.msra.mxu0 0.0
    %6078 = vmatprep.subr.mxu0 0.0
    %6079 = vmatpush1.msra.mxu0 0.0
    %6080 = vmatprep.subr.mxu0 0.0
    %6081 = vmatpush1.msra.mxu0 0.0
    %6082 = vmatprep.subr.mxu0 0.0
    %6083 = vmatpush1.msra.mxu0 0.0
    %6084 = vmatprep.subr.mxu0 0.0
    %6085 = vmatpush1.msra.mxu0 0.0
    %6086 = vmatprep.subr.mxu0 0.0
    %6087 = vmatpush1.msra.mxu0 0.0
    %6088 = vmatprep.subr.mxu0 0.0
    %6089 = vmatpush1.msra.mxu0 0.0
    %6090 = vmatprep.subr.mxu0 0.0
    %6091 = vmatpush1.msra.mxu0 0.0
    %6092 = vmatprep.mubr.f32.mxu0 0.0
    %6093 = vmatmul.mubr.f32.gmra.mrb[0].mxu0 %v5908
    %v6094 = vpop.f32.mrb[0].mxu0
    %v6095 = vadd.f32 0.0, %v6094
    %v6096 = vpop.f32.mrb[0].mxu0
    %6097 = vdwg.mxu0
    %v6098 = vld [vmem:[%s3747] sm:$0xff]
    %v6099 = vld [vmem:[%s3747 + $0x8] sm:$0xff]
    %v6100 = vld [vmem:[%s3747 + $0x10] sm:$0xff]
    %v6101 = vadd.f32 %v6098, %v6024
    %v6102 = vxor.u32 %v6101, 2147483648
    %v6103 = vmul.f32 %v6102, 1.442695
    %v6104 = vpow.pop %v6103
    %v6105 = vadd.f32 %v6104, 1.0
    %v6106 = vrcp.pop %v6105
    %v6107 = vmul.f32 1.0, %v6106
    %v6108 = vadd.f32 %v6099, %v6026
    %v6109 = vxor.u32 %v6108, 2147483648
    %v6110 = vmul.f32 %v6109, 1.442695
    %v6111 = vpow.pop %v6110
    %v6112 = vadd.f32 %v6111, 1.0
    %v6113 = vrcp.pop %v6112
    %v6114 = vmul.f32 1.0, %v6113
    %v6115 = vadd.f32 %v6095, %v4616
    %v6116 = vmul.f32 %v6107, %v6115
    %v6117 = vadd.f32 %v6100, %v6116
    %v6118 = vtanh.pop %v6117
    %v6119 = vsub.f32 %v5908, %v6118
    %v6120 = vmul.f32 %v6114, %v6119
    %v6121 = vadd.f32 %v6118, %v6120
    %6122 = vst [vmem:[#allocation4] sm:$0xff] %v6121
    %v6123 = vld [vmem:[#allocation4] sm:$0xff]
    %v6124 = vld [vmem:[#allocation14] sm:$0xff]
    %v6125 = vld [vmem:[#allocation14 + $0x8] sm:$0xff]
    %v6126 = vld [vmem:[#allocation14 + $0x10] sm:$0xff]
    %v6127 = vld [vmem:[#allocation14 + $0x30] sm:$0xff]
    %v6128 = vld [vmem:[#allocation14 + $0x38] sm:$0xff]
    %v6129 = vld [vmem:[#allocation14 + $0x40] sm:$0xff]
    %v6130 = vld [vmem:[#allocation14 + $0x60] sm:$0xff]
    %v6131 = vld [vmem:[#allocation14 + $0x68] sm:$0xff]
    %v6132 = vld [vmem:[#allocation14 + $0x70] sm:$0xff]
    %v6133 = vld [vmem:[#allocation14 + $0x90] sm:$0xff]
    %v6134 = vld [vmem:[#allocation14 + $0x98] sm:$0xff]
    %v6135 = vld [vmem:[#allocation14 + $0xa0] sm:$0xff]
    %v6136 = vld [vmem:[#allocation14 + $0xc0] sm:$0xff]
    %v6137 = vld [vmem:[#allocation14 + $0xc8] sm:$0xff]
    %v6138 = vld [vmem:[#allocation14 + $0xd0] sm:$0xff]
    %v6139 = vld [vmem:[#allocation14 + $0xf0] sm:$0xff]
    %v6140 = vld [vmem:[#allocation14 + $0xf8] sm:$0xff]
    %v6141 = vld [vmem:[#allocation14 + $0x100] sm:$0xff]
    %v6142 = vld [vmem:[#allocation14 + $0x120] sm:$0xff]
    %v6143 = vld [vmem:[#allocation14 + $0x128] sm:$0xff]
    %v6144 = vld [vmem:[#allocation14 + $0x130] sm:$0xff]
    %v6145 = vld [vmem:[#allocation14 + $0x150] sm:$0xff]
    %v6146 = vld [vmem:[#allocation14 + $0x158] sm:$0xff]
    %v6147 = vld [vmem:[#allocation14 + $0x160] sm:$0xff]
    %v6148 = vld [vmem:[#allocation14 + $0x180] sm:$0xff]
    %v6149 = vld [vmem:[#allocation14 + $0x188] sm:$0xff]
    %v6150 = vld [vmem:[#allocation14 + $0x190] sm:$0xff]
    %v6151 = vld [vmem:[#allocation14 + $0x1b0] sm:$0xff]
    %v6152 = vld [vmem:[#allocation14 + $0x1b8] sm:$0xff]
    %v6153 = vld [vmem:[#allocation14 + $0x1c0] sm:$0xff]
    %v6154 = vld [vmem:[#allocation14 + $0x1e0] sm:$0xff]
    %v6155 = vld [vmem:[#allocation14 + $0x1e8] sm:$0xff]
    %v6156 = vld [vmem:[#allocation14 + $0x1f0] sm:$0xff]
    %v6157 = vld [vmem:[#allocation14 + $0x210] sm:$0xff]
    %v6158 = vld [vmem:[#allocation14 + $0x218] sm:$0xff]
    %v6159 = vld [vmem:[#allocation14 + $0x220] sm:$0xff]
    %v6160 = vld [vmem:[#allocation14 + $0x240] sm:$0xff]
    %v6161 = vld [vmem:[#allocation14 + $0x248] sm:$0xff]
    %v6162 = vld [vmem:[#allocation14 + $0x250] sm:$0xff]
    %v6163 = vld [vmem:[#allocation14 + $0x270] sm:$0xff]
    %v6164 = vld [vmem:[#allocation14 + $0x278] sm:$0xff]
    %v6165 = vld [vmem:[#allocation14 + $0x280] sm:$0xff]
    %v6166 = vld [vmem:[#allocation14 + $0x2a0] sm:$0xff]
    %v6167 = vld [vmem:[#allocation14 + $0x2a8] sm:$0xff]
    %v6168 = vld [vmem:[#allocation14 + $0x2b0] sm:$0xff]
    %v6169 = vld [vmem:[#allocation14 + $0x2d0] sm:$0xff]
    %v6170 = vld [vmem:[#allocation14 + $0x2d8] sm:$0xff]
    %v6171 = vld [vmem:[#allocation14 + $0x2e0] sm:$0xff]
    %6172 = vmatprep.subr.mxu0 %v6125
    %6173 = vmatpush1.msra.mxu0 %v6124
    %6174 = vmatprep.subr.mxu0 %v6128
    %6175 = vmatpush1.msra.mxu0 %v6127
    %6176 = vmatprep.subr.mxu0 %v6131
    %6177 = vmatpush1.msra.mxu0 %v6130
    %6178 = vmatprep.subr.mxu0 %v6134
    %6179 = vmatpush1.msra.mxu0 %v6133
    %6180 = vmatprep.subr.mxu0 %v6137
    %6181 = vmatpush1.msra.mxu0 %v6136
    %6182 = vmatprep.subr.mxu0 %v6140
    %6183 = vmatpush1.msra.mxu0 %v6139
    %6184 = vmatprep.subr.mxu0 %v6143
    %6185 = vmatpush1.msra.mxu0 %v6142
    %6186 = vmatprep.subr.mxu0 %v6146
    %6187 = vmatpush1.msra.mxu0 %v6145
    %6188 = vmatprep.subr.mxu0 %v6149
    %6189 = vmatpush1.msra.mxu0 %v6148
    %6190 = vmatprep.subr.mxu0 %v6152
    %6191 = vmatpush1.msra.mxu0 %v6151
    %6192 = vmatprep.subr.mxu0 %v6155
    %6193 = vmatpush1.msra.mxu0 %v6154
    %6194 = vmatprep.subr.mxu0 %v6158
    %6195 = vmatpush1.msra.mxu0 %v6157
    %6196 = vmatprep.subr.mxu0 %v6161
    %6197 = vmatpush1.msra.mxu0 %v6160
    %6198 = vmatprep.subr.mxu0 %v6164
    %6199 = vmatpush1.msra.mxu0 %v6163
    %6200 = vmatprep.subr.mxu0 %v6167
    %6201 = vmatpush1.msra.mxu0 %v6166
    %6202 = vmatprep.subr.mxu0 %v6170
    %6203 = vmatpush1.msra.mxu0 %v6169
    %6204 = vmatprep.subr.mxu0 0.0
    %6205 = vmatpush1.msra.mxu0 0.0
    %6206 = vmatprep.subr.mxu0 0.0
    %6207 = vmatpush1.msra.mxu0 0.0
    %6208 = vmatprep.subr.mxu0 0.0
    %6209 = vmatpush1.msra.mxu0 0.0
    %6210 = vmatprep.subr.mxu0 0.0
    %6211 = vmatpush1.msra.mxu0 0.0
    %6212 = vmatprep.subr.mxu0 0.0
    %6213 = vmatpush1.msra.mxu0 0.0
    %6214 = vmatprep.subr.mxu0 0.0
    %6215 = vmatpush1.msra.mxu0 0.0
    %6216 = vmatprep.subr.mxu0 0.0
    %6217 = vmatpush1.msra.mxu0 0.0
    %6218 = vmatprep.subr.mxu0 0.0
    %6219 = vmatpush1.msra.mxu0 0.0
    %6220 = vmatprep.subr.mxu0 0.0
    %6221 = vmatpush1.msra.mxu0 0.0
    %6222 = vmatprep.subr.mxu0 0.0
    %6223 = vmatpush1.msra.mxu0 0.0
    %6224 = vmatprep.subr.mxu0 0.0
    %6225 = vmatpush1.msra.mxu0 0.0
    %6226 = vmatprep.subr.mxu0 0.0
    %6227 = vmatpush1.msra.mxu0 0.0
    %6228 = vmatprep.subr.mxu0 0.0
    %6229 = vmatpush1.msra.mxu0 0.0
    %6230 = vmatprep.subr.mxu0 0.0
    %6231 = vmatpush1.msra.mxu0 0.0
    %6232 = vmatprep.subr.mxu0 0.0
    %6233 = vmatpush1.msra.mxu0 0.0
    %6234 = vmatprep.subr.mxu0 0.0
    %6235 = vmatpush1.msra.mxu0 0.0
    %6236 = vmatprep.mubr.f32.mxu0 0.0
    %6237 = vmatmul.mubr.f32.gmra.mrb[0].mxu0 %v6123
    %v6238 = vpop.f32.mrb[0].mxu0
    %v6239 = vadd.f32 0.0, %v6238
    %v6240 = vpop.f32.mrb[0].mxu0
    %v6241 = vadd.f32 0.0, %v6240
    %6242 = vdwg.mxu0
    %6243 = vmatprep.subr.mxu0 0.0
    %6244 = vmatpush1.msra.mxu0 %v6126
    %6245 = vmatprep.subr.mxu0 0.0
    %6246 = vmatpush1.msra.mxu0 %v6129
    %6247 = vmatprep.subr.mxu0 0.0
    %6248 = vmatpush1.msra.mxu0 %v6132
    %6249 = vmatprep.subr.mxu0 0.0
    %6250 = vmatpush1.msra.mxu0 %v6135
    %6251 = vmatprep.subr.mxu0 0.0
    %6252 = vmatpush1.msra.mxu0 %v6138
    %6253 = vmatprep.subr.mxu0 0.0
    %6254 = vmatpush1.msra.mxu0 %v6141
    %6255 = vmatprep.subr.mxu0 0.0
    %6256 = vmatpush1.msra.mxu0 %v6144
    %6257 = vmatprep.subr.mxu0 0.0
    %6258 = vmatpush1.msra.mxu0 %v6147
    %6259 = vmatprep.subr.mxu0 0.0
    %6260 = vmatpush1.msra.mxu0 %v6150
    %6261 = vmatprep.subr.mxu0 0.0
    %6262 = vmatpush1.msra.mxu0 %v6153
    %6263 = vmatprep.subr.mxu0 0.0
    %6264 = vmatpush1.msra.mxu0 %v6156
    %6265 = vmatprep.subr.mxu0 0.0
    %6266 = vmatpush1.msra.mxu0 %v6159
    %6267 = vmatprep.subr.mxu0 0.0
    %6268 = vmatpush1.msra.mxu0 %v6162
    %6269 = vmatprep.subr.mxu0 0.0
    %6270 = vmatpush1.msra.mxu0 %v6165
    %6271 = vmatprep.subr.mxu0 0.0
    %6272 = vmatpush1.msra.mxu0 %v6168
    %6273 = vmatprep.subr.mxu0 0.0
    %6274 = vmatpush1.msra.mxu0 %v6171
    %6275 = vmatprep.subr.mxu0 0.0
    %6276 = vmatpush1.msra.mxu0 0.0
    %6277 = vmatprep.subr.mxu0 0.0
    %6278 = vmatpush1.msra.mxu0 0.0
    %6279 = vmatprep.subr.mxu0 0.0
    %6280 = vmatpush1.msra.mxu0 0.0
    %6281 = vmatprep.subr.mxu0 0.0
    %6282 = vmatpush1.msra.mxu0 0.0
    %6283 = vmatprep.subr.mxu0 0.0
    %6284 = vmatpush1.msra.mxu0 0.0
    %6285 = vmatprep.subr.mxu0 0.0
    %6286 = vmatpush1.msra.mxu0 0.0
    %6287 = vmatprep.subr.mxu0 0.0
    %6288 = vmatpush1.msra.mxu0 0.0
    %6289 = vmatprep.subr.mxu0 0.0
    %6290 = vmatpush1.msra.mxu0 0.0
    %6291 = vmatprep.subr.mxu0 0.0
    %6292 = vmatpush1.msra.mxu0 0.0
    %6293 = vmatprep.subr.mxu0 0.0
    %6294 = vmatpush1.msra.mxu0 0.0
    %6295 = vmatprep.subr.mxu0 0.0
    %6296 = vmatpush1.msra.mxu0 0.0
    %6297 = vmatprep.subr.mxu0 0.0
    %6298 = vmatpush1.msra.mxu0 0.0
    %6299 = vmatprep.subr.mxu0 0.0
    %6300 = vmatpush1.msra.mxu0 0.0
    %6301 = vmatprep.subr.mxu0 0.0
    %6302 = vmatpush1.msra.mxu0 0.0
    %6303 = vmatprep.subr.mxu0 0.0
    %6304 = vmatpush1.msra.mxu0 0.0
    %6305 = vmatprep.subr.mxu0 0.0
    %6306 = vmatpush1.msra.mxu0 0.0
    %6307 = vmatprep.mubr.f32.mxu0 0.0
    %6308 = vmatmul.mubr.f32.gmra.mrb[0].mxu0 %v6123
    %v6309 = vpop.f32.mrb[0].mxu0
    %v6310 = vadd.f32 0.0, %v6309
    %v6311 = vpop.f32.mrb[0].mxu0
    %6312 = vdwg.mxu0
    %v6313 = vld [vmem:[%s4183] sm:$0xff]
    %v6314 = vld [vmem:[%s4183 + $0x8] sm:$0xff]
    %v6315 = vld [vmem:[%s4183 + $0x10] sm:$0xff]
    %v6316 = vadd.f32 %v6313, %v6239
    %v6317 = vxor.u32 %v6316, 2147483648
    %v6318 = vmul.f32 %v6317, 1.442695
    %v6319 = vpow.pop %v6318
    %v6320 = vadd.f32 %v6319, 1.0
    %v6321 = vrcp.pop %v6320
    %v6322 = vmul.f32 1.0, %v6321
    %v6323 = vadd.f32 %v6314, %v6241
    %v6324 = vxor.u32 %v6323, 2147483648
    %v6325 = vmul.f32 %v6324, 1.442695
    %v6326 = vpow.pop %v6325
    %v6327 = vadd.f32 %v6326, 1.0
    %v6328 = vrcp.pop %v6327
    %v6329 = vmul.f32 1.0, %v6328
    %v6330 = vadd.f32 %v6310, %v4616
    %v6331 = vmul.f32 %v6322, %v6330
    %v6332 = vadd.f32 %v6315, %v6331
    %v6333 = vtanh.pop %v6332
    %v6334 = vsub.f32 %v6123, %v6333
    %v6335 = vmul.f32 %v6329, %v6334
    %v6336 = vadd.f32 %v6333, %v6335
    %6337 = vst [vmem:[#allocation4] sm:$0xff] %v6336
    %v6338 = vld [vmem:[#allocation12] sm:$0xff]
    %v6339 = vld [vmem:[#allocation12 + $0x8] sm:$0xff]
    %v6340 = vld [vmem:[#allocation12 + $0x10] sm:$0xff]
    %v6341 = vld [vmem:[#allocation12 + $0x18] sm:$0xff]
    %v6342 = vld [vmem:[#allocation12 + $0x20] sm:$0xff]
    %v6343 = vld [vmem:[#allocation12 + $0x28] sm:$0xff]
    %v6344 = vld [vmem:[#allocation12 + $0x30] sm:$0xff]
    %v6345 = vld [vmem:[#allocation12 + $0x38] sm:$0xff]
    %v6346 = vld [vmem:[#allocation12 + $0x40] sm:$0xff]
    %v6347 = vld [vmem:[#allocation12 + $0x48] sm:$0xff]
    %v6348 = vld [vmem:[#allocation12 + $0x50] sm:$0xff]
    %v6349 = vld [vmem:[#allocation12 + $0x58] sm:$0xff]
    %v6350 = vld [vmem:[#allocation12 + $0x60] sm:$0xff]
    %v6351 = vld [vmem:[#allocation12 + $0x68] sm:$0xff]
    %v6352 = vld [vmem:[#allocation12 + $0x70] sm:$0xff]
    %v6353 = vld [vmem:[#allocation12 + $0x78] sm:$0xff]
    %v6354 = vld [vmem:[#allocation12 + $0x80] sm:$0xff]
    %v6355 = vld [vmem:[#allocation12 + $0x88] sm:$0xff]
    %v6356 = vld [vmem:[#allocation12 + $0x90] sm:$0xff]
    %v6357 = vld [vmem:[#allocation12 + $0x98] sm:$0xff]
    %v6358 = vld [vmem:[#allocation12 + $0xa0] sm:$0xff]
    %v6359 = vld [vmem:[#allocation12 + $0xa8] sm:$0xff]
    %v6360 = vld [vmem:[#allocation12 + $0xb0] sm:$0xff]
    %v6361 = vld [vmem:[#allocation12 + $0xb8] sm:$0xff]
    %v6362 = vld [vmem:[#allocation12 + $0xc0] sm:$0xff]
    %v6363 = vld [vmem:[#allocation12 + $0xc8] sm:$0xff]
    %v6364 = vld [vmem:[#allocation12 + $0xd0] sm:$0xff]
    %v6365 = vld [vmem:[#allocation12 + $0xd8] sm:$0xff]
    %v6366 = vld [vmem:[#allocation12 + $0xe0] sm:$0xff]
    %v6367 = vld [vmem:[#allocation12 + $0xe8] sm:$0xff]
    %v6368 = vld [vmem:[#allocation12 + $0xf0] sm:$0xff]
    %v6369 = vld [vmem:[#allocation12 + $0xf8] sm:$0xff]
    %v6370 = vld [vmem:[#allocation12 + $0x100] sm:$0xff]
    %v6371 = vld [vmem:[#allocation12 + $0x108] sm:$0xff]
    %v6372 = vld [vmem:[#allocation12 + $0x110] sm:$0xff]
    %v6373 = vld [vmem:[#allocation12 + $0x118] sm:$0xff]
    %v6374 = vld [vmem:[#allocation12 + $0x120] sm:$0xff]
    %v6375 = vld [vmem:[#allocation12 + $0x128] sm:$0xff]
    %v6376 = vld [vmem:[#allocation12 + $0x130] sm:$0xff]
    %v6377 = vld [vmem:[#allocation12 + $0x138] sm:$0xff]
    %v6378 = vld [vmem:[#allocation12 + $0x140] sm:$0xff]
    %v6379 = vld [vmem:[#allocation12 + $0x148] sm:$0xff]
    %v6380 = vld [vmem:[#allocation12 + $0x150] sm:$0xff]
    %v6381 = vld [vmem:[#allocation12 + $0x158] sm:$0xff]
    %v6382 = vld [vmem:[#allocation12 + $0x160] sm:$0xff]
    %v6383 = vld [vmem:[#allocation12 + $0x168] sm:$0xff]
    %v6384 = vld [vmem:[#allocation12 + $0x170] sm:$0xff]
    %v6385 = vld [vmem:[#allocation12 + $0x178] sm:$0xff]
    %v6386 = vld [vmem:[#allocation12 + $0x180] sm:$0xff]
    %v6387 = vld [vmem:[#allocation12 + $0x188] sm:$0xff]
    %v6388 = vld [vmem:[#allocation12 + $0x190] sm:$0xff]
    %v6389 = vld [vmem:[#allocation12 + $0x198] sm:$0xff]
    %v6390 = vld [vmem:[#allocation12 + $0x1a0] sm:$0xff]
    %v6391 = vld [vmem:[#allocation12 + $0x1a8] sm:$0xff]
    %v6392 = vld [vmem:[#allocation12 + $0x1b0] sm:$0xff]
    %v6393 = vld [vmem:[#allocation12 + $0x1b8] sm:$0xff]
    %v6394 = vld [vmem:[#allocation12 + $0x1c0] sm:$0xff]
    %v6395 = vld [vmem:[#allocation12 + $0x1c8] sm:$0xff]
    %v6396 = vld [vmem:[#allocation12 + $0x1d0] sm:$0xff]
    %v6397 = vld [vmem:[#allocation12 + $0x1d8] sm:$0xff]
    %v6398 = vld [vmem:[#allocation12 + $0x1e0] sm:$0xff]
    %v6399 = vld [vmem:[#allocation12 + $0x1e8] sm:$0xff]
    %v6400 = vld [vmem:[#allocation12 + $0x1f0] sm:$0xff]
    %v6401 = vld [vmem:[#allocation12 + $0x1f8] sm:$0xff]
    %v6402 = vld [vmem:[#allocation12 + $0x200] sm:$0xff]
    %v6403 = vld [vmem:[#allocation12 + $0x208] sm:$0xff]
    %v6404 = vld [vmem:[#allocation12 + $0x210] sm:$0xff]
    %v6405 = vld [vmem:[#allocation12 + $0x218] sm:$0xff]
    %v6406 = vld [vmem:[#allocation12 + $0x220] sm:$0xff]
    %v6407 = vld [vmem:[#allocation12 + $0x228] sm:$0xff]
    %v6408 = vld [vmem:[#allocation12 + $0x230] sm:$0xff]
    %v6409 = vld [vmem:[#allocation12 + $0x238] sm:$0xff]
    %v6410 = vld [vmem:[#allocation12 + $0x240] sm:$0xff]
    %v6411 = vld [vmem:[#allocation12 + $0x248] sm:$0xff]
    %v6412 = vld [vmem:[#allocation12 + $0x250] sm:$0xff]
    %v6413 = vld [vmem:[#allocation12 + $0x258] sm:$0xff]
    %v6414 = vld [vmem:[#allocation12 + $0x260] sm:$0xff]
    %v6415 = vld [vmem:[#allocation12 + $0x268] sm:$0xff]
    %v6416 = vld [vmem:[#allocation12 + $0x270] sm:$0xff]
    %v6417 = vld [vmem:[#allocation12 + $0x278] sm:$0xff]
    %v6418 = vld [vmem:[#allocation12 + $0x280] sm:$0xff]
    %v6419 = vld [vmem:[#allocation12 + $0x288] sm:$0xff]
    %v6420 = vld [vmem:[#allocation12 + $0x290] sm:$0xff]
    %v6421 = vld [vmem:[#allocation12 + $0x298] sm:$0xff]
    %v6422 = vld [vmem:[#allocation12 + $0x2a0] sm:$0xff]
    %v6423 = vld [vmem:[#allocation12 + $0x2a8] sm:$0xff]
    %v6424 = vld [vmem:[#allocation12 + $0x2b0] sm:$0xff]
    %v6425 = vld [vmem:[#allocation12 + $0x2b8] sm:$0xff]
    %v6426 = vld [vmem:[#allocation12 + $0x2c0] sm:$0xff]
    %v6427 = vld [vmem:[#allocation12 + $0x2c8] sm:$0xff]
    %v6428 = vld [vmem:[#allocation12 + $0x2d0] sm:$0xff]
    %v6429 = vld [vmem:[#allocation12 + $0x2d8] sm:$0xff]
    %v6430 = vld [vmem:[#allocation12 + $0x2e0] sm:$0xff]
    %v6431 = vld [vmem:[#allocation12 + $0x2e8] sm:$0xff]
    %v6432 = vld [vmem:[#allocation12 + $0x2f0] sm:$0xff]
    %v6433 = vld [vmem:[#allocation12 + $0x2f8] sm:$0xff]
    %v6434 = vld [vmem:[%s12] sm:$0x7]
    %v6436 = vlaneseq
    %v6437 = vshrl.u32 %v6436, 7
    %v6438 = vsub.s32 0, %v6437
    %v6439 = vrot.slane %v6434, %v6438
    %v6440 = vlaneseq
    %v6441 = vshrl.u32 %v6440, 7
    %v6442 = vsub.s32 1, %v6441
    %v6443 = vrot.slane %v6434, %v6442
    %v6444 = vlaneseq
    %v6445 = vshrl.u32 %v6444, 7
    %v6446 = vsub.s32 2, %v6445
    %v6447 = vrot.slane %v6434, %v6446
    %6451 = vmatprep.subr.mxu0 %v6339
    %6452 = vmatpush1.msra.mxu0 %v6338
    %6453 = vmatprep.subr.mxu0 %v6342
    %6454 = vmatpush1.msra.mxu0 %v6341
    %6455 = vmatprep.subr.mxu0 %v6345
    %6456 = vmatpush1.msra.mxu0 %v6344
    %6457 = vmatprep.subr.mxu0 %v6348
    %6458 = vmatpush1.msra.mxu0 %v6347
    %6459 = vmatprep.subr.mxu0 %v6351
    %6460 = vmatpush1.msra.mxu0 %v6350
    %6461 = vmatprep.subr.mxu0 %v6354
    %6462 = vmatpush1.msra.mxu0 %v6353
    %6463 = vmatprep.subr.mxu0 %v6357
    %6464 = vmatpush1.msra.mxu0 %v6356
    %6465 = vmatprep.subr.mxu0 %v6360
    %6466 = vmatpush1.msra.mxu0 %v6359
    %6467 = vmatprep.subr.mxu0 %v6363
    %6468 = vmatpush1.msra.mxu0 %v6362
    %6469 = vmatprep.subr.mxu0 %v6366
    %6470 = vmatpush1.msra.mxu0 %v6365
    %6471 = vmatprep.subr.mxu0 %v6369
    %6472 = vmatpush1.msra.mxu0 %v6368
    %6473 = vmatprep.subr.mxu0 %v6372
    %6474 = vmatpush1.msra.mxu0 %v6371
    %6475 = vmatprep.subr.mxu0 %v6375
    %6476 = vmatpush1.msra.mxu0 %v6374
    %6477 = vmatprep.subr.mxu0 %v6378
    %6478 = vmatpush1.msra.mxu0 %v6377
    %6479 = vmatprep.subr.mxu0 %v6381
    %6480 = vmatpush1.msra.mxu0 %v6380
    %6481 = vmatprep.subr.mxu0 %v6384
    %6482 = vmatpush1.msra.mxu0 %v6383
    %6483 = vmatprep.subr.mxu0 %v6387
    %6484 = vmatpush1.msra.mxu0 %v6386
    %6485 = vmatprep.subr.mxu0 %v6390
    %6486 = vmatpush1.msra.mxu0 %v6389
    %6487 = vmatprep.subr.mxu0 %v6393
    %6488 = vmatpush1.msra.mxu0 %v6392
    %6489 = vmatprep.subr.mxu0 %v6396
    %6490 = vmatpush1.msra.mxu0 %v6395
    %6491 = vmatprep.subr.mxu0 %v6399
    %6492 = vmatpush1.msra.mxu0 %v6398
    %6493 = vmatprep.subr.mxu0 %v6402
    %6494 = vmatpush1.msra.mxu0 %v6401
    %6495 = vmatprep.subr.mxu0 %v6405
    %6496 = vmatpush1.msra.mxu0 %v6404
    %6497 = vmatprep.subr.mxu0 %v6408
    %6498 = vmatpush1.msra.mxu0 %v6407
    %6499 = vmatprep.subr.mxu0 %v6411
    %6500 = vmatpush1.msra.mxu0 %v6410
    %6501 = vmatprep.subr.mxu0 %v6414
    %6502 = vmatpush1.msra.mxu0 %v6413
    %6503 = vmatprep.subr.mxu0 %v6417
    %6504 = vmatpush1.msra.mxu0 %v6416
    %6505 = vmatprep.subr.mxu0 %v6420
    %6506 = vmatpush1.msra.mxu0 %v6419
    %6507 = vmatprep.subr.mxu0 %v6423
    %6508 = vmatpush1.msra.mxu0 %v6422
    %6509 = vmatprep.subr.mxu0 %v6426
    %6510 = vmatpush1.msra.mxu0 %v6425
    %6511 = vmatprep.subr.mxu0 %v6429
    %6512 = vmatpush1.msra.mxu0 %v6428
    %6513 = vmatprep.subr.mxu0 %v6432
    %6514 = vmatpush1.msra.mxu0 %v6431
    %6515 = vmatprep.mubr.f32.mxu0 %v4253
    %6516 = vmatmul.mubr.f32.gmra.mrb[0].mxu0 %v4252
    %v6517 = vpop.f32.mrb[0].mxu0
    %v6518 = vadd.f32 %v6439, %v6517
    %v6519 = vpop.f32.mrb[0].mxu0
    %v6520 = vadd.f32 %v6443, %v6519
    %6521 = vdwg.mxu0
    %6522 = vmatprep.subr.mxu0 0.0
    %6523 = vmatpush1.msra.mxu0 %v6340
    %6524 = vmatprep.subr.mxu0 0.0
    %6525 = vmatpush1.msra.mxu0 %v6343
    %6526 = vmatprep.subr.mxu0 0.0
    %6527 = vmatpush1.msra.mxu0 %v6346
    %6528 = vmatprep.subr.mxu0 0.0
    %6529 = vmatpush1.msra.mxu0 %v6349
    %6530 = vmatprep.subr.mxu0 0.0
    %6531 = vmatpush1.msra.mxu0 %v6352
    %6532 = vmatprep.subr.mxu0 0.0
    %6533 = vmatpush1.msra.mxu0 %v6355
    %6534 = vmatprep.subr.mxu0 0.0
    %6535 = vmatpush1.msra.mxu0 %v6358
    %6536 = vmatprep.subr.mxu0 0.0
    %6537 = vmatpush1.msra.mxu0 %v6361
    %6538 = vmatprep.subr.mxu0 0.0
    %6539 = vmatpush1.msra.mxu0 %v6364
    %6540 = vmatprep.subr.mxu0 0.0
    %6541 = vmatpush1.msra.mxu0 %v6367
    %6542 = vmatprep.subr.mxu0 0.0
    %6543 = vmatpush1.msra.mxu0 %v6370
    %6544 = vmatprep.subr.mxu0 0.0
    %6545 = vmatpush1.msra.mxu0 %v6373
    %6546 = vmatprep.subr.mxu0 0.0
    %6547 = vmatpush1.msra.mxu0 %v6376
    %6548 = vmatprep.subr.mxu0 0.0
    %6549 = vmatpush1.msra.mxu0 %v6379
    %6550 = vmatprep.subr.mxu0 0.0
    %6551 = vmatpush1.msra.mxu0 %v6382
    %6552 = vmatprep.subr.mxu0 0.0
    %6553 = vmatpush1.msra.mxu0 %v6385
    %6554 = vmatprep.subr.mxu0 0.0
    %6555 = vmatpush1.msra.mxu0 %v6388
    %6556 = vmatprep.subr.mxu0 0.0
    %6557 = vmatpush1.msra.mxu0 %v6391
    %6558 = vmatprep.subr.mxu0 0.0
    %6559 = vmatpush1.msra.mxu0 %v6394
    %6560 = vmatprep.subr.mxu0 0.0
    %6561 = vmatpush1.msra.mxu0 %v6397
    %6562 = vmatprep.subr.mxu0 0.0
    %6563 = vmatpush1.msra.mxu0 %v6400
    %6564 = vmatprep.subr.mxu0 0.0
    %6565 = vmatpush1.msra.mxu0 %v6403
    %6566 = vmatprep.subr.mxu0 0.0
    %6567 = vmatpush1.msra.mxu0 %v6406
    %6568 = vmatprep.subr.mxu0 0.0
    %6569 = vmatpush1.msra.mxu0 %v6409
    %6570 = vmatprep.subr.mxu0 0.0
    %6571 = vmatpush1.msra.mxu0 %v6412
    %6572 = vmatprep.subr.mxu0 0.0
    %6573 = vmatpush1.msra.mxu0 %v6415
    %6574 = vmatprep.subr.mxu0 0.0
    %6575 = vmatpush1.msra.mxu0 %v6418
    %6576 = vmatprep.subr.mxu0 0.0
    %6577 = vmatpush1.msra.mxu0 %v6421
    %6578 = vmatprep.subr.mxu0 0.0
    %6579 = vmatpush1.msra.mxu0 %v6424
    %6580 = vmatprep.subr.mxu0 0.0
    %6581 = vmatpush1.msra.mxu0 %v6427
    %6582 = vmatprep.subr.mxu0 0.0
    %6583 = vmatpush1.msra.mxu0 %v6430
    %6584 = vmatprep.subr.mxu0 0.0
    %6585 = vmatpush1.msra.mxu0 %v6433
    %6586 = vmatprep.mubr.f32.mxu0 %v4253
    %6587 = vmatmul.mubr.f32.gmra.mrb[0].mxu0 %v4252
    %v6588 = vpop.f32.mrb[0].mxu0
    %v6589 = vadd.f32 %v6447, %v6588
    %v6590 = vpop.f32.mrb[0].mxu0
    %6591 = vdwg.mxu0
    %v6592 = vxor.u32 %v6518, 2147483648
    %v6593 = vmul.f32 %v6592, 1.442695
    %v6594 = vpow.pop %v6593
    %v6595 = vadd.f32 %v6594, 1.0
    %v6596 = vrcp.pop %v6595
    %v6597 = vmul.f32 1.0, %v6596
    %v6598 = vxor.u32 %v6520, 2147483648
    %v6599 = vmul.f32 %v6598, 1.442695
    %v6600 = vpow.pop %v6599
    %v6601 = vadd.f32 %v6600, 1.0
    %v6602 = vrcp.pop %v6601
    %v6603 = vmul.f32 1.0, %v6602
    %v6604 = vld [vmem:[%s14] sm:$0x1]
    %v6606 = vlaneseq
    %v6607 = vshrl.u32 %v6606, 7
    %v6608 = vsub.s32 0, %v6607
    %v6609 = vrot.slane %v6604, %v6608
    %v6611 = vmul.f32 %v6597, %v6609
    %v6612 = vadd.f32 %v6589, %v6611
    %v6613 = vtanh.pop %v6612
    %v6614 = vmul.f32 %v6603, %v6613
    %v6615 = vsub.f32 %v6613, %v6614
    %v6616 = vld [vmem:[#allocation4] sm:$0xff]
    %v6617 = vld [vmem:[#allocation15] sm:$0xff]
    %v6618 = vld [vmem:[#allocation15 + $0x8] sm:$0xff]
    %v6619 = vld [vmem:[#allocation15 + $0x10] sm:$0xff]
    %v6620 = vld [vmem:[#allocation15 + $0x18] sm:$0xff]
    %v6621 = vld [vmem:[#allocation15 + $0x20] sm:$0xff]
    %v6622 = vld [vmem:[#allocation15 + $0x28] sm:$0xff]
    %v6623 = vld [vmem:[#allocation15 + $0x30] sm:$0xff]
    %v6624 = vld [vmem:[#allocation15 + $0x38] sm:$0xff]
    %v6625 = vld [vmem:[#allocation15 + $0x40] sm:$0xff]
    %v6626 = vld [vmem:[#allocation15 + $0x48] sm:$0xff]
    %v6627 = vld [vmem:[#allocation15 + $0x50] sm:$0xff]
    %v6628 = vld [vmem:[#allocation15 + $0x58] sm:$0xff]
    %v6629 = vld [vmem:[#allocation15 + $0x60] sm:$0xff]
    %v6630 = vld [vmem:[#allocation15 + $0x68] sm:$0xff]
    %v6631 = vld [vmem:[#allocation15 + $0x70] sm:$0xff]
    %v6632 = vld [vmem:[#allocation15 + $0x78] sm:$0xff]
    %v6633 = vld [vmem:[#allocation15 + $0x80] sm:$0xff]
    %v6634 = vld [vmem:[#allocation15 + $0x88] sm:$0xff]
    %v6635 = vld [vmem:[#allocation15 + $0x90] sm:$0xff]
    %v6636 = vld [vmem:[#allocation15 + $0x98] sm:$0xff]
    %v6637 = vld [vmem:[#allocation15 + $0xa0] sm:$0xff]
    %v6638 = vld [vmem:[#allocation15 + $0xa8] sm:$0xff]
    %v6639 = vld [vmem:[#allocation15 + $0xb0] sm:$0xff]
    %v6640 = vld [vmem:[#allocation15 + $0xb8] sm:$0xff]
    %v6641 = vld [vmem:[#allocation15 + $0xc0] sm:$0xff]
    %v6642 = vld [vmem:[#allocation15 + $0xc8] sm:$0xff]
    %v6643 = vld [vmem:[#allocation15 + $0xd0] sm:$0xff]
    %v6644 = vld [vmem:[#allocation15 + $0xd8] sm:$0xff]
    %v6645 = vld [vmem:[#allocation15 + $0xe0] sm:$0xff]
    %v6646 = vld [vmem:[#allocation15 + $0xe8] sm:$0xff]
    %v6647 = vld [vmem:[#allocation15 + $0xf0] sm:$0xff]
    %v6648 = vld [vmem:[#allocation15 + $0xf8] sm:$0xff]
    %6649 = vmatprep.subr.mxu0 0.0
    %6650 = vmatpush1.msra.mxu0 %v6633
    %6651 = vmatprep.subr.mxu0 0.0
    %6652 = vmatpush1.msra.mxu0 %v6634
    %6653 = vmatprep.subr.mxu0 0.0
    %6654 = vmatpush1.msra.mxu0 %v6635
    %6655 = vmatprep.subr.mxu0 0.0
    %6656 = vmatpush1.msra.mxu0 %v6636
    %6657 = vmatprep.subr.mxu0 0.0
    %6658 = vmatpush1.msra.mxu0 %v6637
    %6659 = vmatprep.subr.mxu0 0.0
    %6660 = vmatpush1.msra.mxu0 %v6638
    %6661 = vmatprep.subr.mxu0 0.0
    %6662 = vmatpush1.msra.mxu0 %v6639
    %6663 = vmatprep.subr.mxu0 0.0
    %6664 = vmatpush1.msra.mxu0 %v6640
    %6665 = vmatprep.subr.mxu0 0.0
    %6666 = vmatpush1.msra.mxu0 %v6641
    %6667 = vmatprep.subr.mxu0 0.0
    %6668 = vmatpush1.msra.mxu0 %v6642
    %6669 = vmatprep.subr.mxu0 0.0
    %6670 = vmatpush1.msra.mxu0 %v6643
    %6671 = vmatprep.subr.mxu0 0.0
    %6672 = vmatpush1.msra.mxu0 %v6644
    %6673 = vmatprep.subr.mxu0 0.0
    %6674 = vmatpush1.msra.mxu0 %v6645
    %6675 = vmatprep.subr.mxu0 0.0
    %6676 = vmatpush1.msra.mxu0 %v6646
    %6677 = vmatprep.subr.mxu0 0.0
    %6678 = vmatpush1.msra.mxu0 %v6647
    %6679 = vmatprep.subr.mxu0 0.0
    %6680 = vmatpush1.msra.mxu0 %v6648
    %6681 = vmatprep.subr.mxu0 0.0
    %6682 = vmatpush1.msra.mxu0 0.0
    %6683 = vmatprep.subr.mxu0 0.0
    %6684 = vmatpush1.msra.mxu0 0.0
    %6685 = vmatprep.subr.mxu0 0.0
    %6686 = vmatpush1.msra.mxu0 0.0
    %6687 = vmatprep.subr.mxu0 0.0
    %6688 = vmatpush1.msra.mxu0 0.0
    %6689 = vmatprep.subr.mxu0 0.0
    %6690 = vmatpush1.msra.mxu0 0.0
    %6691 = vmatprep.subr.mxu0 0.0
    %6692 = vmatpush1.msra.mxu0 0.0
    %6693 = vmatprep.subr.mxu0 0.0
    %6694 = vmatpush1.msra.mxu0 0.0
    %6695 = vmatprep.subr.mxu0 0.0
    %6696 = vmatpush1.msra.mxu0 0.0
    %6697 = vmatprep.subr.mxu0 0.0
    %6698 = vmatpush1.msra.mxu0 0.0
    %6699 = vmatprep.subr.mxu0 0.0
    %6700 = vmatpush1.msra.mxu0 0.0
    %6701 = vmatprep.subr.mxu0 0.0
    %6702 = vmatpush1.msra.mxu0 0.0
    %6703 = vmatprep.subr.mxu0 0.0
    %6704 = vmatpush1.msra.mxu0 0.0
    %6705 = vmatprep.subr.mxu0 0.0
    %6706 = vmatpush1.msra.mxu0 0.0
    %6707 = vmatprep.subr.mxu0 0.0
    %6708 = vmatpush1.msra.mxu0 0.0
    %6709 = vmatprep.subr.mxu0 0.0
    %6710 = vmatpush1.msra.mxu0 0.0
    %6711 = vmatprep.subr.mxu0 0.0
    %6712 = vmatpush1.msra.mxu0 0.0
    %6713 = vmatprep.mubr.f32.mxu0 0.0
    %6714 = vmatmul.mubr.f32.gmra.mrb[0].mxu0 %v6615
    %v6715 = vpop.f32.mrb[0].mxu0
    %v6716 = vadd.f32 0.0, %v6715
    %v6717 = vpop.f32.mrb[0].mxu0
    %6718 = vdwg.mxu0
    %6719 = vmatprep.subr.mxu0 0.0
    %6720 = vmatpush1.msra.mxu0 %v6617
    %6721 = vmatprep.subr.mxu0 0.0
    %6722 = vmatpush1.msra.mxu0 %v6618
    %6723 = vmatprep.subr.mxu0 0.0
    %6724 = vmatpush1.msra.mxu0 %v6619
    %6725 = vmatprep.subr.mxu0 0.0
    %6726 = vmatpush1.msra.mxu0 %v6620
    %6727 = vmatprep.subr.mxu0 0.0
    %6728 = vmatpush1.msra.mxu0 %v6621
    %6729 = vmatprep.subr.mxu0 0.0
    %6730 = vmatpush1.msra.mxu0 %v6622
    %6731 = vmatprep.subr.mxu0 0.0
    %6732 = vmatpush1.msra.mxu0 %v6623
    %6733 = vmatprep.subr.mxu0 0.0
    %6734 = vmatpush1.msra.mxu0 %v6624
    %6735 = vmatprep.subr.mxu0 0.0
    %6736 = vmatpush1.msra.mxu0 %v6625
    %6737 = vmatprep.subr.mxu0 0.0
    %6738 = vmatpush1.msra.mxu0 %v6626
    %6739 = vmatprep.subr.mxu0 0.0
    %6740 = vmatpush1.msra.mxu0 %v6627
    %6741 = vmatprep.subr.mxu0 0.0
    %6742 = vmatpush1.msra.mxu0 %v6628
    %6743 = vmatprep.subr.mxu0 0.0
    %6744 = vmatpush1.msra.mxu0 %v6629
    %6745 = vmatprep.subr.mxu0 0.0
    %6746 = vmatpush1.msra.mxu0 %v6630
    %6747 = vmatprep.subr.mxu0 0.0
    %6748 = vmatpush1.msra.mxu0 %v6631
    %6749 = vmatprep.subr.mxu0 0.0
    %6750 = vmatpush1.msra.mxu0 %v6632
    %6751 = vmatprep.subr.mxu0 0.0
    %6752 = vmatpush1.msra.mxu0 0.0
    %6753 = vmatprep.subr.mxu0 0.0
    %6754 = vmatpush1.msra.mxu0 0.0
    %6755 = vmatprep.subr.mxu0 0.0
    %6756 = vmatpush1.msra.mxu0 0.0
    %6757 = vmatprep.subr.mxu0 0.0
    %6758 = vmatpush1.msra.mxu0 0.0
    %6759 = vmatprep.subr.mxu0 0.0
    %6760 = vmatpush1.msra.mxu0 0.0
    %6761 = vmatprep.subr.mxu0 0.0
    %6762 = vmatpush1.msra.mxu0 0.0
    %6763 = vmatprep.subr.mxu0 0.0
    %6764 = vmatpush1.msra.mxu0 0.0
    %6765 = vmatprep.subr.mxu0 0.0
    %6766 = vmatpush1.msra.mxu0 0.0
    %6767 = vmatprep.subr.mxu0 0.0
    %6768 = vmatpush1.msra.mxu0 0.0
    %6769 = vmatprep.subr.mxu0 0.0
    %6770 = vmatpush1.msra.mxu0 0.0
    %6771 = vmatprep.subr.mxu0 0.0
    %6772 = vmatpush1.msra.mxu0 0.0
    %6773 = vmatprep.subr.mxu0 0.0
    %6774 = vmatpush1.msra.mxu0 0.0
    %6775 = vmatprep.subr.mxu0 0.0
    %6776 = vmatpush1.msra.mxu0 0.0
    %6777 = vmatprep.subr.mxu0 0.0
    %6778 = vmatpush1.msra.mxu0 0.0
    %6779 = vmatprep.subr.mxu0 0.0
    %6780 = vmatpush1.msra.mxu0 0.0
    %6781 = vmatprep.subr.mxu0 0.0
    %6782 = vmatpush1.msra.mxu0 0.0
    %6783 = vmatprep.mubr.f32.mxu0 0.0
    %6784 = vmatmul.mubr.f32.gmra.mrb[0].mxu0 %v6616
    %v6785 = vpop.f32.mrb[0].mxu0
    %v6786 = vadd.f32 %v6716, %v6785
    %v6787 = vpop.f32.mrb[0].mxu0
    %6788 = vdwg.mxu0
    %v6789 = vld [vmem:[%s16] sm:$0x1]
    %v6791 = vlaneseq
    %v6792 = vshrl.u32 %v6791, 7
    %v6793 = vsub.s32 0, %v6792
    %v6794 = vrot.slane %v6789, %v6793
    %v6796 = vadd.f32 %v6786, %v6794
    %6797 = vst [vmem:[#allocation17] sm:$0xff] %v6796
    // Predicated region
    $region94: #{tpu_custom_call.1} parent=1 // pred_check
      _
    $region95: #{tpu_custom_call.1} parent=1 // pred_check_branch
      %6799 = sbr.rel (0) target = $region97
    $region96: #{tpu_custom_call.1} parent=1 // pred_region
      %s6801 = ssub.s32 128, 128
      %6802 = vsyncadd [#allocation8], %s6801
      %s6804 = sshll.u32 [#allocation17], 4
      %s6805 = int_to_ptr.vmem [resolvable:$true] %s6804
      %6807 = dma.vmem_to_hbm [thread:$0]  %s6805, 128, %s17, [#allocation8]
    $region97: #{tpu_custom_call.1} parent=1 // pred_fallthru
      _
    // Predicated region
    $region98: #{tpu_custom_call.1} parent=1 // pred_check
      _
    $region99: #{tpu_custom_call.1} parent=1 // pred_check_branch
      %6809 = sbr.rel (0) target = $region101
    $region100: #{tpu_custom_call.1} parent=1 // pred_region
      %6810 = dma.done [#allocation8], 128
    $region101: #{tpu_custom_call.1} parent=1 // pred_fallthru
      _
    %6811 = vsyncpa [#allocation7], 1
    %6812 = vsyncpa [#allocation10], 1
    %6813 = vsyncpa [#allocation13], 1
    %6814 = vsyncpa [#allocation16], 1
    %6815 = vsyncpa [#allocation8], 1

</llo_original>
